<compile_context>
chip_gen: v7x
topology: tpu7x:2x2x1
jax: 0.10.0
libtpu: 0.0.40
codegen_flags: <defaults>
</compile_context>

<pallas_src>
import functools

import numpy as np

import jax
import jax.numpy as jnp
from jax import lax
from jax.experimental import pallas as pl
from jax.experimental.pallas import tpu as pltpu

EPS = 1e-5


# --------------------------------------------------------------------------
# Per-block compute (runs entirely on VMEM/vreg-resident values)
# --------------------------------------------------------------------------

def _apply_block(x, p, cfg):
    """x: (T, Cin) f32 activation; p: dict name -> Ref; returns (To, Cout) f32."""
    f32, bf16 = jnp.float32, jnp.bfloat16
    heads, dh = cfg['heads'], cfg['dh']
    hd = heads * dh

    # --- contraction 1x1 conv (BN scale folded into weight) + bias + ReLU ----
    y = jnp.dot(x.astype(bf16), p['wc'][...], preferred_element_type=f32) + p['c_b'][...]
    y = jnp.maximum(y, 0.0)                                    # (T, bott)

    # --- fused qkv projection -------------------------------------------------
    # q columns carry dh^-0.5, v columns carry the post-attention BN scale
    # (both folded at parameter-build time).
    qkv = jnp.dot(y.astype(bf16), p['wqkv'][...], preferred_element_type=f32)
    q = qkv[:, 0:hd]
    k = qkv[:, hd:2 * hd]
    v = qkv[:, 2 * hd:3 * hd]

    # spatially-transposed q (token permutation as a constant matmul) used by
    # the second relative-position term.
    q_perm = jnp.dot(p['perm'][...], q.astype(bf16), preferred_element_type=f32)

    def split_heads(z):                                        # (T, hd) -> (heads, T, dh)
        return jnp.concatenate(
            [z[:, h_i * dh:(h_i + 1) * dh][None] for h_i in range(heads)], axis=0)

    qh, kh, vh = split_heads(q), split_heads(k), split_heads(v)
    qph = split_heads(q_perm)

    # --- heads-batched content logits on the MXU: (heads, T, T) ---------------
    # TODO(synk): on v5e a VPU outer-product formulation (K=dh is tiny) may beat
    # the MXU path; kept batched-MXU which is preferred on v6e/v7x.
    s = lax.dot_general(qh.astype(bf16), kh.astype(bf16),
                        (((2,), (2,)), ((0,), (0,))),
                        preferred_element_type=f32)

    # relative-position bias for all heads at once; aw/ah loads hoisted out of
    # the head axis (they are head-invariant).  dh is tiny -> a few broadcast
    # mul-adds on the VPU.
    for c in range(dh):
        s = s + qh[:, :, c:c + 1] * p['aw'][c][None]
        s = s + qph[:, :, c:c + 1] * p['ah'][c][None]

    # --- batched softmax over keys --------------------------------------------
    m = jnp.max(s, axis=-1, keepdims=True)
    e = jnp.exp(s - m)
    attn = e * pl.reciprocal(jnp.sum(e, axis=-1, keepdims=True), approx=True)

    # --- heads-batched attn @ V: (heads, T, dh) --------------------------------
    out_h = lax.dot_general(attn.astype(bf16), vh.astype(bf16),
                            (((2,), (1,)), ((0,), (0,))),
                            preferred_element_type=f32)

    # channel layout h*dh + d, matching 'b h (x y) d -> b (h d) x y'.
    att = jnp.concatenate([out_h[h_i] for h_i in range(heads)], axis=-1)  # (T, hd)

    # --- AvgPool2d(2,2) as a constant matmul -----------------------------------
    # (linear per channel, so the BN scale folded into v commutes with it)
    if cfg['pooling']:
        att = jnp.dot(p['pool'][...], att.astype(bf16), preferred_element_type=f32)
    att = jnp.maximum(att + p['bn_b'][...], 0.0)               # (To, hd)

    # --- expansion 1x1 conv (BN scale folded) + bias ----------------------------
    main = jnp.dot(att.astype(bf16), p['we'][...], preferred_element_type=f32) + p['e_b'][...]

    # --- shortcut ---------------------------------------------------------------
    if cfg['shortcut']:
        xs = x
        if cfg['pooling']:
            # stride-2 token selection as a constant matmul (no in-kernel gather)
            xs = jnp.dot(p['sel'][...], x.astype(bf16), preferred_element_type=f32)
        sc = jnp.dot(xs.astype(bf16), p['ws'][...], preferred_element_type=f32) + p['s_b'][...]
        sc = jnp.maximum(sc, 0.0)
    else:
        sc = x

    # TODO(synk): no post-add activation, matching the previously-validated forward.
    return main + sc


def _botnet_stack_kernel(*refs, block_cfgs):
    x_ref = refs[0]
    o_ref = refs[-1]
    act = x_ref[0]                                             # (T0, Cin0) f32
    pos = 1
    for cfg in block_cfgs:
        n = len(cfg['names'])
        prm = dict(zip(cfg['names'], refs[pos:pos + n]))
        pos += n
        act = _apply_block(act, prm, cfg)
    o_ref[0] = act.astype(o_ref.dtype)


# --------------------------------------------------------------------------
# Parameter construction (deterministic, same random draws as before)
# --------------------------------------------------------------------------

def _conv_bn_folded(key, in_ch, out_ch):
    k1, k2, k3, k4, k5 = jax.random.split(key, 5)
    w = jax.random.normal(k1, (out_ch, in_ch), jnp.float32) * 0.1
    gamma = 1.0 + 0.1 * jax.random.normal(k2, (out_ch,), jnp.float32)
    beta = 0.1 * jax.random.normal(k3, (out_ch,), jnp.float32)
    mean = 0.05 * jax.random.normal(k4, (out_ch,), jnp.float32)
    var = 1.0 + 0.1 * jnp.abs(jax.random.normal(k5, (out_ch,), jnp.float32))
    scale = gamma / jnp.sqrt(var + EPS)
    bias = beta - mean * scale
    # (K, N) layout; BN scale folded into the f32 weight before the bf16 cast.
    w_folded = (jnp.transpose(w) * scale[None, :]).astype(jnp.bfloat16)
    return w_folded, bias.reshape(1, out_ch)


def _bn_params(key, ch):
    k1, k2, k3, k4 = jax.random.split(key, 4)
    gamma = 1.0 + 0.1 * jax.random.normal(k1, (ch,), jnp.float32)
    beta = 0.1 * jax.random.normal(k2, (ch,), jnp.float32)
    mean = 0.05 * jax.random.normal(k3, (ch,), jnp.float32)
    var = 1.0 + 0.1 * jnp.abs(jax.random.normal(k4, (ch,), jnp.float32))
    scale = gamma / jnp.sqrt(var + EPS)
    bias = beta - mean * scale
    return scale, bias


def make_block_params(key, in_ch, fmap, out_ch, proj_factor, heads, dim_head, pooling):
    h, w = fmap
    # TODO(synk): like the reference expand_emb path, this assumes square maps.
    assert h == w, "relative position path requires a square feature map"
    T = h * w
    bott = out_ch // proj_factor
    dh = bott // heads if dim_head is None else dim_head
    hd = heads * dh
    mhsa_out = bott if dim_head is None else dim_head * heads
    assert mhsa_out == hd
    keys = jax.random.split(key, 7)
    p = {}

    p['wc'], p['c_b'] = _conv_bn_folded(keys[0], in_ch, bott)

    # post-attention BatchNorm: scale folded into the v columns, bias kept.
    bn_s, bn_b = _bn_params(keys[4], mhsa_out)
    p['bn_b'] = bn_b.reshape(1, mhsa_out)

    # qkv weight: same draws as before, columns permuted to [q|k|v], head-major,
    # d-minor so heads can be split with static lane slices.  dh^-0.5 folded
    # into the q columns, BN scale folded into the v columns.
    w_qkv = jax.random.normal(keys[1], (hd * 3, bott), jnp.float32) * 0.1
    idx = np.empty(3 * hd, np.int32)
    for k_i in range(3):
        for h_i in range(heads):
            for d_i in range(dh):
                idx[k_i * hd + h_i * dh + d_i] = d_i * 3 * heads + k_i * heads + h_i
    col_scale = jnp.concatenate([
        jnp.full((hd,), float(dh) ** -0.5, jnp.float32),
        jnp.ones((hd,), jnp.float32),
        bn_s])
    p['wqkv'] = (w_qkv[idx, :].T * col_scale[None, :]).astype(jnp.bfloat16)  # (bott, 3*hd)

    # relative position embeddings (UNscaled: dh^-0.5 now lives in the q columns,
    # keeping the overall positional-term scaling identical to the previous
    # validated forward) expanded to dense (dh, T, T) coefficient tensors.
    rel_w = jax.random.normal(keys[2], (2 * h - 1, dh), jnp.float32)
    rel_h = jax.random.normal(keys[3], (2 * w - 1, dh), jnp.float32)
    t = np.arange(T)
    y1 = (t % w)[:, None]
    y2 = (t % w)[None, :]
    idx_w = w - 1 + y2 - y1                                    # (T, T) in [0, 2w-2]
    idx_h = h - 1 + y2 - y1
    p['aw'] = jnp.transpose(jnp.take(rel_w, jnp.asarray(idx_w), axis=0), (2, 0, 1))  # (dh,T,T)
    p['ah'] = jnp.transpose(jnp.take(rel_h, jnp.asarray(idx_h), axis=0), (2, 0, 1))  # (dh,T,T)

    # spatial-transpose token permutation: q_perm[x*w+y] = q[y*w+x]
    perm = np.zeros((T, T), np.float32)
    perm[t, (t % w) * w + (t // w)] = 1.0
    p['perm'] = jnp.asarray(perm, jnp.bfloat16)

    p['we'], p['e_b'] = _conv_bn_folded(keys[5], mhsa_out, out_ch)

    if pooling:
        Ho, Wo = h // 2, w // 2
        To = Ho * Wo
        pool = np.zeros((To, T), np.float32)
        sel = np.zeros((To, T), np.float32)
        for xo in range(Ho):
            for yo in range(Wo):
                sel[xo * Wo + yo, (2 * xo) * w + (2 * yo)] = 1.0
                for dx in range(2):
                    for dy in range(2):
                        pool[xo * Wo + yo, (2 * xo + dx) * w + (2 * yo + dy)] = 0.25
        p['pool'] = jnp.asarray(pool, jnp.bfloat16)
        p['sel'] = jnp.asarray(sel, jnp.bfloat16)
    else:
        Ho, Wo, To = h, w, T

    has_shortcut = pooling or in_ch != out_ch
    if has_shortcut:
        p['ws'], p['s_b'] = _conv_bn_folded(keys[6], in_ch, out_ch)

    p['cfg'] = dict(heads=heads, dh=dh, pooling=pooling, shortcut=has_shortcut,
                    fmap=fmap, out_fmap=(Ho, Wo), in_ch=in_ch, out_ch=out_ch,
                    bott=bott, T=T, To=To)
    return p


def build_module_params(key, *, in_channels, fmap_size, out_channels, proj_factor,
                        heads, dim_head, pooling, num_layers):
    blocks = []
    keys = jax.random.split(key, num_layers)
    feat_map = fmap_size
    for i in range(num_layers):
        if i == 0:
            feat_map = fmap_size
            pool = bool(pooling)
        else:
            pool = False
            if pooling:
                in_channels = out_channels
                feat_map = (fmap_size[0] // 2, fmap_size[1] // 2)
        blocks.append(make_block_params(keys[i], in_channels, feat_map, out_channels,
                                        proj_factor, heads, dim_head, pool))
    return blocks


# --------------------------------------------------------------------------
# Forward pass: one fused pallas_call for the whole stack
# --------------------------------------------------------------------------

def _rep_spec(a):
    n = a.ndim
    return pl.BlockSpec(a.shape, lambda b, n=n: (0,) * n)


_BLOCK_PARAM_ORDER_BASE = ('wc', 'c_b', 'wqkv', 'aw', 'ah', 'perm', 'bn_b', 'we', 'e_b')


def botnet_stack_forward(blocks, x_nchw):
    """x_nchw: (B, Cin, H, W) f32 -> (B, Cout, Ho, Wo) f32, all blocks fused."""
    B = x_nchw.shape[0]
    x = jnp.transpose(x_nchw, (0, 2, 3, 1))                    # NCHW -> NHWC
    H, W, C = x.shape[1], x.shape[2], x.shape[3]
    x = x.reshape(B, H * W, C)                                 # token-major

    c0 = blocks[0]['cfg']
    cl = blocks[-1]['cfg']
    T0, Cin0 = c0['T'], c0['in_ch']
    To, Cout = cl['To'], cl['out_ch']
    Ho, Wo = cl['out_fmap']

    args = [x]
    in_specs = [pl.BlockSpec((1, T0, Cin0), lambda b: (b, 0, 0))]
    block_cfgs = []
    for p in blocks:
        cfg = p['cfg']
        names = list(_BLOCK_PARAM_ORDER_BASE)
        if cfg['pooling']:
            names.append('pool')
        if cfg['shortcut']:
            if cfg['pooling']:
                names.append('sel')
            names += ['ws', 's_b']
        for nm in names:
            args.append(p[nm])
            in_specs.append(_rep_spec(p[nm]))
        block_cfgs.append(dict(heads=cfg['heads'], dh=cfg['dh'],
                               pooling=cfg['pooling'], shortcut=cfg['shortcut'],
                               names=tuple(names)))

    kernel = functools.partial(_botnet_stack_kernel, block_cfgs=tuple(block_cfgs))

    # NOTE: final output slab is tiny (To*Cout f32 per step), so no lane-dense
    # repacking is done; fusion already removed all intermediate HBM stores.
    out = pl.pallas_call(
        kernel,
        out_shape=jax.ShapeDtypeStruct((B, To, Cout), jnp.float32),
        grid=(B,),
        in_specs=in_specs,
        out_specs=pl.BlockSpec((1, To, Cout), lambda b: (b, 0, 0)),
        compiler_params=pltpu.CompilerParams(
            dimension_semantics=("parallel",)),
    )(*args)

    return jnp.transpose(out.reshape(B, Ho, Wo, Cout), (0, 3, 1, 2))   # -> NCHW


# --------------------------------------------------------------------------
# Main
# --------------------------------------------------------------------------

if __name__ == "__main__":
    key = jax.random.PRNGKey(0)
    k_params, k_x = jax.random.split(key)

    cfg = dict(in_channels=8, fmap_size=(8, 8), out_channels=32, proj_factor=4,
               heads=4, dim_head=None, pooling=True, num_layers=3)
    params = build_module_params(k_params, **cfg)

    # NCHW input, matching the PyTorch module's convention.
    x = jax.random.normal(k_x, (2, 8, 8, 8), jnp.float32)

    fwd = jax.jit(lambda xx: botnet_stack_forward(params, xx))
    y = fwd(x)
    jax.block_until_ready(y)
    assert y.shape == (2, 32, 4, 4), y.shape
    print("KERNEL_OK")
</pallas_src>

<mosaic_0001>
module attributes {stable_mosaic.version = 11 : i64} {
  func.func @_botnet_stack_kernel(%arg0: i32, %arg1: memref<1x64x8xf32, #tpu.memory_space<vmem>>, %arg2: memref<8x8xbf16, #tpu.memory_space<vmem>>, %arg3: memref<1x8xf32, #tpu.memory_space<vmem>>, %arg4: memref<8x24xbf16, #tpu.memory_space<vmem>>, %arg5: memref<2x64x64xf32, #tpu.memory_space<vmem>>, %arg6: memref<2x64x64xf32, #tpu.memory_space<vmem>>, %arg7: memref<64x64xbf16, #tpu.memory_space<vmem>>, %arg8: memref<1x8xf32, #tpu.memory_space<vmem>>, %arg9: memref<8x32xbf16, #tpu.memory_space<vmem>>, %arg10: memref<1x32xf32, #tpu.memory_space<vmem>>, %arg11: memref<16x64xbf16, #tpu.memory_space<vmem>>, %arg12: memref<16x64xbf16, #tpu.memory_space<vmem>>, %arg13: memref<8x32xbf16, #tpu.memory_space<vmem>>, %arg14: memref<1x32xf32, #tpu.memory_space<vmem>>, %arg15: memref<32x8xbf16, #tpu.memory_space<vmem>>, %arg16: memref<1x8xf32, #tpu.memory_space<vmem>>, %arg17: memref<8x24xbf16, #tpu.memory_space<vmem>>, %arg18: memref<2x16x16xf32, #tpu.memory_space<vmem>>, %arg19: memref<2x16x16xf32, #tpu.memory_space<vmem>>, %arg20: memref<16x16xbf16, #tpu.memory_space<vmem>>, %arg21: memref<1x8xf32, #tpu.memory_space<vmem>>, %arg22: memref<8x32xbf16, #tpu.memory_space<vmem>>, %arg23: memref<1x32xf32, #tpu.memory_space<vmem>>, %arg24: memref<32x8xbf16, #tpu.memory_space<vmem>>, %arg25: memref<1x8xf32, #tpu.memory_space<vmem>>, %arg26: memref<8x24xbf16, #tpu.memory_space<vmem>>, %arg27: memref<2x16x16xf32, #tpu.memory_space<vmem>>, %arg28: memref<2x16x16xf32, #tpu.memory_space<vmem>>, %arg29: memref<16x16xbf16, #tpu.memory_space<vmem>>, %arg30: memref<1x8xf32, #tpu.memory_space<vmem>>, %arg31: memref<8x32xbf16, #tpu.memory_space<vmem>>, %arg32: memref<1x32xf32, #tpu.memory_space<vmem>>, %arg33: memref<1x16x32xf32, #tpu.memory_space<vmem>>) attributes {dimension_semantics = [#tpu.dimension_semantics<parallel>], iteration_bounds = array<i64: 2>, scalar_prefetch = 0 : i64, scratch_operands = 0 : i64, tpu.core_type = #tpu.core_type<tc>, window_params = [{transform_indices = @transform_0, window_bounds = array<i64: 1, 64, 8>}, {pipeline_mode = #tpu.pipeline_mode<synchronous>, transform_indices = @transform_1, window_bounds = array<i64: 8, 8>}, {pipeline_mode = #tpu.pipeline_mode<synchronous>, transform_indices = @transform_2, window_bounds = array<i64: 1, 8>}, {pipeline_mode = #tpu.pipeline_mode<synchronous>, transform_indices = @transform_3, window_bounds = array<i64: 8, 24>}, {pipeline_mode = #tpu.pipeline_mode<synchronous>, transform_indices = @transform_4, window_bounds = array<i64: 2, 64, 64>}, {pipeline_mode = #tpu.pipeline_mode<synchronous>, transform_indices = @transform_5, window_bounds = array<i64: 2, 64, 64>}, {pipeline_mode = #tpu.pipeline_mode<synchronous>, transform_indices = @transform_6, window_bounds = array<i64: 64, 64>}, {pipeline_mode = #tpu.pipeline_mode<synchronous>, transform_indices = @transform_7, window_bounds = array<i64: 1, 8>}, {pipeline_mode = #tpu.pipeline_mode<synchronous>, transform_indices = @transform_8, window_bounds = array<i64: 8, 32>}, {pipeline_mode = #tpu.pipeline_mode<synchronous>, transform_indices = @transform_9, window_bounds = array<i64: 1, 32>}, {pipeline_mode = #tpu.pipeline_mode<synchronous>, transform_indices = @transform_10, window_bounds = array<i64: 16, 64>}, {pipeline_mode = #tpu.pipeline_mode<synchronous>, transform_indices = @transform_11, window_bounds = array<i64: 16, 64>}, {pipeline_mode = #tpu.pipeline_mode<synchronous>, transform_indices = @transform_12, window_bounds = array<i64: 8, 32>}, {pipeline_mode = #tpu.pipeline_mode<synchronous>, transform_indices = @transform_13, window_bounds = array<i64: 1, 32>}, {pipeline_mode = #tpu.pipeline_mode<synchronous>, transform_indices = @transform_14, window_bounds = array<i64: 32, 8>}, {pipeline_mode = #tpu.pipeline_mode<synchronous>, transform_indices = @transform_15, window_bounds = array<i64: 1, 8>}, {pipeline_mode = #tpu.pipeline_mode<synchronous>, transform_indices = @transform_16, window_bounds = array<i64: 8, 24>}, {pipeline_mode = #tpu.pipeline_mode<synchronous>, transform_indices = @transform_17, window_bounds = array<i64: 2, 16, 16>}, {pipeline_mode = #tpu.pipeline_mode<synchronous>, transform_indices = @transform_18, window_bounds = array<i64: 2, 16, 16>}, {pipeline_mode = #tpu.pipeline_mode<synchronous>, transform_indices = @transform_19, window_bounds = array<i64: 16, 16>}, {pipeline_mode = #tpu.pipeline_mode<synchronous>, transform_indices = @transform_20, window_bounds = array<i64: 1, 8>}, {pipeline_mode = #tpu.pipeline_mode<synchronous>, transform_indices = @transform_21, window_bounds = array<i64: 8, 32>}, {pipeline_mode = #tpu.pipeline_mode<synchronous>, transform_indices = @transform_22, window_bounds = array<i64: 1, 32>}, {pipeline_mode = #tpu.pipeline_mode<synchronous>, transform_indices = @transform_23, window_bounds = array<i64: 32, 8>}, {pipeline_mode = #tpu.pipeline_mode<synchronous>, transform_indices = @transform_24, window_bounds = array<i64: 1, 8>}, {pipeline_mode = #tpu.pipeline_mode<synchronous>, transform_indices = @transform_25, window_bounds = array<i64: 8, 24>}, {pipeline_mode = #tpu.pipeline_mode<synchronous>, transform_indices = @transform_26, window_bounds = array<i64: 2, 16, 16>}, {pipeline_mode = #tpu.pipeline_mode<synchronous>, transform_indices = @transform_27, window_bounds = array<i64: 2, 16, 16>}, {pipeline_mode = #tpu.pipeline_mode<synchronous>, transform_indices = @transform_28, window_bounds = array<i64: 16, 16>}, {pipeline_mode = #tpu.pipeline_mode<synchronous>, transform_indices = @transform_29, window_bounds = array<i64: 1, 8>}, {pipeline_mode = #tpu.pipeline_mode<synchronous>, transform_indices = @transform_30, window_bounds = array<i64: 8, 32>}, {pipeline_mode = #tpu.pipeline_mode<synchronous>, transform_indices = @transform_31, window_bounds = array<i64: 1, 32>}, {transform_indices = @transform_32, window_bounds = array<i64: 1, 16, 32>}]} {
    %c0 = arith.constant 0 : index
    %c0_0 = arith.constant 0 : index
    %c0_1 = arith.constant 0 : index
    %0 = vector.load %arg1[%c0, %c0_0, %c0_1] : memref<1x64x8xf32, #tpu.memory_space<vmem>>, vector<1x64x8xf32>
    %1 = vector.shape_cast %0 : vector<1x64x8xf32> to vector<64x8xf32>
    %2 = arith.truncf %1 : vector<64x8xf32> to vector<64x8xbf16>
    %c0_2 = arith.constant 0 : index
    %c0_3 = arith.constant 0 : index
    %3 = vector.load %arg2[%c0_2, %c0_3] : memref<8x8xbf16, #tpu.memory_space<vmem>>, vector<8x8xbf16>
    %cst = arith.constant dense<0.000000e+00> : vector<64x8xf32>
    %4 = tpu.matmul %2, %3, %cst {dimension_numbers = #tpu.dot_dimension_numbers<[1], [0], [0], [1], [0, 0, 1, 1], [], []>} : vector<64x8xbf16>, vector<8x8xbf16>, vector<64x8xf32> -> vector<64x8xf32>
    %c0_4 = arith.constant 0 : index
    %c0_5 = arith.constant 0 : index
    %5 = vector.load %arg3[%c0_4, %c0_5] : memref<1x8xf32, #tpu.memory_space<vmem>>, vector<1x8xf32>
    %6 = vector.broadcast %5 : vector<1x8xf32> to vector<64x8xf32>
    %7 = arith.addf %4, %6 : vector<64x8xf32>
    %cst_6 = arith.constant 0.000000e+00 : f32
    %8 = vector.broadcast %cst_6 : f32 to vector<64x8xf32>
    %9 = arith.maximumf %7, %8 : vector<64x8xf32>
    %10 = arith.truncf %9 : vector<64x8xf32> to vector<64x8xbf16>
    %c0_7 = arith.constant 0 : index
    %c0_8 = arith.constant 0 : index
    %11 = vector.load %arg4[%c0_7, %c0_8] : memref<8x24xbf16, #tpu.memory_space<vmem>>, vector<8x24xbf16>
    %cst_9 = arith.constant dense<0.000000e+00> : vector<64x24xf32>
    %12 = tpu.matmul %10, %11, %cst_9 {dimension_numbers = #tpu.dot_dimension_numbers<[1], [0], [0], [1], [0, 0, 1, 1], [], []>} : vector<64x8xbf16>, vector<8x24xbf16>, vector<64x24xf32> -> vector<64x24xf32>
    %13 = vector.extract_strided_slice %12 {offsets = [0, 0], sizes = [64, 8], strides = [1, 1]} : vector<64x24xf32> to vector<64x8xf32>
    %14 = vector.extract_strided_slice %12 {offsets = [0, 8], sizes = [64, 8], strides = [1, 1]} : vector<64x24xf32> to vector<64x8xf32>
    %15 = vector.extract_strided_slice %12 {offsets = [0, 16], sizes = [64, 8], strides = [1, 1]} : vector<64x24xf32> to vector<64x8xf32>
    %c0_10 = arith.constant 0 : index
    %c0_11 = arith.constant 0 : index
    %16 = vector.load %arg7[%c0_10, %c0_11] : memref<64x64xbf16, #tpu.memory_space<vmem>>, vector<64x64xbf16>
    %17 = arith.truncf %13 : vector<64x8xf32> to vector<64x8xbf16>
    %cst_12 = arith.constant dense<0.000000e+00> : vector<64x8xf32>
    %18 = tpu.matmul %16, %17, %cst_12 {dimension_numbers = #tpu.dot_dimension_numbers<[1], [0], [0], [1], [0, 0, 1, 1], [], []>} : vector<64x64xbf16>, vector<64x8xbf16>, vector<64x8xf32> -> vector<64x8xf32>
    %19 = vector.extract_strided_slice %13 {offsets = [0, 0], sizes = [64, 2], strides = [1, 1]} : vector<64x8xf32> to vector<64x2xf32>
    %20 = vector.shape_cast %19 : vector<64x2xf32> to vector<1x64x2xf32>
    %21 = vector.extract_strided_slice %13 {offsets = [0, 2], sizes = [64, 2], strides = [1, 1]} : vector<64x8xf32> to vector<64x2xf32>
    %22 = vector.shape_cast %21 : vector<64x2xf32> to vector<1x64x2xf32>
    %23 = vector.extract_strided_slice %13 {offsets = [0, 4], sizes = [64, 2], strides = [1, 1]} : vector<64x8xf32> to vector<64x2xf32>
    %24 = vector.shape_cast %23 : vector<64x2xf32> to vector<1x64x2xf32>
    %25 = vector.extract_strided_slice %13 {offsets = [0, 6], sizes = [64, 2], strides = [1, 1]} : vector<64x8xf32> to vector<64x2xf32>
    %26 = vector.shape_cast %25 : vector<64x2xf32> to vector<1x64x2xf32>
    %27 = tpu.concatenate %20, %22, %24, %26 in 0 : vector<1x64x2xf32>, vector<1x64x2xf32>, vector<1x64x2xf32>, vector<1x64x2xf32> -> vector<4x64x2xf32>
    %28 = vector.extract_strided_slice %14 {offsets = [0, 0], sizes = [64, 2], strides = [1, 1]} : vector<64x8xf32> to vector<64x2xf32>
    %29 = vector.shape_cast %28 : vector<64x2xf32> to vector<1x64x2xf32>
    %30 = vector.extract_strided_slice %14 {offsets = [0, 2], sizes = [64, 2], strides = [1, 1]} : vector<64x8xf32> to vector<64x2xf32>
    %31 = vector.shape_cast %30 : vector<64x2xf32> to vector<1x64x2xf32>
    %32 = vector.extract_strided_slice %14 {offsets = [0, 4], sizes = [64, 2], strides = [1, 1]} : vector<64x8xf32> to vector<64x2xf32>
    %33 = vector.shape_cast %32 : vector<64x2xf32> to vector<1x64x2xf32>
    %34 = vector.extract_strided_slice %14 {offsets = [0, 6], sizes = [64, 2], strides = [1, 1]} : vector<64x8xf32> to vector<64x2xf32>
    %35 = vector.shape_cast %34 : vector<64x2xf32> to vector<1x64x2xf32>
    %36 = tpu.concatenate %29, %31, %33, %35 in 0 : vector<1x64x2xf32>, vector<1x64x2xf32>, vector<1x64x2xf32>, vector<1x64x2xf32> -> vector<4x64x2xf32>
    %37 = vector.extract_strided_slice %15 {offsets = [0, 0], sizes = [64, 2], strides = [1, 1]} : vector<64x8xf32> to vector<64x2xf32>
    %38 = vector.shape_cast %37 : vector<64x2xf32> to vector<1x64x2xf32>
    %39 = vector.extract_strided_slice %15 {offsets = [0, 2], sizes = [64, 2], strides = [1, 1]} : vector<64x8xf32> to vector<64x2xf32>
    %40 = vector.shape_cast %39 : vector<64x2xf32> to vector<1x64x2xf32>
    %41 = vector.extract_strided_slice %15 {offsets = [0, 4], sizes = [64, 2], strides = [1, 1]} : vector<64x8xf32> to vector<64x2xf32>
    %42 = vector.shape_cast %41 : vector<64x2xf32> to vector<1x64x2xf32>
    %43 = vector.extract_strided_slice %15 {offsets = [0, 6], sizes = [64, 2], strides = [1, 1]} : vector<64x8xf32> to vector<64x2xf32>
    %44 = vector.shape_cast %43 : vector<64x2xf32> to vector<1x64x2xf32>
    %45 = tpu.concatenate %38, %40, %42, %44 in 0 : vector<1x64x2xf32>, vector<1x64x2xf32>, vector<1x64x2xf32>, vector<1x64x2xf32> -> vector<4x64x2xf32>
    %46 = vector.extract_strided_slice %18 {offsets = [0, 0], sizes = [64, 2], strides = [1, 1]} : vector<64x8xf32> to vector<64x2xf32>
    %47 = vector.shape_cast %46 : vector<64x2xf32> to vector<1x64x2xf32>
    %48 = vector.extract_strided_slice %18 {offsets = [0, 2], sizes = [64, 2], strides = [1, 1]} : vector<64x8xf32> to vector<64x2xf32>
    %49 = vector.shape_cast %48 : vector<64x2xf32> to vector<1x64x2xf32>
    %50 = vector.extract_strided_slice %18 {offsets = [0, 4], sizes = [64, 2], strides = [1, 1]} : vector<64x8xf32> to vector<64x2xf32>
    %51 = vector.shape_cast %50 : vector<64x2xf32> to vector<1x64x2xf32>
    %52 = vector.extract_strided_slice %18 {offsets = [0, 6], sizes = [64, 2], strides = [1, 1]} : vector<64x8xf32> to vector<64x2xf32>
    %53 = vector.shape_cast %52 : vector<64x2xf32> to vector<1x64x2xf32>
    %54 = tpu.concatenate %47, %49, %51, %53 in 0 : vector<1x64x2xf32>, vector<1x64x2xf32>, vector<1x64x2xf32>, vector<1x64x2xf32> -> vector<4x64x2xf32>
    %55 = arith.truncf %27 : vector<4x64x2xf32> to vector<4x64x2xbf16>
    %56 = arith.truncf %36 : vector<4x64x2xf32> to vector<4x64x2xbf16>
    %cst_13 = arith.constant dense<0.000000e+00> : vector<4x64x64xf32>
    %57 = tpu.matmul %55, %56, %cst_13 {dimension_numbers = #tpu.dot_dimension_numbers<[2], [2], [1], [1], [0, 0, 0, 1, 1, 1], [0], [0]>} : vector<4x64x2xbf16>, vector<4x64x2xbf16>, vector<4x64x64xf32> -> vector<4x64x64xf32>
    %58 = vector.extract_strided_slice %27 {offsets = [0, 0, 0], sizes = [4, 64, 1], strides = [1, 1, 1]} : vector<4x64x2xf32> to vector<4x64x1xf32>
    %c0_14 = arith.constant 0 : index
    %c0_15 = arith.constant 0 : index
    %c0_16 = arith.constant 0 : index
    %59 = vector.load %arg5[%c0_14, %c0_15, %c0_16] : memref<2x64x64xf32, #tpu.memory_space<vmem>>, vector<1x64x64xf32>
    %60 = vector.shape_cast %59 : vector<1x64x64xf32> to vector<64x64xf32>
    %61 = vector.shape_cast %60 : vector<64x64xf32> to vector<1x64x64xf32>
    %62 = vector.broadcast %58 : vector<4x64x1xf32> to vector<4x64x64xf32>
    %63 = vector.broadcast %61 : vector<1x64x64xf32> to vector<4x64x64xf32>
    %64 = arith.mulf %62, %63 : vector<4x64x64xf32>
    %65 = arith.addf %57, %64 : vector<4x64x64xf32>
    %66 = vector.extract_strided_slice %54 {offsets = [0, 0, 0], sizes = [4, 64, 1], strides = [1, 1, 1]} : vector<4x64x2xf32> to vector<4x64x1xf32>
    %c0_17 = arith.constant 0 : index
    %c0_18 = arith.constant 0 : index
    %c0_19 = arith.constant 0 : index
    %67 = vector.load %arg6[%c0_17, %c0_18, %c0_19] : memref<2x64x64xf32, #tpu.memory_space<vmem>>, vector<1x64x64xf32>
    %68 = vector.shape_cast %67 : vector<1x64x64xf32> to vector<64x64xf32>
    %69 = vector.shape_cast %68 : vector<64x64xf32> to vector<1x64x64xf32>
    %70 = vector.broadcast %66 : vector<4x64x1xf32> to vector<4x64x64xf32>
    %71 = vector.broadcast %69 : vector<1x64x64xf32> to vector<4x64x64xf32>
    %72 = arith.mulf %70, %71 : vector<4x64x64xf32>
    %73 = arith.addf %65, %72 : vector<4x64x64xf32>
    %74 = vector.extract_strided_slice %27 {offsets = [0, 0, 1], sizes = [4, 64, 1], strides = [1, 1, 1]} : vector<4x64x2xf32> to vector<4x64x1xf32>
    %c1 = arith.constant 1 : index
    %c0_20 = arith.constant 0 : index
    %c0_21 = arith.constant 0 : index
    %75 = vector.load %arg5[%c1, %c0_20, %c0_21] : memref<2x64x64xf32, #tpu.memory_space<vmem>>, vector<1x64x64xf32>
    %76 = vector.shape_cast %75 : vector<1x64x64xf32> to vector<64x64xf32>
    %77 = vector.shape_cast %76 : vector<64x64xf32> to vector<1x64x64xf32>
    %78 = vector.broadcast %74 : vector<4x64x1xf32> to vector<4x64x64xf32>
    %79 = vector.broadcast %77 : vector<1x64x64xf32> to vector<4x64x64xf32>
    %80 = arith.mulf %78, %79 : vector<4x64x64xf32>
    %81 = arith.addf %73, %80 : vector<4x64x64xf32>
    %82 = vector.extract_strided_slice %54 {offsets = [0, 0, 1], sizes = [4, 64, 1], strides = [1, 1, 1]} : vector<4x64x2xf32> to vector<4x64x1xf32>
    %c1_22 = arith.constant 1 : index
    %c0_23 = arith.constant 0 : index
    %c0_24 = arith.constant 0 : index
    %83 = vector.load %arg6[%c1_22, %c0_23, %c0_24] : memref<2x64x64xf32, #tpu.memory_space<vmem>>, vector<1x64x64xf32>
    %84 = vector.shape_cast %83 : vector<1x64x64xf32> to vector<64x64xf32>
    %85 = vector.shape_cast %84 : vector<64x64xf32> to vector<1x64x64xf32>
    %86 = vector.broadcast %82 : vector<4x64x1xf32> to vector<4x64x64xf32>
    %87 = vector.broadcast %85 : vector<1x64x64xf32> to vector<4x64x64xf32>
    %88 = arith.mulf %86, %87 : vector<4x64x64xf32>
    %89 = arith.addf %81, %88 : vector<4x64x64xf32>
    %cst_25 = arith.constant dense<0xFF800000> : vector<4x64xf32>
    %90 = vector.multi_reduction <maximumf>, %89, %cst_25 [2] : vector<4x64x64xf32> to vector<4x64xf32>
    %91 = vector.shape_cast %90 : vector<4x64xf32> to vector<4x64x1xf32>
    %92 = vector.broadcast %91 : vector<4x64x1xf32> to vector<4x64x64xf32>
    %93 = arith.subf %89, %92 : vector<4x64x64xf32>
    %94 = math.exp %93 : vector<4x64x64xf32>
    %cst_26 = arith.constant dense<0.000000e+00> : vector<4x64xf32>
    %95 = vector.multi_reduction <add>, %94, %cst_26 [2] : vector<4x64x64xf32> to vector<4x64xf32>
    %96 = vector.shape_cast %95 : vector<4x64xf32> to vector<4x64x1xf32>
    %97 = tpu.reciprocal %96 {approx = true} : vector<4x64x1xf32> -> vector<4x64x1xf32>
    %98 = vector.broadcast %97 : vector<4x64x1xf32> to vector<4x64x64xf32>
    %99 = arith.mulf %94, %98 : vector<4x64x64xf32>
    %100 = arith.truncf %99 : vector<4x64x64xf32> to vector<4x64x64xbf16>
    %101 = arith.truncf %45 : vector<4x64x2xf32> to vector<4x64x2xbf16>
    %cst_27 = arith.constant dense<0.000000e+00> : vector<4x64x2xf32>
    %102 = tpu.matmul %100, %101, %cst_27 {dimension_numbers = #tpu.dot_dimension_numbers<[2], [1], [1], [2], [0, 0, 0, 1, 1, 2], [0], [0]>} : vector<4x64x64xbf16>, vector<4x64x2xbf16>, vector<4x64x2xf32> -> vector<4x64x2xf32>
    %103 = vector.extract_strided_slice %102 {offsets = [0, 0, 0], sizes = [1, 64, 2], strides = [1, 1, 1]} : vector<4x64x2xf32> to vector<1x64x2xf32>
    %104 = vector.shape_cast %103 : vector<1x64x2xf32> to vector<64x2xf32>
    %105 = vector.extract_strided_slice %102 {offsets = [1, 0, 0], sizes = [1, 64, 2], strides = [1, 1, 1]} : vector<4x64x2xf32> to vector<1x64x2xf32>
    %106 = vector.shape_cast %105 : vector<1x64x2xf32> to vector<64x2xf32>
    %107 = vector.extract_strided_slice %102 {offsets = [2, 0, 0], sizes = [1, 64, 2], strides = [1, 1, 1]} : vector<4x64x2xf32> to vector<1x64x2xf32>
    %108 = vector.shape_cast %107 : vector<1x64x2xf32> to vector<64x2xf32>
    %109 = vector.extract_strided_slice %102 {offsets = [3, 0, 0], sizes = [1, 64, 2], strides = [1, 1, 1]} : vector<4x64x2xf32> to vector<1x64x2xf32>
    %110 = vector.shape_cast %109 : vector<1x64x2xf32> to vector<64x2xf32>
    %111 = tpu.concatenate %104, %106, %108, %110 in 1 : vector<64x2xf32>, vector<64x2xf32>, vector<64x2xf32>, vector<64x2xf32> -> vector<64x8xf32>
    %c0_28 = arith.constant 0 : index
    %c0_29 = arith.constant 0 : index
    %112 = vector.load %arg11[%c0_28, %c0_29] : memref<16x64xbf16, #tpu.memory_space<vmem>>, vector<16x64xbf16>
    %113 = arith.truncf %111 : vector<64x8xf32> to vector<64x8xbf16>
    %cst_30 = arith.constant dense<0.000000e+00> : vector<16x8xf32>
    %114 = tpu.matmul %112, %113, %cst_30 {dimension_numbers = #tpu.dot_dimension_numbers<[1], [0], [0], [1], [0, 0, 1, 1], [], []>} : vector<16x64xbf16>, vector<64x8xbf16>, vector<16x8xf32> -> vector<16x8xf32>
    %c0_31 = arith.constant 0 : index
    %c0_32 = arith.constant 0 : index
    %115 = vector.load %arg8[%c0_31, %c0_32] : memref<1x8xf32, #tpu.memory_space<vmem>>, vector<1x8xf32>
    %116 = vector.broadcast %115 : vector<1x8xf32> to vector<16x8xf32>
    %117 = arith.addf %114, %116 : vector<16x8xf32>
    %cst_33 = arith.constant 0.000000e+00 : f32
    %118 = vector.broadcast %cst_33 : f32 to vector<16x8xf32>
    %119 = arith.maximumf %117, %118 : vector<16x8xf32>
    %120 = arith.truncf %119 : vector<16x8xf32> to vector<16x8xbf16>
    %c0_34 = arith.constant 0 : index
    %c0_35 = arith.constant 0 : index
    %121 = vector.load %arg9[%c0_34, %c0_35] : memref<8x32xbf16, #tpu.memory_space<vmem>>, vector<8x32xbf16>
    %cst_36 = arith.constant dense<0.000000e+00> : vector<16x32xf32>
    %122 = tpu.matmul %120, %121, %cst_36 {dimension_numbers = #tpu.dot_dimension_numbers<[1], [0], [0], [1], [0, 0, 1, 1], [], []>} : vector<16x8xbf16>, vector<8x32xbf16>, vector<16x32xf32> -> vector<16x32xf32>
    %c0_37 = arith.constant 0 : index
    %c0_38 = arith.constant 0 : index
    %123 = vector.load %arg10[%c0_37, %c0_38] : memref<1x32xf32, #tpu.memory_space<vmem>>, vector<1x32xf32>
    %124 = vector.broadcast %123 : vector<1x32xf32> to vector<16x32xf32>
    %125 = arith.addf %122, %124 : vector<16x32xf32>
    %c0_39 = arith.constant 0 : index
    %c0_40 = arith.constant 0 : index
    %126 = vector.load %arg12[%c0_39, %c0_40] : memref<16x64xbf16, #tpu.memory_space<vmem>>, vector<16x64xbf16>
    %127 = arith.truncf %1 : vector<64x8xf32> to vector<64x8xbf16>
    %cst_41 = arith.constant dense<0.000000e+00> : vector<16x8xf32>
    %128 = tpu.matmul %126, %127, %cst_41 {dimension_numbers = #tpu.dot_dimension_numbers<[1], [0], [0], [1], [0, 0, 1, 1], [], []>} : vector<16x64xbf16>, vector<64x8xbf16>, vector<16x8xf32> -> vector<16x8xf32>
    %129 = arith.truncf %128 : vector<16x8xf32> to vector<16x8xbf16>
    %c0_42 = arith.constant 0 : index
    %c0_43 = arith.constant 0 : index
    %130 = vector.load %arg13[%c0_42, %c0_43] : memref<8x32xbf16, #tpu.memory_space<vmem>>, vector<8x32xbf16>
    %cst_44 = arith.constant dense<0.000000e+00> : vector<16x32xf32>
    %131 = tpu.matmul %129, %130, %cst_44 {dimension_numbers = #tpu.dot_dimension_numbers<[1], [0], [0], [1], [0, 0, 1, 1], [], []>} : vector<16x8xbf16>, vector<8x32xbf16>, vector<16x32xf32> -> vector<16x32xf32>
    %c0_45 = arith.constant 0 : index
    %c0_46 = arith.constant 0 : index
    %132 = vector.load %arg14[%c0_45, %c0_46] : memref<1x32xf32, #tpu.memory_space<vmem>>, vector<1x32xf32>
    %133 = vector.broadcast %132 : vector<1x32xf32> to vector<16x32xf32>
    %134 = arith.addf %131, %133 : vector<16x32xf32>
    %cst_47 = arith.constant 0.000000e+00 : f32
    %135 = vector.broadcast %cst_47 : f32 to vector<16x32xf32>
    %136 = arith.maximumf %134, %135 : vector<16x32xf32>
    %137 = arith.addf %125, %136 : vector<16x32xf32>
    %138 = arith.truncf %137 : vector<16x32xf32> to vector<16x32xbf16>
    %c0_48 = arith.constant 0 : index
    %c0_49 = arith.constant 0 : index
    %139 = vector.load %arg15[%c0_48, %c0_49] : memref<32x8xbf16, #tpu.memory_space<vmem>>, vector<32x8xbf16>
    %cst_50 = arith.constant dense<0.000000e+00> : vector<16x8xf32>
    %140 = tpu.matmul %138, %139, %cst_50 {dimension_numbers = #tpu.dot_dimension_numbers<[1], [0], [0], [1], [0, 0, 1, 1], [], []>} : vector<16x32xbf16>, vector<32x8xbf16>, vector<16x8xf32> -> vector<16x8xf32>
    %c0_51 = arith.constant 0 : index
    %c0_52 = arith.constant 0 : index
    %141 = vector.load %arg16[%c0_51, %c0_52] : memref<1x8xf32, #tpu.memory_space<vmem>>, vector<1x8xf32>
    %142 = vector.broadcast %141 : vector<1x8xf32> to vector<16x8xf32>
    %143 = arith.addf %140, %142 : vector<16x8xf32>
    %cst_53 = arith.constant 0.000000e+00 : f32
    %144 = vector.broadcast %cst_53 : f32 to vector<16x8xf32>
    %145 = arith.maximumf %143, %144 : vector<16x8xf32>
    %146 = arith.truncf %145 : vector<16x8xf32> to vector<16x8xbf16>
    %c0_54 = arith.constant 0 : index
    %c0_55 = arith.constant 0 : index
    %147 = vector.load %arg17[%c0_54, %c0_55] : memref<8x24xbf16, #tpu.memory_space<vmem>>, vector<8x24xbf16>
    %cst_56 = arith.constant dense<0.000000e+00> : vector<16x24xf32>
    %148 = tpu.matmul %146, %147, %cst_56 {dimension_numbers = #tpu.dot_dimension_numbers<[1], [0], [0], [1], [0, 0, 1, 1], [], []>} : vector<16x8xbf16>, vector<8x24xbf16>, vector<16x24xf32> -> vector<16x24xf32>
    %149 = vector.extract_strided_slice %148 {offsets = [0, 0], sizes = [16, 8], strides = [1, 1]} : vector<16x24xf32> to vector<16x8xf32>
    %150 = vector.extract_strided_slice %148 {offsets = [0, 8], sizes = [16, 8], strides = [1, 1]} : vector<16x24xf32> to vector<16x8xf32>
    %151 = vector.extract_strided_slice %148 {offsets = [0, 16], sizes = [16, 8], strides = [1, 1]} : vector<16x24xf32> to vector<16x8xf32>
    %c0_57 = arith.constant 0 : index
    %c0_58 = arith.constant 0 : index
    %152 = vector.load %arg20[%c0_57, %c0_58] : memref<16x16xbf16, #tpu.memory_space<vmem>>, vector<16x16xbf16>
    %153 = arith.truncf %149 : vector<16x8xf32> to vector<16x8xbf16>
    %cst_59 = arith.constant dense<0.000000e+00> : vector<16x8xf32>
    %154 = tpu.matmul %152, %153, %cst_59 {dimension_numbers = #tpu.dot_dimension_numbers<[1], [0], [0], [1], [0, 0, 1, 1], [], []>} : vector<16x16xbf16>, vector<16x8xbf16>, vector<16x8xf32> -> vector<16x8xf32>
    %155 = vector.extract_strided_slice %149 {offsets = [0, 0], sizes = [16, 2], strides = [1, 1]} : vector<16x8xf32> to vector<16x2xf32>
    %156 = vector.shape_cast %155 : vector<16x2xf32> to vector<1x16x2xf32>
    %157 = vector.extract_strided_slice %149 {offsets = [0, 2], sizes = [16, 2], strides = [1, 1]} : vector<16x8xf32> to vector<16x2xf32>
    %158 = vector.shape_cast %157 : vector<16x2xf32> to vector<1x16x2xf32>
    %159 = vector.extract_strided_slice %149 {offsets = [0, 4], sizes = [16, 2], strides = [1, 1]} : vector<16x8xf32> to vector<16x2xf32>
    %160 = vector.shape_cast %159 : vector<16x2xf32> to vector<1x16x2xf32>
    %161 = vector.extract_strided_slice %149 {offsets = [0, 6], sizes = [16, 2], strides = [1, 1]} : vector<16x8xf32> to vector<16x2xf32>
    %162 = vector.shape_cast %161 : vector<16x2xf32> to vector<1x16x2xf32>
    %163 = tpu.concatenate %156, %158, %160, %162 in 0 : vector<1x16x2xf32>, vector<1x16x2xf32>, vector<1x16x2xf32>, vector<1x16x2xf32> -> vector<4x16x2xf32>
    %164 = vector.extract_strided_slice %150 {offsets = [0, 0], sizes = [16, 2], strides = [1, 1]} : vector<16x8xf32> to vector<16x2xf32>
    %165 = vector.shape_cast %164 : vector<16x2xf32> to vector<1x16x2xf32>
    %166 = vector.extract_strided_slice %150 {offsets = [0, 2], sizes = [16, 2], strides = [1, 1]} : vector<16x8xf32> to vector<16x2xf32>
    %167 = vector.shape_cast %166 : vector<16x2xf32> to vector<1x16x2xf32>
    %168 = vector.extract_strided_slice %150 {offsets = [0, 4], sizes = [16, 2], strides = [1, 1]} : vector<16x8xf32> to vector<16x2xf32>
    %169 = vector.shape_cast %168 : vector<16x2xf32> to vector<1x16x2xf32>
    %170 = vector.extract_strided_slice %150 {offsets = [0, 6], sizes = [16, 2], strides = [1, 1]} : vector<16x8xf32> to vector<16x2xf32>
    %171 = vector.shape_cast %170 : vector<16x2xf32> to vector<1x16x2xf32>
    %172 = tpu.concatenate %165, %167, %169, %171 in 0 : vector<1x16x2xf32>, vector<1x16x2xf32>, vector<1x16x2xf32>, vector<1x16x2xf32> -> vector<4x16x2xf32>
    %173 = vector.extract_strided_slice %151 {offsets = [0, 0], sizes = [16, 2], strides = [1, 1]} : vector<16x8xf32> to vector<16x2xf32>
    %174 = vector.shape_cast %173 : vector<16x2xf32> to vector<1x16x2xf32>
    %175 = vector.extract_strided_slice %151 {offsets = [0, 2], sizes = [16, 2], strides = [1, 1]} : vector<16x8xf32> to vector<16x2xf32>
    %176 = vector.shape_cast %175 : vector<16x2xf32> to vector<1x16x2xf32>
    %177 = vector.extract_strided_slice %151 {offsets = [0, 4], sizes = [16, 2], strides = [1, 1]} : vector<16x8xf32> to vector<16x2xf32>
    %178 = vector.shape_cast %177 : vector<16x2xf32> to vector<1x16x2xf32>
    %179 = vector.extract_strided_slice %151 {offsets = [0, 6], sizes = [16, 2], strides = [1, 1]} : vector<16x8xf32> to vector<16x2xf32>
    %180 = vector.shape_cast %179 : vector<16x2xf32> to vector<1x16x2xf32>
    %181 = tpu.concatenate %174, %176, %178, %180 in 0 : vector<1x16x2xf32>, vector<1x16x2xf32>, vector<1x16x2xf32>, vector<1x16x2xf32> -> vector<4x16x2xf32>
    %182 = vector.extract_strided_slice %154 {offsets = [0, 0], sizes = [16, 2], strides = [1, 1]} : vector<16x8xf32> to vector<16x2xf32>
    %183 = vector.shape_cast %182 : vector<16x2xf32> to vector<1x16x2xf32>
    %184 = vector.extract_strided_slice %154 {offsets = [0, 2], sizes = [16, 2], strides = [1, 1]} : vector<16x8xf32> to vector<16x2xf32>
    %185 = vector.shape_cast %184 : vector<16x2xf32> to vector<1x16x2xf32>
    %186 = vector.extract_strided_slice %154 {offsets = [0, 4], sizes = [16, 2], strides = [1, 1]} : vector<16x8xf32> to vector<16x2xf32>
    %187 = vector.shape_cast %186 : vector<16x2xf32> to vector<1x16x2xf32>
    %188 = vector.extract_strided_slice %154 {offsets = [0, 6], sizes = [16, 2], strides = [1, 1]} : vector<16x8xf32> to vector<16x2xf32>
    %189 = vector.shape_cast %188 : vector<16x2xf32> to vector<1x16x2xf32>
    %190 = tpu.concatenate %183, %185, %187, %189 in 0 : vector<1x16x2xf32>, vector<1x16x2xf32>, vector<1x16x2xf32>, vector<1x16x2xf32> -> vector<4x16x2xf32>
    %191 = arith.truncf %163 : vector<4x16x2xf32> to vector<4x16x2xbf16>
    %192 = arith.truncf %172 : vector<4x16x2xf32> to vector<4x16x2xbf16>
    %cst_60 = arith.constant dense<0.000000e+00> : vector<4x16x16xf32>
    %193 = tpu.matmul %191, %192, %cst_60 {dimension_numbers = #tpu.dot_dimension_numbers<[2], [2], [1], [1], [0, 0, 0, 1, 1, 1], [0], [0]>} : vector<4x16x2xbf16>, vector<4x16x2xbf16>, vector<4x16x16xf32> -> vector<4x16x16xf32>
    %194 = vector.extract_strided_slice %163 {offsets = [0, 0, 0], sizes = [4, 16, 1], strides = [1, 1, 1]} : vector<4x16x2xf32> to vector<4x16x1xf32>
    %c0_61 = arith.constant 0 : index
    %c0_62 = arith.constant 0 : index
    %c0_63 = arith.constant 0 : index
    %195 = vector.load %arg18[%c0_61, %c0_62, %c0_63] : memref<2x16x16xf32, #tpu.memory_space<vmem>>, vector<1x16x16xf32>
    %196 = vector.shape_cast %195 : vector<1x16x16xf32> to vector<16x16xf32>
    %197 = vector.shape_cast %196 : vector<16x16xf32> to vector<1x16x16xf32>
    %198 = vector.broadcast %194 : vector<4x16x1xf32> to vector<4x16x16xf32>
    %199 = vector.broadcast %197 : vector<1x16x16xf32> to vector<4x16x16xf32>
    %200 = arith.mulf %198, %199 : vector<4x16x16xf32>
    %201 = arith.addf %193, %200 : vector<4x16x16xf32>
    %202 = vector.extract_strided_slice %190 {offsets = [0, 0, 0], sizes = [4, 16, 1], strides = [1, 1, 1]} : vector<4x16x2xf32> to vector<4x16x1xf32>
    %c0_64 = arith.constant 0 : index
    %c0_65 = arith.constant 0 : index
    %c0_66 = arith.constant 0 : index
    %203 = vector.load %arg19[%c0_64, %c0_65, %c0_66] : memref<2x16x16xf32, #tpu.memory_space<vmem>>, vector<1x16x16xf32>
    %204 = vector.shape_cast %203 : vector<1x16x16xf32> to vector<16x16xf32>
    %205 = vector.shape_cast %204 : vector<16x16xf32> to vector<1x16x16xf32>
    %206 = vector.broadcast %202 : vector<4x16x1xf32> to vector<4x16x16xf32>
    %207 = vector.broadcast %205 : vector<1x16x16xf32> to vector<4x16x16xf32>
    %208 = arith.mulf %206, %207 : vector<4x16x16xf32>
    %209 = arith.addf %201, %208 : vector<4x16x16xf32>
    %210 = vector.extract_strided_slice %163 {offsets = [0, 0, 1], sizes = [4, 16, 1], strides = [1, 1, 1]} : vector<4x16x2xf32> to vector<4x16x1xf32>
    %c1_67 = arith.constant 1 : index
    %c0_68 = arith.constant 0 : index
    %c0_69 = arith.constant 0 : index
    %211 = vector.load %arg18[%c1_67, %c0_68, %c0_69] : memref<2x16x16xf32, #tpu.memory_space<vmem>>, vector<1x16x16xf32>
    %212 = vector.shape_cast %211 : vector<1x16x16xf32> to vector<16x16xf32>
    %213 = vector.shape_cast %212 : vector<16x16xf32> to vector<1x16x16xf32>
    %214 = vector.broadcast %210 : vector<4x16x1xf32> to vector<4x16x16xf32>
    %215 = vector.broadcast %213 : vector<1x16x16xf32> to vector<4x16x16xf32>
    %216 = arith.mulf %214, %215 : vector<4x16x16xf32>
    %217 = arith.addf %209, %216 : vector<4x16x16xf32>
    %218 = vector.extract_strided_slice %190 {offsets = [0, 0, 1], sizes = [4, 16, 1], strides = [1, 1, 1]} : vector<4x16x2xf32> to vector<4x16x1xf32>
    %c1_70 = arith.constant 1 : index
    %c0_71 = arith.constant 0 : index
    %c0_72 = arith.constant 0 : index
    %219 = vector.load %arg19[%c1_70, %c0_71, %c0_72] : memref<2x16x16xf32, #tpu.memory_space<vmem>>, vector<1x16x16xf32>
    %220 = vector.shape_cast %219 : vector<1x16x16xf32> to vector<16x16xf32>
    %221 = vector.shape_cast %220 : vector<16x16xf32> to vector<1x16x16xf32>
    %222 = vector.broadcast %218 : vector<4x16x1xf32> to vector<4x16x16xf32>
    %223 = vector.broadcast %221 : vector<1x16x16xf32> to vector<4x16x16xf32>
    %224 = arith.mulf %222, %223 : vector<4x16x16xf32>
    %225 = arith.addf %217, %224 : vector<4x16x16xf32>
    %cst_73 = arith.constant dense<0xFF800000> : vector<4x16xf32>
    %226 = vector.multi_reduction <maximumf>, %225, %cst_73 [2] : vector<4x16x16xf32> to vector<4x16xf32>
    %227 = vector.shape_cast %226 : vector<4x16xf32> to vector<4x16x1xf32>
    %228 = vector.broadcast %227 : vector<4x16x1xf32> to vector<4x16x16xf32>
    %229 = arith.subf %225, %228 : vector<4x16x16xf32>
    %230 = math.exp %229 : vector<4x16x16xf32>
    %cst_74 = arith.constant dense<0.000000e+00> : vector<4x16xf32>
    %231 = vector.multi_reduction <add>, %230, %cst_74 [2] : vector<4x16x16xf32> to vector<4x16xf32>
    %232 = vector.shape_cast %231 : vector<4x16xf32> to vector<4x16x1xf32>
    %233 = tpu.reciprocal %232 {approx = true} : vector<4x16x1xf32> -> vector<4x16x1xf32>
    %234 = vector.broadcast %233 : vector<4x16x1xf32> to vector<4x16x16xf32>
    %235 = arith.mulf %230, %234 : vector<4x16x16xf32>
    %236 = arith.truncf %235 : vector<4x16x16xf32> to vector<4x16x16xbf16>
    %237 = arith.truncf %181 : vector<4x16x2xf32> to vector<4x16x2xbf16>
    %cst_75 = arith.constant dense<0.000000e+00> : vector<4x16x2xf32>
    %238 = tpu.matmul %236, %237, %cst_75 {dimension_numbers = #tpu.dot_dimension_numbers<[2], [1], [1], [2], [0, 0, 0, 1, 1, 2], [0], [0]>} : vector<4x16x16xbf16>, vector<4x16x2xbf16>, vector<4x16x2xf32> -> vector<4x16x2xf32>
    %239 = vector.extract_strided_slice %238 {offsets = [0, 0, 0], sizes = [1, 16, 2], strides = [1, 1, 1]} : vector<4x16x2xf32> to vector<1x16x2xf32>
    %240 = vector.shape_cast %239 : vector<1x16x2xf32> to vector<16x2xf32>
    %241 = vector.extract_strided_slice %238 {offsets = [1, 0, 0], sizes = [1, 16, 2], strides = [1, 1, 1]} : vector<4x16x2xf32> to vector<1x16x2xf32>
    %242 = vector.shape_cast %241 : vector<1x16x2xf32> to vector<16x2xf32>
    %243 = vector.extract_strided_slice %238 {offsets = [2, 0, 0], sizes = [1, 16, 2], strides = [1, 1, 1]} : vector<4x16x2xf32> to vector<1x16x2xf32>
    %244 = vector.shape_cast %243 : vector<1x16x2xf32> to vector<16x2xf32>
    %245 = vector.extract_strided_slice %238 {offsets = [3, 0, 0], sizes = [1, 16, 2], strides = [1, 1, 1]} : vector<4x16x2xf32> to vector<1x16x2xf32>
    %246 = vector.shape_cast %245 : vector<1x16x2xf32> to vector<16x2xf32>
    %247 = tpu.concatenate %240, %242, %244, %246 in 1 : vector<16x2xf32>, vector<16x2xf32>, vector<16x2xf32>, vector<16x2xf32> -> vector<16x8xf32>
    %c0_76 = arith.constant 0 : index
    %c0_77 = arith.constant 0 : index
    %248 = vector.load %arg21[%c0_76, %c0_77] : memref<1x8xf32, #tpu.memory_space<vmem>>, vector<1x8xf32>
    %249 = vector.broadcast %248 : vector<1x8xf32> to vector<16x8xf32>
    %250 = arith.addf %247, %249 : vector<16x8xf32>
    %cst_78 = arith.constant 0.000000e+00 : f32
    %251 = vector.broadcast %cst_78 : f32 to vector<16x8xf32>
    %252 = arith.maximumf %250, %251 : vector<16x8xf32>
    %253 = arith.truncf %252 : vector<16x8xf32> to vector<16x8xbf16>
    %c0_79 = arith.constant 0 : index
    %c0_80 = arith.constant 0 : index
    %254 = vector.load %arg22[%c0_79, %c0_80] : memref<8x32xbf16, #tpu.memory_space<vmem>>, vector<8x32xbf16>
    %cst_81 = arith.constant dense<0.000000e+00> : vector<16x32xf32>
    %255 = tpu.matmul %253, %254, %cst_81 {dimension_numbers = #tpu.dot_dimension_numbers<[1], [0], [0], [1], [0, 0, 1, 1], [], []>} : vector<16x8xbf16>, vector<8x32xbf16>, vector<16x32xf32> -> vector<16x32xf32>
    %c0_82 = arith.constant 0 : index
    %c0_83 = arith.constant 0 : index
    %256 = vector.load %arg23[%c0_82, %c0_83] : memref<1x32xf32, #tpu.memory_space<vmem>>, vector<1x32xf32>
    %257 = vector.broadcast %256 : vector<1x32xf32> to vector<16x32xf32>
    %258 = arith.addf %255, %257 : vector<16x32xf32>
    %259 = arith.addf %258, %137 : vector<16x32xf32>
    %260 = arith.truncf %259 : vector<16x32xf32> to vector<16x32xbf16>
    %c0_84 = arith.constant 0 : index
    %c0_85 = arith.constant 0 : index
    %261 = vector.load %arg24[%c0_84, %c0_85] : memref<32x8xbf16, #tpu.memory_space<vmem>>, vector<32x8xbf16>
    %cst_86 = arith.constant dense<0.000000e+00> : vector<16x8xf32>
    %262 = tpu.matmul %260, %261, %cst_86 {dimension_numbers = #tpu.dot_dimension_numbers<[1], [0], [0], [1], [0, 0, 1, 1], [], []>} : vector<16x32xbf16>, vector<32x8xbf16>, vector<16x8xf32> -> vector<16x8xf32>
    %c0_87 = arith.constant 0 : index
    %c0_88 = arith.constant 0 : index
    %263 = vector.load %arg25[%c0_87, %c0_88] : memref<1x8xf32, #tpu.memory_space<vmem>>, vector<1x8xf32>
    %264 = vector.broadcast %263 : vector<1x8xf32> to vector<16x8xf32>
    %265 = arith.addf %262, %264 : vector<16x8xf32>
    %cst_89 = arith.constant 0.000000e+00 : f32
    %266 = vector.broadcast %cst_89 : f32 to vector<16x8xf32>
    %267 = arith.maximumf %265, %266 : vector<16x8xf32>
    %268 = arith.truncf %267 : vector<16x8xf32> to vector<16x8xbf16>
    %c0_90 = arith.constant 0 : index
    %c0_91 = arith.constant 0 : index
    %269 = vector.load %arg26[%c0_90, %c0_91] : memref<8x24xbf16, #tpu.memory_space<vmem>>, vector<8x24xbf16>
    %cst_92 = arith.constant dense<0.000000e+00> : vector<16x24xf32>
    %270 = tpu.matmul %268, %269, %cst_92 {dimension_numbers = #tpu.dot_dimension_numbers<[1], [0], [0], [1], [0, 0, 1, 1], [], []>} : vector<16x8xbf16>, vector<8x24xbf16>, vector<16x24xf32> -> vector<16x24xf32>
    %271 = vector.extract_strided_slice %270 {offsets = [0, 0], sizes = [16, 8], strides = [1, 1]} : vector<16x24xf32> to vector<16x8xf32>
    %272 = vector.extract_strided_slice %270 {offsets = [0, 8], sizes = [16, 8], strides = [1, 1]} : vector<16x24xf32> to vector<16x8xf32>
    %273 = vector.extract_strided_slice %270 {offsets = [0, 16], sizes = [16, 8], strides = [1, 1]} : vector<16x24xf32> to vector<16x8xf32>
    %c0_93 = arith.constant 0 : index
    %c0_94 = arith.constant 0 : index
    %274 = vector.load %arg29[%c0_93, %c0_94] : memref<16x16xbf16, #tpu.memory_space<vmem>>, vector<16x16xbf16>
    %275 = arith.truncf %271 : vector<16x8xf32> to vector<16x8xbf16>
    %cst_95 = arith.constant dense<0.000000e+00> : vector<16x8xf32>
    %276 = tpu.matmul %274, %275, %cst_95 {dimension_numbers = #tpu.dot_dimension_numbers<[1], [0], [0], [1], [0, 0, 1, 1], [], []>} : vector<16x16xbf16>, vector<16x8xbf16>, vector<16x8xf32> -> vector<16x8xf32>
    %277 = vector.extract_strided_slice %271 {offsets = [0, 0], sizes = [16, 2], strides = [1, 1]} : vector<16x8xf32> to vector<16x2xf32>
    %278 = vector.shape_cast %277 : vector<16x2xf32> to vector<1x16x2xf32>
    %279 = vector.extract_strided_slice %271 {offsets = [0, 2], sizes = [16, 2], strides = [1, 1]} : vector<16x8xf32> to vector<16x2xf32>
    %280 = vector.shape_cast %279 : vector<16x2xf32> to vector<1x16x2xf32>
    %281 = vector.extract_strided_slice %271 {offsets = [0, 4], sizes = [16, 2], strides = [1, 1]} : vector<16x8xf32> to vector<16x2xf32>
    %282 = vector.shape_cast %281 : vector<16x2xf32> to vector<1x16x2xf32>
    %283 = vector.extract_strided_slice %271 {offsets = [0, 6], sizes = [16, 2], strides = [1, 1]} : vector<16x8xf32> to vector<16x2xf32>
    %284 = vector.shape_cast %283 : vector<16x2xf32> to vector<1x16x2xf32>
    %285 = tpu.concatenate %278, %280, %282, %284 in 0 : vector<1x16x2xf32>, vector<1x16x2xf32>, vector<1x16x2xf32>, vector<1x16x2xf32> -> vector<4x16x2xf32>
    %286 = vector.extract_strided_slice %272 {offsets = [0, 0], sizes = [16, 2], strides = [1, 1]} : vector<16x8xf32> to vector<16x2xf32>
    %287 = vector.shape_cast %286 : vector<16x2xf32> to vector<1x16x2xf32>
    %288 = vector.extract_strided_slice %272 {offsets = [0, 2], sizes = [16, 2], strides = [1, 1]} : vector<16x8xf32> to vector<16x2xf32>
    %289 = vector.shape_cast %288 : vector<16x2xf32> to vector<1x16x2xf32>
    %290 = vector.extract_strided_slice %272 {offsets = [0, 4], sizes = [16, 2], strides = [1, 1]} : vector<16x8xf32> to vector<16x2xf32>
    %291 = vector.shape_cast %290 : vector<16x2xf32> to vector<1x16x2xf32>
    %292 = vector.extract_strided_slice %272 {offsets = [0, 6], sizes = [16, 2], strides = [1, 1]} : vector<16x8xf32> to vector<16x2xf32>
    %293 = vector.shape_cast %292 : vector<16x2xf32> to vector<1x16x2xf32>
    %294 = tpu.concatenate %287, %289, %291, %293 in 0 : vector<1x16x2xf32>, vector<1x16x2xf32>, vector<1x16x2xf32>, vector<1x16x2xf32> -> vector<4x16x2xf32>
    %295 = vector.extract_strided_slice %273 {offsets = [0, 0], sizes = [16, 2], strides = [1, 1]} : vector<16x8xf32> to vector<16x2xf32>
    %296 = vector.shape_cast %295 : vector<16x2xf32> to vector<1x16x2xf32>
    %297 = vector.extract_strided_slice %273 {offsets = [0, 2], sizes = [16, 2], strides = [1, 1]} : vector<16x8xf32> to vector<16x2xf32>
    %298 = vector.shape_cast %297 : vector<16x2xf32> to vector<1x16x2xf32>
    %299 = vector.extract_strided_slice %273 {offsets = [0, 4], sizes = [16, 2], strides = [1, 1]} : vector<16x8xf32> to vector<16x2xf32>
    %300 = vector.shape_cast %299 : vector<16x2xf32> to vector<1x16x2xf32>
    %301 = vector.extract_strided_slice %273 {offsets = [0, 6], sizes = [16, 2], strides = [1, 1]} : vector<16x8xf32> to vector<16x2xf32>
    %302 = vector.shape_cast %301 : vector<16x2xf32> to vector<1x16x2xf32>
    %303 = tpu.concatenate %296, %298, %300, %302 in 0 : vector<1x16x2xf32>, vector<1x16x2xf32>, vector<1x16x2xf32>, vector<1x16x2xf32> -> vector<4x16x2xf32>
    %304 = vector.extract_strided_slice %276 {offsets = [0, 0], sizes = [16, 2], strides = [1, 1]} : vector<16x8xf32> to vector<16x2xf32>
    %305 = vector.shape_cast %304 : vector<16x2xf32> to vector<1x16x2xf32>
    %306 = vector.extract_strided_slice %276 {offsets = [0, 2], sizes = [16, 2], strides = [1, 1]} : vector<16x8xf32> to vector<16x2xf32>
    %307 = vector.shape_cast %306 : vector<16x2xf32> to vector<1x16x2xf32>
    %308 = vector.extract_strided_slice %276 {offsets = [0, 4], sizes = [16, 2], strides = [1, 1]} : vector<16x8xf32> to vector<16x2xf32>
    %309 = vector.shape_cast %308 : vector<16x2xf32> to vector<1x16x2xf32>
    %310 = vector.extract_strided_slice %276 {offsets = [0, 6], sizes = [16, 2], strides = [1, 1]} : vector<16x8xf32> to vector<16x2xf32>
    %311 = vector.shape_cast %310 : vector<16x2xf32> to vector<1x16x2xf32>
    %312 = tpu.concatenate %305, %307, %309, %311 in 0 : vector<1x16x2xf32>, vector<1x16x2xf32>, vector<1x16x2xf32>, vector<1x16x2xf32> -> vector<4x16x2xf32>
    %313 = arith.truncf %285 : vector<4x16x2xf32> to vector<4x16x2xbf16>
    %314 = arith.truncf %294 : vector<4x16x2xf32> to vector<4x16x2xbf16>
    %cst_96 = arith.constant dense<0.000000e+00> : vector<4x16x16xf32>
    %315 = tpu.matmul %313, %314, %cst_96 {dimension_numbers = #tpu.dot_dimension_numbers<[2], [2], [1], [1], [0, 0, 0, 1, 1, 1], [0], [0]>} : vector<4x16x2xbf16>, vector<4x16x2xbf16>, vector<4x16x16xf32> -> vector<4x16x16xf32>
    %316 = vector.extract_strided_slice %285 {offsets = [0, 0, 0], sizes = [4, 16, 1], strides = [1, 1, 1]} : vector<4x16x2xf32> to vector<4x16x1xf32>
    %c0_97 = arith.constant 0 : index
    %c0_98 = arith.constant 0 : index
    %c0_99 = arith.constant 0 : index
    %317 = vector.load %arg27[%c0_97, %c0_98, %c0_99] : memref<2x16x16xf32, #tpu.memory_space<vmem>>, vector<1x16x16xf32>
    %318 = vector.shape_cast %317 : vector<1x16x16xf32> to vector<16x16xf32>
    %319 = vector.shape_cast %318 : vector<16x16xf32> to vector<1x16x16xf32>
    %320 = vector.broadcast %316 : vector<4x16x1xf32> to vector<4x16x16xf32>
    %321 = vector.broadcast %319 : vector<1x16x16xf32> to vector<4x16x16xf32>
    %322 = arith.mulf %320, %321 : vector<4x16x16xf32>
    %323 = arith.addf %315, %322 : vector<4x16x16xf32>
    %324 = vector.extract_strided_slice %312 {offsets = [0, 0, 0], sizes = [4, 16, 1], strides = [1, 1, 1]} : vector<4x16x2xf32> to vector<4x16x1xf32>
    %c0_100 = arith.constant 0 : index
    %c0_101 = arith.constant 0 : index
    %c0_102 = arith.constant 0 : index
    %325 = vector.load %arg28[%c0_100, %c0_101, %c0_102] : memref<2x16x16xf32, #tpu.memory_space<vmem>>, vector<1x16x16xf32>
    %326 = vector.shape_cast %325 : vector<1x16x16xf32> to vector<16x16xf32>
    %327 = vector.shape_cast %326 : vector<16x16xf32> to vector<1x16x16xf32>
    %328 = vector.broadcast %324 : vector<4x16x1xf32> to vector<4x16x16xf32>
    %329 = vector.broadcast %327 : vector<1x16x16xf32> to vector<4x16x16xf32>
    %330 = arith.mulf %328, %329 : vector<4x16x16xf32>
    %331 = arith.addf %323, %330 : vector<4x16x16xf32>
    %332 = vector.extract_strided_slice %285 {offsets = [0, 0, 1], sizes = [4, 16, 1], strides = [1, 1, 1]} : vector<4x16x2xf32> to vector<4x16x1xf32>
    %c1_103 = arith.constant 1 : index
    %c0_104 = arith.constant 0 : index
    %c0_105 = arith.constant 0 : index
    %333 = vector.load %arg27[%c1_103, %c0_104, %c0_105] : memref<2x16x16xf32, #tpu.memory_space<vmem>>, vector<1x16x16xf32>
    %334 = vector.shape_cast %333 : vector<1x16x16xf32> to vector<16x16xf32>
    %335 = vector.shape_cast %334 : vector<16x16xf32> to vector<1x16x16xf32>
    %336 = vector.broadcast %332 : vector<4x16x1xf32> to vector<4x16x16xf32>
    %337 = vector.broadcast %335 : vector<1x16x16xf32> to vector<4x16x16xf32>
    %338 = arith.mulf %336, %337 : vector<4x16x16xf32>
    %339 = arith.addf %331, %338 : vector<4x16x16xf32>
    %340 = vector.extract_strided_slice %312 {offsets = [0, 0, 1], sizes = [4, 16, 1], strides = [1, 1, 1]} : vector<4x16x2xf32> to vector<4x16x1xf32>
    %c1_106 = arith.constant 1 : index
    %c0_107 = arith.constant 0 : index
    %c0_108 = arith.constant 0 : index
    %341 = vector.load %arg28[%c1_106, %c0_107, %c0_108] : memref<2x16x16xf32, #tpu.memory_space<vmem>>, vector<1x16x16xf32>
    %342 = vector.shape_cast %341 : vector<1x16x16xf32> to vector<16x16xf32>
    %343 = vector.shape_cast %342 : vector<16x16xf32> to vector<1x16x16xf32>
    %344 = vector.broadcast %340 : vector<4x16x1xf32> to vector<4x16x16xf32>
    %345 = vector.broadcast %343 : vector<1x16x16xf32> to vector<4x16x16xf32>
    %346 = arith.mulf %344, %345 : vector<4x16x16xf32>
    %347 = arith.addf %339, %346 : vector<4x16x16xf32>
    %cst_109 = arith.constant dense<0xFF800000> : vector<4x16xf32>
    %348 = vector.multi_reduction <maximumf>, %347, %cst_109 [2] : vector<4x16x16xf32> to vector<4x16xf32>
    %349 = vector.shape_cast %348 : vector<4x16xf32> to vector<4x16x1xf32>
    %350 = vector.broadcast %349 : vector<4x16x1xf32> to vector<4x16x16xf32>
    %351 = arith.subf %347, %350 : vector<4x16x16xf32>
    %352 = math.exp %351 : vector<4x16x16xf32>
    %cst_110 = arith.constant dense<0.000000e+00> : vector<4x16xf32>
    %353 = vector.multi_reduction <add>, %352, %cst_110 [2] : vector<4x16x16xf32> to vector<4x16xf32>
    %354 = vector.shape_cast %353 : vector<4x16xf32> to vector<4x16x1xf32>
    %355 = tpu.reciprocal %354 {approx = true} : vector<4x16x1xf32> -> vector<4x16x1xf32>
    %356 = vector.broadcast %355 : vector<4x16x1xf32> to vector<4x16x16xf32>
    %357 = arith.mulf %352, %356 : vector<4x16x16xf32>
    %358 = arith.truncf %357 : vector<4x16x16xf32> to vector<4x16x16xbf16>
    %359 = arith.truncf %303 : vector<4x16x2xf32> to vector<4x16x2xbf16>
    %cst_111 = arith.constant dense<0.000000e+00> : vector<4x16x2xf32>
    %360 = tpu.matmul %358, %359, %cst_111 {dimension_numbers = #tpu.dot_dimension_numbers<[2], [1], [1], [2], [0, 0, 0, 1, 1, 2], [0], [0]>} : vector<4x16x16xbf16>, vector<4x16x2xbf16>, vector<4x16x2xf32> -> vector<4x16x2xf32>
    %361 = vector.extract_strided_slice %360 {offsets = [0, 0, 0], sizes = [1, 16, 2], strides = [1, 1, 1]} : vector<4x16x2xf32> to vector<1x16x2xf32>
    %362 = vector.shape_cast %361 : vector<1x16x2xf32> to vector<16x2xf32>
    %363 = vector.extract_strided_slice %360 {offsets = [1, 0, 0], sizes = [1, 16, 2], strides = [1, 1, 1]} : vector<4x16x2xf32> to vector<1x16x2xf32>
    %364 = vector.shape_cast %363 : vector<1x16x2xf32> to vector<16x2xf32>
    %365 = vector.extract_strided_slice %360 {offsets = [2, 0, 0], sizes = [1, 16, 2], strides = [1, 1, 1]} : vector<4x16x2xf32> to vector<1x16x2xf32>
    %366 = vector.shape_cast %365 : vector<1x16x2xf32> to vector<16x2xf32>
    %367 = vector.extract_strided_slice %360 {offsets = [3, 0, 0], sizes = [1, 16, 2], strides = [1, 1, 1]} : vector<4x16x2xf32> to vector<1x16x2xf32>
    %368 = vector.shape_cast %367 : vector<1x16x2xf32> to vector<16x2xf32>
    %369 = tpu.concatenate %362, %364, %366, %368 in 1 : vector<16x2xf32>, vector<16x2xf32>, vector<16x2xf32>, vector<16x2xf32> -> vector<16x8xf32>
    %c0_112 = arith.constant 0 : index
    %c0_113 = arith.constant 0 : index
    %370 = vector.load %arg30[%c0_112, %c0_113] : memref<1x8xf32, #tpu.memory_space<vmem>>, vector<1x8xf32>
    %371 = vector.broadcast %370 : vector<1x8xf32> to vector<16x8xf32>
    %372 = arith.addf %369, %371 : vector<16x8xf32>
    %cst_114 = arith.constant 0.000000e+00 : f32
    %373 = vector.broadcast %cst_114 : f32 to vector<16x8xf32>
    %374 = arith.maximumf %372, %373 : vector<16x8xf32>
    %375 = arith.truncf %374 : vector<16x8xf32> to vector<16x8xbf16>
    %c0_115 = arith.constant 0 : index
    %c0_116 = arith.constant 0 : index
    %376 = vector.load %arg31[%c0_115, %c0_116] : memref<8x32xbf16, #tpu.memory_space<vmem>>, vector<8x32xbf16>
    %cst_117 = arith.constant dense<0.000000e+00> : vector<16x32xf32>
    %377 = tpu.matmul %375, %376, %cst_117 {dimension_numbers = #tpu.dot_dimension_numbers<[1], [0], [0], [1], [0, 0, 1, 1], [], []>} : vector<16x8xbf16>, vector<8x32xbf16>, vector<16x32xf32> -> vector<16x32xf32>
    %c0_118 = arith.constant 0 : index
    %c0_119 = arith.constant 0 : index
    %378 = vector.load %arg32[%c0_118, %c0_119] : memref<1x32xf32, #tpu.memory_space<vmem>>, vector<1x32xf32>
    %379 = vector.broadcast %378 : vector<1x32xf32> to vector<16x32xf32>
    %380 = arith.addf %377, %379 : vector<16x32xf32>
    %381 = arith.addf %380, %259 : vector<16x32xf32>
    %c0_120 = arith.constant 0 : index
    %c0_121 = arith.constant 0 : index
    %c0_122 = arith.constant 0 : index
    %382 = vector.load %arg33[%c0_120, %c0_121, %c0_122] : memref<1x16x32xf32, #tpu.memory_space<vmem>>, vector<1x16x32xf32>
    %383 = vector.shape_cast %382 : vector<1x16x32xf32> to vector<16x32xf32>
    %384 = vector.shape_cast %381 : vector<16x32xf32> to vector<1x16x32xf32>
    tpu.vector_store %arg33[%c0_120, %c0_121, %c0_122], %384 {strides = array<i32>} : memref<1x16x32xf32, #tpu.memory_space<vmem>>, vector<1x16x32xf32>,
    return
  }
  func.func @transform_0(%arg0: i32) -> (i32, i32, i32) {
    %c0_i32 = arith.constant 0 : i32
    %c0_i32_0 = arith.constant 0 : i32
    %c0_i32_1 = arith.constant 0 : i32
    return %arg0, %c0_i32, %c0_i32_0 : i32, i32, i32
  }
  func.func @transform_1(%arg0: i32) -> (i32, i32) {
    %c0_i32 = arith.constant 0 : i32
    %c0_i32_0 = arith.constant 0 : i32
    %c0_i32_1 = arith.constant 0 : i32
    return %c0_i32, %c0_i32_0 : i32, i32
  }
  func.func @transform_2(%arg0: i32) -> (i32, i32) {
    %c0_i32 = arith.constant 0 : i32
    %c0_i32_0 = arith.constant 0 : i32
    %c0_i32_1 = arith.constant 0 : i32
    return %c0_i32, %c0_i32_0 : i32, i32
  }
  func.func @transform_3(%arg0: i32) -> (i32, i32) {
    %c0_i32 = arith.constant 0 : i32
    %c0_i32_0 = arith.constant 0 : i32
    %c0_i32_1 = arith.constant 0 : i32
    return %c0_i32, %c0_i32_0 : i32, i32
  }
  func.func @transform_4(%arg0: i32) -> (i32, i32, i32) {
    %c0_i32 = arith.constant 0 : i32
    %c0_i32_0 = arith.constant 0 : i32
    %c0_i32_1 = arith.constant 0 : i32
    %c0_i32_2 = arith.constant 0 : i32
    return %c0_i32, %c0_i32_0, %c0_i32_1 : i32, i32, i32
  }
  func.func @transform_5(%arg0: i32) -> (i32, i32, i32) {
    %c0_i32 = arith.constant 0 : i32
    %c0_i32_0 = arith.constant 0 : i32
    %c0_i32_1 = arith.constant 0 : i32
    %c0_i32_2 = arith.constant 0 : i32
    return %c0_i32, %c0_i32_0, %c0_i32_1 : i32, i32, i32
  }
  func.func @transform_6(%arg0: i32) -> (i32, i32) {
    %c0_i32 = arith.constant 0 : i32
    %c0_i32_0 = arith.constant 0 : i32
    %c0_i32_1 = arith.constant 0 : i32
    return %c0_i32, %c0_i32_0 : i32, i32
  }
  func.func @transform_7(%arg0: i32) -> (i32, i32) {
    %c0_i32 = arith.constant 0 : i32
    %c0_i32_0 = arith.constant 0 : i32
    %c0_i32_1 = arith.constant 0 : i32
    return %c0_i32, %c0_i32_0 : i32, i32
  }
  func.func @transform_8(%arg0: i32) -> (i32, i32) {
    %c0_i32 = arith.constant 0 : i32
    %c0_i32_0 = arith.constant 0 : i32
    %c0_i32_1 = arith.constant 0 : i32
    return %c0_i32, %c0_i32_0 : i32, i32
  }
  func.func @transform_9(%arg0: i32) -> (i32, i32) {
    %c0_i32 = arith.constant 0 : i32
    %c0_i32_0 = arith.constant 0 : i32
    %c0_i32_1 = arith.constant 0 : i32
    return %c0_i32, %c0_i32_0 : i32, i32
  }
  func.func @transform_10(%arg0: i32) -> (i32, i32) {
    %c0_i32 = arith.constant 0 : i32
    %c0_i32_0 = arith.constant 0 : i32
    %c0_i32_1 = arith.constant 0 : i32
    return %c0_i32, %c0_i32_0 : i32, i32
  }
  func.func @transform_11(%arg0: i32) -> (i32, i32) {
    %c0_i32 = arith.constant 0 : i32
    %c0_i32_0 = arith.constant 0 : i32
    %c0_i32_1 = arith.constant 0 : i32
    return %c0_i32, %c0_i32_0 : i32, i32
  }
  func.func @transform_12(%arg0: i32) -> (i32, i32) {
    %c0_i32 = arith.constant 0 : i32
    %c0_i32_0 = arith.constant 0 : i32
    %c0_i32_1 = arith.constant 0 : i32
    return %c0_i32, %c0_i32_0 : i32, i32
  }
  func.func @transform_13(%arg0: i32) -> (i32, i32) {
    %c0_i32 = arith.constant 0 : i32
    %c0_i32_0 = arith.constant 0 : i32
    %c0_i32_1 = arith.constant 0 : i32
    return %c0_i32, %c0_i32_0 : i32, i32
  }
  func.func @transform_14(%arg0: i32) -> (i32, i32) {
    %c0_i32 = arith.constant 0 : i32
    %c0_i32_0 = arith.constant 0 : i32
    %c0_i32_1 = arith.constant 0 : i32
    return %c0_i32, %c0_i32_0 : i32, i32
  }
  func.func @transform_15(%arg0: i32) -> (i32, i32) {
    %c0_i32 = arith.constant 0 : i32
    %c0_i32_0 = arith.constant 0 : i32
    %c0_i32_1 = arith.constant 0 : i32
    return %c0_i32, %c0_i32_0 : i32, i32
  }
  func.func @transform_16(%arg0: i32) -> (i32, i32) {
    %c0_i32 = arith.constant 0 : i32
    %c0_i32_0 = arith.constant 0 : i32
    %c0_i32_1 = arith.constant 0 : i32
    return %c0_i32, %c0_i32_0 : i32, i32
  }
  func.func @transform_17(%arg0: i32) -> (i32, i32, i32) {
    %c0_i32 = arith.constant 0 : i32
    %c0_i32_0 = arith.constant 0 : i32
    %c0_i32_1 = arith.constant 0 : i32
    %c0_i32_2 = arith.constant 0 : i32
    return %c0_i32, %c0_i32_0, %c0_i32_1 : i32, i32, i32
  }
  func.func @transform_18(%arg0: i32) -> (i32, i32, i32) {
    %c0_i32 = arith.constant 0 : i32
    %c0_i32_0 = arith.constant 0 : i32
    %c0_i32_1 = arith.constant 0 : i32
    %c0_i32_2 = arith.constant 0 : i32
    return %c0_i32, %c0_i32_0, %c0_i32_1 : i32, i32, i32
  }
  func.func @transform_19(%arg0: i32) -> (i32, i32) {
    %c0_i32 = arith.constant 0 : i32
    %c0_i32_0 = arith.constant 0 : i32
    %c0_i32_1 = arith.constant 0 : i32
    return %c0_i32, %c0_i32_0 : i32, i32
  }
  func.func @transform_20(%arg0: i32) -> (i32, i32) {
    %c0_i32 = arith.constant 0 : i32
    %c0_i32_0 = arith.constant 0 : i32
    %c0_i32_1 = arith.constant 0 : i32
    return %c0_i32, %c0_i32_0 : i32, i32
  }
  func.func @transform_21(%arg0: i32) -> (i32, i32) {
    %c0_i32 = arith.constant 0 : i32
    %c0_i32_0 = arith.constant 0 : i32
    %c0_i32_1 = arith.constant 0 : i32
    return %c0_i32, %c0_i32_0 : i32, i32
  }
  func.func @transform_22(%arg0: i32) -> (i32, i32) {
    %c0_i32 = arith.constant 0 : i32
    %c0_i32_0 = arith.constant 0 : i32
    %c0_i32_1 = arith.constant 0 : i32
    return %c0_i32, %c0_i32_0 : i32, i32
  }
  func.func @transform_23(%arg0: i32) -> (i32, i32) {
    %c0_i32 = arith.constant 0 : i32
    %c0_i32_0 = arith.constant 0 : i32
    %c0_i32_1 = arith.constant 0 : i32
    return %c0_i32, %c0_i32_0 : i32, i32
  }
  func.func @transform_24(%arg0: i32) -> (i32, i32) {
    %c0_i32 = arith.constant 0 : i32
    %c0_i32_0 = arith.constant 0 : i32
    %c0_i32_1 = arith.constant 0 : i32
    return %c0_i32, %c0_i32_0 : i32, i32
  }
  func.func @transform_25(%arg0: i32) -> (i32, i32) {
    %c0_i32 = arith.constant 0 : i32
    %c0_i32_0 = arith.constant 0 : i32
    %c0_i32_1 = arith.constant 0 : i32
    return %c0_i32, %c0_i32_0 : i32, i32
  }
  func.func @transform_26(%arg0: i32) -> (i32, i32, i32) {
    %c0_i32 = arith.constant 0 : i32
    %c0_i32_0 = arith.constant 0 : i32
    %c0_i32_1 = arith.constant 0 : i32
    %c0_i32_2 = arith.constant 0 : i32
    return %c0_i32, %c0_i32_0, %c0_i32_1 : i32, i32, i32
  }
  func.func @transform_27(%arg0: i32) -> (i32, i32, i32) {
    %c0_i32 = arith.constant 0 : i32
    %c0_i32_0 = arith.constant 0 : i32
    %c0_i32_1 = arith.constant 0 : i32
    %c0_i32_2 = arith.constant 0 : i32
    return %c0_i32, %c0_i32_0, %c0_i32_1 : i32, i32, i32
  }
  func.func @transform_28(%arg0: i32) -> (i32, i32) {
    %c0_i32 = arith.constant 0 : i32
    %c0_i32_0 = arith.constant 0 : i32
    %c0_i32_1 = arith.constant 0 : i32
    return %c0_i32, %c0_i32_0 : i32, i32
  }
  func.func @transform_29(%arg0: i32) -> (i32, i32) {
    %c0_i32 = arith.constant 0 : i32
    %c0_i32_0 = arith.constant 0 : i32
    %c0_i32_1 = arith.constant 0 : i32
    return %c0_i32, %c0_i32_0 : i32, i32
  }
  func.func @transform_30(%arg0: i32) -> (i32, i32) {
    %c0_i32 = arith.constant 0 : i32
    %c0_i32_0 = arith.constant 0 : i32
    %c0_i32_1 = arith.constant 0 : i32
    return %c0_i32, %c0_i32_0 : i32, i32
  }
  func.func @transform_31(%arg0: i32) -> (i32, i32) {
    %c0_i32 = arith.constant 0 : i32
    %c0_i32_0 = arith.constant 0 : i32
    %c0_i32_1 = arith.constant 0 : i32
    return %c0_i32, %c0_i32_0 : i32, i32
  }
  func.func @transform_32(%arg0: i32) -> (i32, i32, i32) {
    %c0_i32 = arith.constant 0 : i32
    %c0_i32_0 = arith.constant 0 : i32
    %c0_i32_1 = arith.constant 0 : i32
    return %arg0, %c0_i32, %c0_i32_0 : i32, i32, i32
  }
}

</mosaic_0001>

<llo_original>
// kernel: _lambda_.1
$region0: #{_lambda_.1}
  #allocation0 [shape = 'u32[]', space=smem, size = 0x4, offset = 0x4, fixed_abs, tag = 'smem constant byte address 0x4 - core index']
  #allocation1 [shape = 'u32[144,128]{1,0:T(1,128)}', space=vmem, size = 0x12000, scoped, tag = 'internal scratch']
  %s0 = inlined_call_operand.smem [shape: u32[33], index: -1, kind: input, shape index: {}]
  %s1 = sld [smem:[%s0]]
  %s2 = scalar_lea.smem %s0, 1
  %s3 = sld [smem:[%s2]]
  %s4 = scalar_lea.smem %s0, 2
  %s5 = sld [smem:[%s4]]
  %s6 = scalar_lea.smem %s0, 3
  %s7 = sld [smem:[%s6]]
  %s8 = scalar_lea.smem %s0, 4
  %s9 = sld [smem:[%s8]]
  %s10 = scalar_lea.smem %s0, 5
  %s11 = sld [smem:[%s10]]
  %s12 = scalar_lea.smem %s0, 6
  %s13 = sld [smem:[%s12]]
  %s14 = scalar_lea.smem %s0, 7
  %s15 = sld [smem:[%s14]]
  %s16 = scalar_lea.smem %s0, 8
  %s17 = sld [smem:[%s16]]
  %s18 = scalar_lea.smem %s0, 9
  %s19 = sld [smem:[%s18]]
  %s20 = scalar_lea.smem %s0, 10
  %s21 = sld [smem:[%s20]]
  %s22 = scalar_lea.smem %s0, 11
  %s23 = sld [smem:[%s22]]
  %s24 = scalar_lea.smem %s0, 12
  %s25 = sld [smem:[%s24]]
  %s26 = scalar_lea.smem %s0, 13
  %s27 = sld [smem:[%s26]]
  %s28 = scalar_lea.smem %s0, 14
  %s29 = sld [smem:[%s28]]
  %s30 = scalar_lea.smem %s0, 15
  %s31 = sld [smem:[%s30]]
  %s32 = scalar_lea.smem %s0, 16
  %s33 = sld [smem:[%s32]]
  %s34 = scalar_lea.smem %s0, 17
  %s35 = sld [smem:[%s34]]
  %s36 = scalar_lea.smem %s0, 18
  %s37 = sld [smem:[%s36]]
  %s38 = scalar_lea.smem %s0, 19
  %s39 = sld [smem:[%s38]]
  %s40 = scalar_lea.smem %s0, 20
  %s41 = sld [smem:[%s40]]
  %s42 = scalar_lea.smem %s0, 21
  %s43 = sld [smem:[%s42]]
  %s44 = scalar_lea.smem %s0, 22
  %s45 = sld [smem:[%s44]]
  %s46 = scalar_lea.smem %s0, 23
  %s47 = sld [smem:[%s46]]
  %s48 = scalar_lea.smem %s0, 24
  %s49 = sld [smem:[%s48]]
  %s50 = scalar_lea.smem %s0, 25
  %s51 = sld [smem:[%s50]]
  %s52 = scalar_lea.smem %s0, 26
  %s53 = sld [smem:[%s52]]
  %s54 = scalar_lea.smem %s0, 27
  %s55 = sld [smem:[%s54]]
  %s56 = scalar_lea.smem %s0, 28
  %s57 = sld [smem:[%s56]]
  %s58 = scalar_lea.smem %s0, 29
  %s59 = sld [smem:[%s58]]
  %s60 = scalar_lea.smem %s0, 30
  %s61 = sld [smem:[%s60]]
  %s62 = scalar_lea.smem %s0, 31
  %s63 = sld [smem:[%s62]]
  %s64 = scalar_lea.smem %s0, 32
  %s65 = sld [smem:[%s64]]
  %s66 = sld [smem:[#allocation0]]
  $region245: #{_lambda_.1} parent=0
    _
  %s68 = ssub.s32 1, %s66
  %s69 = scalar_select 0, %s68, %s66
  $region1: #{_lambda_.1} parent=0
    #allocation2 [shape = 'u8[2048]{0}', space=vmem, size = 0x800, scoped, tag = 'input window, operand 1, single buffered']
    #allocation3 [shape = 's32[2]{0}', space=sflag, size = 0x8, scoped, tag = 'scoped memory for _lambda_.1']
    #allocation4 [shape = 's32[2]{0}', space=sflag, size = 0x8, scoped, tag = 'scoped memory for _lambda_.1']
    #allocation5 [shape = 'u8[512]{0}', space=vmem, size = 0x400, scoped, tag = 'input window, operand 2, single buffered']
    #allocation6 [shape = 's32[1]{0}', space=sflag, size = 0x4, scoped, tag = 'scoped memory for _lambda_.1']
    #allocation7 [shape = 'u8[2048]{0}', space=vmem, size = 0x800, scoped, tag = 'input window, operand 3, single buffered']
    #allocation8 [shape = 'u8[512]{0}', space=vmem, size = 0x400, scoped, tag = 'input window, operand 7, single buffered']
    #allocation9 [shape = 's32[1]{0}', space=sflag, size = 0x4, scoped, tag = 'scoped memory for _lambda_.1']
    #allocation10 [shape = 'u8[2048]{0}', space=vmem, size = 0x800, scoped, tag = 'input window, operand 8, single buffered']
    #allocation11 [shape = 'u8[512]{0}', space=vmem, size = 0x400, scoped, tag = 'input window, operand 9, single buffered']
    #allocation12 [shape = 's32[1]{0}', space=sflag, size = 0x4, scoped, tag = 'scoped memory for _lambda_.1']
    #allocation13 [shape = 'u8[4096]{0}', space=vmem, size = 0x1000, scoped, tag = 'input window, operand 10, single buffered']
    #allocation14 [shape = 'u8[4096]{0}', space=vmem, size = 0x1000, scoped, tag = 'input window, operand 11, single buffered']
    #allocation15 [shape = 's32[1]{0}', space=sflag, size = 0x4, scoped, tag = 'scoped memory for _lambda_.1']
    #allocation16 [shape = 'u8[2048]{0}', space=vmem, size = 0x800, scoped, tag = 'input window, operand 12, single buffered']
    #allocation17 [shape = 'u8[512]{0}', space=vmem, size = 0x400, scoped, tag = 'input window, operand 13, single buffered']
    #allocation18 [shape = 's32[1]{0}', space=sflag, size = 0x4, scoped, tag = 'scoped memory for _lambda_.1']
    #allocation19 [shape = 'u8[512]{0}', space=vmem, size = 0x400, scoped, tag = 'input window, operand 15, single buffered']
    #allocation20 [shape = 'u8[2048]{0}', space=vmem, size = 0x800, scoped, tag = 'input window, operand 16, single buffered']
    #allocation21 [shape = 's32[1]{0}', space=sflag, size = 0x4, scoped, tag = 'scoped memory for _lambda_.1']
    #allocation22 [shape = 'u8[16384]{0}', space=vmem, size = 0x4000, scoped, tag = 'input window, operand 17, single buffered']
    #allocation23 [shape = 'u8[16384]{0}', space=vmem, size = 0x4000, scoped, tag = 'input window, operand 18, single buffered']
    #allocation24 [shape = 's32[1]{0}', space=sflag, size = 0x4, scoped, tag = 'scoped memory for _lambda_.1']
    #allocation25 [shape = 'u8[512]{0}', space=vmem, size = 0x400, scoped, tag = 'input window, operand 20, single buffered']
    #allocation26 [shape = 'u8[2048]{0}', space=vmem, size = 0x800, scoped, tag = 'input window, operand 21, single buffered']
    #allocation27 [shape = 's32[1]{0}', space=sflag, size = 0x4, scoped, tag = 'scoped memory for _lambda_.1']
    #allocation28 [shape = 'u8[512]{0}', space=vmem, size = 0x400, scoped, tag = 'input window, operand 22, single buffered']
    #allocation29 [shape = 'u8[512]{0}', space=vmem, size = 0x400, scoped, tag = 'input window, operand 24, single buffered']
    #allocation30 [shape = 's32[1]{0}', space=sflag, size = 0x4, scoped, tag = 'scoped memory for _lambda_.1']
    #allocation31 [shape = 'u8[2048]{0}', space=vmem, size = 0x800, scoped, tag = 'input window, operand 25, single buffered']
    #allocation32 [shape = 'u8[512]{0}', space=vmem, size = 0x400, scoped, tag = 'input window, operand 29, single buffered']
    #allocation33 [shape = 's32[1]{0}', space=sflag, size = 0x4, scoped, tag = 'scoped memory for _lambda_.1']
    #allocation34 [shape = 'u8[512]{0}', space=vmem, size = 0x400, scoped, tag = 'input window, operand 31, single buffered']
    #allocation35 [shape = 'u8[16384]{0}', space=vmem, size = 0x4000, scoped, tag = 'output window, operand 0']
    %70 = vsyncpa [#allocation3], 0
    %71 = vsyncpa [#allocation6], 0
    %72 = vsyncpa [#allocation9], 0
    %73 = vsyncpa [#allocation12], 0
    %74 = vsyncpa [#allocation15], 0
    %75 = vsyncpa [#allocation18], 0
    %76 = vsyncpa [#allocation21], 0
    %77 = vsyncpa [#allocation24], 0
    %78 = vsyncpa [#allocation27], 0
    %79 = vsyncpa [#allocation30], 0
    %80 = vsyncpa [#allocation33], 0
    %81 = vsyncpa [#allocation4], 0
    %s82 = scalar_lea.sflag [#allocation4], 1
    %83 = vsyncpa %s82, 0
    loop: start=0, step=1, limit=4
    $region2: #{_lambda_.1} parent=1 // loop_pre_header
      _
    $region3: #{_lambda_.1} parent=1 // loop_header
      %s85 = sphi 0, %s89
      %p86 = scmp.ge.s32.totalorder %s85, 4
      %s95 = sphi 0, %s97
      %s98 = sphi 0, %s95
      %s99 = sphi 0, %s98
      %s115 = sphi 0, %s99
      %s119 = sphi 0, %s119
      %s121 = sphi 0, %s119
      %s122 = sphi 0, %s121
      %s136 = sphi 0, %s122
      %s140 = sphi 0, %s140
      %s142 = sphi 0, %s140
      %s143 = sphi 0, %s142
      %s157 = sphi 0, %s143
      %s161 = sphi 0, %s161
      %s163 = sphi 0, %s161
      %s164 = sphi 0, %s163
      %s178 = sphi 0, %s164
      %s182 = sphi 0, %s182
      %s184 = sphi 0, %s182
      %s185 = sphi 0, %s184
      %s199 = sphi 0, %s185
      %s203 = sphi 0, %s203
      %s205 = sphi 0, %s203
      %s206 = sphi 0, %s205
      %s220 = sphi 0, %s206
      %s224 = sphi 0, %s224
      %s226 = sphi 0, %s224
      %s227 = sphi 0, %s226
      %s241 = sphi 0, %s227
      %s245 = sphi 0, %s245
      %s247 = sphi 0, %s245
      %s248 = sphi 0, %s247
      %s262 = sphi 0, %s248
      %s266 = sphi 0, %s266
      %s268 = sphi 0, %s266
      %s269 = sphi 0, %s268
      %s283 = sphi 0, %s269
      %s287 = sphi 0, %s287
      %s289 = sphi 0, %s287
      %s290 = sphi 0, %s289
      %s304 = sphi 0, %s290
      %s308 = sphi 0, %s308
      %s310 = sphi 0, %s308
      %s311 = sphi 0, %s310
      %s325 = sphi 0, %s311
      %s329 = sphi 0, %s329
      %s331 = sphi 0, %s329
      %s332 = sphi 0, %s331
      %s346 = sphi 0, %s332
      %s350 = sphi 0, %s350
      %s352 = sphi 0, %s350
      %s353 = sphi 0, %s352
      %s367 = sphi 0, %s353
      %s371 = sphi 0, %s371
      %s373 = sphi 0, %s371
      %s374 = sphi 0, %s373
      %s388 = sphi 0, %s374
      %s392 = sphi 0, %s392
      %s394 = sphi 0, %s392
      %s395 = sphi 0, %s394
      %s409 = sphi 0, %s395
      %s413 = sphi 0, %s413
      %s415 = sphi 0, %s413
      %s416 = sphi 0, %s415
      %s430 = sphi 0, %s416
      %s434 = sphi 0, %s434
      %s436 = sphi 0, %s434
      %s437 = sphi 0, %s436
      %s451 = sphi 0, %s437
      %s455 = sphi 0, %s455
      %s457 = sphi 0, %s455
      %s458 = sphi 0, %s457
      %s472 = sphi 0, %s458
      %s476 = sphi 0, %s476
      %s478 = sphi 0, %s476
      %s479 = sphi 0, %s478
      %s493 = sphi 0, %s479
      %s497 = sphi 0, %s497
      %s499 = sphi 0, %s497
      %s500 = sphi 0, %s499
      %s514 = sphi 0, %s500
      %s518 = sphi 0, %s518
      %s520 = sphi 0, %s518
      %s521 = sphi 0, %s520
      %s535 = sphi 0, %s521
      %s539 = sphi 0, %s539
      %s541 = sphi 0, %s539
      %s542 = sphi 0, %s541
      %s556 = sphi 0, %s542
      %s560 = sphi 0, %s560
      %s562 = sphi 0, %s560
      %s563 = sphi 0, %s562
      %s577 = sphi 0, %s563
      %s581 = sphi 0, %s581
      %s583 = sphi 0, %s581
      %s584 = sphi 0, %s583
      %s598 = sphi 0, %s584
      %s602 = sphi 0, %s602
      %s604 = sphi 0, %s602
      %s605 = sphi 0, %s604
      %s619 = sphi 0, %s605
      %s623 = sphi 0, %s623
      %s625 = sphi 0, %s623
      %s626 = sphi 0, %s625
      %s640 = sphi 0, %s626
      %s644 = sphi 0, %s644
      %s646 = sphi 0, %s644
      %s647 = sphi 0, %s646
      %s661 = sphi 0, %s647
      %s665 = sphi 0, %s665
      %s667 = sphi 0, %s665
      %s668 = sphi 0, %s667
      %s682 = sphi 0, %s668
      %s686 = sphi 0, %s686
      %s688 = sphi 0, %s686
      %s689 = sphi 0, %s688
      %s703 = sphi 0, %s689
      %s707 = sphi 0, %s707
      %s709 = sphi 0, %s707
      %s710 = sphi 0, %s709
      %s724 = sphi 0, %s710
      %s728 = sphi 0, %s728
      %s730 = sphi 0, %s728
      %s731 = sphi 0, %s730
      %s745 = sphi 0, %s731
      %s749 = sphi 0, %s749
      %s751 = sphi 0, %s749
      %s752 = sphi 0, %s751
      %s766 = sphi 0, %s752
      %s772 = sphi 0, %s774
      %s775 = sphi 0, %s772
      %s776 = sphi 0, %s775
      %s792 = sphi 0, %s776
    $region4: #{_lambda_.1} parent=1 // loop_header_branch
      %88 = sbr.rel (%p86) target = $region8
    $region5: #{_lambda_.1} parent=1 // loop_body
      %s90 = ssub.s32 %s85, 1
      %s91 = ssub.s32 %s85, 2
      %s92 = sadd.s32 %s85, 1
      %s93 = ssub.s32 %s85, %s92
      %p94 = scmp.eq.s32.totalorder %s93, 0
      %s96 = sadd.s32 %s95, 1
      %s97 = scalar_select %p94, %s95, %s96
      %p100 = pneg %p94
      %p101 = scmp.eq.s32.totalorder %s85, 1
      %p102 = por %p100, %p101
      %p103 = scmp.ne.s32.totalorder %s95, %s98
      %p104 = scmp.eq.s32.totalorder %s85, 0
      %p105 = por %p103, %p104
      %p106 = scmp.ne.s32.totalorder %s95, %s98
      %p107 = scmp.eq.s32.totalorder %s90, 1
      %p108 = por %p106, %p107
      %p109 = scmp.ne.s32.totalorder %s98, %s99
      %p110 = scmp.eq.s32.totalorder %s90, 0
      %p111 = por %p109, %p110
      %p112 = scmp.ne.s32.totalorder %s98, %s99
      %p113 = scmp.eq.s32.totalorder %s91, 1
      %p114 = por %p112, %p113
      %p116 = scmp.ne.s32.totalorder %s99, %s115
      %p117 = scmp.eq.s32.totalorder %s91, 0
      %p118 = por %p116, %p117
      %s120 = sadd.s32 %s119, 1
      %p123 = scmp.eq.s32.totalorder %s85, 1
      %p124 = scmp.ne.s32.totalorder %s119, %s121
      %p125 = scmp.eq.s32.totalorder %s85, 0
      %p126 = por %p124, %p125
      %p127 = scmp.ne.s32.totalorder %s119, %s121
      %p128 = scmp.eq.s32.totalorder %s90, 1
      %p129 = por %p127, %p128
      %p130 = scmp.ne.s32.totalorder %s121, %s122
      %p131 = scmp.eq.s32.totalorder %s90, 0
      %p132 = por %p130, %p131
      %p133 = scmp.ne.s32.totalorder %s121, %s122
      %p134 = scmp.eq.s32.totalorder %s91, 1
      %p135 = por %p133, %p134
      %p137 = scmp.ne.s32.totalorder %s122, %s136
      %p138 = scmp.eq.s32.totalorder %s91, 0
      %p139 = por %p137, %p138
      %s141 = sadd.s32 %s140, 1
      %p144 = scmp.eq.s32.totalorder %s85, 1
      %p145 = scmp.ne.s32.totalorder %s140, %s142
      %p146 = scmp.eq.s32.totalorder %s85, 0
      %p147 = por %p145, %p146
      %p148 = scmp.ne.s32.totalorder %s140, %s142
      %p149 = scmp.eq.s32.totalorder %s90, 1
      %p150 = por %p148, %p149
      %p151 = scmp.ne.s32.totalorder %s142, %s143
      %p152 = scmp.eq.s32.totalorder %s90, 0
      %p153 = por %p151, %p152
      %p154 = scmp.ne.s32.totalorder %s142, %s143
      %p155 = scmp.eq.s32.totalorder %s91, 1
      %p156 = por %p154, %p155
      %p158 = scmp.ne.s32.totalorder %s143, %s157
      %p159 = scmp.eq.s32.totalorder %s91, 0
      %p160 = por %p158, %p159
      %s162 = sadd.s32 %s161, 1
      %p165 = scmp.eq.s32.totalorder %s85, 1
      %p166 = scmp.ne.s32.totalorder %s161, %s163
      %p167 = scmp.eq.s32.totalorder %s85, 0
      %p168 = por %p166, %p167
      %p169 = scmp.ne.s32.totalorder %s161, %s163
      %p170 = scmp.eq.s32.totalorder %s90, 1
      %p171 = por %p169, %p170
      %p172 = scmp.ne.s32.totalorder %s163, %s164
      %p173 = scmp.eq.s32.totalorder %s90, 0
      %p174 = por %p172, %p173
      %p175 = scmp.ne.s32.totalorder %s163, %s164
      %p176 = scmp.eq.s32.totalorder %s91, 1
      %p177 = por %p175, %p176
      %p179 = scmp.ne.s32.totalorder %s164, %s178
      %p180 = scmp.eq.s32.totalorder %s91, 0
      %p181 = por %p179, %p180
      %s183 = sadd.s32 %s182, 1
      %p186 = scmp.eq.s32.totalorder %s85, 1
      %p187 = scmp.ne.s32.totalorder %s182, %s184
      %p188 = scmp.eq.s32.totalorder %s85, 0
      %p189 = por %p187, %p188
      %p190 = scmp.ne.s32.totalorder %s182, %s184
      %p191 = scmp.eq.s32.totalorder %s90, 1
      %p192 = por %p190, %p191
      %p193 = scmp.ne.s32.totalorder %s184, %s185
      %p194 = scmp.eq.s32.totalorder %s90, 0
      %p195 = por %p193, %p194
      %p196 = scmp.ne.s32.totalorder %s184, %s185
      %p197 = scmp.eq.s32.totalorder %s91, 1
      %p198 = por %p196, %p197
      %p200 = scmp.ne.s32.totalorder %s185, %s199
      %p201 = scmp.eq.s32.totalorder %s91, 0
      %p202 = por %p200, %p201
      %s204 = sadd.s32 %s203, 1
      %p207 = scmp.eq.s32.totalorder %s85, 1
      %p208 = scmp.ne.s32.totalorder %s203, %s205
      %p209 = scmp.eq.s32.totalorder %s85, 0
      %p210 = por %p208, %p209
      %p211 = scmp.ne.s32.totalorder %s203, %s205
      %p212 = scmp.eq.s32.totalorder %s90, 1
      %p213 = por %p211, %p212
      %p214 = scmp.ne.s32.totalorder %s205, %s206
      %p215 = scmp.eq.s32.totalorder %s90, 0
      %p216 = por %p214, %p215
      %p217 = scmp.ne.s32.totalorder %s205, %s206
      %p218 = scmp.eq.s32.totalorder %s91, 1
      %p219 = por %p217, %p218
      %p221 = scmp.ne.s32.totalorder %s206, %s220
      %p222 = scmp.eq.s32.totalorder %s91, 0
      %p223 = por %p221, %p222
      %s225 = sadd.s32 %s224, 1
      %p228 = scmp.eq.s32.totalorder %s85, 1
      %p229 = scmp.ne.s32.totalorder %s224, %s226
      %p230 = scmp.eq.s32.totalorder %s85, 0
      %p231 = por %p229, %p230
      %p232 = scmp.ne.s32.totalorder %s224, %s226
      %p233 = scmp.eq.s32.totalorder %s90, 1
      %p234 = por %p232, %p233
      %p235 = scmp.ne.s32.totalorder %s226, %s227
      %p236 = scmp.eq.s32.totalorder %s90, 0
      %p237 = por %p235, %p236
      %p238 = scmp.ne.s32.totalorder %s226, %s227
      %p239 = scmp.eq.s32.totalorder %s91, 1
      %p240 = por %p238, %p239
      %p242 = scmp.ne.s32.totalorder %s227, %s241
      %p243 = scmp.eq.s32.totalorder %s91, 0
      %p244 = por %p242, %p243
      %s246 = sadd.s32 %s245, 1
      %p249 = scmp.eq.s32.totalorder %s85, 1
      %p250 = scmp.ne.s32.totalorder %s245, %s247
      %p251 = scmp.eq.s32.totalorder %s85, 0
      %p252 = por %p250, %p251
      %p253 = scmp.ne.s32.totalorder %s245, %s247
      %p254 = scmp.eq.s32.totalorder %s90, 1
      %p255 = por %p253, %p254
      %p256 = scmp.ne.s32.totalorder %s247, %s248
      %p257 = scmp.eq.s32.totalorder %s90, 0
      %p258 = por %p256, %p257
      %p259 = scmp.ne.s32.totalorder %s247, %s248
      %p260 = scmp.eq.s32.totalorder %s91, 1
      %p261 = por %p259, %p260
      %p263 = scmp.ne.s32.totalorder %s248, %s262
      %p264 = scmp.eq.s32.totalorder %s91, 0
      %p265 = por %p263, %p264
      %s267 = sadd.s32 %s266, 1
      %p270 = scmp.eq.s32.totalorder %s85, 1
      %p271 = scmp.ne.s32.totalorder %s266, %s268
      %p272 = scmp.eq.s32.totalorder %s85, 0
      %p273 = por %p271, %p272
      %p274 = scmp.ne.s32.totalorder %s266, %s268
      %p275 = scmp.eq.s32.totalorder %s90, 1
      %p276 = por %p274, %p275
      %p277 = scmp.ne.s32.totalorder %s268, %s269
      %p278 = scmp.eq.s32.totalorder %s90, 0
      %p279 = por %p277, %p278
      %p280 = scmp.ne.s32.totalorder %s268, %s269
      %p281 = scmp.eq.s32.totalorder %s91, 1
      %p282 = por %p280, %p281
      %p284 = scmp.ne.s32.totalorder %s269, %s283
      %p285 = scmp.eq.s32.totalorder %s91, 0
      %p286 = por %p284, %p285
      %s288 = sadd.s32 %s287, 1
      %p291 = scmp.eq.s32.totalorder %s85, 1
      %p292 = scmp.ne.s32.totalorder %s287, %s289
      %p293 = scmp.eq.s32.totalorder %s85, 0
      %p294 = por %p292, %p293
      %p295 = scmp.ne.s32.totalorder %s287, %s289
      %p296 = scmp.eq.s32.totalorder %s90, 1
      %p297 = por %p295, %p296
      %p298 = scmp.ne.s32.totalorder %s289, %s290
      %p299 = scmp.eq.s32.totalorder %s90, 0
      %p300 = por %p298, %p299
      %p301 = scmp.ne.s32.totalorder %s289, %s290
      %p302 = scmp.eq.s32.totalorder %s91, 1
      %p303 = por %p301, %p302
      %p305 = scmp.ne.s32.totalorder %s290, %s304
      %p306 = scmp.eq.s32.totalorder %s91, 0
      %p307 = por %p305, %p306
      %s309 = sadd.s32 %s308, 1
      %p312 = scmp.eq.s32.totalorder %s85, 1
      %p313 = scmp.ne.s32.totalorder %s308, %s310
      %p314 = scmp.eq.s32.totalorder %s85, 0
      %p315 = por %p313, %p314
      %p316 = scmp.ne.s32.totalorder %s308, %s310
      %p317 = scmp.eq.s32.totalorder %s90, 1
      %p318 = por %p316, %p317
      %p319 = scmp.ne.s32.totalorder %s310, %s311
      %p320 = scmp.eq.s32.totalorder %s90, 0
      %p321 = por %p319, %p320
      %p322 = scmp.ne.s32.totalorder %s310, %s311
      %p323 = scmp.eq.s32.totalorder %s91, 1
      %p324 = por %p322, %p323
      %p326 = scmp.ne.s32.totalorder %s311, %s325
      %p327 = scmp.eq.s32.totalorder %s91, 0
      %p328 = por %p326, %p327
      %s330 = sadd.s32 %s329, 1
      %p333 = scmp.eq.s32.totalorder %s85, 1
      %p334 = scmp.ne.s32.totalorder %s329, %s331
      %p335 = scmp.eq.s32.totalorder %s85, 0
      %p336 = por %p334, %p335
      %p337 = scmp.ne.s32.totalorder %s329, %s331
      %p338 = scmp.eq.s32.totalorder %s90, 1
      %p339 = por %p337, %p338
      %p340 = scmp.ne.s32.totalorder %s331, %s332
      %p341 = scmp.eq.s32.totalorder %s90, 0
      %p342 = por %p340, %p341
      %p343 = scmp.ne.s32.totalorder %s331, %s332
      %p344 = scmp.eq.s32.totalorder %s91, 1
      %p345 = por %p343, %p344
      %p347 = scmp.ne.s32.totalorder %s332, %s346
      %p348 = scmp.eq.s32.totalorder %s91, 0
      %p349 = por %p347, %p348
      %s351 = sadd.s32 %s350, 1
      %p354 = scmp.eq.s32.totalorder %s85, 1
      %p355 = scmp.ne.s32.totalorder %s350, %s352
      %p356 = scmp.eq.s32.totalorder %s85, 0
      %p357 = por %p355, %p356
      %p358 = scmp.ne.s32.totalorder %s350, %s352
      %p359 = scmp.eq.s32.totalorder %s90, 1
      %p360 = por %p358, %p359
      %p361 = scmp.ne.s32.totalorder %s352, %s353
      %p362 = scmp.eq.s32.totalorder %s90, 0
      %p363 = por %p361, %p362
      %p364 = scmp.ne.s32.totalorder %s352, %s353
      %p365 = scmp.eq.s32.totalorder %s91, 1
      %p366 = por %p364, %p365
      %p368 = scmp.ne.s32.totalorder %s353, %s367
      %p369 = scmp.eq.s32.totalorder %s91, 0
      %p370 = por %p368, %p369
      %s372 = sadd.s32 %s371, 1
      %p375 = scmp.eq.s32.totalorder %s85, 1
      %p376 = scmp.ne.s32.totalorder %s371, %s373
      %p377 = scmp.eq.s32.totalorder %s85, 0
      %p378 = por %p376, %p377
      %p379 = scmp.ne.s32.totalorder %s371, %s373
      %p380 = scmp.eq.s32.totalorder %s90, 1
      %p381 = por %p379, %p380
      %p382 = scmp.ne.s32.totalorder %s373, %s374
      %p383 = scmp.eq.s32.totalorder %s90, 0
      %p384 = por %p382, %p383
      %p385 = scmp.ne.s32.totalorder %s373, %s374
      %p386 = scmp.eq.s32.totalorder %s91, 1
      %p387 = por %p385, %p386
      %p389 = scmp.ne.s32.totalorder %s374, %s388
      %p390 = scmp.eq.s32.totalorder %s91, 0
      %p391 = por %p389, %p390
      %s393 = sadd.s32 %s392, 1
      %p396 = scmp.eq.s32.totalorder %s85, 1
      %p397 = scmp.ne.s32.totalorder %s392, %s394
      %p398 = scmp.eq.s32.totalorder %s85, 0
      %p399 = por %p397, %p398
      %p400 = scmp.ne.s32.totalorder %s392, %s394
      %p401 = scmp.eq.s32.totalorder %s90, 1
      %p402 = por %p400, %p401
      %p403 = scmp.ne.s32.totalorder %s394, %s395
      %p404 = scmp.eq.s32.totalorder %s90, 0
      %p405 = por %p403, %p404
      %p406 = scmp.ne.s32.totalorder %s394, %s395
      %p407 = scmp.eq.s32.totalorder %s91, 1
      %p408 = por %p406, %p407
      %p410 = scmp.ne.s32.totalorder %s395, %s409
      %p411 = scmp.eq.s32.totalorder %s91, 0
      %p412 = por %p410, %p411
      %s414 = sadd.s32 %s413, 1
      %p417 = scmp.eq.s32.totalorder %s85, 1
      %p418 = scmp.ne.s32.totalorder %s413, %s415
      %p419 = scmp.eq.s32.totalorder %s85, 0
      %p420 = por %p418, %p419
      %p421 = scmp.ne.s32.totalorder %s413, %s415
      %p422 = scmp.eq.s32.totalorder %s90, 1
      %p423 = por %p421, %p422
      %p424 = scmp.ne.s32.totalorder %s415, %s416
      %p425 = scmp.eq.s32.totalorder %s90, 0
      %p426 = por %p424, %p425
      %p427 = scmp.ne.s32.totalorder %s415, %s416
      %p428 = scmp.eq.s32.totalorder %s91, 1
      %p429 = por %p427, %p428
      %p431 = scmp.ne.s32.totalorder %s416, %s430
      %p432 = scmp.eq.s32.totalorder %s91, 0
      %p433 = por %p431, %p432
      %s435 = sadd.s32 %s434, 1
      %p438 = scmp.eq.s32.totalorder %s85, 1
      %p439 = scmp.ne.s32.totalorder %s434, %s436
      %p440 = scmp.eq.s32.totalorder %s85, 0
      %p441 = por %p439, %p440
      %p442 = scmp.ne.s32.totalorder %s434, %s436
      %p443 = scmp.eq.s32.totalorder %s90, 1
      %p444 = por %p442, %p443
      %p445 = scmp.ne.s32.totalorder %s436, %s437
      %p446 = scmp.eq.s32.totalorder %s90, 0
      %p447 = por %p445, %p446
      %p448 = scmp.ne.s32.totalorder %s436, %s437
      %p449 = scmp.eq.s32.totalorder %s91, 1
      %p450 = por %p448, %p449
      %p452 = scmp.ne.s32.totalorder %s437, %s451
      %p453 = scmp.eq.s32.totalorder %s91, 0
      %p454 = por %p452, %p453
      %s456 = sadd.s32 %s455, 1
      %p459 = scmp.eq.s32.totalorder %s85, 1
      %p460 = scmp.ne.s32.totalorder %s455, %s457
      %p461 = scmp.eq.s32.totalorder %s85, 0
      %p462 = por %p460, %p461
      %p463 = scmp.ne.s32.totalorder %s455, %s457
      %p464 = scmp.eq.s32.totalorder %s90, 1
      %p465 = por %p463, %p464
      %p466 = scmp.ne.s32.totalorder %s457, %s458
      %p467 = scmp.eq.s32.totalorder %s90, 0
      %p468 = por %p466, %p467
      %p469 = scmp.ne.s32.totalorder %s457, %s458
      %p470 = scmp.eq.s32.totalorder %s91, 1
      %p471 = por %p469, %p470
      %p473 = scmp.ne.s32.totalorder %s458, %s472
      %p474 = scmp.eq.s32.totalorder %s91, 0
      %p475 = por %p473, %p474
      %s477 = sadd.s32 %s476, 1
      %p480 = scmp.eq.s32.totalorder %s85, 1
      %p481 = scmp.ne.s32.totalorder %s476, %s478
      %p482 = scmp.eq.s32.totalorder %s85, 0
      %p483 = por %p481, %p482
      %p484 = scmp.ne.s32.totalorder %s476, %s478
      %p485 = scmp.eq.s32.totalorder %s90, 1
      %p486 = por %p484, %p485
      %p487 = scmp.ne.s32.totalorder %s478, %s479
      %p488 = scmp.eq.s32.totalorder %s90, 0
      %p489 = por %p487, %p488
      %p490 = scmp.ne.s32.totalorder %s478, %s479
      %p491 = scmp.eq.s32.totalorder %s91, 1
      %p492 = por %p490, %p491
      %p494 = scmp.ne.s32.totalorder %s479, %s493
      %p495 = scmp.eq.s32.totalorder %s91, 0
      %p496 = por %p494, %p495
      %s498 = sadd.s32 %s497, 1
      %p501 = scmp.eq.s32.totalorder %s85, 1
      %p502 = scmp.ne.s32.totalorder %s497, %s499
      %p503 = scmp.eq.s32.totalorder %s85, 0
      %p504 = por %p502, %p503
      %p505 = scmp.ne.s32.totalorder %s497, %s499
      %p506 = scmp.eq.s32.totalorder %s90, 1
      %p507 = por %p505, %p506
      %p508 = scmp.ne.s32.totalorder %s499, %s500
      %p509 = scmp.eq.s32.totalorder %s90, 0
      %p510 = por %p508, %p509
      %p511 = scmp.ne.s32.totalorder %s499, %s500
      %p512 = scmp.eq.s32.totalorder %s91, 1
      %p513 = por %p511, %p512
      %p515 = scmp.ne.s32.totalorder %s500, %s514
      %p516 = scmp.eq.s32.totalorder %s91, 0
      %p517 = por %p515, %p516
      %s519 = sadd.s32 %s518, 1
      %p522 = scmp.eq.s32.totalorder %s85, 1
      %p523 = scmp.ne.s32.totalorder %s518, %s520
      %p524 = scmp.eq.s32.totalorder %s85, 0
      %p525 = por %p523, %p524
      %p526 = scmp.ne.s32.totalorder %s518, %s520
      %p527 = scmp.eq.s32.totalorder %s90, 1
      %p528 = por %p526, %p527
      %p529 = scmp.ne.s32.totalorder %s520, %s521
      %p530 = scmp.eq.s32.totalorder %s90, 0
      %p531 = por %p529, %p530
      %p532 = scmp.ne.s32.totalorder %s520, %s521
      %p533 = scmp.eq.s32.totalorder %s91, 1
      %p534 = por %p532, %p533
      %p536 = scmp.ne.s32.totalorder %s521, %s535
      %p537 = scmp.eq.s32.totalorder %s91, 0
      %p538 = por %p536, %p537
      %s540 = sadd.s32 %s539, 1
      %p543 = scmp.eq.s32.totalorder %s85, 1
      %p544 = scmp.ne.s32.totalorder %s539, %s541
      %p545 = scmp.eq.s32.totalorder %s85, 0
      %p546 = por %p544, %p545
      %p547 = scmp.ne.s32.totalorder %s539, %s541
      %p548 = scmp.eq.s32.totalorder %s90, 1
      %p549 = por %p547, %p548
      %p550 = scmp.ne.s32.totalorder %s541, %s542
      %p551 = scmp.eq.s32.totalorder %s90, 0
      %p552 = por %p550, %p551
      %p553 = scmp.ne.s32.totalorder %s541, %s542
      %p554 = scmp.eq.s32.totalorder %s91, 1
      %p555 = por %p553, %p554
      %p557 = scmp.ne.s32.totalorder %s542, %s556
      %p558 = scmp.eq.s32.totalorder %s91, 0
      %p559 = por %p557, %p558
      %s561 = sadd.s32 %s560, 1
      %p564 = scmp.eq.s32.totalorder %s85, 1
      %p565 = scmp.ne.s32.totalorder %s560, %s562
      %p566 = scmp.eq.s32.totalorder %s85, 0
      %p567 = por %p565, %p566
      %p568 = scmp.ne.s32.totalorder %s560, %s562
      %p569 = scmp.eq.s32.totalorder %s90, 1
      %p570 = por %p568, %p569
      %p571 = scmp.ne.s32.totalorder %s562, %s563
      %p572 = scmp.eq.s32.totalorder %s90, 0
      %p573 = por %p571, %p572
      %p574 = scmp.ne.s32.totalorder %s562, %s563
      %p575 = scmp.eq.s32.totalorder %s91, 1
      %p576 = por %p574, %p575
      %p578 = scmp.ne.s32.totalorder %s563, %s577
      %p579 = scmp.eq.s32.totalorder %s91, 0
      %p580 = por %p578, %p579
      %s582 = sadd.s32 %s581, 1
      %p585 = scmp.eq.s32.totalorder %s85, 1
      %p586 = scmp.ne.s32.totalorder %s581, %s583
      %p587 = scmp.eq.s32.totalorder %s85, 0
      %p588 = por %p586, %p587
      %p589 = scmp.ne.s32.totalorder %s581, %s583
      %p590 = scmp.eq.s32.totalorder %s90, 1
      %p591 = por %p589, %p590
      %p592 = scmp.ne.s32.totalorder %s583, %s584
      %p593 = scmp.eq.s32.totalorder %s90, 0
      %p594 = por %p592, %p593
      %p595 = scmp.ne.s32.totalorder %s583, %s584
      %p596 = scmp.eq.s32.totalorder %s91, 1
      %p597 = por %p595, %p596
      %p599 = scmp.ne.s32.totalorder %s584, %s598
      %p600 = scmp.eq.s32.totalorder %s91, 0
      %p601 = por %p599, %p600
      %s603 = sadd.s32 %s602, 1
      %p606 = scmp.eq.s32.totalorder %s85, 1
      %p607 = scmp.ne.s32.totalorder %s602, %s604
      %p608 = scmp.eq.s32.totalorder %s85, 0
      %p609 = por %p607, %p608
      %p610 = scmp.ne.s32.totalorder %s602, %s604
      %p611 = scmp.eq.s32.totalorder %s90, 1
      %p612 = por %p610, %p611
      %p613 = scmp.ne.s32.totalorder %s604, %s605
      %p614 = scmp.eq.s32.totalorder %s90, 0
      %p615 = por %p613, %p614
      %p616 = scmp.ne.s32.totalorder %s604, %s605
      %p617 = scmp.eq.s32.totalorder %s91, 1
      %p618 = por %p616, %p617
      %p620 = scmp.ne.s32.totalorder %s605, %s619
      %p621 = scmp.eq.s32.totalorder %s91, 0
      %p622 = por %p620, %p621
      %s624 = sadd.s32 %s623, 1
      %p627 = scmp.eq.s32.totalorder %s85, 1
      %p628 = scmp.ne.s32.totalorder %s623, %s625
      %p629 = scmp.eq.s32.totalorder %s85, 0
      %p630 = por %p628, %p629
      %p631 = scmp.ne.s32.totalorder %s623, %s625
      %p632 = scmp.eq.s32.totalorder %s90, 1
      %p633 = por %p631, %p632
      %p634 = scmp.ne.s32.totalorder %s625, %s626
      %p635 = scmp.eq.s32.totalorder %s90, 0
      %p636 = por %p634, %p635
      %p637 = scmp.ne.s32.totalorder %s625, %s626
      %p638 = scmp.eq.s32.totalorder %s91, 1
      %p639 = por %p637, %p638
      %p641 = scmp.ne.s32.totalorder %s626, %s640
      %p642 = scmp.eq.s32.totalorder %s91, 0
      %p643 = por %p641, %p642
      %s645 = sadd.s32 %s644, 1
      %p648 = scmp.eq.s32.totalorder %s85, 1
      %p649 = scmp.ne.s32.totalorder %s644, %s646
      %p650 = scmp.eq.s32.totalorder %s85, 0
      %p651 = por %p649, %p650
      %p652 = scmp.ne.s32.totalorder %s644, %s646
      %p653 = scmp.eq.s32.totalorder %s90, 1
      %p654 = por %p652, %p653
      %p655 = scmp.ne.s32.totalorder %s646, %s647
      %p656 = scmp.eq.s32.totalorder %s90, 0
      %p657 = por %p655, %p656
      %p658 = scmp.ne.s32.totalorder %s646, %s647
      %p659 = scmp.eq.s32.totalorder %s91, 1
      %p660 = por %p658, %p659
      %p662 = scmp.ne.s32.totalorder %s647, %s661
      %p663 = scmp.eq.s32.totalorder %s91, 0
      %p664 = por %p662, %p663
      %s666 = sadd.s32 %s665, 1
      %p669 = scmp.eq.s32.totalorder %s85, 1
      %p670 = scmp.ne.s32.totalorder %s665, %s667
      %p671 = scmp.eq.s32.totalorder %s85, 0
      %p672 = por %p670, %p671
      %p673 = scmp.ne.s32.totalorder %s665, %s667
      %p674 = scmp.eq.s32.totalorder %s90, 1
      %p675 = por %p673, %p674
      %p676 = scmp.ne.s32.totalorder %s667, %s668
      %p677 = scmp.eq.s32.totalorder %s90, 0
      %p678 = por %p676, %p677
      %p679 = scmp.ne.s32.totalorder %s667, %s668
      %p680 = scmp.eq.s32.totalorder %s91, 1
      %p681 = por %p679, %p680
      %p683 = scmp.ne.s32.totalorder %s668, %s682
      %p684 = scmp.eq.s32.totalorder %s91, 0
      %p685 = por %p683, %p684
      %s687 = sadd.s32 %s686, 1
      %p690 = scmp.eq.s32.totalorder %s85, 1
      %p691 = scmp.ne.s32.totalorder %s686, %s688
      %p692 = scmp.eq.s32.totalorder %s85, 0
      %p693 = por %p691, %p692
      %p694 = scmp.ne.s32.totalorder %s686, %s688
      %p695 = scmp.eq.s32.totalorder %s90, 1
      %p696 = por %p694, %p695
      %p697 = scmp.ne.s32.totalorder %s688, %s689
      %p698 = scmp.eq.s32.totalorder %s90, 0
      %p699 = por %p697, %p698
      %p700 = scmp.ne.s32.totalorder %s688, %s689
      %p701 = scmp.eq.s32.totalorder %s91, 1
      %p702 = por %p700, %p701
      %p704 = scmp.ne.s32.totalorder %s689, %s703
      %p705 = scmp.eq.s32.totalorder %s91, 0
      %p706 = por %p704, %p705
      %s708 = sadd.s32 %s707, 1
      %p711 = scmp.eq.s32.totalorder %s85, 1
      %p712 = scmp.ne.s32.totalorder %s707, %s709
      %p713 = scmp.eq.s32.totalorder %s85, 0
      %p714 = por %p712, %p713
      %p715 = scmp.ne.s32.totalorder %s707, %s709
      %p716 = scmp.eq.s32.totalorder %s90, 1
      %p717 = por %p715, %p716
      %p718 = scmp.ne.s32.totalorder %s709, %s710
      %p719 = scmp.eq.s32.totalorder %s90, 0
      %p720 = por %p718, %p719
      %p721 = scmp.ne.s32.totalorder %s709, %s710
      %p722 = scmp.eq.s32.totalorder %s91, 1
      %p723 = por %p721, %p722
      %p725 = scmp.ne.s32.totalorder %s710, %s724
      %p726 = scmp.eq.s32.totalorder %s91, 0
      %p727 = por %p725, %p726
      %s729 = sadd.s32 %s728, 1
      %p732 = scmp.eq.s32.totalorder %s85, 1
      %p733 = scmp.ne.s32.totalorder %s728, %s730
      %p734 = scmp.eq.s32.totalorder %s85, 0
      %p735 = por %p733, %p734
      %p736 = scmp.ne.s32.totalorder %s728, %s730
      %p737 = scmp.eq.s32.totalorder %s90, 1
      %p738 = por %p736, %p737
      %p739 = scmp.ne.s32.totalorder %s730, %s731
      %p740 = scmp.eq.s32.totalorder %s90, 0
      %p741 = por %p739, %p740
      %p742 = scmp.ne.s32.totalorder %s730, %s731
      %p743 = scmp.eq.s32.totalorder %s91, 1
      %p744 = por %p742, %p743
      %p746 = scmp.ne.s32.totalorder %s731, %s745
      %p747 = scmp.eq.s32.totalorder %s91, 0
      %p748 = por %p746, %p747
      %s750 = sadd.s32 %s749, 1
      %p753 = scmp.eq.s32.totalorder %s85, 1
      %p754 = scmp.ne.s32.totalorder %s749, %s751
      %p755 = scmp.eq.s32.totalorder %s85, 0
      %p756 = por %p754, %p755
      %p757 = scmp.ne.s32.totalorder %s749, %s751
      %p758 = scmp.eq.s32.totalorder %s90, 1
      %p759 = por %p757, %p758
      %p760 = scmp.ne.s32.totalorder %s751, %s752
      %p761 = scmp.eq.s32.totalorder %s90, 0
      %p762 = por %p760, %p761
      %p763 = scmp.ne.s32.totalorder %s751, %s752
      %p764 = scmp.eq.s32.totalorder %s91, 1
      %p765 = por %p763, %p764
      %p767 = scmp.ne.s32.totalorder %s752, %s766
      %p768 = scmp.eq.s32.totalorder %s91, 0
      %p769 = por %p767, %p768
      %s770 = ssub.s32 %s85, %s92
      %p771 = scmp.eq.s32.totalorder %s770, 0
      %s773 = sadd.s32 %s772, 1
      %s774 = scalar_select %p771, %s772, %s773
      %p777 = pneg %p771
      %p778 = scmp.eq.s32.totalorder %s85, 1
      %p779 = por %p777, %p778
      %p780 = scmp.ne.s32.totalorder %s772, %s775
      %p781 = scmp.eq.s32.totalorder %s85, 0
      %p782 = por %p780, %p781
      %p783 = scmp.ne.s32.totalorder %s772, %s775
      %p784 = scmp.eq.s32.totalorder %s90, 1
      %p785 = por %p783, %p784
      %p786 = scmp.ne.s32.totalorder %s775, %s776
      %p787 = scmp.eq.s32.totalorder %s90, 0
      %p788 = por %p786, %p787
      %p789 = scmp.ne.s32.totalorder %s775, %s776
      %p790 = scmp.eq.s32.totalorder %s91, 1
      %p791 = por %p789, %p790
      %p793 = scmp.ne.s32.totalorder %s776, %s792
      %p794 = scmp.eq.s32.totalorder %s91, 0
      %p795 = por %p793, %p794
      %p796 = scmp.le.s32.totalorder 1, %s85
      %p797 = scmp.lt.s32.totalorder %s85, 3
      %p798 = pnand %p796, %p797
      %p799 = pneg %p798
      // Predicated region
      $region9: #{_lambda_.1} parent=5 // pred_check
        _
      $region10: #{_lambda_.1} parent=5 // pred_check_branch
        %801 = sbr.rel (%p798) target = $region12
      $region11: #{_lambda_.1} parent=5 // pred_region
        %s802 = ssub.s32 %s85, 1
        // Predicated region
        $region13: #{_lambda_.1} parent=11 // pred_check
          %p803 = pneg %p132
        $region14: #{_lambda_.1} parent=11 // pred_check_branch
          %805 = sbr.rel (%p803) target = $region16
        $region15: #{_lambda_.1} parent=11 // pred_region
          %s807 = ssub.s32 64, 64
          %808 = vsyncadd [#allocation3], %s807
          %s810 = sshll.u32 [#allocation2], 4
          %s811 = int_to_ptr.vmem [resolvable:$true] %s810
          %813 = dma.hbm_to_vmem [thread:$0]  %s3, 64, %s811, [#allocation3]
        $region16: #{_lambda_.1} parent=11 // pred_fallthru
          _
        // Predicated region
        $region17: #{_lambda_.1} parent=11 // pred_check
          %p814 = pneg %p153
        $region18: #{_lambda_.1} parent=11 // pred_check_branch
          %816 = sbr.rel (%p814) target = $region20
        $region19: #{_lambda_.1} parent=11 // pred_region
          %s818 = ssub.s32 16, 16
          %819 = vsyncadd [#allocation6], %s818
          %s821 = sshll.u32 [#allocation5], 4
          %s822 = int_to_ptr.vmem [resolvable:$true] %s821
          %824 = dma.hbm_to_vmem [thread:$0]  %s5, 16, %s822, [#allocation6]
        $region20: #{_lambda_.1} parent=11 // pred_fallthru
          _
        // Predicated region
        $region21: #{_lambda_.1} parent=11 // pred_check
          %p825 = pneg %p174
        $region22: #{_lambda_.1} parent=11 // pred_check_branch
          %827 = sbr.rel (%p825) target = $region24
        $region23: #{_lambda_.1} parent=11 // pred_region
          %s829 = ssub.s32 64, 64
          %830 = vsyncadd [#allocation6], %s829
          %s832 = sshll.u32 [#allocation7], 4
          %s833 = int_to_ptr.vmem [resolvable:$true] %s832
          %835 = dma.hbm_to_vmem [thread:$0]  %s7, 64, %s833, [#allocation6]
        $region24: #{_lambda_.1} parent=11 // pred_fallthru
          _
        // Predicated region
        $region25: #{_lambda_.1} parent=11 // pred_check
          %p836 = pneg %p195
        $region26: #{_lambda_.1} parent=11 // pred_check_branch
          %838 = sbr.rel (%p836) target = $region28
        $region27: #{_lambda_.1} parent=11 // pred_region
          _
        $region28: #{_lambda_.1} parent=11 // pred_fallthru
          _
        // Predicated region
        $region29: #{_lambda_.1} parent=11 // pred_check
          %p839 = pneg %p216
        $region30: #{_lambda_.1} parent=11 // pred_check_branch
          %841 = sbr.rel (%p839) target = $region32
        $region31: #{_lambda_.1} parent=11 // pred_region
          _
        $region32: #{_lambda_.1} parent=11 // pred_fallthru
          _
        // Predicated region
        $region33: #{_lambda_.1} parent=11 // pred_check
          %p842 = pneg %p237
        $region34: #{_lambda_.1} parent=11 // pred_check_branch
          %844 = sbr.rel (%p842) target = $region36
        $region35: #{_lambda_.1} parent=11 // pred_region
          _
        $region36: #{_lambda_.1} parent=11 // pred_fallthru
          _
        // Predicated region
        $region37: #{_lambda_.1} parent=11 // pred_check
          %p845 = pneg %p258
        $region38: #{_lambda_.1} parent=11 // pred_check_branch
          %847 = sbr.rel (%p845) target = $region40
        $region39: #{_lambda_.1} parent=11 // pred_region
          %s849 = ssub.s32 16, 16
          %850 = vsyncadd [#allocation9], %s849
          %s852 = sshll.u32 [#allocation8], 4
          %s853 = int_to_ptr.vmem [resolvable:$true] %s852
          %855 = dma.hbm_to_vmem [thread:$0]  %s15, 16, %s853, [#allocation9]
        $region40: #{_lambda_.1} parent=11 // pred_fallthru
          _
        // Predicated region
        $region41: #{_lambda_.1} parent=11 // pred_check
          %p856 = pneg %p279
        $region42: #{_lambda_.1} parent=11 // pred_check_branch
          %858 = sbr.rel (%p856) target = $region44
        $region43: #{_lambda_.1} parent=11 // pred_region
          %s860 = ssub.s32 64, 64
          %861 = vsyncadd [#allocation9], %s860
          %s863 = sshll.u32 [#allocation10], 4
          %s864 = int_to_ptr.vmem [resolvable:$true] %s863
          %866 = dma.hbm_to_vmem [thread:$0]  %s17, 64, %s864, [#allocation9]
        $region44: #{_lambda_.1} parent=11 // pred_fallthru
          _
        // Predicated region
        $region45: #{_lambda_.1} parent=11 // pred_check
          %p867 = pneg %p300
        $region46: #{_lambda_.1} parent=11 // pred_check_branch
          %869 = sbr.rel (%p867) target = $region48
        $region47: #{_lambda_.1} parent=11 // pred_region
          %s871 = ssub.s32 16, 16
          %872 = vsyncadd [#allocation12], %s871
          %s874 = sshll.u32 [#allocation11], 4
          %s875 = int_to_ptr.vmem [resolvable:$true] %s874
          %877 = dma.hbm_to_vmem [thread:$0]  %s19, 16, %s875, [#allocation12]
        $region48: #{_lambda_.1} parent=11 // pred_fallthru
          _
        // Predicated region
        $region49: #{_lambda_.1} parent=11 // pred_check
          %p878 = pneg %p321
        $region50: #{_lambda_.1} parent=11 // pred_check_branch
          %880 = sbr.rel (%p878) target = $region52
        $region51: #{_lambda_.1} parent=11 // pred_region
          %s882 = ssub.s32 128, 128
          %883 = vsyncadd [#allocation12], %s882
          %s884 = sshll.u32 [#allocation13], 4
          %s885 = int_to_ptr.vmem [resolvable:$true] %s884
          %890 = dma.hbm_to_vmem [thread:$0]  %s21, 128, %s885, [#allocation12], 64, 64, 4
        $region52: #{_lambda_.1} parent=11 // pred_fallthru
          _
        // Predicated region
        $region53: #{_lambda_.1} parent=11 // pred_check
          %p891 = pneg %p342
        $region54: #{_lambda_.1} parent=11 // pred_check_branch
          %893 = sbr.rel (%p891) target = $region56
        $region55: #{_lambda_.1} parent=11 // pred_region
          %s895 = ssub.s32 128, 128
          %896 = vsyncadd [#allocation15], %s895
          %s897 = sshll.u32 [#allocation14], 4
          %s898 = int_to_ptr.vmem [resolvable:$true] %s897
          %903 = dma.hbm_to_vmem [thread:$0]  %s23, 128, %s898, [#allocation15], 64, 64, 4
        $region56: #{_lambda_.1} parent=11 // pred_fallthru
          _
        // Predicated region
        $region57: #{_lambda_.1} parent=11 // pred_check
          %p904 = pneg %p363
        $region58: #{_lambda_.1} parent=11 // pred_check_branch
          %906 = sbr.rel (%p904) target = $region60
        $region59: #{_lambda_.1} parent=11 // pred_region
          %s908 = ssub.s32 64, 64
          %909 = vsyncadd [#allocation15], %s908
          %s911 = sshll.u32 [#allocation16], 4
          %s912 = int_to_ptr.vmem [resolvable:$true] %s911
          %914 = dma.hbm_to_vmem [thread:$0]  %s25, 64, %s912, [#allocation15]
        $region60: #{_lambda_.1} parent=11 // pred_fallthru
          _
        // Predicated region
        $region61: #{_lambda_.1} parent=11 // pred_check
          %p915 = pneg %p384
        $region62: #{_lambda_.1} parent=11 // pred_check_branch
          %917 = sbr.rel (%p915) target = $region64
        $region63: #{_lambda_.1} parent=11 // pred_region
          %s919 = ssub.s32 16, 16
          %920 = vsyncadd [#allocation18], %s919
          %s922 = sshll.u32 [#allocation17], 4
          %s923 = int_to_ptr.vmem [resolvable:$true] %s922
          %925 = dma.hbm_to_vmem [thread:$0]  %s27, 16, %s923, [#allocation18]
        $region64: #{_lambda_.1} parent=11 // pred_fallthru
          _
        // Predicated region
        $region65: #{_lambda_.1} parent=11 // pred_check
          %p926 = pneg %p405
        $region66: #{_lambda_.1} parent=11 // pred_check_branch
          %928 = sbr.rel (%p926) target = $region68
        $region67: #{_lambda_.1} parent=11 // pred_region
          _
        $region68: #{_lambda_.1} parent=11 // pred_fallthru
          _
        // Predicated region
        $region69: #{_lambda_.1} parent=11 // pred_check
          %p929 = pneg %p426
        $region70: #{_lambda_.1} parent=11 // pred_check_branch
          %931 = sbr.rel (%p929) target = $region72
        $region71: #{_lambda_.1} parent=11 // pred_region
          %s933 = ssub.s32 16, 16
          %934 = vsyncadd [#allocation18], %s933
          %s936 = sshll.u32 [#allocation19], 4
          %s937 = int_to_ptr.vmem [resolvable:$true] %s936
          %939 = dma.hbm_to_vmem [thread:$0]  %s31, 16, %s937, [#allocation18]
        $region72: #{_lambda_.1} parent=11 // pred_fallthru
          _
        // Predicated region
        $region73: #{_lambda_.1} parent=11 // pred_check
          %p940 = pneg %p447
        $region74: #{_lambda_.1} parent=11 // pred_check_branch
          %942 = sbr.rel (%p940) target = $region76
        $region75: #{_lambda_.1} parent=11 // pred_region
          %s944 = ssub.s32 64, 64
          %945 = vsyncadd [#allocation21], %s944
          %s947 = sshll.u32 [#allocation20], 4
          %s948 = int_to_ptr.vmem [resolvable:$true] %s947
          %950 = dma.hbm_to_vmem [thread:$0]  %s33, 64, %s948, [#allocation21]
        $region76: #{_lambda_.1} parent=11 // pred_fallthru
          _
        // Predicated region
        $region77: #{_lambda_.1} parent=11 // pred_check
          %p951 = pneg %p468
        $region78: #{_lambda_.1} parent=11 // pred_check_branch
          %953 = sbr.rel (%p951) target = $region80
        $region79: #{_lambda_.1} parent=11 // pred_region
          %s955 = ssub.s32 512, 512
          %956 = vsyncadd [#allocation21], %s955
          %s957 = sshll.u32 [#allocation22], 4
          %s958 = int_to_ptr.vmem [resolvable:$true] %s957
          %963 = dma.hbm_to_vmem [thread:$0]  %s35, 512, %s958, [#allocation21], 128, 128, 8
        $region80: #{_lambda_.1} parent=11 // pred_fallthru
          _
        // Predicated region
        $region81: #{_lambda_.1} parent=11 // pred_check
          %p964 = pneg %p489
        $region82: #{_lambda_.1} parent=11 // pred_check_branch
          %966 = sbr.rel (%p964) target = $region84
        $region83: #{_lambda_.1} parent=11 // pred_region
          %s968 = ssub.s32 512, 512
          %969 = vsyncadd [#allocation24], %s968
          %s970 = sshll.u32 [#allocation23], 4
          %s971 = int_to_ptr.vmem [resolvable:$true] %s970
          %976 = dma.hbm_to_vmem [thread:$0]  %s37, 512, %s971, [#allocation24], 128, 128, 8
        $region84: #{_lambda_.1} parent=11 // pred_fallthru
          _
        // Predicated region
        $region85: #{_lambda_.1} parent=11 // pred_check
          %p977 = pneg %p510
        $region86: #{_lambda_.1} parent=11 // pred_check_branch
          %979 = sbr.rel (%p977) target = $region88
        $region87: #{_lambda_.1} parent=11 // pred_region
          _
        $region88: #{_lambda_.1} parent=11 // pred_fallthru
          _
        // Predicated region
        $region89: #{_lambda_.1} parent=11 // pred_check
          %p980 = pneg %p531
        $region90: #{_lambda_.1} parent=11 // pred_check_branch
          %982 = sbr.rel (%p980) target = $region92
        $region91: #{_lambda_.1} parent=11 // pred_region
          %s984 = ssub.s32 16, 16
          %985 = vsyncadd [#allocation24], %s984
          %s987 = sshll.u32 [#allocation25], 4
          %s988 = int_to_ptr.vmem [resolvable:$true] %s987
          %990 = dma.hbm_to_vmem [thread:$0]  %s41, 16, %s988, [#allocation24]
        $region92: #{_lambda_.1} parent=11 // pred_fallthru
          _
        // Predicated region
        $region93: #{_lambda_.1} parent=11 // pred_check
          %p991 = pneg %p552
        $region94: #{_lambda_.1} parent=11 // pred_check_branch
          %993 = sbr.rel (%p991) target = $region96
        $region95: #{_lambda_.1} parent=11 // pred_region
          %s995 = ssub.s32 64, 64
          %996 = vsyncadd [#allocation27], %s995
          %s998 = sshll.u32 [#allocation26], 4
          %s999 = int_to_ptr.vmem [resolvable:$true] %s998
          %1001 = dma.hbm_to_vmem [thread:$0]  %s43, 64, %s999, [#allocation27]
        $region96: #{_lambda_.1} parent=11 // pred_fallthru
          _
        // Predicated region
        $region97: #{_lambda_.1} parent=11 // pred_check
          %p1002 = pneg %p573
        $region98: #{_lambda_.1} parent=11 // pred_check_branch
          %1004 = sbr.rel (%p1002) target = $region100
        $region99: #{_lambda_.1} parent=11 // pred_region
          %s1006 = ssub.s32 16, 16
          %1007 = vsyncadd [#allocation27], %s1006
          %s1009 = sshll.u32 [#allocation28], 4
          %s1010 = int_to_ptr.vmem [resolvable:$true] %s1009
          %1012 = dma.hbm_to_vmem [thread:$0]  %s45, 16, %s1010, [#allocation27]
        $region100: #{_lambda_.1} parent=11 // pred_fallthru
          _
        // Predicated region
        $region101: #{_lambda_.1} parent=11 // pred_check
          %p1013 = pneg %p594
        $region102: #{_lambda_.1} parent=11 // pred_check_branch
          %1015 = sbr.rel (%p1013) target = $region104
        $region103: #{_lambda_.1} parent=11 // pred_region
          _
        $region104: #{_lambda_.1} parent=11 // pred_fallthru
          _
        // Predicated region
        $region105: #{_lambda_.1} parent=11 // pred_check
          %p1016 = pneg %p615
        $region106: #{_lambda_.1} parent=11 // pred_check_branch
          %1018 = sbr.rel (%p1016) target = $region108
        $region107: #{_lambda_.1} parent=11 // pred_region
          %s1020 = ssub.s32 16, 16
          %1021 = vsyncadd [#allocation30], %s1020
          %s1023 = sshll.u32 [#allocation29], 4
          %s1024 = int_to_ptr.vmem [resolvable:$true] %s1023
          %1026 = dma.hbm_to_vmem [thread:$0]  %s49, 16, %s1024, [#allocation30]
        $region108: #{_lambda_.1} parent=11 // pred_fallthru
          _
        // Predicated region
        $region109: #{_lambda_.1} parent=11 // pred_check
          %p1027 = pneg %p636
        $region110: #{_lambda_.1} parent=11 // pred_check_branch
          %1029 = sbr.rel (%p1027) target = $region112
        $region111: #{_lambda_.1} parent=11 // pred_region
          %s1031 = ssub.s32 64, 64
          %1032 = vsyncadd [#allocation30], %s1031
          %s1034 = sshll.u32 [#allocation31], 4
          %s1035 = int_to_ptr.vmem [resolvable:$true] %s1034
          %1037 = dma.hbm_to_vmem [thread:$0]  %s51, 64, %s1035, [#allocation30]
        $region112: #{_lambda_.1} parent=11 // pred_fallthru
          _
        // Predicated region
        $region113: #{_lambda_.1} parent=11 // pred_check
          %p1038 = pneg %p657
        $region114: #{_lambda_.1} parent=11 // pred_check_branch
          %1040 = sbr.rel (%p1038) target = $region116
        $region115: #{_lambda_.1} parent=11 // pred_region
          _
        $region116: #{_lambda_.1} parent=11 // pred_fallthru
          _
        // Predicated region
        $region117: #{_lambda_.1} parent=11 // pred_check
          %p1041 = pneg %p678
        $region118: #{_lambda_.1} parent=11 // pred_check_branch
          %1043 = sbr.rel (%p1041) target = $region120
        $region119: #{_lambda_.1} parent=11 // pred_region
          _
        $region120: #{_lambda_.1} parent=11 // pred_fallthru
          _
        // Predicated region
        $region121: #{_lambda_.1} parent=11 // pred_check
          %p1044 = pneg %p699
        $region122: #{_lambda_.1} parent=11 // pred_check_branch
          %1046 = sbr.rel (%p1044) target = $region124
        $region123: #{_lambda_.1} parent=11 // pred_region
          _
        $region124: #{_lambda_.1} parent=11 // pred_fallthru
          _
        // Predicated region
        $region125: #{_lambda_.1} parent=11 // pred_check
          %p1047 = pneg %p720
        $region126: #{_lambda_.1} parent=11 // pred_check_branch
          %1049 = sbr.rel (%p1047) target = $region128
        $region127: #{_lambda_.1} parent=11 // pred_region
          %s1051 = ssub.s32 16, 16
          %1052 = vsyncadd [#allocation33], %s1051
          %s1054 = sshll.u32 [#allocation32], 4
          %s1055 = int_to_ptr.vmem [resolvable:$true] %s1054
          %1057 = dma.hbm_to_vmem [thread:$0]  %s59, 16, %s1055, [#allocation33]
        $region128: #{_lambda_.1} parent=11 // pred_fallthru
          _
        // Predicated region
        $region129: #{_lambda_.1} parent=11 // pred_check
          %p1058 = pneg %p741
        $region130: #{_lambda_.1} parent=11 // pred_check_branch
          %1060 = sbr.rel (%p1058) target = $region132
        $region131: #{_lambda_.1} parent=11 // pred_region
          _
        $region132: #{_lambda_.1} parent=11 // pred_fallthru
          _
        // Predicated region
        $region133: #{_lambda_.1} parent=11 // pred_check
          %p1061 = pneg %p762
        $region134: #{_lambda_.1} parent=11 // pred_check_branch
          %1063 = sbr.rel (%p1061) target = $region136
        $region135: #{_lambda_.1} parent=11 // pred_region
          %s1065 = ssub.s32 16, 16
          %1066 = vsyncadd [#allocation33], %s1065
          %s1068 = sshll.u32 [#allocation34], 4
          %s1069 = int_to_ptr.vmem [resolvable:$true] %s1068
          %1071 = dma.hbm_to_vmem [thread:$0]  %s63, 16, %s1069, [#allocation33]
        $region136: #{_lambda_.1} parent=11 // pred_fallthru
          _
      $region12: #{_lambda_.1} parent=5 // pred_fallthru
        _
      %p1072 = scmp.lt.s32.totalorder %s85, 2
      // Predicated region
      $region137: #{_lambda_.1} parent=5 // pred_check
        %p1073 = pneg %p1072
      $region138: #{_lambda_.1} parent=5 // pred_check_branch
        %1075 = sbr.rel (%p1073) target = $region140
      $region139: #{_lambda_.1} parent=5 // pred_region
        // Predicated region
        $region141: #{_lambda_.1} parent=139 // pred_check
          %p1076 = pneg %p105
        $region142: #{_lambda_.1} parent=139 // pred_check_branch
          %1078 = sbr.rel (%p1076) target = $region144
        $region143: #{_lambda_.1} parent=139 // pred_region
          %p1079 = scmp.lt.s32.totalorder %s85, 1
          %s1080 = scalar_select %p1079, %s85, 1
          %s1081 = smul.addr %s1080, 8
          %s1082 = smul.addr %s1081, 8
          %s1083 = scalar_lea.vmem %s1, %s1082
        $region144: #{_lambda_.1} parent=139 // pred_fallthru
          _
      $region140: #{_lambda_.1} parent=5 // pred_fallthru
        _
      %p1084 = scmp.le.s32.totalorder 1, %s85
      %p1085 = scmp.lt.s32.totalorder %s85, 3
      %p1086 = pnand %p1084, %p1085
      %p1087 = pneg %p1086
      // Predicated region
      $region145: #{_lambda_.1} parent=5 // pred_check
        _
      $region146: #{_lambda_.1} parent=5 // pred_check_branch
        %1089 = sbr.rel (%p1086) target = $region148
      $region147: #{_lambda_.1} parent=5 // pred_region
        %s1090 = ssub.s32 %s85, 1
        // Predicated region
        $region149: #{_lambda_.1} parent=147 // pred_check
          %p1091 = pneg %p132
        $region150: #{_lambda_.1} parent=147 // pred_check_branch
          %1093 = sbr.rel (%p1091) target = $region152
        $region151: #{_lambda_.1} parent=147 // pred_region
          %1094 = dma.done [#allocation3], 64
        $region152: #{_lambda_.1} parent=147 // pred_fallthru
          _
        // Predicated region
        $region153: #{_lambda_.1} parent=147 // pred_check
          %p1095 = pneg %p153
        $region154: #{_lambda_.1} parent=147 // pred_check_branch
          %1097 = sbr.rel (%p1095) target = $region156
        $region155: #{_lambda_.1} parent=147 // pred_region
          %1098 = dma.done [#allocation6], 16
        $region156: #{_lambda_.1} parent=147 // pred_fallthru
          _
        // Predicated region
        $region157: #{_lambda_.1} parent=147 // pred_check
          %p1099 = pneg %p174
        $region158: #{_lambda_.1} parent=147 // pred_check_branch
          %1101 = sbr.rel (%p1099) target = $region160
        $region159: #{_lambda_.1} parent=147 // pred_region
          %1102 = dma.done [#allocation6], 64
        $region160: #{_lambda_.1} parent=147 // pred_fallthru
          _
        // Predicated region
        $region161: #{_lambda_.1} parent=147 // pred_check
          %p1103 = pneg %p258
        $region162: #{_lambda_.1} parent=147 // pred_check_branch
          %1105 = sbr.rel (%p1103) target = $region164
        $region163: #{_lambda_.1} parent=147 // pred_region
          %1106 = dma.done [#allocation9], 16
        $region164: #{_lambda_.1} parent=147 // pred_fallthru
          _
        // Predicated region
        $region165: #{_lambda_.1} parent=147 // pred_check
          %p1107 = pneg %p279
        $region166: #{_lambda_.1} parent=147 // pred_check_branch
          %1109 = sbr.rel (%p1107) target = $region168
        $region167: #{_lambda_.1} parent=147 // pred_region
          %1110 = dma.done [#allocation9], 64
        $region168: #{_lambda_.1} parent=147 // pred_fallthru
          _
        // Predicated region
        $region169: #{_lambda_.1} parent=147 // pred_check
          %p1111 = pneg %p300
        $region170: #{_lambda_.1} parent=147 // pred_check_branch
          %1113 = sbr.rel (%p1111) target = $region172
        $region171: #{_lambda_.1} parent=147 // pred_region
          %1114 = dma.done [#allocation12], 16
        $region172: #{_lambda_.1} parent=147 // pred_fallthru
          _
        // Predicated region
        $region173: #{_lambda_.1} parent=147 // pred_check
          %p1115 = pneg %p321
        $region174: #{_lambda_.1} parent=147 // pred_check_branch
          %1117 = sbr.rel (%p1115) target = $region176
        $region175: #{_lambda_.1} parent=147 // pred_region
          %1118 = dma.done [#allocation12], 128
        $region176: #{_lambda_.1} parent=147 // pred_fallthru
          _
        // Predicated region
        $region177: #{_lambda_.1} parent=147 // pred_check
          %p1119 = pneg %p342
        $region178: #{_lambda_.1} parent=147 // pred_check_branch
          %1121 = sbr.rel (%p1119) target = $region180
        $region179: #{_lambda_.1} parent=147 // pred_region
          %1122 = dma.done [#allocation15], 128
        $region180: #{_lambda_.1} parent=147 // pred_fallthru
          _
        // Predicated region
        $region181: #{_lambda_.1} parent=147 // pred_check
          %p1123 = pneg %p363
        $region182: #{_lambda_.1} parent=147 // pred_check_branch
          %1125 = sbr.rel (%p1123) target = $region184
        $region183: #{_lambda_.1} parent=147 // pred_region
          %1126 = dma.done [#allocation15], 64
        $region184: #{_lambda_.1} parent=147 // pred_fallthru
          _
        // Predicated region
        $region185: #{_lambda_.1} parent=147 // pred_check
          %p1127 = pneg %p384
        $region186: #{_lambda_.1} parent=147 // pred_check_branch
          %1129 = sbr.rel (%p1127) target = $region188
        $region187: #{_lambda_.1} parent=147 // pred_region
          %1130 = dma.done [#allocation18], 16
        $region188: #{_lambda_.1} parent=147 // pred_fallthru
          _
        // Predicated region
        $region189: #{_lambda_.1} parent=147 // pred_check
          %p1131 = pneg %p426
        $region190: #{_lambda_.1} parent=147 // pred_check_branch
          %1133 = sbr.rel (%p1131) target = $region192
        $region191: #{_lambda_.1} parent=147 // pred_region
          %1134 = dma.done [#allocation18], 16
        $region192: #{_lambda_.1} parent=147 // pred_fallthru
          _
        // Predicated region
        $region193: #{_lambda_.1} parent=147 // pred_check
          %p1135 = pneg %p447
        $region194: #{_lambda_.1} parent=147 // pred_check_branch
          %1137 = sbr.rel (%p1135) target = $region196
        $region195: #{_lambda_.1} parent=147 // pred_region
          %1138 = dma.done [#allocation21], 64
        $region196: #{_lambda_.1} parent=147 // pred_fallthru
          _
        // Predicated region
        $region197: #{_lambda_.1} parent=147 // pred_check
          %p1139 = pneg %p468
        $region198: #{_lambda_.1} parent=147 // pred_check_branch
          %1141 = sbr.rel (%p1139) target = $region200
        $region199: #{_lambda_.1} parent=147 // pred_region
          %1142 = dma.done [#allocation21], 512
        $region200: #{_lambda_.1} parent=147 // pred_fallthru
          _
        // Predicated region
        $region201: #{_lambda_.1} parent=147 // pred_check
          %p1143 = pneg %p489
        $region202: #{_lambda_.1} parent=147 // pred_check_branch
          %1145 = sbr.rel (%p1143) target = $region204
        $region203: #{_lambda_.1} parent=147 // pred_region
          %1146 = dma.done [#allocation24], 512
        $region204: #{_lambda_.1} parent=147 // pred_fallthru
          _
        // Predicated region
        $region205: #{_lambda_.1} parent=147 // pred_check
          %p1147 = pneg %p531
        $region206: #{_lambda_.1} parent=147 // pred_check_branch
          %1149 = sbr.rel (%p1147) target = $region208
        $region207: #{_lambda_.1} parent=147 // pred_region
          %1150 = dma.done [#allocation24], 16
        $region208: #{_lambda_.1} parent=147 // pred_fallthru
          _
        // Predicated region
        $region209: #{_lambda_.1} parent=147 // pred_check
          %p1151 = pneg %p552
        $region210: #{_lambda_.1} parent=147 // pred_check_branch
          %1153 = sbr.rel (%p1151) target = $region212
        $region211: #{_lambda_.1} parent=147 // pred_region
          %1154 = dma.done [#allocation27], 64
        $region212: #{_lambda_.1} parent=147 // pred_fallthru
          _
        // Predicated region
        $region213: #{_lambda_.1} parent=147 // pred_check
          %p1155 = pneg %p573
        $region214: #{_lambda_.1} parent=147 // pred_check_branch
          %1157 = sbr.rel (%p1155) target = $region216
        $region215: #{_lambda_.1} parent=147 // pred_region
          %1158 = dma.done [#allocation27], 16
        $region216: #{_lambda_.1} parent=147 // pred_fallthru
          _
        // Predicated region
        $region217: #{_lambda_.1} parent=147 // pred_check
          %p1159 = pneg %p615
        $region218: #{_lambda_.1} parent=147 // pred_check_branch
          %1161 = sbr.rel (%p1159) target = $region220
        $region219: #{_lambda_.1} parent=147 // pred_region
          %1162 = dma.done [#allocation30], 16
        $region220: #{_lambda_.1} parent=147 // pred_fallthru
          _
        // Predicated region
        $region221: #{_lambda_.1} parent=147 // pred_check
          %p1163 = pneg %p636
        $region222: #{_lambda_.1} parent=147 // pred_check_branch
          %1165 = sbr.rel (%p1163) target = $region224
        $region223: #{_lambda_.1} parent=147 // pred_region
          %1166 = dma.done [#allocation30], 64
        $region224: #{_lambda_.1} parent=147 // pred_fallthru
          _
        // Predicated region
        $region225: #{_lambda_.1} parent=147 // pred_check
          %p1167 = pneg %p720
        $region226: #{_lambda_.1} parent=147 // pred_check_branch
          %1169 = sbr.rel (%p1167) target = $region228
        $region227: #{_lambda_.1} parent=147 // pred_region
          %1170 = dma.done [#allocation33], 16
        $region228: #{_lambda_.1} parent=147 // pred_fallthru
          _
        // Predicated region
        $region229: #{_lambda_.1} parent=147 // pred_check
          %p1171 = pneg %p762
        $region230: #{_lambda_.1} parent=147 // pred_check_branch
          %1173 = sbr.rel (%p1171) target = $region232
        $region231: #{_lambda_.1} parent=147 // pred_region
          %1174 = dma.done [#allocation33], 16
        $region232: #{_lambda_.1} parent=147 // pred_fallthru
          _
        %p1175 = scmp.lt.s32.totalorder %s90, 1
        %s1176 = scalar_select %p1175, %s90, 1
        %s1177 = smul.addr %s1176, 8
        %s1178 = smul.addr %s1177, 8
        %s1179 = scalar_lea.vmem %s1, %s1178
        %p1180 = pneg %p111
        %p1181 = pneg %p108
        %p1182 = pneg %p132
        %p1183 = pneg %p129
        %p1184 = pneg %p153
        %p1185 = pneg %p150
        %p1186 = pneg %p174
        %p1187 = pneg %p171
        %p1188 = pneg %p195
        %p1189 = pneg %p192
        %p1190 = pneg %p216
        %p1191 = pneg %p213
        %p1192 = pneg %p237
        %p1193 = pneg %p234
        %p1194 = pneg %p258
        %p1195 = pneg %p255
        %p1196 = pneg %p279
        %p1197 = pneg %p276
        %p1198 = pneg %p300
        %p1199 = pneg %p297
        %p1200 = pneg %p321
        %p1201 = pneg %p318
        %p1202 = pneg %p342
        %p1203 = pneg %p339
        %p1204 = pneg %p363
        %p1205 = pneg %p360
        %p1206 = pneg %p384
        %p1207 = pneg %p381
        %p1208 = pneg %p405
        %p1209 = pneg %p402
        %p1210 = pneg %p426
        %p1211 = pneg %p423
        %p1212 = pneg %p447
        %p1213 = pneg %p444
        %p1214 = pneg %p468
        %p1215 = pneg %p465
        %p1216 = pneg %p489
        %p1217 = pneg %p486
        %p1218 = pneg %p510
        %p1219 = pneg %p507
        %p1220 = pneg %p531
        %p1221 = pneg %p528
        %p1222 = pneg %p552
        %p1223 = pneg %p549
        %p1224 = pneg %p573
        %p1225 = pneg %p570
        %p1226 = pneg %p594
        %p1227 = pneg %p591
        %p1228 = pneg %p615
        %p1229 = pneg %p612
        %p1230 = pneg %p636
        %p1231 = pneg %p633
        %p1232 = pneg %p657
        %p1233 = pneg %p654
        %p1234 = pneg %p678
        %p1235 = pneg %p675
        %p1236 = pneg %p699
        %p1237 = pneg %p696
        %p1238 = pneg %p720
        %p1239 = pneg %p717
        %p1240 = pneg %p741
        %p1241 = pneg %p738
        %p1242 = pneg %p762
        %p1243 = pneg %p759
        %p1244 = pneg %p788
        %p1245 = pneg %p785
        %s1246 = sand.u32 %s775, 1
        %s1247 = scalar_lea.sflag [#allocation4], %s1246
        %s1248 = sand.u32 %s775, 1
        %s1249 = smul.addr %s1248, 16
        %s1250 = scalar_lea.vmem [#allocation35], %s1249
        %p1251 = scmp.lt.s32.totalorder %s90, 1
        %s1252 = scalar_select %p1251, %s90, 1
        %s1253 = smul.addr %s1252, 8
        %s1254 = smul.addr %s1253, 8
        %s1255 = scalar_lea.vmem %s1, %s1254
        %v1257 = vld [vmem:[%s1255] sm:$0xff]
        %v1258 = vld [vmem:[%s1255 + $0x8] sm:$0xff]
        %v1259 = vld [vmem:[%s1255 + $0x10] sm:$0xff]
        %v1260 = vld [vmem:[%s1255 + $0x18] sm:$0xff]
        %v1261 = vld [vmem:[%s1255 + $0x20] sm:$0xff]
        %v1262 = vld [vmem:[%s1255 + $0x28] sm:$0xff]
        %v1263 = vld [vmem:[%s1255 + $0x30] sm:$0xff]
        %v1264 = vld [vmem:[%s1255 + $0x38] sm:$0xff]
        %v1265 = vpack.c.bf16 %v1258, %v1257
        %v1266 = vpack.c.bf16 %v1260, %v1259
        %v1267 = vpack.c.bf16 %v1262, %v1261
        %v1268 = vpack.c.bf16 %v1264, %v1263
        %v1269 = vld [vmem:[#allocation2] sm:$0xf]
        %v1270 = vld [vmem:[#allocation5] sm:$0x1]
        %v1272 = vlaneseq
        %v1273 = vshrl.u32 %v1272, 7
        %v1274 = vsub.s32 0, %v1273
        %v1275 = vrot.slane %v1270, %v1274
        %vm1277 = vcmask 64512
        %v1279 = vsel %vm1277, %v1265, 0
        %v1282 = vsel %vm1277, %v1266, 0
        %v1285 = vsel %vm1277, %v1267, 0
        %v1288 = vsel %vm1277, %v1268, 0
        %vm1290 = vcmask 1043456
        %v1292 = vsel %vm1290, %v1269, 0
        %1294 = vmatprep.subr.bf16.mxu0 0
        %1295 = vmatpush1.bf16.msra.mxu0 %v1292
        %1296 = vmatprep.subr.bf16.mxu0 0
        %1297 = vmatpush1.bf16.msra.mxu0 0
        %1298 = vmatprep.subr.bf16.mxu0 0
        %1299 = vmatpush1.bf16.msra.mxu0 0
        %1300 = vmatprep.subr.bf16.mxu0 0
        %1301 = vmatpush1.bf16.msra.mxu0 0
        %1302 = vmatprep.subr.bf16.mxu0 0
        %1303 = vmatpush1.bf16.msra.mxu0 0
        %1304 = vmatprep.subr.bf16.mxu0 0
        %1305 = vmatpush1.bf16.msra.mxu0 0
        %1306 = vmatprep.subr.bf16.mxu0 0
        %1307 = vmatpush1.bf16.msra.mxu0 0
        %1308 = vmatprep.subr.bf16.mxu0 0
        %1309 = vmatpush1.bf16.msra.mxu0 0
        %1310 = vmatprep.subr.bf16.mxu0 0
        %1311 = vmatpush1.bf16.msra.mxu0 0
        %1312 = vmatprep.subr.bf16.mxu0 0
        %1313 = vmatpush1.bf16.msra.mxu0 0
        %1314 = vmatprep.subr.bf16.mxu0 0
        %1315 = vmatpush1.bf16.msra.mxu0 0
        %1316 = vmatprep.subr.bf16.mxu0 0
        %1317 = vmatpush1.bf16.msra.mxu0 0
        %1318 = vmatprep.subr.bf16.mxu0 0
        %1319 = vmatpush1.bf16.msra.mxu0 0
        %1320 = vmatprep.subr.bf16.mxu0 0
        %1321 = vmatpush1.bf16.msra.mxu0 0
        %1322 = vmatprep.subr.bf16.mxu0 0
        %1323 = vmatpush1.bf16.msra.mxu0 0
        %1324 = vmatprep.subr.bf16.mxu0 0
        %1325 = vmatpush1.bf16.msra.mxu0 0
        %1326 = vmatprep.mubr.bf16.mxu0 0
        %1327 = vmatmul.mubr.bf16.gmra.mrb[0].mxu0 %v1279
        %v1328 = vpop.f32.mrb[0].mxu0
        %v1329 = vadd.f32 %v1275, %v1328
        %v1330 = vpop.f32.mrb[0].mxu0
        %v1331 = vpop.f32.mrb[0].mxu0
        %v1332 = vadd.f32 %v1275, %v1331
        %v1333 = vpop.f32.mrb[0].mxu0
        %1334 = vmatprep.mubr.bf16.mxu0 0
        %1335 = vmatmul.mubr.bf16.gmra.mrb[0].mxu0 %v1282
        %v1336 = vpop.f32.mrb[0].mxu0
        %v1337 = vadd.f32 %v1275, %v1336
        %v1338 = vpop.f32.mrb[0].mxu0
        %v1339 = vpop.f32.mrb[0].mxu0
        %v1340 = vadd.f32 %v1275, %v1339
        %v1341 = vpop.f32.mrb[0].mxu0
        %1342 = vmatprep.mubr.bf16.mxu0 0
        %1343 = vmatmul.mubr.bf16.gmra.mrb[0].mxu0 %v1285
        %v1344 = vpop.f32.mrb[0].mxu0
        %v1345 = vadd.f32 %v1275, %v1344
        %v1346 = vpop.f32.mrb[0].mxu0
        %v1347 = vpop.f32.mrb[0].mxu0
        %v1348 = vadd.f32 %v1275, %v1347
        %v1349 = vpop.f32.mrb[0].mxu0
        %1350 = vmatprep.mubr.bf16.mxu0 0
        %1351 = vmatmul.mubr.bf16.gmra.mrb[0].mxu0 %v1288
        %v1352 = vpop.f32.mrb[0].mxu0
        %v1353 = vadd.f32 %v1275, %v1352
        %v1354 = vpop.f32.mrb[0].mxu0
        %v1355 = vpop.f32.mrb[0].mxu0
        %v1356 = vadd.f32 %v1275, %v1355
        %v1357 = vpop.f32.mrb[0].mxu0
        %1358 = vdwg.mxu0
        %v1359 = vmax.f32 %v1329, 0.0
        %v1360 = vmax.f32 %v1332, 0.0
        %v1361 = vmax.f32 %v1337, 0.0
        %v1362 = vmax.f32 %v1340, 0.0
        %v1363 = vmax.f32 %v1345, 0.0
        %v1364 = vmax.f32 %v1348, 0.0
        %v1365 = vmax.f32 %v1353, 0.0
        %v1366 = vmax.f32 %v1356, 0.0
        %v1367 = vpack.c.bf16 %v1360, %v1359
        %v1368 = vpack.c.bf16 %v1362, %v1361
        %v1369 = vpack.c.bf16 %v1364, %v1363
        %v1370 = vpack.c.bf16 %v1366, %v1365
        %v1371 = vld [vmem:[#allocation7] sm:$0xf]
        %v1373 = vsel %vm1277, %v1367, 0
        %v1376 = vsel %vm1277, %v1368, 0
        %v1379 = vsel %vm1277, %v1369, 0
        %v1382 = vsel %vm1277, %v1370, 0
        %v1385 = vsel %vm1290, %v1371, 0
        %1387 = vmatprep.subr.bf16.mxu0 0
        %1388 = vmatpush1.bf16.msra.mxu0 %v1385
        %1389 = vmatprep.subr.bf16.mxu0 0
        %1390 = vmatpush1.bf16.msra.mxu0 0
        %1391 = vmatprep.subr.bf16.mxu0 0
        %1392 = vmatpush1.bf16.msra.mxu0 0
        %1393 = vmatprep.subr.bf16.mxu0 0
        %1394 = vmatpush1.bf16.msra.mxu0 0
        %1395 = vmatprep.subr.bf16.mxu0 0
        %1396 = vmatpush1.bf16.msra.mxu0 0
        %1397 = vmatprep.subr.bf16.mxu0 0
        %1398 = vmatpush1.bf16.msra.mxu0 0
        %1399 = vmatprep.subr.bf16.mxu0 0
        %1400 = vmatpush1.bf16.msra.mxu0 0
        %1401 = vmatprep.subr.bf16.mxu0 0
        %1402 = vmatpush1.bf16.msra.mxu0 0
        %1403 = vmatprep.subr.bf16.mxu0 0
        %1404 = vmatpush1.bf16.msra.mxu0 0
        %1405 = vmatprep.subr.bf16.mxu0 0
        %1406 = vmatpush1.bf16.msra.mxu0 0
        %1407 = vmatprep.subr.bf16.mxu0 0
        %1408 = vmatpush1.bf16.msra.mxu0 0
        %1409 = vmatprep.subr.bf16.mxu0 0
        %1410 = vmatpush1.bf16.msra.mxu0 0
        %1411 = vmatprep.subr.bf16.mxu0 0
        %1412 = vmatpush1.bf16.msra.mxu0 0
        %1413 = vmatprep.subr.bf16.mxu0 0
        %1414 = vmatpush1.bf16.msra.mxu0 0
        %1415 = vmatprep.subr.bf16.mxu0 0
        %1416 = vmatpush1.bf16.msra.mxu0 0
        %1417 = vmatprep.subr.bf16.mxu0 0
        %1418 = vmatpush1.bf16.msra.mxu0 0
        %1419 = vmatprep.mubr.bf16.mxu0 0
        %1420 = vmatmul.mubr.bf16.gmra.mrb[0].mxu0 %v1373
        %v1421 = vpop.f32.mrb[0].mxu0
        %v1422 = vadd.f32 0.0, %v1421
        %v1423 = vpop.f32.mrb[0].mxu0
        %v1424 = vpop.f32.mrb[0].mxu0
        %v1425 = vadd.f32 0.0, %v1424
        %v1426 = vpop.f32.mrb[0].mxu0
        %1427 = vmatprep.mubr.bf16.mxu0 0
        %1428 = vmatmul.mubr.bf16.gmra.mrb[0].mxu0 %v1376
        %v1429 = vpop.f32.mrb[0].mxu0
        %v1430 = vadd.f32 0.0, %v1429
        %v1431 = vpop.f32.mrb[0].mxu0
        %v1432 = vpop.f32.mrb[0].mxu0
        %v1433 = vadd.f32 0.0, %v1432
        %v1434 = vpop.f32.mrb[0].mxu0
        %1435 = vmatprep.mubr.bf16.mxu0 0
        %1436 = vmatmul.mubr.bf16.gmra.mrb[0].mxu0 %v1379
        %v1437 = vpop.f32.mrb[0].mxu0
        %v1438 = vadd.f32 0.0, %v1437
        %v1439 = vpop.f32.mrb[0].mxu0
        %v1440 = vpop.f32.mrb[0].mxu0
        %v1441 = vadd.f32 0.0, %v1440
        %v1442 = vpop.f32.mrb[0].mxu0
        %1443 = vmatprep.mubr.bf16.mxu0 0
        %1444 = vmatmul.mubr.bf16.gmra.mrb[0].mxu0 %v1382
        %v1445 = vpop.f32.mrb[0].mxu0
        %v1446 = vadd.f32 0.0, %v1445
        %v1447 = vpop.f32.mrb[0].mxu0
        %v1448 = vpop.f32.mrb[0].mxu0
        %v1449 = vadd.f32 0.0, %v1448
        %v1450 = vpop.f32.mrb[0].mxu0
        %1451 = vdwg.mxu0
        %v1452 = vld [vmem:[%s13] sm:$0xf]
        %v1453 = vld [vmem:[%s13 + $0x4] sm:$0xf]
        %v1454 = vld [vmem:[%s13 + $0x8] sm:$0xf]
        %v1455 = vld [vmem:[%s13 + $0xc] sm:$0xf]
        %v1456 = vld [vmem:[%s13 + $0x10] sm:$0xf]
        %v1457 = vld [vmem:[%s13 + $0x14] sm:$0xf]
        %v1458 = vld [vmem:[%s13 + $0x18] sm:$0xf]
        %v1459 = vld [vmem:[%s13 + $0x1c] sm:$0xf]
        %v1460 = vpack.c.bf16 %v1425, %v1422
        %v1461 = vpack.c.bf16 %v1433, %v1430
        %v1462 = vpack.c.bf16 %v1441, %v1438
        %v1463 = vpack.c.bf16 %v1449, %v1446
        %v1472 = vunpack.c.l.b16 %v1452
        %v1473 = vunpack.c.l.b16 %v1453
        %v1474 = vunpack.c.l.b16 %v1454
        %v1475 = vunpack.c.l.b16 %v1455
        %v1476 = vunpack.c.l.b16 %v1456
        %v1477 = vunpack.c.l.b16 %v1457
        %v1478 = vunpack.c.l.b16 %v1458
        %v1479 = vunpack.c.l.b16 %v1459
        %v1480 = vpack.c.b16 %v1473, %v1472
        %v1481 = vpack.c.b16 %v1475, %v1474
        %v1482 = vpack.c.b16 %v1477, %v1476
        %v1483 = vpack.c.b16 %v1479, %v1478
        %vm1484 = vcmask 523264
        %v1486 = vsel %vm1484, %v1480, 0
        %v1489 = vsel %vm1484, %v1481, 0
        %v1492 = vsel %vm1484, %v1482, 0
        %v1495 = vsel %vm1484, %v1483, 0
        %1497 = vmatprep.subr.bf16.mxu0 0
        %1498 = vmatpush1.bf16.msra.mxu0 %v1460
        %1499 = vmatprep.subr.bf16.mxu0 0
        %1500 = vmatpush1.bf16.msra.mxu0 %v1461
        %1501 = vmatprep.subr.bf16.mxu0 0
        %1502 = vmatpush1.bf16.msra.mxu0 %v1462
        %1503 = vmatprep.subr.bf16.mxu0 0
        %1504 = vmatpush1.bf16.msra.mxu0 %v1463
        %1505 = vmatprep.subr.bf16.mxu0 0
        %1506 = vmatpush1.bf16.msra.mxu0 0
        %1507 = vmatprep.subr.bf16.mxu0 0
        %1508 = vmatpush1.bf16.msra.mxu0 0
        %1509 = vmatprep.subr.bf16.mxu0 0
        %1510 = vmatpush1.bf16.msra.mxu0 0
        %1511 = vmatprep.subr.bf16.mxu0 0
        %1512 = vmatpush1.bf16.msra.mxu0 0
        %1513 = vmatprep.subr.bf16.mxu0 0
        %1514 = vmatpush1.bf16.msra.mxu0 0
        %1515 = vmatprep.subr.bf16.mxu0 0
        %1516 = vmatpush1.bf16.msra.mxu0 0
        %1517 = vmatprep.subr.bf16.mxu0 0
        %1518 = vmatpush1.bf16.msra.mxu0 0
        %1519 = vmatprep.subr.bf16.mxu0 0
        %1520 = vmatpush1.bf16.msra.mxu0 0
        %1521 = vmatprep.subr.bf16.mxu0 0
        %1522 = vmatpush1.bf16.msra.mxu0 0
        %1523 = vmatprep.subr.bf16.mxu0 0
        %1524 = vmatpush1.bf16.msra.mxu0 0
        %1525 = vmatprep.subr.bf16.mxu0 0
        %1526 = vmatpush1.bf16.msra.mxu0 0
        %1527 = vmatprep.subr.bf16.mxu0 0
        %1528 = vmatpush1.bf16.msra.mxu0 0
        %1529 = vmatprep.mubr.bf16.mxu0 0
        %1530 = vmatmul.mubr.bf16.gmra.mrb[0].mxu0 %v1486
        %v1531 = vpop.f32.mrb[0].mxu0
        %v1532 = vadd.f32 0.0, %v1531
        %v1533 = vpop.f32.mrb[0].mxu0
        %v1534 = vpop.f32.mrb[0].mxu0
        %v1535 = vadd.f32 0.0, %v1534
        %v1536 = vpop.f32.mrb[0].mxu0
        %1537 = vmatprep.mubr.bf16.mxu0 0
        %1538 = vmatmul.mubr.bf16.gmra.mrb[0].mxu0 %v1489
        %v1539 = vpop.f32.mrb[0].mxu0
        %v1540 = vadd.f32 0.0, %v1539
        %v1541 = vpop.f32.mrb[0].mxu0
        %v1542 = vpop.f32.mrb[0].mxu0
        %v1543 = vadd.f32 0.0, %v1542
        %v1544 = vpop.f32.mrb[0].mxu0
        %1545 = vmatprep.mubr.bf16.mxu0 0
        %1546 = vmatmul.mubr.bf16.gmra.mrb[0].mxu0 %v1492
        %v1547 = vpop.f32.mrb[0].mxu0
        %v1548 = vadd.f32 0.0, %v1547
        %v1549 = vpop.f32.mrb[0].mxu0
        %v1550 = vpop.f32.mrb[0].mxu0
        %v1551 = vadd.f32 0.0, %v1550
        %v1552 = vpop.f32.mrb[0].mxu0
        %1553 = vmatprep.mubr.bf16.mxu0 0
        %1554 = vmatmul.mubr.bf16.gmra.mrb[0].mxu0 %v1495
        %v1555 = vpop.f32.mrb[0].mxu0
        %v1556 = vadd.f32 0.0, %v1555
        %v1557 = vpop.f32.mrb[0].mxu0
        %v1558 = vpop.f32.mrb[0].mxu0
        %v1559 = vadd.f32 0.0, %v1558
        %v1560 = vpop.f32.mrb[0].mxu0
        %1561 = vdwg.mxu0
        %1570 = vrot.lane.b32.xlu0 %v1422, 126
        %v1571 = vpop.permute.xlu0 %1570
        %1572 = vrot.lane.b32.xlu0 %v1425, 126
        %v1573 = vpop.permute.xlu0 %1572
        %1574 = vrot.lane.b32.xlu0 %v1430, 126
        %v1575 = vpop.permute.xlu0 %1574
        %1576 = vrot.lane.b32.xlu0 %v1433, 126
        %v1577 = vpop.permute.xlu0 %1576
        %1578 = vrot.lane.b32.xlu0 %v1438, 126
        %v1579 = vpop.permute.xlu0 %1578
        %1580 = vrot.lane.b32.xlu0 %v1441, 126
        %v1581 = vpop.permute.xlu0 %1580
        %1582 = vrot.lane.b32.xlu0 %v1446, 126
        %v1583 = vpop.permute.xlu0 %1582
        %1584 = vrot.lane.b32.xlu0 %v1449, 126
        %v1585 = vpop.permute.xlu0 %1584
        %1594 = vrot.lane.b32.xlu0 %v1422, 124
        %v1595 = vpop.permute.xlu0 %1594
        %1596 = vrot.lane.b32.xlu0 %v1425, 124
        %v1597 = vpop.permute.xlu0 %1596
        %1598 = vrot.lane.b32.xlu0 %v1430, 124
        %v1599 = vpop.permute.xlu0 %1598
        %1600 = vrot.lane.b32.xlu0 %v1433, 124
        %v1601 = vpop.permute.xlu0 %1600
        %1602 = vrot.lane.b32.xlu0 %v1438, 124
        %v1603 = vpop.permute.xlu0 %1602
        %1604 = vrot.lane.b32.xlu0 %v1441, 124
        %v1605 = vpop.permute.xlu0 %1604
        %1606 = vrot.lane.b32.xlu0 %v1446, 124
        %v1607 = vpop.permute.xlu0 %1606
        %1608 = vrot.lane.b32.xlu0 %v1449, 124
        %v1609 = vpop.permute.xlu0 %1608
        %1618 = vrot.lane.b32.xlu0 %v1422, 122
        %v1619 = vpop.permute.xlu0 %1618
        %1620 = vrot.lane.b32.xlu0 %v1425, 122
        %v1621 = vpop.permute.xlu0 %1620
        %1622 = vrot.lane.b32.xlu0 %v1430, 122
        %v1623 = vpop.permute.xlu0 %1622
        %1624 = vrot.lane.b32.xlu0 %v1433, 122
        %v1625 = vpop.permute.xlu0 %1624
        %1626 = vrot.lane.b32.xlu0 %v1438, 122
        %v1627 = vpop.permute.xlu0 %1626
        %1628 = vrot.lane.b32.xlu0 %v1441, 122
        %v1629 = vpop.permute.xlu0 %1628
        %1630 = vrot.lane.b32.xlu0 %v1446, 122
        %v1631 = vpop.permute.xlu0 %1630
        %1632 = vrot.lane.b32.xlu0 %v1449, 122
        %v1633 = vpop.permute.xlu0 %1632
        %1650 = vrot.lane.b32.xlu0 %v1532, 126
        %v1651 = vpop.permute.xlu0 %1650
        %1652 = vrot.lane.b32.xlu0 %v1535, 126
        %v1653 = vpop.permute.xlu0 %1652
        %1654 = vrot.lane.b32.xlu0 %v1540, 126
        %v1655 = vpop.permute.xlu0 %1654
        %1656 = vrot.lane.b32.xlu0 %v1543, 126
        %v1657 = vpop.permute.xlu0 %1656
        %1658 = vrot.lane.b32.xlu0 %v1548, 126
        %v1659 = vpop.permute.xlu0 %1658
        %1660 = vrot.lane.b32.xlu0 %v1551, 126
        %v1661 = vpop.permute.xlu0 %1660
        %1662 = vrot.lane.b32.xlu0 %v1556, 126
        %v1663 = vpop.permute.xlu0 %1662
        %1664 = vrot.lane.b32.xlu0 %v1559, 126
        %v1665 = vpop.permute.xlu0 %1664
        %1666 = vrot.lane.b32.xlu0 %v1532, 124
        %v1667 = vpop.permute.xlu0 %1666
        %1668 = vrot.lane.b32.xlu0 %v1535, 124
        %v1669 = vpop.permute.xlu0 %1668
        %1670 = vrot.lane.b32.xlu0 %v1540, 124
        %v1671 = vpop.permute.xlu0 %1670
        %1672 = vrot.lane.b32.xlu0 %v1543, 124
        %v1673 = vpop.permute.xlu0 %1672
        %1674 = vrot.lane.b32.xlu0 %v1548, 124
        %v1675 = vpop.permute.xlu0 %1674
        %1676 = vrot.lane.b32.xlu0 %v1551, 124
        %v1677 = vpop.permute.xlu0 %1676
        %1678 = vrot.lane.b32.xlu0 %v1556, 124
        %v1679 = vpop.permute.xlu0 %1678
        %1680 = vrot.lane.b32.xlu0 %v1559, 124
        %v1681 = vpop.permute.xlu0 %1680
        %1682 = vrot.lane.b32.xlu0 %v1532, 122
        %v1683 = vpop.permute.xlu0 %1682
        %1684 = vrot.lane.b32.xlu0 %v1535, 122
        %v1685 = vpop.permute.xlu0 %1684
        %1686 = vrot.lane.b32.xlu0 %v1540, 122
        %v1687 = vpop.permute.xlu0 %1686
        %1688 = vrot.lane.b32.xlu0 %v1543, 122
        %v1689 = vpop.permute.xlu0 %1688
        %1690 = vrot.lane.b32.xlu0 %v1548, 122
        %v1691 = vpop.permute.xlu0 %1690
        %1692 = vrot.lane.b32.xlu0 %v1551, 122
        %v1693 = vpop.permute.xlu0 %1692
        %1694 = vrot.lane.b32.xlu0 %v1556, 122
        %v1695 = vpop.permute.xlu0 %1694
        %1696 = vrot.lane.b32.xlu0 %v1559, 122
        %v1697 = vpop.permute.xlu0 %1696
        %v1698 = vpack.c.bf16 %v1573, %v1571
        %v1699 = vpack.c.bf16 %v1577, %v1575
        %v1700 = vpack.c.bf16 %v1581, %v1579
        %v1701 = vpack.c.bf16 %v1585, %v1583
        %v1702 = vpack.c.bf16 %v1597, %v1595
        %v1703 = vpack.c.bf16 %v1601, %v1599
        %v1704 = vpack.c.bf16 %v1605, %v1603
        %v1705 = vpack.c.bf16 %v1609, %v1607
        %v1706 = vpack.c.bf16 %v1621, %v1619
        %v1707 = vpack.c.bf16 %v1625, %v1623
        %v1708 = vpack.c.bf16 %v1629, %v1627
        %v1709 = vpack.c.bf16 %v1633, %v1631
        %v1710 = vld [vmem:[%s9] sm:$0xff]
        %v1711 = vld [vmem:[%s9 + $0x8] sm:$0xff]
        %v1712 = vld [vmem:[%s9 + $0x10] sm:$0xff]
        %v1713 = vld [vmem:[%s9 + $0x18] sm:$0xff]
        %v1714 = vld [vmem:[%s9 + $0x20] sm:$0xff]
        %v1715 = vld [vmem:[%s9 + $0x28] sm:$0xff]
        %v1716 = vld [vmem:[%s9 + $0x30] sm:$0xff]
        %v1717 = vld [vmem:[%s9 + $0x38] sm:$0xff]
        %1718 = vset.pattern.permute.xlu0 0
        %1719 = vperm.xlu0 %1718, %v1422
        %v1720 = vpop.permute.xlu0 %1719
        %1722 = vset.pattern.permute.xlu0 0
        %1723 = vperm.xlu0 %1722, %v1425
        %v1724 = vpop.permute.xlu0 %1723
        %1726 = vset.pattern.permute.xlu0 0
        %1727 = vperm.xlu0 %1726, %v1430
        %v1728 = vpop.permute.xlu0 %1727
        %1730 = vset.pattern.permute.xlu0 0
        %1731 = vperm.xlu0 %1730, %v1433
        %v1732 = vpop.permute.xlu0 %1731
        %1734 = vset.pattern.permute.xlu0 0
        %1735 = vperm.xlu0 %1734, %v1438
        %v1736 = vpop.permute.xlu0 %1735
        %1738 = vset.pattern.permute.xlu0 0
        %1739 = vperm.xlu0 %1738, %v1441
        %v1740 = vpop.permute.xlu0 %1739
        %1742 = vset.pattern.permute.xlu0 0
        %1743 = vperm.xlu0 %1742, %v1446
        %v1744 = vpop.permute.xlu0 %1743
        %1746 = vset.pattern.permute.xlu0 0
        %1747 = vperm.xlu0 %1746, %v1449
        %v1748 = vpop.permute.xlu0 %1747
        %1750 = vset.pattern.permute.xlu0 0
        %1751 = vperm.xlu0 %1750, %v1571
        %v1752 = vpop.permute.xlu0 %1751
        %1754 = vset.pattern.permute.xlu0 0
        %1755 = vperm.xlu0 %1754, %v1573
        %v1756 = vpop.permute.xlu0 %1755
        %1758 = vset.pattern.permute.xlu0 0
        %1759 = vperm.xlu0 %1758, %v1575
        %v1760 = vpop.permute.xlu0 %1759
        %1762 = vset.pattern.permute.xlu0 0
        %1763 = vperm.xlu0 %1762, %v1577
        %v1764 = vpop.permute.xlu0 %1763
        %1766 = vset.pattern.permute.xlu0 0
        %1767 = vperm.xlu0 %1766, %v1579
        %v1768 = vpop.permute.xlu0 %1767
        %1770 = vset.pattern.permute.xlu0 0
        %1771 = vperm.xlu0 %1770, %v1581
        %v1772 = vpop.permute.xlu0 %1771
        %1774 = vset.pattern.permute.xlu0 0
        %1775 = vperm.xlu0 %1774, %v1583
        %v1776 = vpop.permute.xlu0 %1775
        %1778 = vset.pattern.permute.xlu0 0
        %1779 = vperm.xlu0 %1778, %v1585
        %v1780 = vpop.permute.xlu0 %1779
        %1782 = vset.pattern.permute.xlu0 0
        %1783 = vperm.xlu0 %1782, %v1595
        %v1784 = vpop.permute.xlu0 %1783
        %1786 = vset.pattern.permute.xlu0 0
        %1787 = vperm.xlu0 %1786, %v1597
        %v1788 = vpop.permute.xlu0 %1787
        %1790 = vset.pattern.permute.xlu0 0
        %1791 = vperm.xlu0 %1790, %v1599
        %v1792 = vpop.permute.xlu0 %1791
        %1794 = vset.pattern.permute.xlu0 0
        %1795 = vperm.xlu0 %1794, %v1601
        %v1796 = vpop.permute.xlu0 %1795
        %1798 = vset.pattern.permute.xlu0 0
        %1799 = vperm.xlu0 %1798, %v1603
        %v1800 = vpop.permute.xlu0 %1799
        %1802 = vset.pattern.permute.xlu0 0
        %1803 = vperm.xlu0 %1802, %v1605
        %v1804 = vpop.permute.xlu0 %1803
        %1806 = vset.pattern.permute.xlu0 0
        %1807 = vperm.xlu0 %1806, %v1607
        %v1808 = vpop.permute.xlu0 %1807
        %1810 = vset.pattern.permute.xlu0 0
        %1811 = vperm.xlu0 %1810, %v1609
        %v1812 = vpop.permute.xlu0 %1811
        %1814 = vset.pattern.permute.xlu0 0
        %1815 = vperm.xlu0 %1814, %v1619
        %v1816 = vpop.permute.xlu0 %1815
        %1818 = vset.pattern.permute.xlu0 0
        %1819 = vperm.xlu0 %1818, %v1621
        %v1820 = vpop.permute.xlu0 %1819
        %1822 = vset.pattern.permute.xlu0 0
        %1823 = vperm.xlu0 %1822, %v1623
        %v1824 = vpop.permute.xlu0 %1823
        %1826 = vset.pattern.permute.xlu0 0
        %1827 = vperm.xlu0 %1826, %v1625
        %v1828 = vpop.permute.xlu0 %1827
        %1830 = vset.pattern.permute.xlu0 0
        %1831 = vperm.xlu0 %1830, %v1627
        %v1832 = vpop.permute.xlu0 %1831
        %1834 = vset.pattern.permute.xlu0 0
        %1835 = vperm.xlu0 %1834, %v1629
        %v1836 = vpop.permute.xlu0 %1835
        %1838 = vset.pattern.permute.xlu0 0
        %1839 = vperm.xlu0 %1838, %v1631
        %v1840 = vpop.permute.xlu0 %1839
        %1842 = vset.pattern.permute.xlu0 0
        %1843 = vperm.xlu0 %1842, %v1633
        %v1844 = vpop.permute.xlu0 %1843
        %v1846 = vmul.f32 %v1720, %v1710
        %v1847 = vmul.f32 %v1724, %v1711
        %v1848 = vmul.f32 %v1728, %v1712
        %v1849 = vmul.f32 %v1732, %v1713
        %v1850 = vmul.f32 %v1736, %v1714
        %v1851 = vmul.f32 %v1740, %v1715
        %v1852 = vmul.f32 %v1744, %v1716
        %v1853 = vmul.f32 %v1748, %v1717
        %v1854 = vmul.f32 %v1752, %v1710
        %v1855 = vmul.f32 %v1756, %v1711
        %v1856 = vmul.f32 %v1760, %v1712
        %v1857 = vmul.f32 %v1764, %v1713
        %v1858 = vmul.f32 %v1768, %v1714
        %v1859 = vmul.f32 %v1772, %v1715
        %v1860 = vmul.f32 %v1776, %v1716
        %v1861 = vmul.f32 %v1780, %v1717
        %v1862 = vmul.f32 %v1784, %v1710
        %v1863 = vmul.f32 %v1788, %v1711
        %v1864 = vmul.f32 %v1792, %v1712
        %v1865 = vmul.f32 %v1796, %v1713
        %v1866 = vmul.f32 %v1800, %v1714
        %v1867 = vmul.f32 %v1804, %v1715
        %v1868 = vmul.f32 %v1808, %v1716
        %v1869 = vmul.f32 %v1812, %v1717
        %v1870 = vmul.f32 %v1816, %v1710
        %v1871 = vmul.f32 %v1820, %v1711
        %v1872 = vmul.f32 %v1824, %v1712
        %v1873 = vmul.f32 %v1828, %v1713
        %v1874 = vmul.f32 %v1832, %v1714
        %v1875 = vmul.f32 %v1836, %v1715
        %v1876 = vmul.f32 %v1840, %v1716
        %v1877 = vmul.f32 %v1844, %v1717
        %1882 = vrot.lane.b32.xlu0 %v1460, 120
        %v1883 = vpop.permute.xlu0 %1882
        %1884 = vrot.lane.b32.xlu0 %v1461, 120
        %v1885 = vpop.permute.xlu0 %1884
        %1886 = vrot.lane.b32.xlu0 %v1462, 120
        %v1887 = vpop.permute.xlu0 %1886
        %1888 = vrot.lane.b32.xlu0 %v1463, 120
        %v1889 = vpop.permute.xlu0 %1888
        %vm1890 = vcmask 15360
        %v1892 = vsel %vm1890, %v1460, 0
        %v1895 = vsel %vm1890, %v1461, 0
        %v1898 = vsel %vm1890, %v1462, 0
        %v1901 = vsel %vm1890, %v1463, 0
        %v1904 = vsel %vm1890, %v1883, 0
        %v1907 = vsel %vm1890, %v1885, 0
        %v1910 = vsel %vm1890, %v1887, 0
        %v1913 = vsel %vm1890, %v1889, 0
        %1915 = vmatprep.subr.bf16.mxu0 0
        %1916 = vmatpush1.bf16.xpose.msra.mxu0 %v1904
        %1917 = vmatprep.subr.bf16.mxu0 0
        %1918 = vmatpush1.bf16.xpose.msra.mxu0 %v1907
        %1919 = vmatprep.subr.bf16.mxu0 0
        %1920 = vmatpush1.bf16.xpose.msra.mxu0 %v1910
        %1921 = vmatprep.subr.bf16.mxu0 0
        %1922 = vmatpush1.bf16.xpose.msra.mxu0 %v1913
        %1923 = vmatprep.subr.bf16.mxu0 0
        %1924 = vmatpush1.bf16.xpose.msra.mxu0 0
        %1925 = vmatprep.subr.bf16.mxu0 0
        %1926 = vmatpush1.bf16.xpose.msra.mxu0 0
        %1927 = vmatprep.subr.bf16.mxu0 0
        %1928 = vmatpush1.bf16.xpose.msra.mxu0 0
        %1929 = vmatprep.subr.bf16.mxu0 0
        %1930 = vmatpush1.bf16.xpose.msra.mxu0 0
        %1931 = vmatprep.subr.bf16.mxu0 0
        %1932 = vmatpush1.bf16.xpose.msra.mxu0 0
        %1933 = vmatprep.subr.bf16.mxu0 0
        %1934 = vmatpush1.bf16.xpose.msra.mxu0 0
        %1935 = vmatprep.subr.bf16.mxu0 0
        %1936 = vmatpush1.bf16.xpose.msra.mxu0 0
        %1937 = vmatprep.subr.bf16.mxu0 0
        %1938 = vmatpush1.bf16.xpose.msra.mxu0 0
        %1939 = vmatprep.subr.bf16.mxu0 0
        %1940 = vmatpush1.bf16.xpose.msra.mxu0 0
        %1941 = vmatprep.subr.bf16.mxu0 0
        %1942 = vmatpush1.bf16.xpose.msra.mxu0 0
        %1943 = vmatprep.subr.bf16.mxu0 0
        %1944 = vmatpush1.bf16.xpose.msra.mxu0 0
        %1945 = vmatprep.subr.bf16.mxu0 0
        %1946 = vmatpush1.bf16.xpose.msra.mxu0 0
        %1947 = vmatprep.mubr.bf16.mxu0 0
        %1948 = vmatmul.mubr.bf16.gmra.mrb[0].mxu0 %v1892
        %v1949 = vpop.f32.mrb[0].mxu0
        %v1950 = vadd.f32 %v1846, %v1949
        %v1951 = vpop.f32.mrb[0].mxu0
        %v1952 = vpop.f32.mrb[0].mxu0
        %v1953 = vadd.f32 %v1847, %v1952
        %v1954 = vpop.f32.mrb[0].mxu0
        %1955 = vmatprep.mubr.bf16.mxu0 0
        %1956 = vmatmul.mubr.bf16.gmra.mrb[0].mxu0 %v1895
        %v1957 = vpop.f32.mrb[0].mxu0
        %v1958 = vadd.f32 %v1848, %v1957
        %v1959 = vpop.f32.mrb[0].mxu0
        %v1960 = vpop.f32.mrb[0].mxu0
        %v1961 = vadd.f32 %v1849, %v1960
        %v1962 = vpop.f32.mrb[0].mxu0
        %1963 = vmatprep.mubr.bf16.mxu0 0
        %1964 = vmatmul.mubr.bf16.gmra.mrb[0].mxu0 %v1898
        %v1965 = vpop.f32.mrb[0].mxu0
        %v1966 = vadd.f32 %v1850, %v1965
        %v1967 = vpop.f32.mrb[0].mxu0
        %v1968 = vpop.f32.mrb[0].mxu0
        %v1969 = vadd.f32 %v1851, %v1968
        %v1970 = vpop.f32.mrb[0].mxu0
        %1971 = vmatprep.mubr.bf16.mxu0 0
        %1972 = vmatmul.mubr.bf16.gmra.mrb[0].mxu0 %v1901
        %v1973 = vpop.f32.mrb[0].mxu0
        %v1974 = vadd.f32 %v1852, %v1973
        %v1975 = vpop.f32.mrb[0].mxu0
        %v1976 = vpop.f32.mrb[0].mxu0
        %v1977 = vadd.f32 %v1853, %v1976
        %v1978 = vpop.f32.mrb[0].mxu0
        %1979 = vdwg.mxu0
        %1984 = vrot.lane.b32.xlu0 %v1698, 120
        %v1985 = vpop.permute.xlu0 %1984
        %1986 = vrot.lane.b32.xlu0 %v1699, 120
        %v1987 = vpop.permute.xlu0 %1986
        %1988 = vrot.lane.b32.xlu0 %v1700, 120
        %v1989 = vpop.permute.xlu0 %1988
        %1990 = vrot.lane.b32.xlu0 %v1701, 120
        %v1991 = vpop.permute.xlu0 %1990
        %v1993 = vsel %vm1890, %v1698, 0
        %v1996 = vsel %vm1890, %v1699, 0
        %v1999 = vsel %vm1890, %v1700, 0
        %v2002 = vsel %vm1890, %v1701, 0
        %v2005 = vsel %vm1890, %v1985, 0
        %v2008 = vsel %vm1890, %v1987, 0
        %v2011 = vsel %vm1890, %v1989, 0
        %v2014 = vsel %vm1890, %v1991, 0
        %2016 = vmatprep.subr.bf16.mxu0 0
        %2017 = vmatpush1.bf16.xpose.msra.mxu0 %v2005
        %2018 = vmatprep.subr.bf16.mxu0 0
        %2019 = vmatpush1.bf16.xpose.msra.mxu0 %v2008
        %2020 = vmatprep.subr.bf16.mxu0 0
        %2021 = vmatpush1.bf16.xpose.msra.mxu0 %v2011
        %2022 = vmatprep.subr.bf16.mxu0 0
        %2023 = vmatpush1.bf16.xpose.msra.mxu0 %v2014
        %2024 = vmatprep.subr.bf16.mxu0 0
        %2025 = vmatpush1.bf16.xpose.msra.mxu0 0
        %2026 = vmatprep.subr.bf16.mxu0 0
        %2027 = vmatpush1.bf16.xpose.msra.mxu0 0
        %2028 = vmatprep.subr.bf16.mxu0 0
        %2029 = vmatpush1.bf16.xpose.msra.mxu0 0
        %2030 = vmatprep.subr.bf16.mxu0 0
        %2031 = vmatpush1.bf16.xpose.msra.mxu0 0
        %2032 = vmatprep.subr.bf16.mxu0 0
        %2033 = vmatpush1.bf16.xpose.msra.mxu0 0
        %2034 = vmatprep.subr.bf16.mxu0 0
        %2035 = vmatpush1.bf16.xpose.msra.mxu0 0
        %2036 = vmatprep.subr.bf16.mxu0 0
        %2037 = vmatpush1.bf16.xpose.msra.mxu0 0
        %2038 = vmatprep.subr.bf16.mxu0 0
        %2039 = vmatpush1.bf16.xpose.msra.mxu0 0
        %2040 = vmatprep.subr.bf16.mxu0 0
        %2041 = vmatpush1.bf16.xpose.msra.mxu0 0
        %2042 = vmatprep.subr.bf16.mxu0 0
        %2043 = vmatpush1.bf16.xpose.msra.mxu0 0
        %2044 = vmatprep.subr.bf16.mxu0 0
        %2045 = vmatpush1.bf16.xpose.msra.mxu0 0
        %2046 = vmatprep.subr.bf16.mxu0 0
        %2047 = vmatpush1.bf16.xpose.msra.mxu0 0
        %2048 = vmatprep.mubr.bf16.mxu0 0
        %2049 = vmatmul.mubr.bf16.gmra.mrb[0].mxu0 %v1993
        %v2050 = vpop.f32.mrb[0].mxu0
        %v2051 = vadd.f32 %v1854, %v2050
        %v2052 = vpop.f32.mrb[0].mxu0
        %v2053 = vpop.f32.mrb[0].mxu0
        %v2054 = vadd.f32 %v1855, %v2053
        %v2055 = vpop.f32.mrb[0].mxu0
        %2056 = vmatprep.mubr.bf16.mxu0 0
        %2057 = vmatmul.mubr.bf16.gmra.mrb[0].mxu0 %v1996
        %v2058 = vpop.f32.mrb[0].mxu0
        %v2059 = vadd.f32 %v1856, %v2058
        %v2060 = vpop.f32.mrb[0].mxu0
        %v2061 = vpop.f32.mrb[0].mxu0
        %v2062 = vadd.f32 %v1857, %v2061
        %v2063 = vpop.f32.mrb[0].mxu0
        %2064 = vmatprep.mubr.bf16.mxu0 0
        %2065 = vmatmul.mubr.bf16.gmra.mrb[0].mxu0 %v1999
        %v2066 = vpop.f32.mrb[0].mxu0
        %v2067 = vadd.f32 %v1858, %v2066
        %v2068 = vpop.f32.mrb[0].mxu0
        %v2069 = vpop.f32.mrb[0].mxu0
        %v2070 = vadd.f32 %v1859, %v2069
        %v2071 = vpop.f32.mrb[0].mxu0
        %2072 = vmatprep.mubr.bf16.mxu0 0
        %2073 = vmatmul.mubr.bf16.gmra.mrb[0].mxu0 %v2002
        %v2074 = vpop.f32.mrb[0].mxu0
        %v2075 = vadd.f32 %v1860, %v2074
        %v2076 = vpop.f32.mrb[0].mxu0
        %v2077 = vpop.f32.mrb[0].mxu0
        %v2078 = vadd.f32 %v1861, %v2077
        %v2079 = vpop.f32.mrb[0].mxu0
        %2080 = vdwg.mxu0
        %2085 = vrot.lane.b32.xlu0 %v1702, 120
        %v2086 = vpop.permute.xlu0 %2085
        %2087 = vrot.lane.b32.xlu0 %v1703, 120
        %v2088 = vpop.permute.xlu0 %2087
        %2089 = vrot.lane.b32.xlu0 %v1704, 120
        %v2090 = vpop.permute.xlu0 %2089
        %2091 = vrot.lane.b32.xlu0 %v1705, 120
        %v2092 = vpop.permute.xlu0 %2091
        %v2094 = vsel %vm1890, %v1702, 0
        %v2097 = vsel %vm1890, %v1703, 0
        %v2100 = vsel %vm1890, %v1704, 0
        %v2103 = vsel %vm1890, %v1705, 0
        %v2106 = vsel %vm1890, %v2086, 0
        %v2109 = vsel %vm1890, %v2088, 0
        %v2112 = vsel %vm1890, %v2090, 0
        %v2115 = vsel %vm1890, %v2092, 0
        %2117 = vmatprep.subr.bf16.mxu0 0
        %2118 = vmatpush1.bf16.xpose.msra.mxu0 %v2106
        %2119 = vmatprep.subr.bf16.mxu0 0
        %2120 = vmatpush1.bf16.xpose.msra.mxu0 %v2109
        %2121 = vmatprep.subr.bf16.mxu0 0
        %2122 = vmatpush1.bf16.xpose.msra.mxu0 %v2112
        %2123 = vmatprep.subr.bf16.mxu0 0
        %2124 = vmatpush1.bf16.xpose.msra.mxu0 %v2115
        %2125 = vmatprep.subr.bf16.mxu0 0
        %2126 = vmatpush1.bf16.xpose.msra.mxu0 0
        %2127 = vmatprep.subr.bf16.mxu0 0
        %2128 = vmatpush1.bf16.xpose.msra.mxu0 0
        %2129 = vmatprep.subr.bf16.mxu0 0
        %2130 = vmatpush1.bf16.xpose.msra.mxu0 0
        %2131 = vmatprep.subr.bf16.mxu0 0
        %2132 = vmatpush1.bf16.xpose.msra.mxu0 0
        %2133 = vmatprep.subr.bf16.mxu0 0
        %2134 = vmatpush1.bf16.xpose.msra.mxu0 0
        %2135 = vmatprep.subr.bf16.mxu0 0
        %2136 = vmatpush1.bf16.xpose.msra.mxu0 0
        %2137 = vmatprep.subr.bf16.mxu0 0
        %2138 = vmatpush1.bf16.xpose.msra.mxu0 0
        %2139 = vmatprep.subr.bf16.mxu0 0
        %2140 = vmatpush1.bf16.xpose.msra.mxu0 0
        %2141 = vmatprep.subr.bf16.mxu0 0
        %2142 = vmatpush1.bf16.xpose.msra.mxu0 0
        %2143 = vmatprep.subr.bf16.mxu0 0
        %2144 = vmatpush1.bf16.xpose.msra.mxu0 0
        %2145 = vmatprep.subr.bf16.mxu0 0
        %2146 = vmatpush1.bf16.xpose.msra.mxu0 0
        %2147 = vmatprep.subr.bf16.mxu0 0
        %2148 = vmatpush1.bf16.xpose.msra.mxu0 0
        %2149 = vmatprep.mubr.bf16.mxu0 0
        %2150 = vmatmul.mubr.bf16.gmra.mrb[0].mxu0 %v2094
        %v2151 = vpop.f32.mrb[0].mxu0
        %v2152 = vadd.f32 %v1862, %v2151
        %v2153 = vpop.f32.mrb[0].mxu0
        %v2154 = vpop.f32.mrb[0].mxu0
        %v2155 = vadd.f32 %v1863, %v2154
        %v2156 = vpop.f32.mrb[0].mxu0
        %2157 = vmatprep.mubr.bf16.mxu0 0
        %2158 = vmatmul.mubr.bf16.gmra.mrb[0].mxu0 %v2097
        %v2159 = vpop.f32.mrb[0].mxu0
        %v2160 = vadd.f32 %v1864, %v2159
        %v2161 = vpop.f32.mrb[0].mxu0
        %v2162 = vpop.f32.mrb[0].mxu0
        %v2163 = vadd.f32 %v1865, %v2162
        %v2164 = vpop.f32.mrb[0].mxu0
        %2165 = vmatprep.mubr.bf16.mxu0 0
        %2166 = vmatmul.mubr.bf16.gmra.mrb[0].mxu0 %v2100
        %v2167 = vpop.f32.mrb[0].mxu0
        %v2168 = vadd.f32 %v1866, %v2167
        %v2169 = vpop.f32.mrb[0].mxu0
        %v2170 = vpop.f32.mrb[0].mxu0
        %v2171 = vadd.f32 %v1867, %v2170
        %v2172 = vpop.f32.mrb[0].mxu0
        %2173 = vmatprep.mubr.bf16.mxu0 0
        %2174 = vmatmul.mubr.bf16.gmra.mrb[0].mxu0 %v2103
        %v2175 = vpop.f32.mrb[0].mxu0
        %v2176 = vadd.f32 %v1868, %v2175
        %v2177 = vpop.f32.mrb[0].mxu0
        %v2178 = vpop.f32.mrb[0].mxu0
        %v2179 = vadd.f32 %v1869, %v2178
        %v2180 = vpop.f32.mrb[0].mxu0
        %2181 = vdwg.mxu0
        %2186 = vrot.lane.b32.xlu0 %v1706, 120
        %v2187 = vpop.permute.xlu0 %2186
        %2188 = vrot.lane.b32.xlu0 %v1707, 120
        %v2189 = vpop.permute.xlu0 %2188
        %2190 = vrot.lane.b32.xlu0 %v1708, 120
        %v2191 = vpop.permute.xlu0 %2190
        %2192 = vrot.lane.b32.xlu0 %v1709, 120
        %v2193 = vpop.permute.xlu0 %2192
        %v2195 = vsel %vm1890, %v1706, 0
        %v2198 = vsel %vm1890, %v1707, 0
        %v2201 = vsel %vm1890, %v1708, 0
        %v2204 = vsel %vm1890, %v1709, 0
        %v2207 = vsel %vm1890, %v2187, 0
        %v2210 = vsel %vm1890, %v2189, 0
        %v2213 = vsel %vm1890, %v2191, 0
        %v2216 = vsel %vm1890, %v2193, 0
        %2218 = vmatprep.subr.bf16.mxu0 0
        %2219 = vmatpush1.bf16.xpose.msra.mxu0 %v2207
        %2220 = vmatprep.subr.bf16.mxu0 0
        %2221 = vmatpush1.bf16.xpose.msra.mxu0 %v2210
        %2222 = vmatprep.subr.bf16.mxu0 0
        %2223 = vmatpush1.bf16.xpose.msra.mxu0 %v2213
        %2224 = vmatprep.subr.bf16.mxu0 0
        %2225 = vmatpush1.bf16.xpose.msra.mxu0 %v2216
        %2226 = vmatprep.subr.bf16.mxu0 0
        %2227 = vmatpush1.bf16.xpose.msra.mxu0 0
        %2228 = vmatprep.subr.bf16.mxu0 0
        %2229 = vmatpush1.bf16.xpose.msra.mxu0 0
        %2230 = vmatprep.subr.bf16.mxu0 0
        %2231 = vmatpush1.bf16.xpose.msra.mxu0 0
        %2232 = vmatprep.subr.bf16.mxu0 0
        %2233 = vmatpush1.bf16.xpose.msra.mxu0 0
        %2234 = vmatprep.subr.bf16.mxu0 0
        %2235 = vmatpush1.bf16.xpose.msra.mxu0 0
        %2236 = vmatprep.subr.bf16.mxu0 0
        %2237 = vmatpush1.bf16.xpose.msra.mxu0 0
        %2238 = vmatprep.subr.bf16.mxu0 0
        %2239 = vmatpush1.bf16.xpose.msra.mxu0 0
        %2240 = vmatprep.subr.bf16.mxu0 0
        %2241 = vmatpush1.bf16.xpose.msra.mxu0 0
        %2242 = vmatprep.subr.bf16.mxu0 0
        %2243 = vmatpush1.bf16.xpose.msra.mxu0 0
        %2244 = vmatprep.subr.bf16.mxu0 0
        %2245 = vmatpush1.bf16.xpose.msra.mxu0 0
        %2246 = vmatprep.subr.bf16.mxu0 0
        %2247 = vmatpush1.bf16.xpose.msra.mxu0 0
        %2248 = vmatprep.subr.bf16.mxu0 0
        %2249 = vmatpush1.bf16.xpose.msra.mxu0 0
        %2250 = vmatprep.mubr.bf16.mxu0 0
        %2251 = vmatmul.mubr.bf16.gmra.mrb[0].mxu0 %v2195
        %v2252 = vpop.f32.mrb[0].mxu0
        %v2253 = vadd.f32 %v1870, %v2252
        %v2254 = vpop.f32.mrb[0].mxu0
        %v2255 = vpop.f32.mrb[0].mxu0
        %v2256 = vadd.f32 %v1871, %v2255
        %v2257 = vpop.f32.mrb[0].mxu0
        %2258 = vmatprep.mubr.bf16.mxu0 0
        %2259 = vmatmul.mubr.bf16.gmra.mrb[0].mxu0 %v2198
        %v2260 = vpop.f32.mrb[0].mxu0
        %v2261 = vadd.f32 %v1872, %v2260
        %v2262 = vpop.f32.mrb[0].mxu0
        %v2263 = vpop.f32.mrb[0].mxu0
        %v2264 = vadd.f32 %v1873, %v2263
        %v2265 = vpop.f32.mrb[0].mxu0
        %2266 = vmatprep.mubr.bf16.mxu0 0
        %2267 = vmatmul.mubr.bf16.gmra.mrb[0].mxu0 %v2201
        %v2268 = vpop.f32.mrb[0].mxu0
        %v2269 = vadd.f32 %v1874, %v2268
        %v2270 = vpop.f32.mrb[0].mxu0
        %v2271 = vpop.f32.mrb[0].mxu0
        %v2272 = vadd.f32 %v1875, %v2271
        %v2273 = vpop.f32.mrb[0].mxu0
        %2274 = vmatprep.mubr.bf16.mxu0 0
        %2275 = vmatmul.mubr.bf16.gmra.mrb[0].mxu0 %v2204
        %v2276 = vpop.f32.mrb[0].mxu0
        %v2277 = vadd.f32 %v1876, %v2276
        %v2278 = vpop.f32.mrb[0].mxu0
        %v2279 = vpop.f32.mrb[0].mxu0
        %v2280 = vadd.f32 %v1877, %v2279
        %v2281 = vpop.f32.mrb[0].mxu0
        %2282 = vdwg.mxu0
        %v2283 = vld [vmem:[%s11] sm:$0xff]
        %v2284 = vld [vmem:[%s11 + $0x8] sm:$0xff]
        %v2285 = vld [vmem:[%s11 + $0x10] sm:$0xff]
        %v2286 = vld [vmem:[%s11 + $0x18] sm:$0xff]
        %v2287 = vld [vmem:[%s11 + $0x20] sm:$0xff]
        %v2288 = vld [vmem:[%s11 + $0x28] sm:$0xff]
        %v2289 = vld [vmem:[%s11 + $0x30] sm:$0xff]
        %v2290 = vld [vmem:[%s11 + $0x38] sm:$0xff]
        %2291 = vset.pattern.permute.xlu0 0
        %2292 = vperm.xlu0 %2291, %v1532
        %v2293 = vpop.permute.xlu0 %2292
        %2295 = vset.pattern.permute.xlu0 0
        %2296 = vperm.xlu0 %2295, %v1535
        %v2297 = vpop.permute.xlu0 %2296
        %2299 = vset.pattern.permute.xlu0 0
        %2300 = vperm.xlu0 %2299, %v1540
        %v2301 = vpop.permute.xlu0 %2300
        %2303 = vset.pattern.permute.xlu0 0
        %2304 = vperm.xlu0 %2303, %v1543
        %v2305 = vpop.permute.xlu0 %2304
        %2307 = vset.pattern.permute.xlu0 0
        %2308 = vperm.xlu0 %2307, %v1548
        %v2309 = vpop.permute.xlu0 %2308
        %2311 = vset.pattern.permute.xlu0 0
        %2312 = vperm.xlu0 %2311, %v1551
        %v2313 = vpop.permute.xlu0 %2312
        %2315 = vset.pattern.permute.xlu0 0
        %2316 = vperm.xlu0 %2315, %v1556
        %v2317 = vpop.permute.xlu0 %2316
        %2319 = vset.pattern.permute.xlu0 0
        %2320 = vperm.xlu0 %2319, %v1559
        %v2321 = vpop.permute.xlu0 %2320
        %2323 = vset.pattern.permute.xlu0 0
        %2324 = vperm.xlu0 %2323, %v1651
        %v2325 = vpop.permute.xlu0 %2324
        %2327 = vset.pattern.permute.xlu0 0
        %2328 = vperm.xlu0 %2327, %v1653
        %v2329 = vpop.permute.xlu0 %2328
        %2331 = vset.pattern.permute.xlu0 0
        %2332 = vperm.xlu0 %2331, %v1655
        %v2333 = vpop.permute.xlu0 %2332
        %2335 = vset.pattern.permute.xlu0 0
        %2336 = vperm.xlu0 %2335, %v1657
        %v2337 = vpop.permute.xlu0 %2336
        %2339 = vset.pattern.permute.xlu0 0
        %2340 = vperm.xlu0 %2339, %v1659
        %v2341 = vpop.permute.xlu0 %2340
        %2343 = vset.pattern.permute.xlu0 0
        %2344 = vperm.xlu0 %2343, %v1661
        %v2345 = vpop.permute.xlu0 %2344
        %2347 = vset.pattern.permute.xlu0 0
        %2348 = vperm.xlu0 %2347, %v1663
        %v2349 = vpop.permute.xlu0 %2348
        %2351 = vset.pattern.permute.xlu0 0
        %2352 = vperm.xlu0 %2351, %v1665
        %v2353 = vpop.permute.xlu0 %2352
        %2355 = vset.pattern.permute.xlu0 0
        %2356 = vperm.xlu0 %2355, %v1667
        %v2357 = vpop.permute.xlu0 %2356
        %2359 = vset.pattern.permute.xlu0 0
        %2360 = vperm.xlu0 %2359, %v1669
        %v2361 = vpop.permute.xlu0 %2360
        %2363 = vset.pattern.permute.xlu0 0
        %2364 = vperm.xlu0 %2363, %v1671
        %v2365 = vpop.permute.xlu0 %2364
        %2367 = vset.pattern.permute.xlu0 0
        %2368 = vperm.xlu0 %2367, %v1673
        %v2369 = vpop.permute.xlu0 %2368
        %2371 = vset.pattern.permute.xlu0 0
        %2372 = vperm.xlu0 %2371, %v1675
        %v2373 = vpop.permute.xlu0 %2372
        %2375 = vset.pattern.permute.xlu0 0
        %2376 = vperm.xlu0 %2375, %v1677
        %v2377 = vpop.permute.xlu0 %2376
        %2379 = vset.pattern.permute.xlu0 0
        %2380 = vperm.xlu0 %2379, %v1679
        %v2381 = vpop.permute.xlu0 %2380
        %2383 = vset.pattern.permute.xlu0 0
        %2384 = vperm.xlu0 %2383, %v1681
        %v2385 = vpop.permute.xlu0 %2384
        %2387 = vset.pattern.permute.xlu0 0
        %2388 = vperm.xlu0 %2387, %v1683
        %v2389 = vpop.permute.xlu0 %2388
        %2391 = vset.pattern.permute.xlu0 0
        %2392 = vperm.xlu0 %2391, %v1685
        %v2393 = vpop.permute.xlu0 %2392
        %2395 = vset.pattern.permute.xlu0 0
        %2396 = vperm.xlu0 %2395, %v1687
        %v2397 = vpop.permute.xlu0 %2396
        %2399 = vset.pattern.permute.xlu0 0
        %2400 = vperm.xlu0 %2399, %v1689
        %v2401 = vpop.permute.xlu0 %2400
        %2403 = vset.pattern.permute.xlu0 0
        %2404 = vperm.xlu0 %2403, %v1691
        %v2405 = vpop.permute.xlu0 %2404
        %2407 = vset.pattern.permute.xlu0 0
        %2408 = vperm.xlu0 %2407, %v1693
        %v2409 = vpop.permute.xlu0 %2408
        %2411 = vset.pattern.permute.xlu0 0
        %2412 = vperm.xlu0 %2411, %v1695
        %v2413 = vpop.permute.xlu0 %2412
        %2415 = vset.pattern.permute.xlu0 0
        %2416 = vperm.xlu0 %2415, %v1697
        %v2417 = vpop.permute.xlu0 %2416
        %v2419 = vmul.f32 %v2293, %v2283
        %v2420 = vmul.f32 %v2297, %v2284
        %v2421 = vmul.f32 %v2301, %v2285
        %v2422 = vmul.f32 %v2305, %v2286
        %v2423 = vmul.f32 %v2309, %v2287
        %v2424 = vmul.f32 %v2313, %v2288
        %v2425 = vmul.f32 %v2317, %v2289
        %v2426 = vmul.f32 %v2321, %v2290
        %v2427 = vmul.f32 %v2325, %v2283
        %v2428 = vmul.f32 %v2329, %v2284
        %v2429 = vmul.f32 %v2333, %v2285
        %v2430 = vmul.f32 %v2337, %v2286
        %v2431 = vmul.f32 %v2341, %v2287
        %v2432 = vmul.f32 %v2345, %v2288
        %v2433 = vmul.f32 %v2349, %v2289
        %v2434 = vmul.f32 %v2353, %v2290
        %v2435 = vmul.f32 %v2357, %v2283
        %v2436 = vmul.f32 %v2361, %v2284
        %v2437 = vmul.f32 %v2365, %v2285
        %v2438 = vmul.f32 %v2369, %v2286
        %v2439 = vmul.f32 %v2373, %v2287
        %v2440 = vmul.f32 %v2377, %v2288
        %v2441 = vmul.f32 %v2381, %v2289
        %v2442 = vmul.f32 %v2385, %v2290
        %v2443 = vmul.f32 %v2389, %v2283
        %v2444 = vmul.f32 %v2393, %v2284
        %v2445 = vmul.f32 %v2397, %v2285
        %v2446 = vmul.f32 %v2401, %v2286
        %v2447 = vmul.f32 %v2405, %v2287
        %v2448 = vmul.f32 %v2409, %v2288
        %v2449 = vmul.f32 %v2413, %v2289
        %v2450 = vmul.f32 %v2417, %v2290
        %v2451 = vadd.f32 %v1950, %v2419
        %v2452 = vadd.f32 %v1953, %v2420
        %v2453 = vadd.f32 %v1958, %v2421
        %v2454 = vadd.f32 %v1961, %v2422
        %v2455 = vadd.f32 %v1966, %v2423
        %v2456 = vadd.f32 %v1969, %v2424
        %v2457 = vadd.f32 %v1974, %v2425
        %v2458 = vadd.f32 %v1977, %v2426
        %v2459 = vadd.f32 %v2051, %v2427
        %v2460 = vadd.f32 %v2054, %v2428
        %v2461 = vadd.f32 %v2059, %v2429
        %v2462 = vadd.f32 %v2062, %v2430
        %v2463 = vadd.f32 %v2067, %v2431
        %v2464 = vadd.f32 %v2070, %v2432
        %v2465 = vadd.f32 %v2075, %v2433
        %v2466 = vadd.f32 %v2078, %v2434
        %v2467 = vadd.f32 %v2152, %v2435
        %v2468 = vadd.f32 %v2155, %v2436
        %v2469 = vadd.f32 %v2160, %v2437
        %v2470 = vadd.f32 %v2163, %v2438
        %v2471 = vadd.f32 %v2168, %v2439
        %v2472 = vadd.f32 %v2171, %v2440
        %v2473 = vadd.f32 %v2176, %v2441
        %v2474 = vadd.f32 %v2179, %v2442
        %v2475 = vadd.f32 %v2253, %v2443
        %v2476 = vadd.f32 %v2256, %v2444
        %v2477 = vadd.f32 %v2261, %v2445
        %v2478 = vadd.f32 %v2264, %v2446
        %v2479 = vadd.f32 %v2269, %v2447
        %v2480 = vadd.f32 %v2272, %v2448
        %v2481 = vadd.f32 %v2277, %v2449
        %v2482 = vadd.f32 %v2280, %v2450
        %s2483 = scalar_lea.vmem %s9, 64
        %v2484 = vld [vmem:[%s2483] sm:$0xff]
        %v2485 = vld [vmem:[%s2483 + $0x8] sm:$0xff]
        %v2486 = vld [vmem:[%s2483 + $0x10] sm:$0xff]
        %v2487 = vld [vmem:[%s2483 + $0x18] sm:$0xff]
        %v2488 = vld [vmem:[%s2483 + $0x20] sm:$0xff]
        %v2489 = vld [vmem:[%s2483 + $0x28] sm:$0xff]
        %v2490 = vld [vmem:[%s2483 + $0x30] sm:$0xff]
        %v2491 = vld [vmem:[%s2483 + $0x38] sm:$0xff]
        %2492 = vset.pattern.permute.xlu0 1
        %2493 = vperm.xlu0 %2492, %v1422
        %v2494 = vpop.permute.xlu0 %2493
        %2496 = vset.pattern.permute.xlu0 1
        %2497 = vperm.xlu0 %2496, %v1425
        %v2498 = vpop.permute.xlu0 %2497
        %2500 = vset.pattern.permute.xlu0 1
        %2501 = vperm.xlu0 %2500, %v1430
        %v2502 = vpop.permute.xlu0 %2501
        %2504 = vset.pattern.permute.xlu0 1
        %2505 = vperm.xlu0 %2504, %v1433
        %v2506 = vpop.permute.xlu0 %2505
        %2508 = vset.pattern.permute.xlu0 1
        %2509 = vperm.xlu0 %2508, %v1438
        %v2510 = vpop.permute.xlu0 %2509
        %2512 = vset.pattern.permute.xlu0 1
        %2513 = vperm.xlu0 %2512, %v1441
        %v2514 = vpop.permute.xlu0 %2513
        %2516 = vset.pattern.permute.xlu0 1
        %2517 = vperm.xlu0 %2516, %v1446
        %v2518 = vpop.permute.xlu0 %2517
        %2520 = vset.pattern.permute.xlu0 1
        %2521 = vperm.xlu0 %2520, %v1449
        %v2522 = vpop.permute.xlu0 %2521
        %2524 = vset.pattern.permute.xlu0 1
        %2525 = vperm.xlu0 %2524, %v1571
        %v2526 = vpop.permute.xlu0 %2525
        %2528 = vset.pattern.permute.xlu0 1
        %2529 = vperm.xlu0 %2528, %v1573
        %v2530 = vpop.permute.xlu0 %2529
        %2532 = vset.pattern.permute.xlu0 1
        %2533 = vperm.xlu0 %2532, %v1575
        %v2534 = vpop.permute.xlu0 %2533
        %2536 = vset.pattern.permute.xlu0 1
        %2537 = vperm.xlu0 %2536, %v1577
        %v2538 = vpop.permute.xlu0 %2537
        %2540 = vset.pattern.permute.xlu0 1
        %2541 = vperm.xlu0 %2540, %v1579
        %v2542 = vpop.permute.xlu0 %2541
        %2544 = vset.pattern.permute.xlu0 1
        %2545 = vperm.xlu0 %2544, %v1581
        %v2546 = vpop.permute.xlu0 %2545
        %2548 = vset.pattern.permute.xlu0 1
        %2549 = vperm.xlu0 %2548, %v1583
        %v2550 = vpop.permute.xlu0 %2549
        %2552 = vset.pattern.permute.xlu0 1
        %2553 = vperm.xlu0 %2552, %v1585
        %v2554 = vpop.permute.xlu0 %2553
        %2556 = vset.pattern.permute.xlu0 1
        %2557 = vperm.xlu0 %2556, %v1595
        %v2558 = vpop.permute.xlu0 %2557
        %2560 = vset.pattern.permute.xlu0 1
        %2561 = vperm.xlu0 %2560, %v1597
        %v2562 = vpop.permute.xlu0 %2561
        %2564 = vset.pattern.permute.xlu0 1
        %2565 = vperm.xlu0 %2564, %v1599
        %v2566 = vpop.permute.xlu0 %2565
        %2568 = vset.pattern.permute.xlu0 1
        %2569 = vperm.xlu0 %2568, %v1601
        %v2570 = vpop.permute.xlu0 %2569
        %2572 = vset.pattern.permute.xlu0 1
        %2573 = vperm.xlu0 %2572, %v1603
        %v2574 = vpop.permute.xlu0 %2573
        %2576 = vset.pattern.permute.xlu0 1
        %2577 = vperm.xlu0 %2576, %v1605
        %v2578 = vpop.permute.xlu0 %2577
        %2580 = vset.pattern.permute.xlu0 1
        %2581 = vperm.xlu0 %2580, %v1607
        %v2582 = vpop.permute.xlu0 %2581
        %2584 = vset.pattern.permute.xlu0 1
        %2585 = vperm.xlu0 %2584, %v1609
        %v2586 = vpop.permute.xlu0 %2585
        %2588 = vset.pattern.permute.xlu0 1
        %2589 = vperm.xlu0 %2588, %v1619
        %v2590 = vpop.permute.xlu0 %2589
        %2592 = vset.pattern.permute.xlu0 1
        %2593 = vperm.xlu0 %2592, %v1621
        %v2594 = vpop.permute.xlu0 %2593
        %2596 = vset.pattern.permute.xlu0 1
        %2597 = vperm.xlu0 %2596, %v1623
        %v2598 = vpop.permute.xlu0 %2597
        %2600 = vset.pattern.permute.xlu0 1
        %2601 = vperm.xlu0 %2600, %v1625
        %v2602 = vpop.permute.xlu0 %2601
        %2604 = vset.pattern.permute.xlu0 1
        %2605 = vperm.xlu0 %2604, %v1627
        %v2606 = vpop.permute.xlu0 %2605
        %2608 = vset.pattern.permute.xlu0 1
        %2609 = vperm.xlu0 %2608, %v1629
        %v2610 = vpop.permute.xlu0 %2609
        %2612 = vset.pattern.permute.xlu0 1
        %2613 = vperm.xlu0 %2612, %v1631
        %v2614 = vpop.permute.xlu0 %2613
        %2616 = vset.pattern.permute.xlu0 1
        %2617 = vperm.xlu0 %2616, %v1633
        %v2618 = vpop.permute.xlu0 %2617
        %v2620 = vmul.f32 %v2494, %v2484
        %v2621 = vmul.f32 %v2498, %v2485
        %v2622 = vmul.f32 %v2502, %v2486
        %v2623 = vmul.f32 %v2506, %v2487
        %v2624 = vmul.f32 %v2510, %v2488
        %v2625 = vmul.f32 %v2514, %v2489
        %v2626 = vmul.f32 %v2518, %v2490
        %v2627 = vmul.f32 %v2522, %v2491
        %v2628 = vmul.f32 %v2526, %v2484
        %v2629 = vmul.f32 %v2530, %v2485
        %v2630 = vmul.f32 %v2534, %v2486
        %v2631 = vmul.f32 %v2538, %v2487
        %v2632 = vmul.f32 %v2542, %v2488
        %v2633 = vmul.f32 %v2546, %v2489
        %v2634 = vmul.f32 %v2550, %v2490
        %v2635 = vmul.f32 %v2554, %v2491
        %v2636 = vmul.f32 %v2558, %v2484
        %v2637 = vmul.f32 %v2562, %v2485
        %v2638 = vmul.f32 %v2566, %v2486
        %v2639 = vmul.f32 %v2570, %v2487
        %v2640 = vmul.f32 %v2574, %v2488
        %v2641 = vmul.f32 %v2578, %v2489
        %v2642 = vmul.f32 %v2582, %v2490
        %v2643 = vmul.f32 %v2586, %v2491
        %v2644 = vmul.f32 %v2590, %v2484
        %v2645 = vmul.f32 %v2594, %v2485
        %v2646 = vmul.f32 %v2598, %v2486
        %v2647 = vmul.f32 %v2602, %v2487
        %v2648 = vmul.f32 %v2606, %v2488
        %v2649 = vmul.f32 %v2610, %v2489
        %v2650 = vmul.f32 %v2614, %v2490
        %v2651 = vmul.f32 %v2618, %v2491
        %v2652 = vadd.f32 %v2451, %v2620
        %v2653 = vadd.f32 %v2452, %v2621
        %v2654 = vadd.f32 %v2453, %v2622
        %v2655 = vadd.f32 %v2454, %v2623
        %v2656 = vadd.f32 %v2455, %v2624
        %v2657 = vadd.f32 %v2456, %v2625
        %v2658 = vadd.f32 %v2457, %v2626
        %v2659 = vadd.f32 %v2458, %v2627
        %v2660 = vadd.f32 %v2459, %v2628
        %v2661 = vadd.f32 %v2460, %v2629
        %v2662 = vadd.f32 %v2461, %v2630
        %v2663 = vadd.f32 %v2462, %v2631
        %v2664 = vadd.f32 %v2463, %v2632
        %v2665 = vadd.f32 %v2464, %v2633
        %v2666 = vadd.f32 %v2465, %v2634
        %v2667 = vadd.f32 %v2466, %v2635
        %v2668 = vadd.f32 %v2467, %v2636
        %v2669 = vadd.f32 %v2468, %v2637
        %v2670 = vadd.f32 %v2469, %v2638
        %v2671 = vadd.f32 %v2470, %v2639
        %v2672 = vadd.f32 %v2471, %v2640
        %v2673 = vadd.f32 %v2472, %v2641
        %v2674 = vadd.f32 %v2473, %v2642
        %v2675 = vadd.f32 %v2474, %v2643
        %v2676 = vadd.f32 %v2475, %v2644
        %v2677 = vadd.f32 %v2476, %v2645
        %v2678 = vadd.f32 %v2477, %v2646
        %v2679 = vadd.f32 %v2478, %v2647
        %v2680 = vadd.f32 %v2479, %v2648
        %v2681 = vadd.f32 %v2480, %v2649
        %v2682 = vadd.f32 %v2481, %v2650
        %v2683 = vadd.f32 %v2482, %v2651
        %s2684 = scalar_lea.vmem %s11, 64
        %v2685 = vld [vmem:[%s2684] sm:$0xff]
        %v2686 = vld [vmem:[%s2684 + $0x8] sm:$0xff]
        %v2687 = vld [vmem:[%s2684 + $0x10] sm:$0xff]
        %v2688 = vld [vmem:[%s2684 + $0x18] sm:$0xff]
        %v2689 = vld [vmem:[%s2684 + $0x20] sm:$0xff]
        %v2690 = vld [vmem:[%s2684 + $0x28] sm:$0xff]
        %v2691 = vld [vmem:[%s2684 + $0x30] sm:$0xff]
        %v2692 = vld [vmem:[%s2684 + $0x38] sm:$0xff]
        %2693 = vset.pattern.permute.xlu0 1
        %2694 = vperm.xlu0 %2693, %v1532
        %v2695 = vpop.permute.xlu0 %2694
        %2697 = vset.pattern.permute.xlu0 1
        %2698 = vperm.xlu0 %2697, %v1535
        %v2699 = vpop.permute.xlu0 %2698
        %2701 = vset.pattern.permute.xlu0 1
        %2702 = vperm.xlu0 %2701, %v1540
        %v2703 = vpop.permute.xlu0 %2702
        %2705 = vset.pattern.permute.xlu0 1
        %2706 = vperm.xlu0 %2705, %v1543
        %v2707 = vpop.permute.xlu0 %2706
        %2709 = vset.pattern.permute.xlu0 1
        %2710 = vperm.xlu0 %2709, %v1548
        %v2711 = vpop.permute.xlu0 %2710
        %2713 = vset.pattern.permute.xlu0 1
        %2714 = vperm.xlu0 %2713, %v1551
        %v2715 = vpop.permute.xlu0 %2714
        %2717 = vset.pattern.permute.xlu0 1
        %2718 = vperm.xlu0 %2717, %v1556
        %v2719 = vpop.permute.xlu0 %2718
        %2721 = vset.pattern.permute.xlu0 1
        %2722 = vperm.xlu0 %2721, %v1559
        %v2723 = vpop.permute.xlu0 %2722
        %2725 = vset.pattern.permute.xlu0 1
        %2726 = vperm.xlu0 %2725, %v1651
        %v2727 = vpop.permute.xlu0 %2726
        %2729 = vset.pattern.permute.xlu0 1
        %2730 = vperm.xlu0 %2729, %v1653
        %v2731 = vpop.permute.xlu0 %2730
        %2733 = vset.pattern.permute.xlu0 1
        %2734 = vperm.xlu0 %2733, %v1655
        %v2735 = vpop.permute.xlu0 %2734
        %2737 = vset.pattern.permute.xlu0 1
        %2738 = vperm.xlu0 %2737, %v1657
        %v2739 = vpop.permute.xlu0 %2738
        %2741 = vset.pattern.permute.xlu0 1
        %2742 = vperm.xlu0 %2741, %v1659
        %v2743 = vpop.permute.xlu0 %2742
        %2745 = vset.pattern.permute.xlu0 1
        %2746 = vperm.xlu0 %2745, %v1661
        %v2747 = vpop.permute.xlu0 %2746
        %2749 = vset.pattern.permute.xlu0 1
        %2750 = vperm.xlu0 %2749, %v1663
        %v2751 = vpop.permute.xlu0 %2750
        %2753 = vset.pattern.permute.xlu0 1
        %2754 = vperm.xlu0 %2753, %v1665
        %v2755 = vpop.permute.xlu0 %2754
        %2757 = vset.pattern.permute.xlu0 1
        %2758 = vperm.xlu0 %2757, %v1667
        %v2759 = vpop.permute.xlu0 %2758
        %2761 = vset.pattern.permute.xlu0 1
        %2762 = vperm.xlu0 %2761, %v1669
        %v2763 = vpop.permute.xlu0 %2762
        %2765 = vset.pattern.permute.xlu0 1
        %2766 = vperm.xlu0 %2765, %v1671
        %v2767 = vpop.permute.xlu0 %2766
        %2769 = vset.pattern.permute.xlu0 1
        %2770 = vperm.xlu0 %2769, %v1673
        %v2771 = vpop.permute.xlu0 %2770
        %2773 = vset.pattern.permute.xlu0 1
        %2774 = vperm.xlu0 %2773, %v1675
        %v2775 = vpop.permute.xlu0 %2774
        %2777 = vset.pattern.permute.xlu0 1
        %2778 = vperm.xlu0 %2777, %v1677
        %v2779 = vpop.permute.xlu0 %2778
        %2781 = vset.pattern.permute.xlu0 1
        %2782 = vperm.xlu0 %2781, %v1679
        %v2783 = vpop.permute.xlu0 %2782
        %2785 = vset.pattern.permute.xlu0 1
        %2786 = vperm.xlu0 %2785, %v1681
        %v2787 = vpop.permute.xlu0 %2786
        %2789 = vset.pattern.permute.xlu0 1
        %2790 = vperm.xlu0 %2789, %v1683
        %v2791 = vpop.permute.xlu0 %2790
        %2793 = vset.pattern.permute.xlu0 1
        %2794 = vperm.xlu0 %2793, %v1685
        %v2795 = vpop.permute.xlu0 %2794
        %2797 = vset.pattern.permute.xlu0 1
        %2798 = vperm.xlu0 %2797, %v1687
        %v2799 = vpop.permute.xlu0 %2798
        %2801 = vset.pattern.permute.xlu0 1
        %2802 = vperm.xlu0 %2801, %v1689
        %v2803 = vpop.permute.xlu0 %2802
        %2805 = vset.pattern.permute.xlu0 1
        %2806 = vperm.xlu0 %2805, %v1691
        %v2807 = vpop.permute.xlu0 %2806
        %2809 = vset.pattern.permute.xlu0 1
        %2810 = vperm.xlu0 %2809, %v1693
        %v2811 = vpop.permute.xlu0 %2810
        %2813 = vset.pattern.permute.xlu0 1
        %2814 = vperm.xlu0 %2813, %v1695
        %v2815 = vpop.permute.xlu0 %2814
        %2817 = vset.pattern.permute.xlu0 1
        %2818 = vperm.xlu0 %2817, %v1697
        %v2819 = vpop.permute.xlu0 %2818
        %v2821 = vmul.f32 %v2695, %v2685
        %v2822 = vmul.f32 %v2699, %v2686
        %v2823 = vmul.f32 %v2703, %v2687
        %v2824 = vmul.f32 %v2707, %v2688
        %v2825 = vmul.f32 %v2711, %v2689
        %v2826 = vmul.f32 %v2715, %v2690
        %v2827 = vmul.f32 %v2719, %v2691
        %v2828 = vmul.f32 %v2723, %v2692
        %v2829 = vmul.f32 %v2727, %v2685
        %v2830 = vmul.f32 %v2731, %v2686
        %v2831 = vmul.f32 %v2735, %v2687
        %v2832 = vmul.f32 %v2739, %v2688
        %v2833 = vmul.f32 %v2743, %v2689
        %v2834 = vmul.f32 %v2747, %v2690
        %v2835 = vmul.f32 %v2751, %v2691
        %v2836 = vmul.f32 %v2755, %v2692
        %v2837 = vmul.f32 %v2759, %v2685
        %v2838 = vmul.f32 %v2763, %v2686
        %v2839 = vmul.f32 %v2767, %v2687
        %v2840 = vmul.f32 %v2771, %v2688
        %v2841 = vmul.f32 %v2775, %v2689
        %v2842 = vmul.f32 %v2779, %v2690
        %v2843 = vmul.f32 %v2783, %v2691
        %v2844 = vmul.f32 %v2787, %v2692
        %v2845 = vmul.f32 %v2791, %v2685
        %v2846 = vmul.f32 %v2795, %v2686
        %v2847 = vmul.f32 %v2799, %v2687
        %v2848 = vmul.f32 %v2803, %v2688
        %v2849 = vmul.f32 %v2807, %v2689
        %v2850 = vmul.f32 %v2811, %v2690
        %v2851 = vmul.f32 %v2815, %v2691
        %v2852 = vmul.f32 %v2819, %v2692
        %v2853 = vadd.f32 %v2652, %v2821
        %v2854 = vadd.f32 %v2653, %v2822
        %v2855 = vadd.f32 %v2654, %v2823
        %v2856 = vadd.f32 %v2655, %v2824
        %v2857 = vadd.f32 %v2656, %v2825
        %v2858 = vadd.f32 %v2657, %v2826
        %v2859 = vadd.f32 %v2658, %v2827
        %v2860 = vadd.f32 %v2659, %v2828
        %v2861 = vadd.f32 %v2660, %v2829
        %v2862 = vadd.f32 %v2661, %v2830
        %v2863 = vadd.f32 %v2662, %v2831
        %v2864 = vadd.f32 %v2663, %v2832
        %v2865 = vadd.f32 %v2664, %v2833
        %v2866 = vadd.f32 %v2665, %v2834
        %v2867 = vadd.f32 %v2666, %v2835
        %v2868 = vadd.f32 %v2667, %v2836
        %v2869 = vadd.f32 %v2668, %v2837
        %v2870 = vadd.f32 %v2669, %v2838
        %v2871 = vadd.f32 %v2670, %v2839
        %v2872 = vadd.f32 %v2671, %v2840
        %v2873 = vadd.f32 %v2672, %v2841
        %v2874 = vadd.f32 %v2673, %v2842
        %v2875 = vadd.f32 %v2674, %v2843
        %v2876 = vadd.f32 %v2675, %v2844
        %v2877 = vadd.f32 %v2676, %v2845
        %v2878 = vadd.f32 %v2677, %v2846
        %v2879 = vadd.f32 %v2678, %v2847
        %v2880 = vadd.f32 %v2679, %v2848
        %v2881 = vadd.f32 %v2680, %v2849
        %v2882 = vadd.f32 %v2681, %v2850
        %v2883 = vadd.f32 %v2682, %v2851
        %v2884 = vadd.f32 %v2683, %v2852
        %v2885 = vsel %vm1484, %v2853, -inf
        %2886 = vmax.xlane.f32.xlu0 %v2885
        %v2887 = vpop.xlane.xlu0 %2886
        %v2888 = vsel %vm1484, %v2854, -inf
        %2889 = vmax.xlane.f32.xlu0 %v2888
        %v2890 = vpop.xlane.xlu0 %2889
        %v2891 = vsel %vm1484, %v2855, -inf
        %2892 = vmax.xlane.f32.xlu0 %v2891
        %v2893 = vpop.xlane.xlu0 %2892
        %v2894 = vsel %vm1484, %v2856, -inf
        %2895 = vmax.xlane.f32.xlu0 %v2894
        %v2896 = vpop.xlane.xlu0 %2895
        %v2897 = vsel %vm1484, %v2857, -inf
        %2898 = vmax.xlane.f32.xlu0 %v2897
        %v2899 = vpop.xlane.xlu0 %2898
        %v2900 = vsel %vm1484, %v2858, -inf
        %2901 = vmax.xlane.f32.xlu0 %v2900
        %v2902 = vpop.xlane.xlu0 %2901
        %v2903 = vsel %vm1484, %v2859, -inf
        %2904 = vmax.xlane.f32.xlu0 %v2903
        %v2905 = vpop.xlane.xlu0 %2904
        %v2906 = vsel %vm1484, %v2860, -inf
        %2907 = vmax.xlane.f32.xlu0 %v2906
        %v2908 = vpop.xlane.xlu0 %2907
        %v2909 = vsel %vm1484, %v2861, -inf
        %2910 = vmax.xlane.f32.xlu0 %v2909
        %v2911 = vpop.xlane.xlu0 %2910
        %v2912 = vsel %vm1484, %v2862, -inf
        %2913 = vmax.xlane.f32.xlu0 %v2912
        %v2914 = vpop.xlane.xlu0 %2913
        %v2915 = vsel %vm1484, %v2863, -inf
        %2916 = vmax.xlane.f32.xlu0 %v2915
        %v2917 = vpop.xlane.xlu0 %2916
        %v2918 = vsel %vm1484, %v2864, -inf
        %2919 = vmax.xlane.f32.xlu0 %v2918
        %v2920 = vpop.xlane.xlu0 %2919
        %v2921 = vsel %vm1484, %v2865, -inf
        %2922 = vmax.xlane.f32.xlu0 %v2921
        %v2923 = vpop.xlane.xlu0 %2922
        %v2924 = vsel %vm1484, %v2866, -inf
        %2925 = vmax.xlane.f32.xlu0 %v2924
        %v2926 = vpop.xlane.xlu0 %2925
        %v2927 = vsel %vm1484, %v2867, -inf
        %2928 = vmax.xlane.f32.xlu0 %v2927
        %v2929 = vpop.xlane.xlu0 %2928
        %v2930 = vsel %vm1484, %v2868, -inf
        %2931 = vmax.xlane.f32.xlu0 %v2930
        %v2932 = vpop.xlane.xlu0 %2931
        %v2933 = vsel %vm1484, %v2869, -inf
        %2934 = vmax.xlane.f32.xlu0 %v2933
        %v2935 = vpop.xlane.xlu0 %2934
        %v2936 = vsel %vm1484, %v2870, -inf
        %2937 = vmax.xlane.f32.xlu0 %v2936
        %v2938 = vpop.xlane.xlu0 %2937
        %v2939 = vsel %vm1484, %v2871, -inf
        %2940 = vmax.xlane.f32.xlu0 %v2939
        %v2941 = vpop.xlane.xlu0 %2940
        %v2942 = vsel %vm1484, %v2872, -inf
        %2943 = vmax.xlane.f32.xlu0 %v2942
        %v2944 = vpop.xlane.xlu0 %2943
        %v2945 = vsel %vm1484, %v2873, -inf
        %2946 = vmax.xlane.f32.xlu0 %v2945
        %v2947 = vpop.xlane.xlu0 %2946
        %v2948 = vsel %vm1484, %v2874, -inf
        %2949 = vmax.xlane.f32.xlu0 %v2948
        %v2950 = vpop.xlane.xlu0 %2949
        %v2951 = vsel %vm1484, %v2875, -inf
        %2952 = vmax.xlane.f32.xlu0 %v2951
        %v2953 = vpop.xlane.xlu0 %2952
        %v2954 = vsel %vm1484, %v2876, -inf
        %2955 = vmax.xlane.f32.xlu0 %v2954
        %v2956 = vpop.xlane.xlu0 %2955
        %v2957 = vsel %vm1484, %v2877, -inf
        %2958 = vmax.xlane.f32.xlu0 %v2957
        %v2959 = vpop.xlane.xlu0 %2958
        %v2960 = vsel %vm1484, %v2878, -inf
        %2961 = vmax.xlane.f32.xlu0 %v2960
        %v2962 = vpop.xlane.xlu0 %2961
        %v2963 = vsel %vm1484, %v2879, -inf
        %2964 = vmax.xlane.f32.xlu0 %v2963
        %v2965 = vpop.xlane.xlu0 %2964
        %v2966 = vsel %vm1484, %v2880, -inf
        %2967 = vmax.xlane.f32.xlu0 %v2966
        %v2968 = vpop.xlane.xlu0 %2967
        %v2969 = vsel %vm1484, %v2881, -inf
        %2970 = vmax.xlane.f32.xlu0 %v2969
        %v2971 = vpop.xlane.xlu0 %2970
        %v2972 = vsel %vm1484, %v2882, -inf
        %2973 = vmax.xlane.f32.xlu0 %v2972
        %v2974 = vpop.xlane.xlu0 %2973
        %v2975 = vsel %vm1484, %v2883, -inf
        %2976 = vmax.xlane.f32.xlu0 %v2975
        %v2977 = vpop.xlane.xlu0 %2976
        %v2978 = vsel %vm1484, %v2884, -inf
        %2979 = vmax.xlane.f32.xlu0 %v2978
        %v2980 = vpop.xlane.xlu0 %2979
        %v2981 = vsub.f32 %v2853, %v2887
        %v2982 = vsub.f32 %v2854, %v2890
        %v2983 = vsub.f32 %v2855, %v2893
        %v2984 = vsub.f32 %v2856, %v2896
        %v2985 = vsub.f32 %v2857, %v2899
        %v2986 = vsub.f32 %v2858, %v2902
        %v2987 = vsub.f32 %v2859, %v2905
        %v2988 = vsub.f32 %v2860, %v2908
        %v2989 = vsub.f32 %v2861, %v2911
        %v2990 = vsub.f32 %v2862, %v2914
        %v2991 = vsub.f32 %v2863, %v2917
        %v2992 = vsub.f32 %v2864, %v2920
        %v2993 = vsub.f32 %v2865, %v2923
        %v2994 = vsub.f32 %v2866, %v2926
        %v2995 = vsub.f32 %v2867, %v2929
        %v2996 = vsub.f32 %v2868, %v2932
        %v2997 = vsub.f32 %v2869, %v2935
        %v2998 = vsub.f32 %v2870, %v2938
        %v2999 = vsub.f32 %v2871, %v2941
        %v3000 = vsub.f32 %v2872, %v2944
        %v3001 = vsub.f32 %v2873, %v2947
        %v3002 = vsub.f32 %v2874, %v2950
        %v3003 = vsub.f32 %v2875, %v2953
        %v3004 = vsub.f32 %v2876, %v2956
        %v3005 = vsub.f32 %v2877, %v2959
        %v3006 = vsub.f32 %v2878, %v2962
        %v3007 = vsub.f32 %v2879, %v2965
        %v3008 = vsub.f32 %v2880, %v2968
        %v3009 = vsub.f32 %v2881, %v2971
        %v3010 = vsub.f32 %v2882, %v2974
        %v3011 = vsub.f32 %v2883, %v2977
        %v3012 = vsub.f32 %v2884, %v2980
        %v3013 = vmul.f32 %v2981, 1.442695
        %v3014 = vpow.pop %v3013
        %v3015 = vmul.f32 %v2982, 1.442695
        %v3016 = vpow.pop %v3015
        %v3017 = vmul.f32 %v2983, 1.442695
        %v3018 = vpow.pop %v3017
        %v3019 = vmul.f32 %v2984, 1.442695
        %v3020 = vpow.pop %v3019
        %v3021 = vmul.f32 %v2985, 1.442695
        %v3022 = vpow.pop %v3021
        %v3023 = vmul.f32 %v2986, 1.442695
        %v3024 = vpow.pop %v3023
        %v3025 = vmul.f32 %v2987, 1.442695
        %v3026 = vpow.pop %v3025
        %v3027 = vmul.f32 %v2988, 1.442695
        %v3028 = vpow.pop %v3027
        %v3029 = vmul.f32 %v2989, 1.442695
        %v3030 = vpow.pop %v3029
        %v3031 = vmul.f32 %v2990, 1.442695
        %v3032 = vpow.pop %v3031
        %v3033 = vmul.f32 %v2991, 1.442695
        %v3034 = vpow.pop %v3033
        %v3035 = vmul.f32 %v2992, 1.442695
        %v3036 = vpow.pop %v3035
        %v3037 = vmul.f32 %v2993, 1.442695
        %v3038 = vpow.pop %v3037
        %v3039 = vmul.f32 %v2994, 1.442695
        %v3040 = vpow.pop %v3039
        %v3041 = vmul.f32 %v2995, 1.442695
        %v3042 = vpow.pop %v3041
        %v3043 = vmul.f32 %v2996, 1.442695
        %v3044 = vpow.pop %v3043
        %v3045 = vmul.f32 %v2997, 1.442695
        %v3046 = vpow.pop %v3045
        %v3047 = vmul.f32 %v2998, 1.442695
        %v3048 = vpow.pop %v3047
        %v3049 = vmul.f32 %v2999, 1.442695
        %v3050 = vpow.pop %v3049
        %v3051 = vmul.f32 %v3000, 1.442695
        %v3052 = vpow.pop %v3051
        %v3053 = vmul.f32 %v3001, 1.442695
        %v3054 = vpow.pop %v3053
        %v3055 = vmul.f32 %v3002, 1.442695
        %v3056 = vpow.pop %v3055
        %v3057 = vmul.f32 %v3003, 1.442695
        %v3058 = vpow.pop %v3057
        %v3059 = vmul.f32 %v3004, 1.442695
        %v3060 = vpow.pop %v3059
        %v3061 = vmul.f32 %v3005, 1.442695
        %v3062 = vpow.pop %v3061
        %v3063 = vmul.f32 %v3006, 1.442695
        %v3064 = vpow.pop %v3063
        %v3065 = vmul.f32 %v3007, 1.442695
        %v3066 = vpow.pop %v3065
        %v3067 = vmul.f32 %v3008, 1.442695
        %v3068 = vpow.pop %v3067
        %v3069 = vmul.f32 %v3009, 1.442695
        %v3070 = vpow.pop %v3069
        %v3071 = vmul.f32 %v3010, 1.442695
        %v3072 = vpow.pop %v3071
        %v3073 = vmul.f32 %v3011, 1.442695
        %v3074 = vpow.pop %v3073
        %v3075 = vmul.f32 %v3012, 1.442695
        %v3076 = vpow.pop %v3075
        %v3077 = vsel %vm1484, %v3014, 0.0
        %3078 = vadd.xlane.f32.xlu0 %v3077
        %v3079 = vpop.xlane.xlu0 %3078
        %v3080 = vsel %vm1484, %v3016, 0.0
        %3081 = vadd.xlane.f32.xlu0 %v3080
        %v3082 = vpop.xlane.xlu0 %3081
        %v3083 = vsel %vm1484, %v3018, 0.0
        %3084 = vadd.xlane.f32.xlu0 %v3083
        %v3085 = vpop.xlane.xlu0 %3084
        %v3086 = vsel %vm1484, %v3020, 0.0
        %3087 = vadd.xlane.f32.xlu0 %v3086
        %v3088 = vpop.xlane.xlu0 %3087
        %v3089 = vsel %vm1484, %v3022, 0.0
        %3090 = vadd.xlane.f32.xlu0 %v3089
        %v3091 = vpop.xlane.xlu0 %3090
        %v3092 = vsel %vm1484, %v3024, 0.0
        %3093 = vadd.xlane.f32.xlu0 %v3092
        %v3094 = vpop.xlane.xlu0 %3093
        %v3095 = vsel %vm1484, %v3026, 0.0
        %3096 = vadd.xlane.f32.xlu0 %v3095
        %v3097 = vpop.xlane.xlu0 %3096
        %v3098 = vsel %vm1484, %v3028, 0.0
        %3099 = vadd.xlane.f32.xlu0 %v3098
        %v3100 = vpop.xlane.xlu0 %3099
        %v3101 = vsel %vm1484, %v3030, 0.0
        %3102 = vadd.xlane.f32.xlu0 %v3101
        %v3103 = vpop.xlane.xlu0 %3102
        %v3104 = vsel %vm1484, %v3032, 0.0
        %3105 = vadd.xlane.f32.xlu0 %v3104
        %v3106 = vpop.xlane.xlu0 %3105
        %v3107 = vsel %vm1484, %v3034, 0.0
        %3108 = vadd.xlane.f32.xlu0 %v3107
        %v3109 = vpop.xlane.xlu0 %3108
        %v3110 = vsel %vm1484, %v3036, 0.0
        %3111 = vadd.xlane.f32.xlu0 %v3110
        %v3112 = vpop.xlane.xlu0 %3111
        %v3113 = vsel %vm1484, %v3038, 0.0
        %3114 = vadd.xlane.f32.xlu0 %v3113
        %v3115 = vpop.xlane.xlu0 %3114
        %v3116 = vsel %vm1484, %v3040, 0.0
        %3117 = vadd.xlane.f32.xlu0 %v3116
        %v3118 = vpop.xlane.xlu0 %3117
        %v3119 = vsel %vm1484, %v3042, 0.0
        %3120 = vadd.xlane.f32.xlu0 %v3119
        %v3121 = vpop.xlane.xlu0 %3120
        %v3122 = vsel %vm1484, %v3044, 0.0
        %3123 = vadd.xlane.f32.xlu0 %v3122
        %v3124 = vpop.xlane.xlu0 %3123
        %v3125 = vsel %vm1484, %v3046, 0.0
        %3126 = vadd.xlane.f32.xlu0 %v3125
        %v3127 = vpop.xlane.xlu0 %3126
        %v3128 = vsel %vm1484, %v3048, 0.0
        %3129 = vadd.xlane.f32.xlu0 %v3128
        %v3130 = vpop.xlane.xlu0 %3129
        %v3131 = vsel %vm1484, %v3050, 0.0
        %3132 = vadd.xlane.f32.xlu0 %v3131
        %v3133 = vpop.xlane.xlu0 %3132
        %v3134 = vsel %vm1484, %v3052, 0.0
        %3135 = vadd.xlane.f32.xlu0 %v3134
        %v3136 = vpop.xlane.xlu0 %3135
        %v3137 = vsel %vm1484, %v3054, 0.0
        %3138 = vadd.xlane.f32.xlu0 %v3137
        %v3139 = vpop.xlane.xlu0 %3138
        %v3140 = vsel %vm1484, %v3056, 0.0
        %3141 = vadd.xlane.f32.xlu0 %v3140
        %v3142 = vpop.xlane.xlu0 %3141
        %v3143 = vsel %vm1484, %v3058, 0.0
        %3144 = vadd.xlane.f32.xlu0 %v3143
        %v3145 = vpop.xlane.xlu0 %3144
        %v3146 = vsel %vm1484, %v3060, 0.0
        %3147 = vadd.xlane.f32.xlu0 %v3146
        %v3148 = vpop.xlane.xlu0 %3147
        %v3149 = vsel %vm1484, %v3062, 0.0
        %3150 = vadd.xlane.f32.xlu0 %v3149
        %v3151 = vpop.xlane.xlu0 %3150
        %v3152 = vsel %vm1484, %v3064, 0.0
        %3153 = vadd.xlane.f32.xlu0 %v3152
        %v3154 = vpop.xlane.xlu0 %3153
        %v3155 = vsel %vm1484, %v3066, 0.0
        %3156 = vadd.xlane.f32.xlu0 %v3155
        %v3157 = vpop.xlane.xlu0 %3156
        %v3158 = vsel %vm1484, %v3068, 0.0
        %3159 = vadd.xlane.f32.xlu0 %v3158
        %v3160 = vpop.xlane.xlu0 %3159
        %v3161 = vsel %vm1484, %v3070, 0.0
        %3162 = vadd.xlane.f32.xlu0 %v3161
        %v3163 = vpop.xlane.xlu0 %3162
        %v3164 = vsel %vm1484, %v3072, 0.0
        %3165 = vadd.xlane.f32.xlu0 %v3164
        %v3166 = vpop.xlane.xlu0 %3165
        %v3167 = vsel %vm1484, %v3074, 0.0
        %3168 = vadd.xlane.f32.xlu0 %v3167
        %v3169 = vpop.xlane.xlu0 %3168
        %v3170 = vsel %vm1484, %v3076, 0.0
        %3171 = vadd.xlane.f32.xlu0 %v3170
        %v3172 = vpop.xlane.xlu0 %3171
        %v3173 = vrcp.pop %v3079
        %v3174 = vrcp.pop %v3082
        %v3175 = vrcp.pop %v3085
        %v3176 = vrcp.pop %v3088
        %v3177 = vrcp.pop %v3091
        %v3178 = vrcp.pop %v3094
        %v3179 = vrcp.pop %v3097
        %v3180 = vrcp.pop %v3100
        %v3181 = vrcp.pop %v3103
        %v3182 = vrcp.pop %v3106
        %v3183 = vrcp.pop %v3109
        %v3184 = vrcp.pop %v3112
        %v3185 = vrcp.pop %v3115
        %v3186 = vrcp.pop %v3118
        %v3187 = vrcp.pop %v3121
        %v3188 = vrcp.pop %v3124
        %v3189 = vrcp.pop %v3127
        %v3190 = vrcp.pop %v3130
        %v3191 = vrcp.pop %v3133
        %v3192 = vrcp.pop %v3136
        %v3193 = vrcp.pop %v3139
        %v3194 = vrcp.pop %v3142
        %v3195 = vrcp.pop %v3145
        %v3196 = vrcp.pop %v3148
        %v3197 = vrcp.pop %v3151
        %v3198 = vrcp.pop %v3154
        %v3199 = vrcp.pop %v3157
        %v3200 = vrcp.pop %v3160
        %v3201 = vrcp.pop %v3163
        %v3202 = vrcp.pop %v3166
        %v3203 = vrcp.pop %v3169
        %v3204 = vrcp.pop %v3172
        %v3205 = vmul.f32 %v3014, %v3173
        %v3206 = vmul.f32 %v3016, %v3174
        %v3207 = vmul.f32 %v3018, %v3175
        %v3208 = vmul.f32 %v3020, %v3176
        %v3209 = vmul.f32 %v3022, %v3177
        %v3210 = vmul.f32 %v3024, %v3178
        %v3211 = vmul.f32 %v3026, %v3179
        %v3212 = vmul.f32 %v3028, %v3180
        %v3213 = vmul.f32 %v3030, %v3181
        %v3214 = vmul.f32 %v3032, %v3182
        %v3215 = vmul.f32 %v3034, %v3183
        %v3216 = vmul.f32 %v3036, %v3184
        %v3217 = vmul.f32 %v3038, %v3185
        %v3218 = vmul.f32 %v3040, %v3186
        %v3219 = vmul.f32 %v3042, %v3187
        %v3220 = vmul.f32 %v3044, %v3188
        %v3221 = vmul.f32 %v3046, %v3189
        %v3222 = vmul.f32 %v3048, %v3190
        %v3223 = vmul.f32 %v3050, %v3191
        %v3224 = vmul.f32 %v3052, %v3192
        %v3225 = vmul.f32 %v3054, %v3193
        %v3226 = vmul.f32 %v3056, %v3194
        %v3227 = vmul.f32 %v3058, %v3195
        %v3228 = vmul.f32 %v3060, %v3196
        %v3229 = vmul.f32 %v3062, %v3197
        %v3230 = vmul.f32 %v3064, %v3198
        %v3231 = vmul.f32 %v3066, %v3199
        %v3232 = vmul.f32 %v3068, %v3200
        %v3233 = vmul.f32 %v3070, %v3201
        %v3234 = vmul.f32 %v3072, %v3202
        %v3235 = vmul.f32 %v3074, %v3203
        %v3236 = vmul.f32 %v3076, %v3204
        %v3237 = vpack.c.bf16 %v3206, %v3205
        %v3238 = vpack.c.bf16 %v3208, %v3207
        %v3239 = vpack.c.bf16 %v3210, %v3209
        %v3240 = vpack.c.bf16 %v3212, %v3211
        %v3241 = vpack.c.bf16 %v3214, %v3213
        %v3242 = vpack.c.bf16 %v3216, %v3215
        %v3243 = vpack.c.bf16 %v3218, %v3217
        %v3244 = vpack.c.bf16 %v3220, %v3219
        %v3245 = vpack.c.bf16 %v3222, %v3221
        %v3246 = vpack.c.bf16 %v3224, %v3223
        %v3247 = vpack.c.bf16 %v3226, %v3225
        %v3248 = vpack.c.bf16 %v3228, %v3227
        %v3249 = vpack.c.bf16 %v3230, %v3229
        %v3250 = vpack.c.bf16 %v3232, %v3231
        %v3251 = vpack.c.bf16 %v3234, %v3233
        %v3252 = vpack.c.bf16 %v3236, %v3235
        %3253 = vrot.lane.b32.xlu0 %v1460, 112
        %v3254 = vpop.permute.xlu0 %3253
        %3255 = vrot.lane.b32.xlu0 %v1461, 112
        %v3256 = vpop.permute.xlu0 %3255
        %3257 = vrot.lane.b32.xlu0 %v1462, 112
        %v3258 = vpop.permute.xlu0 %3257
        %3259 = vrot.lane.b32.xlu0 %v1463, 112
        %v3260 = vpop.permute.xlu0 %3259
        %v3266 = vsel %vm1484, %v3237, 0
        %v3269 = vsel %vm1484, %v3238, 0
        %v3272 = vsel %vm1484, %v3239, 0
        %v3275 = vsel %vm1484, %v3240, 0
        %3277 = vmatprep.subr.bf16.mxu0 0
        %3278 = vmatpush1.bf16.msra.mxu0 %v3254
        %3279 = vmatprep.subr.bf16.mxu0 0
        %3280 = vmatpush1.bf16.msra.mxu0 %v3256
        %3281 = vmatprep.subr.bf16.mxu0 0
        %3282 = vmatpush1.bf16.msra.mxu0 %v3258
        %3283 = vmatprep.subr.bf16.mxu0 0
        %3284 = vmatpush1.bf16.msra.mxu0 %v3260
        %3285 = vmatprep.subr.bf16.mxu0 0
        %3286 = vmatpush1.bf16.msra.mxu0 0
        %3287 = vmatprep.subr.bf16.mxu0 0
        %3288 = vmatpush1.bf16.msra.mxu0 0
        %3289 = vmatprep.subr.bf16.mxu0 0
        %3290 = vmatpush1.bf16.msra.mxu0 0
        %3291 = vmatprep.subr.bf16.mxu0 0
        %3292 = vmatpush1.bf16.msra.mxu0 0
        %3293 = vmatprep.subr.bf16.mxu0 0
        %3294 = vmatpush1.bf16.msra.mxu0 0
        %3295 = vmatprep.subr.bf16.mxu0 0
        %3296 = vmatpush1.bf16.msra.mxu0 0
        %3297 = vmatprep.subr.bf16.mxu0 0
        %3298 = vmatpush1.bf16.msra.mxu0 0
        %3299 = vmatprep.subr.bf16.mxu0 0
        %3300 = vmatpush1.bf16.msra.mxu0 0
        %3301 = vmatprep.subr.bf16.mxu0 0
        %3302 = vmatpush1.bf16.msra.mxu0 0
        %3303 = vmatprep.subr.bf16.mxu0 0
        %3304 = vmatpush1.bf16.msra.mxu0 0
        %3305 = vmatprep.subr.bf16.mxu0 0
        %3306 = vmatpush1.bf16.msra.mxu0 0
        %3307 = vmatprep.subr.bf16.mxu0 0
        %3308 = vmatpush1.bf16.msra.mxu0 0
        %3309 = vmatprep.mubr.bf16.mxu0 0
        %3310 = vmatmul.mubr.bf16.gmra.mrb[0].mxu0 %v3266
        %v3311 = vpop.f32.mrb[0].mxu0
        %v3312 = vadd.f32 0.0, %v3311
        %v3313 = vpop.f32.mrb[0].mxu0
        %v3314 = vpop.f32.mrb[0].mxu0
        %v3315 = vadd.f32 0.0, %v3314
        %v3316 = vpop.f32.mrb[0].mxu0
        %3317 = vmatprep.mubr.bf16.mxu0 0
        %3318 = vmatmul.mubr.bf16.gmra.mrb[0].mxu0 %v3269
        %v3319 = vpop.f32.mrb[0].mxu0
        %v3320 = vadd.f32 0.0, %v3319
        %v3321 = vpop.f32.mrb[0].mxu0
        %v3322 = vpop.f32.mrb[0].mxu0
        %v3323 = vadd.f32 0.0, %v3322
        %v3324 = vpop.f32.mrb[0].mxu0
        %3325 = vmatprep.mubr.bf16.mxu0 0
        %3326 = vmatmul.mubr.bf16.gmra.mrb[0].mxu0 %v3272
        %v3327 = vpop.f32.mrb[0].mxu0
        %v3328 = vadd.f32 0.0, %v3327
        %v3329 = vpop.f32.mrb[0].mxu0
        %v3330 = vpop.f32.mrb[0].mxu0
        %v3331 = vadd.f32 0.0, %v3330
        %v3332 = vpop.f32.mrb[0].mxu0
        %3333 = vmatprep.mubr.bf16.mxu0 0
        %3334 = vmatmul.mubr.bf16.gmra.mrb[0].mxu0 %v3275
        %v3335 = vpop.f32.mrb[0].mxu0
        %v3336 = vadd.f32 0.0, %v3335
        %v3337 = vpop.f32.mrb[0].mxu0
        %v3338 = vpop.f32.mrb[0].mxu0
        %v3339 = vadd.f32 0.0, %v3338
        %v3340 = vpop.f32.mrb[0].mxu0
        %3341 = vdwg.mxu0
        %3342 = vrot.lane.b32.xlu0 %v1698, 112
        %v3343 = vpop.permute.xlu0 %3342
        %3344 = vrot.lane.b32.xlu0 %v1699, 112
        %v3345 = vpop.permute.xlu0 %3344
        %3346 = vrot.lane.b32.xlu0 %v1700, 112
        %v3347 = vpop.permute.xlu0 %3346
        %3348 = vrot.lane.b32.xlu0 %v1701, 112
        %v3349 = vpop.permute.xlu0 %3348
        %v3355 = vsel %vm1484, %v3241, 0
        %v3358 = vsel %vm1484, %v3242, 0
        %v3361 = vsel %vm1484, %v3243, 0
        %v3364 = vsel %vm1484, %v3244, 0
        %3366 = vmatprep.subr.bf16.mxu0 0
        %3367 = vmatpush1.bf16.msra.mxu0 %v3343
        %3368 = vmatprep.subr.bf16.mxu0 0
        %3369 = vmatpush1.bf16.msra.mxu0 %v3345
        %3370 = vmatprep.subr.bf16.mxu0 0
        %3371 = vmatpush1.bf16.msra.mxu0 %v3347
        %3372 = vmatprep.subr.bf16.mxu0 0
        %3373 = vmatpush1.bf16.msra.mxu0 %v3349
        %3374 = vmatprep.subr.bf16.mxu0 0
        %3375 = vmatpush1.bf16.msra.mxu0 0
        %3376 = vmatprep.subr.bf16.mxu0 0
        %3377 = vmatpush1.bf16.msra.mxu0 0
        %3378 = vmatprep.subr.bf16.mxu0 0
        %3379 = vmatpush1.bf16.msra.mxu0 0
        %3380 = vmatprep.subr.bf16.mxu0 0
        %3381 = vmatpush1.bf16.msra.mxu0 0
        %3382 = vmatprep.subr.bf16.mxu0 0
        %3383 = vmatpush1.bf16.msra.mxu0 0
        %3384 = vmatprep.subr.bf16.mxu0 0
        %3385 = vmatpush1.bf16.msra.mxu0 0
        %3386 = vmatprep.subr.bf16.mxu0 0
        %3387 = vmatpush1.bf16.msra.mxu0 0
        %3388 = vmatprep.subr.bf16.mxu0 0
        %3389 = vmatpush1.bf16.msra.mxu0 0
        %3390 = vmatprep.subr.bf16.mxu0 0
        %3391 = vmatpush1.bf16.msra.mxu0 0
        %3392 = vmatprep.subr.bf16.mxu0 0
        %3393 = vmatpush1.bf16.msra.mxu0 0
        %3394 = vmatprep.subr.bf16.mxu0 0
        %3395 = vmatpush1.bf16.msra.mxu0 0
        %3396 = vmatprep.subr.bf16.mxu0 0
        %3397 = vmatpush1.bf16.msra.mxu0 0
        %3398 = vmatprep.mubr.bf16.mxu0 0
        %3399 = vmatmul.mubr.bf16.gmra.mrb[0].mxu0 %v3355
        %v3400 = vpop.f32.mrb[0].mxu0
        %v3401 = vadd.f32 0.0, %v3400
        %v3402 = vpop.f32.mrb[0].mxu0
        %v3403 = vpop.f32.mrb[0].mxu0
        %v3404 = vadd.f32 0.0, %v3403
        %v3405 = vpop.f32.mrb[0].mxu0
        %3406 = vmatprep.mubr.bf16.mxu0 0
        %3407 = vmatmul.mubr.bf16.gmra.mrb[0].mxu0 %v3358
        %v3408 = vpop.f32.mrb[0].mxu0
        %v3409 = vadd.f32 0.0, %v3408
        %v3410 = vpop.f32.mrb[0].mxu0
        %v3411 = vpop.f32.mrb[0].mxu0
        %v3412 = vadd.f32 0.0, %v3411
        %v3413 = vpop.f32.mrb[0].mxu0
        %3414 = vmatprep.mubr.bf16.mxu0 0
        %3415 = vmatmul.mubr.bf16.gmra.mrb[0].mxu0 %v3361
        %v3416 = vpop.f32.mrb[0].mxu0
        %v3417 = vadd.f32 0.0, %v3416
        %v3418 = vpop.f32.mrb[0].mxu0
        %v3419 = vpop.f32.mrb[0].mxu0
        %v3420 = vadd.f32 0.0, %v3419
        %v3421 = vpop.f32.mrb[0].mxu0
        %3422 = vmatprep.mubr.bf16.mxu0 0
        %3423 = vmatmul.mubr.bf16.gmra.mrb[0].mxu0 %v3364
        %v3424 = vpop.f32.mrb[0].mxu0
        %v3425 = vadd.f32 0.0, %v3424
        %v3426 = vpop.f32.mrb[0].mxu0
        %v3427 = vpop.f32.mrb[0].mxu0
        %v3428 = vadd.f32 0.0, %v3427
        %v3429 = vpop.f32.mrb[0].mxu0
        %3430 = vdwg.mxu0
        %3431 = vrot.lane.b32.xlu0 %v1702, 112
        %v3432 = vpop.permute.xlu0 %3431
        %3433 = vrot.lane.b32.xlu0 %v1703, 112
        %v3434 = vpop.permute.xlu0 %3433
        %3435 = vrot.lane.b32.xlu0 %v1704, 112
        %v3436 = vpop.permute.xlu0 %3435
        %3437 = vrot.lane.b32.xlu0 %v1705, 112
        %v3438 = vpop.permute.xlu0 %3437
        %v3444 = vsel %vm1484, %v3245, 0
        %v3447 = vsel %vm1484, %v3246, 0
        %v3450 = vsel %vm1484, %v3247, 0
        %v3453 = vsel %vm1484, %v3248, 0
        %3455 = vmatprep.subr.bf16.mxu0 0
        %3456 = vmatpush1.bf16.msra.mxu0 %v3432
        %3457 = vmatprep.subr.bf16.mxu0 0
        %3458 = vmatpush1.bf16.msra.mxu0 %v3434
        %3459 = vmatprep.subr.bf16.mxu0 0
        %3460 = vmatpush1.bf16.msra.mxu0 %v3436
        %3461 = vmatprep.subr.bf16.mxu0 0
        %3462 = vmatpush1.bf16.msra.mxu0 %v3438
        %3463 = vmatprep.subr.bf16.mxu0 0
        %3464 = vmatpush1.bf16.msra.mxu0 0
        %3465 = vmatprep.subr.bf16.mxu0 0
        %3466 = vmatpush1.bf16.msra.mxu0 0
        %3467 = vmatprep.subr.bf16.mxu0 0
        %3468 = vmatpush1.bf16.msra.mxu0 0
        %3469 = vmatprep.subr.bf16.mxu0 0
        %3470 = vmatpush1.bf16.msra.mxu0 0
        %3471 = vmatprep.subr.bf16.mxu0 0
        %3472 = vmatpush1.bf16.msra.mxu0 0
        %3473 = vmatprep.subr.bf16.mxu0 0
        %3474 = vmatpush1.bf16.msra.mxu0 0
        %3475 = vmatprep.subr.bf16.mxu0 0
        %3476 = vmatpush1.bf16.msra.mxu0 0
        %3477 = vmatprep.subr.bf16.mxu0 0
        %3478 = vmatpush1.bf16.msra.mxu0 0
        %3479 = vmatprep.subr.bf16.mxu0 0
        %3480 = vmatpush1.bf16.msra.mxu0 0
        %3481 = vmatprep.subr.bf16.mxu0 0
        %3482 = vmatpush1.bf16.msra.mxu0 0
        %3483 = vmatprep.subr.bf16.mxu0 0
        %3484 = vmatpush1.bf16.msra.mxu0 0
        %3485 = vmatprep.subr.bf16.mxu0 0
        %3486 = vmatpush1.bf16.msra.mxu0 0
        %3487 = vmatprep.mubr.bf16.mxu0 0
        %3488 = vmatmul.mubr.bf16.gmra.mrb[0].mxu0 %v3444
        %v3489 = vpop.f32.mrb[0].mxu0
        %v3490 = vadd.f32 0.0, %v3489
        %v3491 = vpop.f32.mrb[0].mxu0
        %v3492 = vpop.f32.mrb[0].mxu0
        %v3493 = vadd.f32 0.0, %v3492
        %v3494 = vpop.f32.mrb[0].mxu0
        %3495 = vmatprep.mubr.bf16.mxu0 0
        %3496 = vmatmul.mubr.bf16.gmra.mrb[0].mxu0 %v3447
        %v3497 = vpop.f32.mrb[0].mxu0
        %v3498 = vadd.f32 0.0, %v3497
        %v3499 = vpop.f32.mrb[0].mxu0
        %v3500 = vpop.f32.mrb[0].mxu0
        %v3501 = vadd.f32 0.0, %v3500
        %v3502 = vpop.f32.mrb[0].mxu0
        %3503 = vmatprep.mubr.bf16.mxu0 0
        %3504 = vmatmul.mubr.bf16.gmra.mrb[0].mxu0 %v3450
        %v3505 = vpop.f32.mrb[0].mxu0
        %v3506 = vadd.f32 0.0, %v3505
        %v3507 = vpop.f32.mrb[0].mxu0
        %v3508 = vpop.f32.mrb[0].mxu0
        %v3509 = vadd.f32 0.0, %v3508
        %v3510 = vpop.f32.mrb[0].mxu0
        %3511 = vmatprep.mubr.bf16.mxu0 0
        %3512 = vmatmul.mubr.bf16.gmra.mrb[0].mxu0 %v3453
        %v3513 = vpop.f32.mrb[0].mxu0
        %v3514 = vadd.f32 0.0, %v3513
        %v3515 = vpop.f32.mrb[0].mxu0
        %v3516 = vpop.f32.mrb[0].mxu0
        %v3517 = vadd.f32 0.0, %v3516
        %v3518 = vpop.f32.mrb[0].mxu0
        %3519 = vdwg.mxu0
        %3520 = vrot.lane.b32.xlu0 %v1706, 112
        %v3521 = vpop.permute.xlu0 %3520
        %3522 = vrot.lane.b32.xlu0 %v1707, 112
        %v3523 = vpop.permute.xlu0 %3522
        %3524 = vrot.lane.b32.xlu0 %v1708, 112
        %v3525 = vpop.permute.xlu0 %3524
        %3526 = vrot.lane.b32.xlu0 %v1709, 112
        %v3527 = vpop.permute.xlu0 %3526
        %v3533 = vsel %vm1484, %v3249, 0
        %v3536 = vsel %vm1484, %v3250, 0
        %v3539 = vsel %vm1484, %v3251, 0
        %v3542 = vsel %vm1484, %v3252, 0
        %3544 = vmatprep.subr.bf16.mxu0 0
        %3545 = vmatpush1.bf16.msra.mxu0 %v3521
        %3546 = vmatprep.subr.bf16.mxu0 0
        %3547 = vmatpush1.bf16.msra.mxu0 %v3523
        %3548 = vmatprep.subr.bf16.mxu0 0
        %3549 = vmatpush1.bf16.msra.mxu0 %v3525
        %3550 = vmatprep.subr.bf16.mxu0 0
        %3551 = vmatpush1.bf16.msra.mxu0 %v3527
        %3552 = vmatprep.subr.bf16.mxu0 0
        %3553 = vmatpush1.bf16.msra.mxu0 0
        %3554 = vmatprep.subr.bf16.mxu0 0
        %3555 = vmatpush1.bf16.msra.mxu0 0
        %3556 = vmatprep.subr.bf16.mxu0 0
        %3557 = vmatpush1.bf16.msra.mxu0 0
        %3558 = vmatprep.subr.bf16.mxu0 0
        %3559 = vmatpush1.bf16.msra.mxu0 0
        %3560 = vmatprep.subr.bf16.mxu0 0
        %3561 = vmatpush1.bf16.msra.mxu0 0
        %3562 = vmatprep.subr.bf16.mxu0 0
        %3563 = vmatpush1.bf16.msra.mxu0 0
        %3564 = vmatprep.subr.bf16.mxu0 0
        %3565 = vmatpush1.bf16.msra.mxu0 0
        %3566 = vmatprep.subr.bf16.mxu0 0
        %3567 = vmatpush1.bf16.msra.mxu0 0
        %3568 = vmatprep.subr.bf16.mxu0 0
        %3569 = vmatpush1.bf16.msra.mxu0 0
        %3570 = vmatprep.subr.bf16.mxu0 0
        %3571 = vmatpush1.bf16.msra.mxu0 0
        %3572 = vmatprep.subr.bf16.mxu0 0
        %3573 = vmatpush1.bf16.msra.mxu0 0
        %3574 = vmatprep.subr.bf16.mxu0 0
        %3575 = vmatpush1.bf16.msra.mxu0 0
        %3576 = vmatprep.mubr.bf16.mxu0 0
        %3577 = vmatmul.mubr.bf16.gmra.mrb[0].mxu0 %v3533
        %v3578 = vpop.f32.mrb[0].mxu0
        %v3579 = vadd.f32 0.0, %v3578
        %v3580 = vpop.f32.mrb[0].mxu0
        %v3581 = vpop.f32.mrb[0].mxu0
        %v3582 = vadd.f32 0.0, %v3581
        %v3583 = vpop.f32.mrb[0].mxu0
        %3584 = vmatprep.mubr.bf16.mxu0 0
        %3585 = vmatmul.mubr.bf16.gmra.mrb[0].mxu0 %v3536
        %v3586 = vpop.f32.mrb[0].mxu0
        %v3587 = vadd.f32 0.0, %v3586
        %v3588 = vpop.f32.mrb[0].mxu0
        %v3589 = vpop.f32.mrb[0].mxu0
        %v3590 = vadd.f32 0.0, %v3589
        %v3591 = vpop.f32.mrb[0].mxu0
        %3592 = vmatprep.mubr.bf16.mxu0 0
        %3593 = vmatmul.mubr.bf16.gmra.mrb[0].mxu0 %v3539
        %v3594 = vpop.f32.mrb[0].mxu0
        %v3595 = vadd.f32 0.0, %v3594
        %v3596 = vpop.f32.mrb[0].mxu0
        %v3597 = vpop.f32.mrb[0].mxu0
        %v3598 = vadd.f32 0.0, %v3597
        %v3599 = vpop.f32.mrb[0].mxu0
        %3600 = vmatprep.mubr.bf16.mxu0 0
        %3601 = vmatmul.mubr.bf16.gmra.mrb[0].mxu0 %v3542
        %v3602 = vpop.f32.mrb[0].mxu0
        %v3603 = vadd.f32 0.0, %v3602
        %v3604 = vpop.f32.mrb[0].mxu0
        %v3605 = vpop.f32.mrb[0].mxu0
        %v3606 = vadd.f32 0.0, %v3605
        %v3607 = vpop.f32.mrb[0].mxu0
        %3608 = vdwg.mxu0
        %3617 = vrot.lane.b32.xlu0 %v3401, 2
        %v3618 = vpop.permute.xlu0 %3617
        %3619 = vrot.lane.b32.xlu0 %v3404, 2
        %v3620 = vpop.permute.xlu0 %3619
        %3621 = vrot.lane.b32.xlu0 %v3409, 2
        %v3622 = vpop.permute.xlu0 %3621
        %3623 = vrot.lane.b32.xlu0 %v3412, 2
        %v3624 = vpop.permute.xlu0 %3623
        %3625 = vrot.lane.b32.xlu0 %v3417, 2
        %v3626 = vpop.permute.xlu0 %3625
        %3627 = vrot.lane.b32.xlu0 %v3420, 2
        %v3628 = vpop.permute.xlu0 %3627
        %3629 = vrot.lane.b32.xlu0 %v3425, 2
        %v3630 = vpop.permute.xlu0 %3629
        %3631 = vrot.lane.b32.xlu0 %v3428, 2
        %v3632 = vpop.permute.xlu0 %3631
        %3649 = vrot.lane.b32.xlu0 %v3490, 4
        %v3650 = vpop.permute.xlu0 %3649
        %3651 = vrot.lane.b32.xlu0 %v3493, 4
        %v3652 = vpop.permute.xlu0 %3651
        %3653 = vrot.lane.b32.xlu0 %v3498, 4
        %v3654 = vpop.permute.xlu0 %3653
        %3655 = vrot.lane.b32.xlu0 %v3501, 4
        %v3656 = vpop.permute.xlu0 %3655
        %3657 = vrot.lane.b32.xlu0 %v3506, 4
        %v3658 = vpop.permute.xlu0 %3657
        %3659 = vrot.lane.b32.xlu0 %v3509, 4
        %v3660 = vpop.permute.xlu0 %3659
        %3661 = vrot.lane.b32.xlu0 %v3514, 4
        %v3662 = vpop.permute.xlu0 %3661
        %3663 = vrot.lane.b32.xlu0 %v3517, 4
        %v3664 = vpop.permute.xlu0 %3663
        %3681 = vrot.lane.b32.xlu0 %v3579, 6
        %v3682 = vpop.permute.xlu0 %3681
        %3683 = vrot.lane.b32.xlu0 %v3582, 6
        %v3684 = vpop.permute.xlu0 %3683
        %3685 = vrot.lane.b32.xlu0 %v3587, 6
        %v3686 = vpop.permute.xlu0 %3685
        %3687 = vrot.lane.b32.xlu0 %v3590, 6
        %v3688 = vpop.permute.xlu0 %3687
        %3689 = vrot.lane.b32.xlu0 %v3595, 6
        %v3690 = vpop.permute.xlu0 %3689
        %3691 = vrot.lane.b32.xlu0 %v3598, 6
        %v3692 = vpop.permute.xlu0 %3691
        %3693 = vrot.lane.b32.xlu0 %v3603, 6
        %v3694 = vpop.permute.xlu0 %3693
        %3695 = vrot.lane.b32.xlu0 %v3606, 6
        %v3696 = vpop.permute.xlu0 %3695
        %v3705 = vsel %vm1890, %v3312, %v3618
        %v3706 = vsel %vm1890, %v3315, %v3620
        %v3707 = vsel %vm1890, %v3320, %v3622
        %v3708 = vsel %vm1890, %v3323, %v3624
        %v3709 = vsel %vm1890, %v3328, %v3626
        %v3710 = vsel %vm1890, %v3331, %v3628
        %v3711 = vsel %vm1890, %v3336, %v3630
        %v3712 = vsel %vm1890, %v3339, %v3632
        %vm3713 = vcmask 31744
        %v3714 = vsel %vm3713, %v3705, %v3650
        %v3715 = vsel %vm3713, %v3706, %v3652
        %v3716 = vsel %vm3713, %v3707, %v3654
        %v3717 = vsel %vm3713, %v3708, %v3656
        %v3718 = vsel %vm3713, %v3709, %v3658
        %v3719 = vsel %vm3713, %v3710, %v3660
        %v3720 = vsel %vm3713, %v3711, %v3662
        %v3721 = vsel %vm3713, %v3712, %v3664
        %vm3722 = vcmask 48128
        %v3723 = vsel %vm3722, %v3714, %v3682
        %v3724 = vsel %vm3722, %v3715, %v3684
        %v3725 = vsel %vm3722, %v3716, %v3686
        %v3726 = vsel %vm3722, %v3717, %v3688
        %v3727 = vsel %vm3722, %v3718, %v3690
        %v3728 = vsel %vm3722, %v3719, %v3692
        %v3729 = vsel %vm3722, %v3720, %v3694
        %v3730 = vsel %vm3722, %v3721, %v3696
        %v3731 = vld [vmem:[#allocation13] sm:$0xf]
        %v3732 = vld [vmem:[#allocation13 + $0x4] sm:$0xf]
        %v3733 = vpack.c.bf16 %v3724, %v3723
        %v3734 = vpack.c.bf16 %v3726, %v3725
        %v3735 = vpack.c.bf16 %v3728, %v3727
        %v3736 = vpack.c.bf16 %v3730, %v3729
        %v3737 = vld [vmem:[#allocation8] sm:$0x1]
        %v3739 = vlaneseq
        %v3740 = vshrl.u32 %v3739, 7
        %v3741 = vsub.s32 0, %v3740
        %v3742 = vrot.slane %v3737, %v3741
        %v3746 = vunpack.c.l.b16 %v3731
        %v3747 = vunpack.c.l.b16 %v3732
        %v3748 = vpack.c.b16 %v3747, %v3746
        %v3750 = vsel %vm1484, %v3748, 0
        %3752 = vmatprep.subr.bf16.mxu0 0
        %3753 = vmatpush1.bf16.msra.mxu0 %v3733
        %3754 = vmatprep.subr.bf16.mxu0 0
        %3755 = vmatpush1.bf16.msra.mxu0 %v3734
        %3756 = vmatprep.subr.bf16.mxu0 0
        %3757 = vmatpush1.bf16.msra.mxu0 %v3735
        %3758 = vmatprep.subr.bf16.mxu0 0
        %3759 = vmatpush1.bf16.msra.mxu0 %v3736
        %3760 = vmatprep.subr.bf16.mxu0 0
        %3761 = vmatpush1.bf16.msra.mxu0 0
        %3762 = vmatprep.subr.bf16.mxu0 0
        %3763 = vmatpush1.bf16.msra.mxu0 0
        %3764 = vmatprep.subr.bf16.mxu0 0
        %3765 = vmatpush1.bf16.msra.mxu0 0
        %3766 = vmatprep.subr.bf16.mxu0 0
        %3767 = vmatpush1.bf16.msra.mxu0 0
        %3768 = vmatprep.subr.bf16.mxu0 0
        %3769 = vmatpush1.bf16.msra.mxu0 0
        %3770 = vmatprep.subr.bf16.mxu0 0
        %3771 = vmatpush1.bf16.msra.mxu0 0
        %3772 = vmatprep.subr.bf16.mxu0 0
        %3773 = vmatpush1.bf16.msra.mxu0 0
        %3774 = vmatprep.subr.bf16.mxu0 0
        %3775 = vmatpush1.bf16.msra.mxu0 0
        %3776 = vmatprep.subr.bf16.mxu0 0
        %3777 = vmatpush1.bf16.msra.mxu0 0
        %3778 = vmatprep.subr.bf16.mxu0 0
        %3779 = vmatpush1.bf16.msra.mxu0 0
        %3780 = vmatprep.subr.bf16.mxu0 0
        %3781 = vmatpush1.bf16.msra.mxu0 0
        %3782 = vmatprep.subr.bf16.mxu0 0
        %3783 = vmatpush1.bf16.msra.mxu0 0
        %3784 = vmatprep.mubr.bf16.mxu0 0
        %3785 = vmatmul.mubr.bf16.gmra.mrb[0].mxu0 %v3750
        %v3786 = vpop.f32.mrb[0].mxu0
        %v3787 = vadd.f32 %v3742, %v3786
        %v3788 = vpop.f32.mrb[0].mxu0
        %v3789 = vpop.f32.mrb[0].mxu0
        %v3790 = vadd.f32 %v3742, %v3789
        %v3791 = vpop.f32.mrb[0].mxu0
        %3792 = vdwg.mxu0
        %v3793 = vmax.f32 %v3787, 0.0
        %v3794 = vmax.f32 %v3790, 0.0
        %v3795 = vpack.c.bf16 %v3794, %v3793
        %v3796 = vld [vmem:[#allocation10] sm:$0xf]
        %v3797 = vld [vmem:[#allocation11] sm:$0x1]
        %v3799 = vlaneseq
        %v3800 = vshrl.u32 %v3799, 7
        %v3801 = vsub.s32 0, %v3800
        %v3802 = vrot.slane %v3797, %v3801
        %v3805 = vsel %vm1277, %v3795, 0
        %v3808 = vsel %vm1290, %v3796, 0
        %3810 = vmatprep.subr.bf16.mxu0 0
        %3811 = vmatpush1.bf16.msra.mxu0 %v3808
        %3812 = vmatprep.subr.bf16.mxu0 0
        %3813 = vmatpush1.bf16.msra.mxu0 0
        %3814 = vmatprep.subr.bf16.mxu0 0
        %3815 = vmatpush1.bf16.msra.mxu0 0
        %3816 = vmatprep.subr.bf16.mxu0 0
        %3817 = vmatpush1.bf16.msra.mxu0 0
        %3818 = vmatprep.subr.bf16.mxu0 0
        %3819 = vmatpush1.bf16.msra.mxu0 0
        %3820 = vmatprep.subr.bf16.mxu0 0
        %3821 = vmatpush1.bf16.msra.mxu0 0
        %3822 = vmatprep.subr.bf16.mxu0 0
        %3823 = vmatpush1.bf16.msra.mxu0 0
        %3824 = vmatprep.subr.bf16.mxu0 0
        %3825 = vmatpush1.bf16.msra.mxu0 0
        %3826 = vmatprep.subr.bf16.mxu0 0
        %3827 = vmatpush1.bf16.msra.mxu0 0
        %3828 = vmatprep.subr.bf16.mxu0 0
        %3829 = vmatpush1.bf16.msra.mxu0 0
        %3830 = vmatprep.subr.bf16.mxu0 0
        %3831 = vmatpush1.bf16.msra.mxu0 0
        %3832 = vmatprep.subr.bf16.mxu0 0
        %3833 = vmatpush1.bf16.msra.mxu0 0
        %3834 = vmatprep.subr.bf16.mxu0 0
        %3835 = vmatpush1.bf16.msra.mxu0 0
        %3836 = vmatprep.subr.bf16.mxu0 0
        %3837 = vmatpush1.bf16.msra.mxu0 0
        %3838 = vmatprep.subr.bf16.mxu0 0
        %3839 = vmatpush1.bf16.msra.mxu0 0
        %3840 = vmatprep.subr.bf16.mxu0 0
        %3841 = vmatpush1.bf16.msra.mxu0 0
        %3842 = vmatprep.mubr.bf16.mxu0 0
        %3843 = vmatmul.mubr.bf16.gmra.mrb[0].mxu0 %v3805
        %v3844 = vpop.f32.mrb[0].mxu0
        %v3845 = vadd.f32 %v3802, %v3844
        %v3846 = vpop.f32.mrb[0].mxu0
        %v3847 = vpop.f32.mrb[0].mxu0
        %v3848 = vadd.f32 %v3802, %v3847
        %v3849 = vpop.f32.mrb[0].mxu0
        %3850 = vdwg.mxu0
        %v3851 = vld [vmem:[#allocation14] sm:$0xf]
        %v3852 = vld [vmem:[#allocation14 + $0x4] sm:$0xf]
        %v3855 = vunpack.c.l.b16 %v3851
        %v3856 = vunpack.c.l.b16 %v3852
        %v3857 = vpack.c.b16 %v3856, %v3855
        %v3859 = vsel %vm1484, %v3857, 0
        %3861 = vmatprep.subr.bf16.mxu0 0
        %3862 = vmatpush1.bf16.msra.mxu0 %v1265
        %3863 = vmatprep.subr.bf16.mxu0 0
        %3864 = vmatpush1.bf16.msra.mxu0 %v1266
        %3865 = vmatprep.subr.bf16.mxu0 0
        %3866 = vmatpush1.bf16.msra.mxu0 %v1267
        %3867 = vmatprep.subr.bf16.mxu0 0
        %3868 = vmatpush1.bf16.msra.mxu0 %v1268
        %3869 = vmatprep.subr.bf16.mxu0 0
        %3870 = vmatpush1.bf16.msra.mxu0 0
        %3871 = vmatprep.subr.bf16.mxu0 0
        %3872 = vmatpush1.bf16.msra.mxu0 0
        %3873 = vmatprep.subr.bf16.mxu0 0
        %3874 = vmatpush1.bf16.msra.mxu0 0
        %3875 = vmatprep.subr.bf16.mxu0 0
        %3876 = vmatpush1.bf16.msra.mxu0 0
        %3877 = vmatprep.subr.bf16.mxu0 0
        %3878 = vmatpush1.bf16.msra.mxu0 0
        %3879 = vmatprep.subr.bf16.mxu0 0
        %3880 = vmatpush1.bf16.msra.mxu0 0
        %3881 = vmatprep.subr.bf16.mxu0 0
        %3882 = vmatpush1.bf16.msra.mxu0 0
        %3883 = vmatprep.subr.bf16.mxu0 0
        %3884 = vmatpush1.bf16.msra.mxu0 0
        %3885 = vmatprep.subr.bf16.mxu0 0
        %3886 = vmatpush1.bf16.msra.mxu0 0
        %3887 = vmatprep.subr.bf16.mxu0 0
        %3888 = vmatpush1.bf16.msra.mxu0 0
        %3889 = vmatprep.subr.bf16.mxu0 0
        %3890 = vmatpush1.bf16.msra.mxu0 0
        %3891 = vmatprep.subr.bf16.mxu0 0
        %3892 = vmatpush1.bf16.msra.mxu0 0
        %3893 = vmatprep.mubr.bf16.mxu0 0
        %3894 = vmatmul.mubr.bf16.gmra.mrb[0].mxu0 %v3859
        %v3895 = vpop.f32.mrb[0].mxu0
        %v3896 = vadd.f32 0.0, %v3895
        %v3897 = vpop.f32.mrb[0].mxu0
        %v3898 = vpop.f32.mrb[0].mxu0
        %v3899 = vadd.f32 0.0, %v3898
        %v3900 = vpop.f32.mrb[0].mxu0
        %3901 = vdwg.mxu0
        %v3902 = vpack.c.bf16 %v3899, %v3896
        %v3903 = vld [vmem:[#allocation16] sm:$0xf]
        %v3904 = vld [vmem:[#allocation17] sm:$0x1]
        %v3906 = vlaneseq
        %v3907 = vshrl.u32 %v3906, 7
        %v3908 = vsub.s32 0, %v3907
        %v3909 = vrot.slane %v3904, %v3908
        %v3912 = vsel %vm1277, %v3902, 0
        %v3915 = vsel %vm1290, %v3903, 0
        %3917 = vmatprep.subr.bf16.mxu0 0
        %3918 = vmatpush1.bf16.msra.mxu0 %v3915
        %3919 = vmatprep.subr.bf16.mxu0 0
        %3920 = vmatpush1.bf16.msra.mxu0 0
        %3921 = vmatprep.subr.bf16.mxu0 0
        %3922 = vmatpush1.bf16.msra.mxu0 0
        %3923 = vmatprep.subr.bf16.mxu0 0
        %3924 = vmatpush1.bf16.msra.mxu0 0
        %3925 = vmatprep.subr.bf16.mxu0 0
        %3926 = vmatpush1.bf16.msra.mxu0 0
        %3927 = vmatprep.subr.bf16.mxu0 0
        %3928 = vmatpush1.bf16.msra.mxu0 0
        %3929 = vmatprep.subr.bf16.mxu0 0
        %3930 = vmatpush1.bf16.msra.mxu0 0
        %3931 = vmatprep.subr.bf16.mxu0 0
        %3932 = vmatpush1.bf16.msra.mxu0 0
        %3933 = vmatprep.subr.bf16.mxu0 0
        %3934 = vmatpush1.bf16.msra.mxu0 0
        %3935 = vmatprep.subr.bf16.mxu0 0
        %3936 = vmatpush1.bf16.msra.mxu0 0
        %3937 = vmatprep.subr.bf16.mxu0 0
        %3938 = vmatpush1.bf16.msra.mxu0 0
        %3939 = vmatprep.subr.bf16.mxu0 0
        %3940 = vmatpush1.bf16.msra.mxu0 0
        %3941 = vmatprep.subr.bf16.mxu0 0
        %3942 = vmatpush1.bf16.msra.mxu0 0
        %3943 = vmatprep.subr.bf16.mxu0 0
        %3944 = vmatpush1.bf16.msra.mxu0 0
        %3945 = vmatprep.subr.bf16.mxu0 0
        %3946 = vmatpush1.bf16.msra.mxu0 0
        %3947 = vmatprep.subr.bf16.mxu0 0
        %3948 = vmatpush1.bf16.msra.mxu0 0
        %3949 = vmatprep.mubr.bf16.mxu0 0
        %3950 = vmatmul.mubr.bf16.gmra.mrb[0].mxu0 %v3912
        %v3951 = vpop.f32.mrb[0].mxu0
        %v3952 = vadd.f32 %v3909, %v3951
        %v3953 = vpop.f32.mrb[0].mxu0
        %v3954 = vpop.f32.mrb[0].mxu0
        %v3955 = vadd.f32 %v3909, %v3954
        %v3956 = vpop.f32.mrb[0].mxu0
        %3957 = vdwg.mxu0
        %v3958 = vmax.f32 %v3952, 0.0
        %v3959 = vmax.f32 %v3955, 0.0
        %v3960 = vadd.f32 %v3845, %v3958
        %v3961 = vadd.f32 %v3848, %v3959
        %v3962 = vpack.c.bf16 %v3961, %v3960
        %v3963 = vld [vmem:[%s29] sm:$0xf]
        %v3964 = vld [vmem:[%s29 + $0x4] sm:$0xf]
        %v3965 = vld [vmem:[%s29 + $0x8] sm:$0xf]
        %v3966 = vld [vmem:[%s29 + $0xc] sm:$0xf]
        %v3967 = vld [vmem:[#allocation19] sm:$0x1]
        %v3969 = vlaneseq
        %v3970 = vshrl.u32 %v3969, 7
        %v3971 = vsub.s32 0, %v3970
        %v3972 = vrot.slane %v3967, %v3971
        %v3978 = vunpack.c.l.b16 %v3963
        %v3979 = vunpack.c.l.b16 %v3964
        %v3980 = vunpack.c.l.b16 %v3965
        %v3981 = vunpack.c.l.b16 %v3966
        %v3982 = vpack.c.b16 %v3979, %v3978
        %v3983 = vpack.c.b16 %v3981, %v3980
        %vm3986 = vcmask 261120
        %v3988 = vsel %vm3986, %v3962, 0
        %3990 = vmatprep.subr.bf16.mxu0 0
        %3991 = vmatpush1.bf16.msra.mxu0 %v3982
        %3992 = vmatprep.subr.bf16.mxu0 0
        %3993 = vmatpush1.bf16.msra.mxu0 %v3983
        %3994 = vmatprep.subr.bf16.mxu0 0
        %3995 = vmatpush1.bf16.msra.mxu0 0
        %3996 = vmatprep.subr.bf16.mxu0 0
        %3997 = vmatpush1.bf16.msra.mxu0 0
        %3998 = vmatprep.subr.bf16.mxu0 0
        %3999 = vmatpush1.bf16.msra.mxu0 0
        %4000 = vmatprep.subr.bf16.mxu0 0
        %4001 = vmatpush1.bf16.msra.mxu0 0
        %4002 = vmatprep.subr.bf16.mxu0 0
        %4003 = vmatpush1.bf16.msra.mxu0 0
        %4004 = vmatprep.subr.bf16.mxu0 0
        %4005 = vmatpush1.bf16.msra.mxu0 0
        %4006 = vmatprep.subr.bf16.mxu0 0
        %4007 = vmatpush1.bf16.msra.mxu0 0
        %4008 = vmatprep.subr.bf16.mxu0 0
        %4009 = vmatpush1.bf16.msra.mxu0 0
        %4010 = vmatprep.subr.bf16.mxu0 0
        %4011 = vmatpush1.bf16.msra.mxu0 0
        %4012 = vmatprep.subr.bf16.mxu0 0
        %4013 = vmatpush1.bf16.msra.mxu0 0
        %4014 = vmatprep.subr.bf16.mxu0 0
        %4015 = vmatpush1.bf16.msra.mxu0 0
        %4016 = vmatprep.subr.bf16.mxu0 0
        %4017 = vmatpush1.bf16.msra.mxu0 0
        %4018 = vmatprep.subr.bf16.mxu0 0
        %4019 = vmatpush1.bf16.msra.mxu0 0
        %4020 = vmatprep.subr.bf16.mxu0 0
        %4021 = vmatpush1.bf16.msra.mxu0 0
        %4022 = vmatprep.mubr.bf16.mxu0 0
        %4023 = vmatmul.mubr.bf16.gmra.mrb[0].mxu0 %v3988
        %v4024 = vpop.f32.mrb[0].mxu0
        %v4025 = vadd.f32 %v3972, %v4024
        %v4026 = vpop.f32.mrb[0].mxu0
        %v4027 = vpop.f32.mrb[0].mxu0
        %v4028 = vadd.f32 %v3972, %v4027
        %v4029 = vpop.f32.mrb[0].mxu0
        %4030 = vdwg.mxu0
        %v4031 = vmax.f32 %v4025, 0.0
        %v4032 = vmax.f32 %v4028, 0.0
        %v4033 = vpack.c.bf16 %v4032, %v4031
        %v4034 = vld [vmem:[#allocation20] sm:$0xf]
        %v4036 = vsel %vm1277, %v4033, 0
        %v4039 = vsel %vm1290, %v4034, 0
        %4041 = vmatprep.subr.bf16.mxu0 0
        %4042 = vmatpush1.bf16.msra.mxu0 %v4039
        %4043 = vmatprep.subr.bf16.mxu0 0
        %4044 = vmatpush1.bf16.msra.mxu0 0
        %4045 = vmatprep.subr.bf16.mxu0 0
        %4046 = vmatpush1.bf16.msra.mxu0 0
        %4047 = vmatprep.subr.bf16.mxu0 0
        %4048 = vmatpush1.bf16.msra.mxu0 0
        %4049 = vmatprep.subr.bf16.mxu0 0
        %4050 = vmatpush1.bf16.msra.mxu0 0
        %4051 = vmatprep.subr.bf16.mxu0 0
        %4052 = vmatpush1.bf16.msra.mxu0 0
        %4053 = vmatprep.subr.bf16.mxu0 0
        %4054 = vmatpush1.bf16.msra.mxu0 0
        %4055 = vmatprep.subr.bf16.mxu0 0
        %4056 = vmatpush1.bf16.msra.mxu0 0
        %4057 = vmatprep.subr.bf16.mxu0 0
        %4058 = vmatpush1.bf16.msra.mxu0 0
        %4059 = vmatprep.subr.bf16.mxu0 0
        %4060 = vmatpush1.bf16.msra.mxu0 0
        %4061 = vmatprep.subr.bf16.mxu0 0
        %4062 = vmatpush1.bf16.msra.mxu0 0
        %4063 = vmatprep.subr.bf16.mxu0 0
        %4064 = vmatpush1.bf16.msra.mxu0 0
        %4065 = vmatprep.subr.bf16.mxu0 0
        %4066 = vmatpush1.bf16.msra.mxu0 0
        %4067 = vmatprep.subr.bf16.mxu0 0
        %4068 = vmatpush1.bf16.msra.mxu0 0
        %4069 = vmatprep.subr.bf16.mxu0 0
        %4070 = vmatpush1.bf16.msra.mxu0 0
        %4071 = vmatprep.subr.bf16.mxu0 0
        %4072 = vmatpush1.bf16.msra.mxu0 0
        %4073 = vmatprep.mubr.bf16.mxu0 0
        %4074 = vmatmul.mubr.bf16.gmra.mrb[0].mxu0 %v4036
        %v4075 = vpop.f32.mrb[0].mxu0
        %v4076 = vadd.f32 0.0, %v4075
        %v4077 = vpop.f32.mrb[0].mxu0
        %v4078 = vpop.f32.mrb[0].mxu0
        %v4079 = vadd.f32 0.0, %v4078
        %v4080 = vpop.f32.mrb[0].mxu0
        %4081 = vdwg.mxu0
        %v4082 = vld [vmem:[%s39] sm:$0xf]
        %v4083 = vld [vmem:[%s39 + $0x4] sm:$0xf]
        %v4084 = vpack.c.bf16 %v4079, %v4076
        %v4087 = vunpack.c.l.b16 %v4082
        %v4088 = vunpack.c.l.b16 %v4083
        %v4089 = vpack.c.b16 %v4088, %v4087
        %vm4090 = vcmask 130048
        %v4092 = vsel %vm4090, %v4089, 0
        %4094 = vmatprep.subr.bf16.mxu0 0
        %4095 = vmatpush1.bf16.msra.mxu0 %v4084
        %4096 = vmatprep.subr.bf16.mxu0 0
        %4097 = vmatpush1.bf16.msra.mxu0 0
        %4098 = vmatprep.subr.bf16.mxu0 0
        %4099 = vmatpush1.bf16.msra.mxu0 0
        %4100 = vmatprep.subr.bf16.mxu0 0
        %4101 = vmatpush1.bf16.msra.mxu0 0
        %4102 = vmatprep.subr.bf16.mxu0 0
        %4103 = vmatpush1.bf16.msra.mxu0 0
        %4104 = vmatprep.subr.bf16.mxu0 0
        %4105 = vmatpush1.bf16.msra.mxu0 0
        %4106 = vmatprep.subr.bf16.mxu0 0
        %4107 = vmatpush1.bf16.msra.mxu0 0
        %4108 = vmatprep.subr.bf16.mxu0 0
        %4109 = vmatpush1.bf16.msra.mxu0 0
        %4110 = vmatprep.subr.bf16.mxu0 0
        %4111 = vmatpush1.bf16.msra.mxu0 0
        %4112 = vmatprep.subr.bf16.mxu0 0
        %4113 = vmatpush1.bf16.msra.mxu0 0
        %4114 = vmatprep.subr.bf16.mxu0 0
        %4115 = vmatpush1.bf16.msra.mxu0 0
        %4116 = vmatprep.subr.bf16.mxu0 0
        %4117 = vmatpush1.bf16.msra.mxu0 0
        %4118 = vmatprep.subr.bf16.mxu0 0
        %4119 = vmatpush1.bf16.msra.mxu0 0
        %4120 = vmatprep.subr.bf16.mxu0 0
        %4121 = vmatpush1.bf16.msra.mxu0 0
        %4122 = vmatprep.subr.bf16.mxu0 0
        %4123 = vmatpush1.bf16.msra.mxu0 0
        %4124 = vmatprep.subr.bf16.mxu0 0
        %4125 = vmatpush1.bf16.msra.mxu0 0
        %4126 = vmatprep.mubr.bf16.mxu0 0
        %4127 = vmatmul.mubr.bf16.gmra.mrb[0].mxu0 %v4092
        %v4128 = vpop.f32.mrb[0].mxu0
        %v4129 = vadd.f32 0.0, %v4128
        %v4130 = vpop.f32.mrb[0].mxu0
        %v4131 = vpop.f32.mrb[0].mxu0
        %v4132 = vadd.f32 0.0, %v4131
        %v4133 = vpop.f32.mrb[0].mxu0
        %4134 = vdwg.mxu0
        %4137 = vrot.lane.b32.xlu0 %v4076, 126
        %v4138 = vpop.permute.xlu0 %4137
        %4139 = vrot.lane.b32.xlu0 %v4079, 126
        %v4140 = vpop.permute.xlu0 %4139
        %4143 = vrot.lane.b32.xlu0 %v4076, 124
        %v4144 = vpop.permute.xlu0 %4143
        %4145 = vrot.lane.b32.xlu0 %v4079, 124
        %v4146 = vpop.permute.xlu0 %4145
        %4149 = vrot.lane.b32.xlu0 %v4076, 122
        %v4150 = vpop.permute.xlu0 %4149
        %4151 = vrot.lane.b32.xlu0 %v4079, 122
        %v4152 = vpop.permute.xlu0 %4151
        %4157 = vrot.lane.b32.xlu0 %v4129, 126
        %v4158 = vpop.permute.xlu0 %4157
        %4159 = vrot.lane.b32.xlu0 %v4132, 126
        %v4160 = vpop.permute.xlu0 %4159
        %4161 = vrot.lane.b32.xlu0 %v4129, 124
        %v4162 = vpop.permute.xlu0 %4161
        %4163 = vrot.lane.b32.xlu0 %v4132, 124
        %v4164 = vpop.permute.xlu0 %4163
        %4165 = vrot.lane.b32.xlu0 %v4129, 122
        %v4166 = vpop.permute.xlu0 %4165
        %4167 = vrot.lane.b32.xlu0 %v4132, 122
        %v4168 = vpop.permute.xlu0 %4167
        %v4169 = vpack.c.bf16 %v4140, %v4138
        %v4170 = vpack.c.bf16 %v4146, %v4144
        %v4171 = vpack.c.bf16 %v4152, %v4150
        %v4172 = vld [vmem:[#allocation22] sm:$0xff]
        %v4173 = vld [vmem:[#allocation22 + $0x8] sm:$0xff]
        %4174 = vset.pattern.permute.xlu0 0
        %4175 = vperm.xlu0 %4174, %v4076
        %v4176 = vpop.permute.xlu0 %4175
        %4178 = vset.pattern.permute.xlu0 0
        %4179 = vperm.xlu0 %4178, %v4079
        %v4180 = vpop.permute.xlu0 %4179
        %4182 = vset.pattern.permute.xlu0 0
        %4183 = vperm.xlu0 %4182, %v4138
        %v4184 = vpop.permute.xlu0 %4183
        %4186 = vset.pattern.permute.xlu0 0
        %4187 = vperm.xlu0 %4186, %v4140
        %v4188 = vpop.permute.xlu0 %4187
        %4190 = vset.pattern.permute.xlu0 0
        %4191 = vperm.xlu0 %4190, %v4144
        %v4192 = vpop.permute.xlu0 %4191
        %4194 = vset.pattern.permute.xlu0 0
        %4195 = vperm.xlu0 %4194, %v4146
        %v4196 = vpop.permute.xlu0 %4195
        %4198 = vset.pattern.permute.xlu0 0
        %4199 = vperm.xlu0 %4198, %v4150
        %v4200 = vpop.permute.xlu0 %4199
        %4202 = vset.pattern.permute.xlu0 0
        %4203 = vperm.xlu0 %4202, %v4152
        %v4204 = vpop.permute.xlu0 %4203
        %v4206 = vmul.f32 %v4176, %v4172
        %v4207 = vmul.f32 %v4180, %v4173
        %v4208 = vmul.f32 %v4184, %v4172
        %v4209 = vmul.f32 %v4188, %v4173
        %v4210 = vmul.f32 %v4192, %v4172
        %v4211 = vmul.f32 %v4196, %v4173
        %v4212 = vmul.f32 %v4200, %v4172
        %v4213 = vmul.f32 %v4204, %v4173
        %4215 = vrot.lane.b32.xlu0 %v4084, 120
        %v4216 = vpop.permute.xlu0 %4215
        %v4218 = vsel %vm1890, %v4084, 0
        %v4221 = vsel %vm1890, %v4216, 0
        %4223 = vmatprep.subr.bf16.mxu0 0
        %4224 = vmatpush1.bf16.xpose.msra.mxu0 %v4221
        %4225 = vmatprep.subr.bf16.mxu0 0
        %4226 = vmatpush1.bf16.xpose.msra.mxu0 0
        %4227 = vmatprep.subr.bf16.mxu0 0
        %4228 = vmatpush1.bf16.xpose.msra.mxu0 0
        %4229 = vmatprep.subr.bf16.mxu0 0
        %4230 = vmatpush1.bf16.xpose.msra.mxu0 0
        %4231 = vmatprep.subr.bf16.mxu0 0
        %4232 = vmatpush1.bf16.xpose.msra.mxu0 0
        %4233 = vmatprep.subr.bf16.mxu0 0
        %4234 = vmatpush1.bf16.xpose.msra.mxu0 0
        %4235 = vmatprep.subr.bf16.mxu0 0
        %4236 = vmatpush1.bf16.xpose.msra.mxu0 0
        %4237 = vmatprep.subr.bf16.mxu0 0
        %4238 = vmatpush1.bf16.xpose.msra.mxu0 0
        %4239 = vmatprep.subr.bf16.mxu0 0
        %4240 = vmatpush1.bf16.xpose.msra.mxu0 0
        %4241 = vmatprep.subr.bf16.mxu0 0
        %4242 = vmatpush1.bf16.xpose.msra.mxu0 0
        %4243 = vmatprep.subr.bf16.mxu0 0
        %4244 = vmatpush1.bf16.xpose.msra.mxu0 0
        %4245 = vmatprep.subr.bf16.mxu0 0
        %4246 = vmatpush1.bf16.xpose.msra.mxu0 0
        %4247 = vmatprep.subr.bf16.mxu0 0
        %4248 = vmatpush1.bf16.xpose.msra.mxu0 0
        %4249 = vmatprep.subr.bf16.mxu0 0
        %4250 = vmatpush1.bf16.xpose.msra.mxu0 0
        %4251 = vmatprep.subr.bf16.mxu0 0
        %4252 = vmatpush1.bf16.xpose.msra.mxu0 0
        %4253 = vmatprep.subr.bf16.mxu0 0
        %4254 = vmatpush1.bf16.xpose.msra.mxu0 0
        %4255 = vmatprep.mubr.bf16.mxu0 0
        %4256 = vmatmul.mubr.bf16.gmra.mrb[0].mxu0 %v4218
        %v4257 = vpop.f32.mrb[0].mxu0
        %v4258 = vadd.f32 %v4206, %v4257
        %v4259 = vpop.f32.mrb[0].mxu0
        %v4260 = vpop.f32.mrb[0].mxu0
        %v4261 = vadd.f32 %v4207, %v4260
        %v4262 = vpop.f32.mrb[0].mxu0
        %4263 = vdwg.mxu0
        %4265 = vrot.lane.b32.xlu0 %v4169, 120
        %v4266 = vpop.permute.xlu0 %4265
        %v4268 = vsel %vm1890, %v4169, 0
        %v4271 = vsel %vm1890, %v4266, 0
        %4273 = vmatprep.subr.bf16.mxu0 0
        %4274 = vmatpush1.bf16.xpose.msra.mxu0 %v4271
        %4275 = vmatprep.subr.bf16.mxu0 0
        %4276 = vmatpush1.bf16.xpose.msra.mxu0 0
        %4277 = vmatprep.subr.bf16.mxu0 0
        %4278 = vmatpush1.bf16.xpose.msra.mxu0 0
        %4279 = vmatprep.subr.bf16.mxu0 0
        %4280 = vmatpush1.bf16.xpose.msra.mxu0 0
        %4281 = vmatprep.subr.bf16.mxu0 0
        %4282 = vmatpush1.bf16.xpose.msra.mxu0 0
        %4283 = vmatprep.subr.bf16.mxu0 0
        %4284 = vmatpush1.bf16.xpose.msra.mxu0 0
        %4285 = vmatprep.subr.bf16.mxu0 0
        %4286 = vmatpush1.bf16.xpose.msra.mxu0 0
        %4287 = vmatprep.subr.bf16.mxu0 0
        %4288 = vmatpush1.bf16.xpose.msra.mxu0 0
        %4289 = vmatprep.subr.bf16.mxu0 0
        %4290 = vmatpush1.bf16.xpose.msra.mxu0 0
        %4291 = vmatprep.subr.bf16.mxu0 0
        %4292 = vmatpush1.bf16.xpose.msra.mxu0 0
        %4293 = vmatprep.subr.bf16.mxu0 0
        %4294 = vmatpush1.bf16.xpose.msra.mxu0 0
        %4295 = vmatprep.subr.bf16.mxu0 0
        %4296 = vmatpush1.bf16.xpose.msra.mxu0 0
        %4297 = vmatprep.subr.bf16.mxu0 0
        %4298 = vmatpush1.bf16.xpose.msra.mxu0 0
        %4299 = vmatprep.subr.bf16.mxu0 0
        %4300 = vmatpush1.bf16.xpose.msra.mxu0 0
        %4301 = vmatprep.subr.bf16.mxu0 0
        %4302 = vmatpush1.bf16.xpose.msra.mxu0 0
        %4303 = vmatprep.subr.bf16.mxu0 0
        %4304 = vmatpush1.bf16.xpose.msra.mxu0 0
        %4305 = vmatprep.mubr.bf16.mxu0 0
        %4306 = vmatmul.mubr.bf16.gmra.mrb[0].mxu0 %v4268
        %v4307 = vpop.f32.mrb[0].mxu0
        %v4308 = vadd.f32 %v4208, %v4307
        %v4309 = vpop.f32.mrb[0].mxu0
        %v4310 = vpop.f32.mrb[0].mxu0
        %v4311 = vadd.f32 %v4209, %v4310
        %v4312 = vpop.f32.mrb[0].mxu0
        %4313 = vdwg.mxu0
        %4315 = vrot.lane.b32.xlu0 %v4170, 120
        %v4316 = vpop.permute.xlu0 %4315
        %v4318 = vsel %vm1890, %v4170, 0
        %v4321 = vsel %vm1890, %v4316, 0
        %4323 = vmatprep.subr.bf16.mxu0 0
        %4324 = vmatpush1.bf16.xpose.msra.mxu0 %v4321
        %4325 = vmatprep.subr.bf16.mxu0 0
        %4326 = vmatpush1.bf16.xpose.msra.mxu0 0
        %4327 = vmatprep.subr.bf16.mxu0 0
        %4328 = vmatpush1.bf16.xpose.msra.mxu0 0
        %4329 = vmatprep.subr.bf16.mxu0 0
        %4330 = vmatpush1.bf16.xpose.msra.mxu0 0
        %4331 = vmatprep.subr.bf16.mxu0 0
        %4332 = vmatpush1.bf16.xpose.msra.mxu0 0
        %4333 = vmatprep.subr.bf16.mxu0 0
        %4334 = vmatpush1.bf16.xpose.msra.mxu0 0
        %4335 = vmatprep.subr.bf16.mxu0 0
        %4336 = vmatpush1.bf16.xpose.msra.mxu0 0
        %4337 = vmatprep.subr.bf16.mxu0 0
        %4338 = vmatpush1.bf16.xpose.msra.mxu0 0
        %4339 = vmatprep.subr.bf16.mxu0 0
        %4340 = vmatpush1.bf16.xpose.msra.mxu0 0
        %4341 = vmatprep.subr.bf16.mxu0 0
        %4342 = vmatpush1.bf16.xpose.msra.mxu0 0
        %4343 = vmatprep.subr.bf16.mxu0 0
        %4344 = vmatpush1.bf16.xpose.msra.mxu0 0
        %4345 = vmatprep.subr.bf16.mxu0 0
        %4346 = vmatpush1.bf16.xpose.msra.mxu0 0
        %4347 = vmatprep.subr.bf16.mxu0 0
        %4348 = vmatpush1.bf16.xpose.msra.mxu0 0
        %4349 = vmatprep.subr.bf16.mxu0 0
        %4350 = vmatpush1.bf16.xpose.msra.mxu0 0
        %4351 = vmatprep.subr.bf16.mxu0 0
        %4352 = vmatpush1.bf16.xpose.msra.mxu0 0
        %4353 = vmatprep.subr.bf16.mxu0 0
        %4354 = vmatpush1.bf16.xpose.msra.mxu0 0
        %4355 = vmatprep.mubr.bf16.mxu0 0
        %4356 = vmatmul.mubr.bf16.gmra.mrb[0].mxu0 %v4318
        %v4357 = vpop.f32.mrb[0].mxu0
        %v4358 = vadd.f32 %v4210, %v4357
        %v4359 = vpop.f32.mrb[0].mxu0
        %v4360 = vpop.f32.mrb[0].mxu0
        %v4361 = vadd.f32 %v4211, %v4360
        %v4362 = vpop.f32.mrb[0].mxu0
        %4363 = vdwg.mxu0
        %4365 = vrot.lane.b32.xlu0 %v4171, 120
        %v4366 = vpop.permute.xlu0 %4365
        %v4368 = vsel %vm1890, %v4171, 0
        %v4371 = vsel %vm1890, %v4366, 0
        %4373 = vmatprep.subr.bf16.mxu0 0
        %4374 = vmatpush1.bf16.xpose.msra.mxu0 %v4371
        %4375 = vmatprep.subr.bf16.mxu0 0
        %4376 = vmatpush1.bf16.xpose.msra.mxu0 0
        %4377 = vmatprep.subr.bf16.mxu0 0
        %4378 = vmatpush1.bf16.xpose.msra.mxu0 0
        %4379 = vmatprep.subr.bf16.mxu0 0
        %4380 = vmatpush1.bf16.xpose.msra.mxu0 0
        %4381 = vmatprep.subr.bf16.mxu0 0
        %4382 = vmatpush1.bf16.xpose.msra.mxu0 0
        %4383 = vmatprep.subr.bf16.mxu0 0
        %4384 = vmatpush1.bf16.xpose.msra.mxu0 0
        %4385 = vmatprep.subr.bf16.mxu0 0
        %4386 = vmatpush1.bf16.xpose.msra.mxu0 0
        %4387 = vmatprep.subr.bf16.mxu0 0
        %4388 = vmatpush1.bf16.xpose.msra.mxu0 0
        %4389 = vmatprep.subr.bf16.mxu0 0
        %4390 = vmatpush1.bf16.xpose.msra.mxu0 0
        %4391 = vmatprep.subr.bf16.mxu0 0
        %4392 = vmatpush1.bf16.xpose.msra.mxu0 0
        %4393 = vmatprep.subr.bf16.mxu0 0
        %4394 = vmatpush1.bf16.xpose.msra.mxu0 0
        %4395 = vmatprep.subr.bf16.mxu0 0
        %4396 = vmatpush1.bf16.xpose.msra.mxu0 0
        %4397 = vmatprep.subr.bf16.mxu0 0
        %4398 = vmatpush1.bf16.xpose.msra.mxu0 0
        %4399 = vmatprep.subr.bf16.mxu0 0
        %4400 = vmatpush1.bf16.xpose.msra.mxu0 0
        %4401 = vmatprep.subr.bf16.mxu0 0
        %4402 = vmatpush1.bf16.xpose.msra.mxu0 0
        %4403 = vmatprep.subr.bf16.mxu0 0
        %4404 = vmatpush1.bf16.xpose.msra.mxu0 0
        %4405 = vmatprep.mubr.bf16.mxu0 0
        %4406 = vmatmul.mubr.bf16.gmra.mrb[0].mxu0 %v4368
        %v4407 = vpop.f32.mrb[0].mxu0
        %v4408 = vadd.f32 %v4212, %v4407
        %v4409 = vpop.f32.mrb[0].mxu0
        %v4410 = vpop.f32.mrb[0].mxu0
        %v4411 = vadd.f32 %v4213, %v4410
        %v4412 = vpop.f32.mrb[0].mxu0
        %4413 = vdwg.mxu0
        %v4414 = vld [vmem:[#allocation23] sm:$0xff]
        %v4415 = vld [vmem:[#allocation23 + $0x8] sm:$0xff]
        %4416 = vset.pattern.permute.xlu0 0
        %4417 = vperm.xlu0 %4416, %v4129
        %v4418 = vpop.permute.xlu0 %4417
        %4420 = vset.pattern.permute.xlu0 0
        %4421 = vperm.xlu0 %4420, %v4132
        %v4422 = vpop.permute.xlu0 %4421
        %4424 = vset.pattern.permute.xlu0 0
        %4425 = vperm.xlu0 %4424, %v4158
        %v4426 = vpop.permute.xlu0 %4425
        %4428 = vset.pattern.permute.xlu0 0
        %4429 = vperm.xlu0 %4428, %v4160
        %v4430 = vpop.permute.xlu0 %4429
        %4432 = vset.pattern.permute.xlu0 0
        %4433 = vperm.xlu0 %4432, %v4162
        %v4434 = vpop.permute.xlu0 %4433
        %4436 = vset.pattern.permute.xlu0 0
        %4437 = vperm.xlu0 %4436, %v4164
        %v4438 = vpop.permute.xlu0 %4437
        %4440 = vset.pattern.permute.xlu0 0
        %4441 = vperm.xlu0 %4440, %v4166
        %v4442 = vpop.permute.xlu0 %4441
        %4444 = vset.pattern.permute.xlu0 0
        %4445 = vperm.xlu0 %4444, %v4168
        %v4446 = vpop.permute.xlu0 %4445
        %v4448 = vmul.f32 %v4418, %v4414
        %v4449 = vmul.f32 %v4422, %v4415
        %v4450 = vmul.f32 %v4426, %v4414
        %v4451 = vmul.f32 %v4430, %v4415
        %v4452 = vmul.f32 %v4434, %v4414
        %v4453 = vmul.f32 %v4438, %v4415
        %v4454 = vmul.f32 %v4442, %v4414
        %v4455 = vmul.f32 %v4446, %v4415
        %v4456 = vadd.f32 %v4258, %v4448
        %v4457 = vadd.f32 %v4261, %v4449
        %v4458 = vadd.f32 %v4308, %v4450
        %v4459 = vadd.f32 %v4311, %v4451
        %v4460 = vadd.f32 %v4358, %v4452
        %v4461 = vadd.f32 %v4361, %v4453
        %v4462 = vadd.f32 %v4408, %v4454
        %v4463 = vadd.f32 %v4411, %v4455
        %s4464 = scalar_lea.vmem [#allocation22], 16
        %v4465 = vld [vmem:[%s4464] sm:$0xff]
        %v4466 = vld [vmem:[%s4464 + $0x8] sm:$0xff]
        %4467 = vset.pattern.permute.xlu0 1
        %4468 = vperm.xlu0 %4467, %v4076
        %v4469 = vpop.permute.xlu0 %4468
        %4471 = vset.pattern.permute.xlu0 1
        %4472 = vperm.xlu0 %4471, %v4079
        %v4473 = vpop.permute.xlu0 %4472
        %4475 = vset.pattern.permute.xlu0 1
        %4476 = vperm.xlu0 %4475, %v4138
        %v4477 = vpop.permute.xlu0 %4476
        %4479 = vset.pattern.permute.xlu0 1
        %4480 = vperm.xlu0 %4479, %v4140
        %v4481 = vpop.permute.xlu0 %4480
        %4483 = vset.pattern.permute.xlu0 1
        %4484 = vperm.xlu0 %4483, %v4144
        %v4485 = vpop.permute.xlu0 %4484
        %4487 = vset.pattern.permute.xlu0 1
        %4488 = vperm.xlu0 %4487, %v4146
        %v4489 = vpop.permute.xlu0 %4488
        %4491 = vset.pattern.permute.xlu0 1
        %4492 = vperm.xlu0 %4491, %v4150
        %v4493 = vpop.permute.xlu0 %4492
        %4495 = vset.pattern.permute.xlu0 1
        %4496 = vperm.xlu0 %4495, %v4152
        %v4497 = vpop.permute.xlu0 %4496
        %v4499 = vmul.f32 %v4469, %v4465
        %v4500 = vmul.f32 %v4473, %v4466
        %v4501 = vmul.f32 %v4477, %v4465
        %v4502 = vmul.f32 %v4481, %v4466
        %v4503 = vmul.f32 %v4485, %v4465
        %v4504 = vmul.f32 %v4489, %v4466
        %v4505 = vmul.f32 %v4493, %v4465
        %v4506 = vmul.f32 %v4497, %v4466
        %v4507 = vadd.f32 %v4456, %v4499
        %v4508 = vadd.f32 %v4457, %v4500
        %v4509 = vadd.f32 %v4458, %v4501
        %v4510 = vadd.f32 %v4459, %v4502
        %v4511 = vadd.f32 %v4460, %v4503
        %v4512 = vadd.f32 %v4461, %v4504
        %v4513 = vadd.f32 %v4462, %v4505
        %v4514 = vadd.f32 %v4463, %v4506
        %s4515 = scalar_lea.vmem [#allocation23], 16
        %v4516 = vld [vmem:[%s4515] sm:$0xff]
        %v4517 = vld [vmem:[%s4515 + $0x8] sm:$0xff]
        %4518 = vset.pattern.permute.xlu0 1
        %4519 = vperm.xlu0 %4518, %v4129
        %v4520 = vpop.permute.xlu0 %4519
        %4522 = vset.pattern.permute.xlu0 1
        %4523 = vperm.xlu0 %4522, %v4132
        %v4524 = vpop.permute.xlu0 %4523
        %4526 = vset.pattern.permute.xlu0 1
        %4527 = vperm.xlu0 %4526, %v4158
        %v4528 = vpop.permute.xlu0 %4527
        %4530 = vset.pattern.permute.xlu0 1
        %4531 = vperm.xlu0 %4530, %v4160
        %v4532 = vpop.permute.xlu0 %4531
        %4534 = vset.pattern.permute.xlu0 1
        %4535 = vperm.xlu0 %4534, %v4162
        %v4536 = vpop.permute.xlu0 %4535
        %4538 = vset.pattern.permute.xlu0 1
        %4539 = vperm.xlu0 %4538, %v4164
        %v4540 = vpop.permute.xlu0 %4539
        %4542 = vset.pattern.permute.xlu0 1
        %4543 = vperm.xlu0 %4542, %v4166
        %v4544 = vpop.permute.xlu0 %4543
        %4546 = vset.pattern.permute.xlu0 1
        %4547 = vperm.xlu0 %4546, %v4168
        %v4548 = vpop.permute.xlu0 %4547
        %v4550 = vmul.f32 %v4520, %v4516
        %v4551 = vmul.f32 %v4524, %v4517
        %v4552 = vmul.f32 %v4528, %v4516
        %v4553 = vmul.f32 %v4532, %v4517
        %v4554 = vmul.f32 %v4536, %v4516
        %v4555 = vmul.f32 %v4540, %v4517
        %v4556 = vmul.f32 %v4544, %v4516
        %v4557 = vmul.f32 %v4548, %v4517
        %v4558 = vadd.f32 %v4507, %v4550
        %v4559 = vadd.f32 %v4508, %v4551
        %v4560 = vadd.f32 %v4509, %v4552
        %v4561 = vadd.f32 %v4510, %v4553
        %v4562 = vadd.f32 %v4511, %v4554
        %v4563 = vadd.f32 %v4512, %v4555
        %v4564 = vadd.f32 %v4513, %v4556
        %v4565 = vadd.f32 %v4514, %v4557
        %v4566 = vsel %vm4090, %v4558, -inf
        %4567 = vmax.xlane.f32.xlu0 %v4566
        %v4568 = vpop.xlane.xlu0 %4567
        %v4569 = vsel %vm4090, %v4559, -inf
        %4570 = vmax.xlane.f32.xlu0 %v4569
        %v4571 = vpop.xlane.xlu0 %4570
        %v4572 = vsel %vm4090, %v4560, -inf
        %4573 = vmax.xlane.f32.xlu0 %v4572
        %v4574 = vpop.xlane.xlu0 %4573
        %v4575 = vsel %vm4090, %v4561, -inf
        %4576 = vmax.xlane.f32.xlu0 %v4575
        %v4577 = vpop.xlane.xlu0 %4576
        %v4578 = vsel %vm4090, %v4562, -inf
        %4579 = vmax.xlane.f32.xlu0 %v4578
        %v4580 = vpop.xlane.xlu0 %4579
        %v4581 = vsel %vm4090, %v4563, -inf
        %4582 = vmax.xlane.f32.xlu0 %v4581
        %v4583 = vpop.xlane.xlu0 %4582
        %v4584 = vsel %vm4090, %v4564, -inf
        %4585 = vmax.xlane.f32.xlu0 %v4584
        %v4586 = vpop.xlane.xlu0 %4585
        %v4587 = vsel %vm4090, %v4565, -inf
        %4588 = vmax.xlane.f32.xlu0 %v4587
        %v4589 = vpop.xlane.xlu0 %4588
        %v4590 = vsub.f32 %v4558, %v4568
        %v4591 = vsub.f32 %v4559, %v4571
        %v4592 = vsub.f32 %v4560, %v4574
        %v4593 = vsub.f32 %v4561, %v4577
        %v4594 = vsub.f32 %v4562, %v4580
        %v4595 = vsub.f32 %v4563, %v4583
        %v4596 = vsub.f32 %v4564, %v4586
        %v4597 = vsub.f32 %v4565, %v4589
        %v4598 = vmul.f32 %v4590, 1.442695
        %v4599 = vpow.pop %v4598
        %v4600 = vmul.f32 %v4591, 1.442695
        %v4601 = vpow.pop %v4600
        %v4602 = vmul.f32 %v4592, 1.442695
        %v4603 = vpow.pop %v4602
        %v4604 = vmul.f32 %v4593, 1.442695
        %v4605 = vpow.pop %v4604
        %v4606 = vmul.f32 %v4594, 1.442695
        %v4607 = vpow.pop %v4606
        %v4608 = vmul.f32 %v4595, 1.442695
        %v4609 = vpow.pop %v4608
        %v4610 = vmul.f32 %v4596, 1.442695
        %v4611 = vpow.pop %v4610
        %v4612 = vmul.f32 %v4597, 1.442695
        %v4613 = vpow.pop %v4612
        %v4614 = vsel %vm4090, %v4599, 0.0
        %4615 = vadd.xlane.f32.xlu0 %v4614
        %v4616 = vpop.xlane.xlu0 %4615
        %v4617 = vsel %vm4090, %v4601, 0.0
        %4618 = vadd.xlane.f32.xlu0 %v4617
        %v4619 = vpop.xlane.xlu0 %4618
        %v4620 = vsel %vm4090, %v4603, 0.0
        %4621 = vadd.xlane.f32.xlu0 %v4620
        %v4622 = vpop.xlane.xlu0 %4621
        %v4623 = vsel %vm4090, %v4605, 0.0
        %4624 = vadd.xlane.f32.xlu0 %v4623
        %v4625 = vpop.xlane.xlu0 %4624
        %v4626 = vsel %vm4090, %v4607, 0.0
        %4627 = vadd.xlane.f32.xlu0 %v4626
        %v4628 = vpop.xlane.xlu0 %4627
        %v4629 = vsel %vm4090, %v4609, 0.0
        %4630 = vadd.xlane.f32.xlu0 %v4629
        %v4631 = vpop.xlane.xlu0 %4630
        %v4632 = vsel %vm4090, %v4611, 0.0
        %4633 = vadd.xlane.f32.xlu0 %v4632
        %v4634 = vpop.xlane.xlu0 %4633
        %v4635 = vsel %vm4090, %v4613, 0.0
        %4636 = vadd.xlane.f32.xlu0 %v4635
        %v4637 = vpop.xlane.xlu0 %4636
        %v4638 = vrcp.pop %v4616
        %v4639 = vrcp.pop %v4619
        %v4640 = vrcp.pop %v4622
        %v4641 = vrcp.pop %v4625
        %v4642 = vrcp.pop %v4628
        %v4643 = vrcp.pop %v4631
        %v4644 = vrcp.pop %v4634
        %v4645 = vrcp.pop %v4637
        %v4646 = vmul.f32 %v4599, %v4638
        %v4647 = vmul.f32 %v4601, %v4639
        %v4648 = vmul.f32 %v4603, %v4640
        %v4649 = vmul.f32 %v4605, %v4641
        %v4650 = vmul.f32 %v4607, %v4642
        %v4651 = vmul.f32 %v4609, %v4643
        %v4652 = vmul.f32 %v4611, %v4644
        %v4653 = vmul.f32 %v4613, %v4645
        %v4654 = vpack.c.bf16 %v4647, %v4646
        %v4655 = vpack.c.bf16 %v4649, %v4648
        %v4656 = vpack.c.bf16 %v4651, %v4650
        %v4657 = vpack.c.bf16 %v4653, %v4652
        %4658 = vrot.lane.b32.xlu0 %v4084, 112
        %v4659 = vpop.permute.xlu0 %4658
        %v4662 = vsel %vm4090, %v4654, 0
        %4664 = vmatprep.subr.bf16.mxu0 0
        %4665 = vmatpush1.bf16.msra.mxu0 %v4659
        %4666 = vmatprep.subr.bf16.mxu0 0
        %4667 = vmatpush1.bf16.msra.mxu0 0
        %4668 = vmatprep.subr.bf16.mxu0 0
        %4669 = vmatpush1.bf16.msra.mxu0 0
        %4670 = vmatprep.subr.bf16.mxu0 0
        %4671 = vmatpush1.bf16.msra.mxu0 0
        %4672 = vmatprep.subr.bf16.mxu0 0
        %4673 = vmatpush1.bf16.msra.mxu0 0
        %4674 = vmatprep.subr.bf16.mxu0 0
        %4675 = vmatpush1.bf16.msra.mxu0 0
        %4676 = vmatprep.subr.bf16.mxu0 0
        %4677 = vmatpush1.bf16.msra.mxu0 0
        %4678 = vmatprep.subr.bf16.mxu0 0
        %4679 = vmatpush1.bf16.msra.mxu0 0
        %4680 = vmatprep.subr.bf16.mxu0 0
        %4681 = vmatpush1.bf16.msra.mxu0 0
        %4682 = vmatprep.subr.bf16.mxu0 0
        %4683 = vmatpush1.bf16.msra.mxu0 0
        %4684 = vmatprep.subr.bf16.mxu0 0
        %4685 = vmatpush1.bf16.msra.mxu0 0
        %4686 = vmatprep.subr.bf16.mxu0 0
        %4687 = vmatpush1.bf16.msra.mxu0 0
        %4688 = vmatprep.subr.bf16.mxu0 0
        %4689 = vmatpush1.bf16.msra.mxu0 0
        %4690 = vmatprep.subr.bf16.mxu0 0
        %4691 = vmatpush1.bf16.msra.mxu0 0
        %4692 = vmatprep.subr.bf16.mxu0 0
        %4693 = vmatpush1.bf16.msra.mxu0 0
        %4694 = vmatprep.subr.bf16.mxu0 0
        %4695 = vmatpush1.bf16.msra.mxu0 0
        %4696 = vmatprep.mubr.bf16.mxu0 0
        %4697 = vmatmul.mubr.bf16.gmra.mrb[0].mxu0 %v4662
        %v4698 = vpop.f32.mrb[0].mxu0
        %v4699 = vadd.f32 0.0, %v4698
        %v4700 = vpop.f32.mrb[0].mxu0
        %v4701 = vpop.f32.mrb[0].mxu0
        %v4702 = vadd.f32 0.0, %v4701
        %v4703 = vpop.f32.mrb[0].mxu0
        %4704 = vdwg.mxu0
        %4705 = vrot.lane.b32.xlu0 %v4169, 112
        %v4706 = vpop.permute.xlu0 %4705
        %v4709 = vsel %vm4090, %v4655, 0
        %4711 = vmatprep.subr.bf16.mxu0 0
        %4712 = vmatpush1.bf16.msra.mxu0 %v4706
        %4713 = vmatprep.subr.bf16.mxu0 0
        %4714 = vmatpush1.bf16.msra.mxu0 0
        %4715 = vmatprep.subr.bf16.mxu0 0
        %4716 = vmatpush1.bf16.msra.mxu0 0
        %4717 = vmatprep.subr.bf16.mxu0 0
        %4718 = vmatpush1.bf16.msra.mxu0 0
        %4719 = vmatprep.subr.bf16.mxu0 0
        %4720 = vmatpush1.bf16.msra.mxu0 0
        %4721 = vmatprep.subr.bf16.mxu0 0
        %4722 = vmatpush1.bf16.msra.mxu0 0
        %4723 = vmatprep.subr.bf16.mxu0 0
        %4724 = vmatpush1.bf16.msra.mxu0 0
        %4725 = vmatprep.subr.bf16.mxu0 0
        %4726 = vmatpush1.bf16.msra.mxu0 0
        %4727 = vmatprep.subr.bf16.mxu0 0
        %4728 = vmatpush1.bf16.msra.mxu0 0
        %4729 = vmatprep.subr.bf16.mxu0 0
        %4730 = vmatpush1.bf16.msra.mxu0 0
        %4731 = vmatprep.subr.bf16.mxu0 0
        %4732 = vmatpush1.bf16.msra.mxu0 0
        %4733 = vmatprep.subr.bf16.mxu0 0
        %4734 = vmatpush1.bf16.msra.mxu0 0
        %4735 = vmatprep.subr.bf16.mxu0 0
        %4736 = vmatpush1.bf16.msra.mxu0 0
        %4737 = vmatprep.subr.bf16.mxu0 0
        %4738 = vmatpush1.bf16.msra.mxu0 0
        %4739 = vmatprep.subr.bf16.mxu0 0
        %4740 = vmatpush1.bf16.msra.mxu0 0
        %4741 = vmatprep.subr.bf16.mxu0 0
        %4742 = vmatpush1.bf16.msra.mxu0 0
        %4743 = vmatprep.mubr.bf16.mxu0 0
        %4744 = vmatmul.mubr.bf16.gmra.mrb[0].mxu0 %v4709
        %v4745 = vpop.f32.mrb[0].mxu0
        %v4746 = vadd.f32 0.0, %v4745
        %v4747 = vpop.f32.mrb[0].mxu0
        %v4748 = vpop.f32.mrb[0].mxu0
        %v4749 = vadd.f32 0.0, %v4748
        %v4750 = vpop.f32.mrb[0].mxu0
        %4751 = vdwg.mxu0
        %4752 = vrot.lane.b32.xlu0 %v4170, 112
        %v4753 = vpop.permute.xlu0 %4752
        %v4756 = vsel %vm4090, %v4656, 0
        %4758 = vmatprep.subr.bf16.mxu0 0
        %4759 = vmatpush1.bf16.msra.mxu0 %v4753
        %4760 = vmatprep.subr.bf16.mxu0 0
        %4761 = vmatpush1.bf16.msra.mxu0 0
        %4762 = vmatprep.subr.bf16.mxu0 0
        %4763 = vmatpush1.bf16.msra.mxu0 0
        %4764 = vmatprep.subr.bf16.mxu0 0
        %4765 = vmatpush1.bf16.msra.mxu0 0
        %4766 = vmatprep.subr.bf16.mxu0 0
        %4767 = vmatpush1.bf16.msra.mxu0 0
        %4768 = vmatprep.subr.bf16.mxu0 0
        %4769 = vmatpush1.bf16.msra.mxu0 0
        %4770 = vmatprep.subr.bf16.mxu0 0
        %4771 = vmatpush1.bf16.msra.mxu0 0
        %4772 = vmatprep.subr.bf16.mxu0 0
        %4773 = vmatpush1.bf16.msra.mxu0 0
        %4774 = vmatprep.subr.bf16.mxu0 0
        %4775 = vmatpush1.bf16.msra.mxu0 0
        %4776 = vmatprep.subr.bf16.mxu0 0
        %4777 = vmatpush1.bf16.msra.mxu0 0
        %4778 = vmatprep.subr.bf16.mxu0 0
        %4779 = vmatpush1.bf16.msra.mxu0 0
        %4780 = vmatprep.subr.bf16.mxu0 0
        %4781 = vmatpush1.bf16.msra.mxu0 0
        %4782 = vmatprep.subr.bf16.mxu0 0
        %4783 = vmatpush1.bf16.msra.mxu0 0
        %4784 = vmatprep.subr.bf16.mxu0 0
        %4785 = vmatpush1.bf16.msra.mxu0 0
        %4786 = vmatprep.subr.bf16.mxu0 0
        %4787 = vmatpush1.bf16.msra.mxu0 0
        %4788 = vmatprep.subr.bf16.mxu0 0
        %4789 = vmatpush1.bf16.msra.mxu0 0
        %4790 = vmatprep.mubr.bf16.mxu0 0
        %4791 = vmatmul.mubr.bf16.gmra.mrb[0].mxu0 %v4756
        %v4792 = vpop.f32.mrb[0].mxu0
        %v4793 = vadd.f32 0.0, %v4792
        %v4794 = vpop.f32.mrb[0].mxu0
        %v4795 = vpop.f32.mrb[0].mxu0
        %v4796 = vadd.f32 0.0, %v4795
        %v4797 = vpop.f32.mrb[0].mxu0
        %4798 = vdwg.mxu0
        %4799 = vrot.lane.b32.xlu0 %v4171, 112
        %v4800 = vpop.permute.xlu0 %4799
        %v4803 = vsel %vm4090, %v4657, 0
        %4805 = vmatprep.subr.bf16.mxu0 0
        %4806 = vmatpush1.bf16.msra.mxu0 %v4800
        %4807 = vmatprep.subr.bf16.mxu0 0
        %4808 = vmatpush1.bf16.msra.mxu0 0
        %4809 = vmatprep.subr.bf16.mxu0 0
        %4810 = vmatpush1.bf16.msra.mxu0 0
        %4811 = vmatprep.subr.bf16.mxu0 0
        %4812 = vmatpush1.bf16.msra.mxu0 0
        %4813 = vmatprep.subr.bf16.mxu0 0
        %4814 = vmatpush1.bf16.msra.mxu0 0
        %4815 = vmatprep.subr.bf16.mxu0 0
        %4816 = vmatpush1.bf16.msra.mxu0 0
        %4817 = vmatprep.subr.bf16.mxu0 0
        %4818 = vmatpush1.bf16.msra.mxu0 0
        %4819 = vmatprep.subr.bf16.mxu0 0
        %4820 = vmatpush1.bf16.msra.mxu0 0
        %4821 = vmatprep.subr.bf16.mxu0 0
        %4822 = vmatpush1.bf16.msra.mxu0 0
        %4823 = vmatprep.subr.bf16.mxu0 0
        %4824 = vmatpush1.bf16.msra.mxu0 0
        %4825 = vmatprep.subr.bf16.mxu0 0
        %4826 = vmatpush1.bf16.msra.mxu0 0
        %4827 = vmatprep.subr.bf16.mxu0 0
        %4828 = vmatpush1.bf16.msra.mxu0 0
        %4829 = vmatprep.subr.bf16.mxu0 0
        %4830 = vmatpush1.bf16.msra.mxu0 0
        %4831 = vmatprep.subr.bf16.mxu0 0
        %4832 = vmatpush1.bf16.msra.mxu0 0
        %4833 = vmatprep.subr.bf16.mxu0 0
        %4834 = vmatpush1.bf16.msra.mxu0 0
        %4835 = vmatprep.subr.bf16.mxu0 0
        %4836 = vmatpush1.bf16.msra.mxu0 0
        %4837 = vmatprep.mubr.bf16.mxu0 0
        %4838 = vmatmul.mubr.bf16.gmra.mrb[0].mxu0 %v4803
        %v4839 = vpop.f32.mrb[0].mxu0
        %v4840 = vadd.f32 0.0, %v4839
        %v4841 = vpop.f32.mrb[0].mxu0
        %v4842 = vpop.f32.mrb[0].mxu0
        %v4843 = vadd.f32 0.0, %v4842
        %v4844 = vpop.f32.mrb[0].mxu0
        %4845 = vdwg.mxu0
        %4848 = vrot.lane.b32.xlu0 %v4746, 2
        %v4849 = vpop.permute.xlu0 %4848
        %4850 = vrot.lane.b32.xlu0 %v4749, 2
        %v4851 = vpop.permute.xlu0 %4850
        %4856 = vrot.lane.b32.xlu0 %v4793, 4
        %v4857 = vpop.permute.xlu0 %4856
        %4858 = vrot.lane.b32.xlu0 %v4796, 4
        %v4859 = vpop.permute.xlu0 %4858
        %4864 = vrot.lane.b32.xlu0 %v4840, 6
        %v4865 = vpop.permute.xlu0 %4864
        %4866 = vrot.lane.b32.xlu0 %v4843, 6
        %v4867 = vpop.permute.xlu0 %4866
        %v4870 = vsel %vm1890, %v4699, %v4849
        %v4871 = vsel %vm1890, %v4702, %v4851
        %v4872 = vsel %vm3713, %v4870, %v4857
        %v4873 = vsel %vm3713, %v4871, %v4859
        %v4874 = vsel %vm3722, %v4872, %v4865
        %v4875 = vsel %vm3722, %v4873, %v4867
        %v4876 = vld [vmem:[#allocation25] sm:$0x1]
        %v4878 = vlaneseq
        %v4879 = vshrl.u32 %v4878, 7
        %v4880 = vsub.s32 0, %v4879
        %v4881 = vrot.slane %v4876, %v4880
        %v4883 = vadd.f32 %v4874, %v4881
        %v4884 = vadd.f32 %v4875, %v4881
        %v4885 = vmax.f32 %v4883, 0.0
        %v4886 = vmax.f32 %v4884, 0.0
        %v4887 = vpack.c.bf16 %v4886, %v4885
        %v4888 = vld [vmem:[#allocation26] sm:$0xf]
        %v4889 = vld [vmem:[#allocation28] sm:$0x1]
        %v4891 = vlaneseq
        %v4892 = vshrl.u32 %v4891, 7
        %v4893 = vsub.s32 0, %v4892
        %v4894 = vrot.slane %v4889, %v4893
        %v4897 = vsel %vm1277, %v4887, 0
        %v4900 = vsel %vm1290, %v4888, 0
        %4902 = vmatprep.subr.bf16.mxu0 0
        %4903 = vmatpush1.bf16.msra.mxu0 %v4900
        %4904 = vmatprep.subr.bf16.mxu0 0
        %4905 = vmatpush1.bf16.msra.mxu0 0
        %4906 = vmatprep.subr.bf16.mxu0 0
        %4907 = vmatpush1.bf16.msra.mxu0 0
        %4908 = vmatprep.subr.bf16.mxu0 0
        %4909 = vmatpush1.bf16.msra.mxu0 0
        %4910 = vmatprep.subr.bf16.mxu0 0
        %4911 = vmatpush1.bf16.msra.mxu0 0
        %4912 = vmatprep.subr.bf16.mxu0 0
        %4913 = vmatpush1.bf16.msra.mxu0 0
        %4914 = vmatprep.subr.bf16.mxu0 0
        %4915 = vmatpush1.bf16.msra.mxu0 0
        %4916 = vmatprep.subr.bf16.mxu0 0
        %4917 = vmatpush1.bf16.msra.mxu0 0
        %4918 = vmatprep.subr.bf16.mxu0 0
        %4919 = vmatpush1.bf16.msra.mxu0 0
        %4920 = vmatprep.subr.bf16.mxu0 0
        %4921 = vmatpush1.bf16.msra.mxu0 0
        %4922 = vmatprep.subr.bf16.mxu0 0
        %4923 = vmatpush1.bf16.msra.mxu0 0
        %4924 = vmatprep.subr.bf16.mxu0 0
        %4925 = vmatpush1.bf16.msra.mxu0 0
        %4926 = vmatprep.subr.bf16.mxu0 0
        %4927 = vmatpush1.bf16.msra.mxu0 0
        %4928 = vmatprep.subr.bf16.mxu0 0
        %4929 = vmatpush1.bf16.msra.mxu0 0
        %4930 = vmatprep.subr.bf16.mxu0 0
        %4931 = vmatpush1.bf16.msra.mxu0 0
        %4932 = vmatprep.subr.bf16.mxu0 0
        %4933 = vmatpush1.bf16.msra.mxu0 0
        %4934 = vmatprep.mubr.bf16.mxu0 0
        %4935 = vmatmul.mubr.bf16.gmra.mrb[0].mxu0 %v4897
        %v4936 = vpop.f32.mrb[0].mxu0
        %v4937 = vadd.f32 %v4894, %v4936
        %v4938 = vpop.f32.mrb[0].mxu0
        %v4939 = vpop.f32.mrb[0].mxu0
        %v4940 = vadd.f32 %v4894, %v4939
        %v4941 = vpop.f32.mrb[0].mxu0
        %4942 = vdwg.mxu0
        %v4943 = vadd.f32 %v4937, %v3960
        %v4944 = vadd.f32 %v4940, %v3961
        %v4945 = vpack.c.bf16 %v4944, %v4943
        %v4946 = vld [vmem:[%s47] sm:$0xf]
        %v4947 = vld [vmem:[%s47 + $0x4] sm:$0xf]
        %v4948 = vld [vmem:[%s47 + $0x8] sm:$0xf]
        %v4949 = vld [vmem:[%s47 + $0xc] sm:$0xf]
        %v4950 = vld [vmem:[#allocation29] sm:$0x1]
        %v4952 = vlaneseq
        %v4953 = vshrl.u32 %v4952, 7
        %v4954 = vsub.s32 0, %v4953
        %v4955 = vrot.slane %v4950, %v4954
        %v4961 = vunpack.c.l.b16 %v4946
        %v4962 = vunpack.c.l.b16 %v4947
        %v4963 = vunpack.c.l.b16 %v4948
        %v4964 = vunpack.c.l.b16 %v4949
        %v4965 = vpack.c.b16 %v4962, %v4961
        %v4966 = vpack.c.b16 %v4964, %v4963
        %v4970 = vsel %vm3986, %v4945, 0
        %4972 = vmatprep.subr.bf16.mxu0 0
        %4973 = vmatpush1.bf16.msra.mxu0 %v4965
        %4974 = vmatprep.subr.bf16.mxu0 0
        %4975 = vmatpush1.bf16.msra.mxu0 %v4966
        %4976 = vmatprep.subr.bf16.mxu0 0
        %4977 = vmatpush1.bf16.msra.mxu0 0
        %4978 = vmatprep.subr.bf16.mxu0 0
        %4979 = vmatpush1.bf16.msra.mxu0 0
        %4980 = vmatprep.subr.bf16.mxu0 0
        %4981 = vmatpush1.bf16.msra.mxu0 0
        %4982 = vmatprep.subr.bf16.mxu0 0
        %4983 = vmatpush1.bf16.msra.mxu0 0
        %4984 = vmatprep.subr.bf16.mxu0 0
        %4985 = vmatpush1.bf16.msra.mxu0 0
        %4986 = vmatprep.subr.bf16.mxu0 0
        %4987 = vmatpush1.bf16.msra.mxu0 0
        %4988 = vmatprep.subr.bf16.mxu0 0
        %4989 = vmatpush1.bf16.msra.mxu0 0
        %4990 = vmatprep.subr.bf16.mxu0 0
        %4991 = vmatpush1.bf16.msra.mxu0 0
        %4992 = vmatprep.subr.bf16.mxu0 0
        %4993 = vmatpush1.bf16.msra.mxu0 0
        %4994 = vmatprep.subr.bf16.mxu0 0
        %4995 = vmatpush1.bf16.msra.mxu0 0
        %4996 = vmatprep.subr.bf16.mxu0 0
        %4997 = vmatpush1.bf16.msra.mxu0 0
        %4998 = vmatprep.subr.bf16.mxu0 0
        %4999 = vmatpush1.bf16.msra.mxu0 0
        %5000 = vmatprep.subr.bf16.mxu0 0
        %5001 = vmatpush1.bf16.msra.mxu0 0
        %5002 = vmatprep.subr.bf16.mxu0 0
        %5003 = vmatpush1.bf16.msra.mxu0 0
        %5004 = vmatprep.mubr.bf16.mxu0 0
        %5005 = vmatmul.mubr.bf16.gmra.mrb[0].mxu0 %v4970
        %v5006 = vpop.f32.mrb[0].mxu0
        %v5007 = vadd.f32 %v4955, %v5006
        %v5008 = vpop.f32.mrb[0].mxu0
        %v5009 = vpop.f32.mrb[0].mxu0
        %v5010 = vadd.f32 %v4955, %v5009
        %v5011 = vpop.f32.mrb[0].mxu0
        %5012 = vdwg.mxu0
        %v5013 = vmax.f32 %v5007, 0.0
        %v5014 = vmax.f32 %v5010, 0.0
        %v5015 = vpack.c.bf16 %v5014, %v5013
        %v5016 = vld [vmem:[#allocation31] sm:$0xf]
        %v5018 = vsel %vm1277, %v5015, 0
        %v5021 = vsel %vm1290, %v5016, 0
        %5023 = vmatprep.subr.bf16.mxu0 0
        %5024 = vmatpush1.bf16.msra.mxu0 %v5021
        %5025 = vmatprep.subr.bf16.mxu0 0
        %5026 = vmatpush1.bf16.msra.mxu0 0
        %5027 = vmatprep.subr.bf16.mxu0 0
        %5028 = vmatpush1.bf16.msra.mxu0 0
        %5029 = vmatprep.subr.bf16.mxu0 0
        %5030 = vmatpush1.bf16.msra.mxu0 0
        %5031 = vmatprep.subr.bf16.mxu0 0
        %5032 = vmatpush1.bf16.msra.mxu0 0
        %5033 = vmatprep.subr.bf16.mxu0 0
        %5034 = vmatpush1.bf16.msra.mxu0 0
        %5035 = vmatprep.subr.bf16.mxu0 0
        %5036 = vmatpush1.bf16.msra.mxu0 0
        %5037 = vmatprep.subr.bf16.mxu0 0
        %5038 = vmatpush1.bf16.msra.mxu0 0
        %5039 = vmatprep.subr.bf16.mxu0 0
        %5040 = vmatpush1.bf16.msra.mxu0 0
        %5041 = vmatprep.subr.bf16.mxu0 0
        %5042 = vmatpush1.bf16.msra.mxu0 0
        %5043 = vmatprep.subr.bf16.mxu0 0
        %5044 = vmatpush1.bf16.msra.mxu0 0
        %5045 = vmatprep.subr.bf16.mxu0 0
        %5046 = vmatpush1.bf16.msra.mxu0 0
        %5047 = vmatprep.subr.bf16.mxu0 0
        %5048 = vmatpush1.bf16.msra.mxu0 0
        %5049 = vmatprep.subr.bf16.mxu0 0
        %5050 = vmatpush1.bf16.msra.mxu0 0
        %5051 = vmatprep.subr.bf16.mxu0 0
        %5052 = vmatpush1.bf16.msra.mxu0 0
        %5053 = vmatprep.subr.bf16.mxu0 0
        %5054 = vmatpush1.bf16.msra.mxu0 0
        %5055 = vmatprep.mubr.bf16.mxu0 0
        %5056 = vmatmul.mubr.bf16.gmra.mrb[0].mxu0 %v5018
        %v5057 = vpop.f32.mrb[0].mxu0
        %v5058 = vadd.f32 0.0, %v5057
        %v5059 = vpop.f32.mrb[0].mxu0
        %v5060 = vpop.f32.mrb[0].mxu0
        %v5061 = vadd.f32 0.0, %v5060
        %v5062 = vpop.f32.mrb[0].mxu0
        %5063 = vdwg.mxu0
        %v5064 = vld [vmem:[%s57] sm:$0xf]
        %v5065 = vld [vmem:[%s57 + $0x4] sm:$0xf]
        %v5066 = vpack.c.bf16 %v5061, %v5058
        %v5069 = vunpack.c.l.b16 %v5064
        %v5070 = vunpack.c.l.b16 %v5065
        %v5071 = vpack.c.b16 %v5070, %v5069
        %v5073 = vsel %vm4090, %v5071, 0
        %5075 = vmatprep.subr.bf16.mxu0 0
        %5076 = vmatpush1.bf16.msra.mxu0 %v5066
        %5077 = vmatprep.subr.bf16.mxu0 0
        %5078 = vmatpush1.bf16.msra.mxu0 0
        %5079 = vmatprep.subr.bf16.mxu0 0
        %5080 = vmatpush1.bf16.msra.mxu0 0
        %5081 = vmatprep.subr.bf16.mxu0 0
        %5082 = vmatpush1.bf16.msra.mxu0 0
        %5083 = vmatprep.subr.bf16.mxu0 0
        %5084 = vmatpush1.bf16.msra.mxu0 0
        %5085 = vmatprep.subr.bf16.mxu0 0
        %5086 = vmatpush1.bf16.msra.mxu0 0
        %5087 = vmatprep.subr.bf16.mxu0 0
        %5088 = vmatpush1.bf16.msra.mxu0 0
        %5089 = vmatprep.subr.bf16.mxu0 0
        %5090 = vmatpush1.bf16.msra.mxu0 0
        %5091 = vmatprep.subr.bf16.mxu0 0
        %5092 = vmatpush1.bf16.msra.mxu0 0
        %5093 = vmatprep.subr.bf16.mxu0 0
        %5094 = vmatpush1.bf16.msra.mxu0 0
        %5095 = vmatprep.subr.bf16.mxu0 0
        %5096 = vmatpush1.bf16.msra.mxu0 0
        %5097 = vmatprep.subr.bf16.mxu0 0
        %5098 = vmatpush1.bf16.msra.mxu0 0
        %5099 = vmatprep.subr.bf16.mxu0 0
        %5100 = vmatpush1.bf16.msra.mxu0 0
        %5101 = vmatprep.subr.bf16.mxu0 0
        %5102 = vmatpush1.bf16.msra.mxu0 0
        %5103 = vmatprep.subr.bf16.mxu0 0
        %5104 = vmatpush1.bf16.msra.mxu0 0
        %5105 = vmatprep.subr.bf16.mxu0 0
        %5106 = vmatpush1.bf16.msra.mxu0 0
        %5107 = vmatprep.mubr.bf16.mxu0 0
        %5108 = vmatmul.mubr.bf16.gmra.mrb[0].mxu0 %v5073
        %v5109 = vpop.f32.mrb[0].mxu0
        %v5110 = vadd.f32 0.0, %v5109
        %v5111 = vpop.f32.mrb[0].mxu0
        %v5112 = vpop.f32.mrb[0].mxu0
        %v5113 = vadd.f32 0.0, %v5112
        %v5114 = vpop.f32.mrb[0].mxu0
        %5115 = vdwg.mxu0
        %5118 = vrot.lane.b32.xlu0 %v5058, 126
        %v5119 = vpop.permute.xlu0 %5118
        %5120 = vrot.lane.b32.xlu0 %v5061, 126
        %v5121 = vpop.permute.xlu0 %5120
        %5124 = vrot.lane.b32.xlu0 %v5058, 124
        %v5125 = vpop.permute.xlu0 %5124
        %5126 = vrot.lane.b32.xlu0 %v5061, 124
        %v5127 = vpop.permute.xlu0 %5126
        %5130 = vrot.lane.b32.xlu0 %v5058, 122
        %v5131 = vpop.permute.xlu0 %5130
        %5132 = vrot.lane.b32.xlu0 %v5061, 122
        %v5133 = vpop.permute.xlu0 %5132
        %5138 = vrot.lane.b32.xlu0 %v5110, 126
        %v5139 = vpop.permute.xlu0 %5138
        %5140 = vrot.lane.b32.xlu0 %v5113, 126
        %v5141 = vpop.permute.xlu0 %5140
        %5142 = vrot.lane.b32.xlu0 %v5110, 124
        %v5143 = vpop.permute.xlu0 %5142
        %5144 = vrot.lane.b32.xlu0 %v5113, 124
        %v5145 = vpop.permute.xlu0 %5144
        %5146 = vrot.lane.b32.xlu0 %v5110, 122
        %v5147 = vpop.permute.xlu0 %5146
        %5148 = vrot.lane.b32.xlu0 %v5113, 122
        %v5149 = vpop.permute.xlu0 %5148
        %v5150 = vpack.c.bf16 %v5121, %v5119
        %v5151 = vpack.c.bf16 %v5127, %v5125
        %v5152 = vpack.c.bf16 %v5133, %v5131
        %v5153 = vld [vmem:[%s53] sm:$0xff]
        %v5154 = vld [vmem:[%s53 + $0x8] sm:$0xff]
        %5155 = vset.pattern.permute.xlu0 0
        %5156 = vperm.xlu0 %5155, %v5058
        %v5157 = vpop.permute.xlu0 %5156
        %5159 = vset.pattern.permute.xlu0 0
        %5160 = vperm.xlu0 %5159, %v5061
        %v5161 = vpop.permute.xlu0 %5160
        %5163 = vset.pattern.permute.xlu0 0
        %5164 = vperm.xlu0 %5163, %v5119
        %v5165 = vpop.permute.xlu0 %5164
        %5167 = vset.pattern.permute.xlu0 0
        %5168 = vperm.xlu0 %5167, %v5121
        %v5169 = vpop.permute.xlu0 %5168
        %5171 = vset.pattern.permute.xlu0 0
        %5172 = vperm.xlu0 %5171, %v5125
        %v5173 = vpop.permute.xlu0 %5172
        %5175 = vset.pattern.permute.xlu0 0
        %5176 = vperm.xlu0 %5175, %v5127
        %v5177 = vpop.permute.xlu0 %5176
        %5179 = vset.pattern.permute.xlu0 0
        %5180 = vperm.xlu0 %5179, %v5131
        %v5181 = vpop.permute.xlu0 %5180
        %5183 = vset.pattern.permute.xlu0 0
        %5184 = vperm.xlu0 %5183, %v5133
        %v5185 = vpop.permute.xlu0 %5184
        %v5187 = vmul.f32 %v5157, %v5153
        %v5188 = vmul.f32 %v5161, %v5154
        %v5189 = vmul.f32 %v5165, %v5153
        %v5190 = vmul.f32 %v5169, %v5154
        %v5191 = vmul.f32 %v5173, %v5153
        %v5192 = vmul.f32 %v5177, %v5154
        %v5193 = vmul.f32 %v5181, %v5153
        %v5194 = vmul.f32 %v5185, %v5154
        %5196 = vrot.lane.b32.xlu0 %v5066, 120
        %v5197 = vpop.permute.xlu0 %5196
        %v5199 = vsel %vm1890, %v5066, 0
        %v5202 = vsel %vm1890, %v5197, 0
        %5204 = vmatprep.subr.bf16.mxu0 0
        %5205 = vmatpush1.bf16.xpose.msra.mxu0 %v5202
        %5206 = vmatprep.subr.bf16.mxu0 0
        %5207 = vmatpush1.bf16.xpose.msra.mxu0 0
        %5208 = vmatprep.subr.bf16.mxu0 0
        %5209 = vmatpush1.bf16.xpose.msra.mxu0 0
        %5210 = vmatprep.subr.bf16.mxu0 0
        %5211 = vmatpush1.bf16.xpose.msra.mxu0 0
        %5212 = vmatprep.subr.bf16.mxu0 0
        %5213 = vmatpush1.bf16.xpose.msra.mxu0 0
        %5214 = vmatprep.subr.bf16.mxu0 0
        %5215 = vmatpush1.bf16.xpose.msra.mxu0 0
        %5216 = vmatprep.subr.bf16.mxu0 0
        %5217 = vmatpush1.bf16.xpose.msra.mxu0 0
        %5218 = vmatprep.subr.bf16.mxu0 0
        %5219 = vmatpush1.bf16.xpose.msra.mxu0 0
        %5220 = vmatprep.subr.bf16.mxu0 0
        %5221 = vmatpush1.bf16.xpose.msra.mxu0 0
        %5222 = vmatprep.subr.bf16.mxu0 0
        %5223 = vmatpush1.bf16.xpose.msra.mxu0 0
        %5224 = vmatprep.subr.bf16.mxu0 0
        %5225 = vmatpush1.bf16.xpose.msra.mxu0 0
        %5226 = vmatprep.subr.bf16.mxu0 0
        %5227 = vmatpush1.bf16.xpose.msra.mxu0 0
        %5228 = vmatprep.subr.bf16.mxu0 0
        %5229 = vmatpush1.bf16.xpose.msra.mxu0 0
        %5230 = vmatprep.subr.bf16.mxu0 0
        %5231 = vmatpush1.bf16.xpose.msra.mxu0 0
        %5232 = vmatprep.subr.bf16.mxu0 0
        %5233 = vmatpush1.bf16.xpose.msra.mxu0 0
        %5234 = vmatprep.subr.bf16.mxu0 0
        %5235 = vmatpush1.bf16.xpose.msra.mxu0 0
        %5236 = vmatprep.mubr.bf16.mxu0 0
        %5237 = vmatmul.mubr.bf16.gmra.mrb[0].mxu0 %v5199
        %v5238 = vpop.f32.mrb[0].mxu0
        %v5239 = vadd.f32 %v5187, %v5238
        %v5240 = vpop.f32.mrb[0].mxu0
        %v5241 = vpop.f32.mrb[0].mxu0
        %v5242 = vadd.f32 %v5188, %v5241
        %v5243 = vpop.f32.mrb[0].mxu0
        %5244 = vdwg.mxu0
        %5246 = vrot.lane.b32.xlu0 %v5150, 120
        %v5247 = vpop.permute.xlu0 %5246
        %v5249 = vsel %vm1890, %v5150, 0
        %v5252 = vsel %vm1890, %v5247, 0
        %5254 = vmatprep.subr.bf16.mxu0 0
        %5255 = vmatpush1.bf16.xpose.msra.mxu0 %v5252
        %5256 = vmatprep.subr.bf16.mxu0 0
        %5257 = vmatpush1.bf16.xpose.msra.mxu0 0
        %5258 = vmatprep.subr.bf16.mxu0 0
        %5259 = vmatpush1.bf16.xpose.msra.mxu0 0
        %5260 = vmatprep.subr.bf16.mxu0 0
        %5261 = vmatpush1.bf16.xpose.msra.mxu0 0
        %5262 = vmatprep.subr.bf16.mxu0 0
        %5263 = vmatpush1.bf16.xpose.msra.mxu0 0
        %5264 = vmatprep.subr.bf16.mxu0 0
        %5265 = vmatpush1.bf16.xpose.msra.mxu0 0
        %5266 = vmatprep.subr.bf16.mxu0 0
        %5267 = vmatpush1.bf16.xpose.msra.mxu0 0
        %5268 = vmatprep.subr.bf16.mxu0 0
        %5269 = vmatpush1.bf16.xpose.msra.mxu0 0
        %5270 = vmatprep.subr.bf16.mxu0 0
        %5271 = vmatpush1.bf16.xpose.msra.mxu0 0
        %5272 = vmatprep.subr.bf16.mxu0 0
        %5273 = vmatpush1.bf16.xpose.msra.mxu0 0
        %5274 = vmatprep.subr.bf16.mxu0 0
        %5275 = vmatpush1.bf16.xpose.msra.mxu0 0
        %5276 = vmatprep.subr.bf16.mxu0 0
        %5277 = vmatpush1.bf16.xpose.msra.mxu0 0
        %5278 = vmatprep.subr.bf16.mxu0 0
        %5279 = vmatpush1.bf16.xpose.msra.mxu0 0
        %5280 = vmatprep.subr.bf16.mxu0 0
        %5281 = vmatpush1.bf16.xpose.msra.mxu0 0
        %5282 = vmatprep.subr.bf16.mxu0 0
        %5283 = vmatpush1.bf16.xpose.msra.mxu0 0
        %5284 = vmatprep.subr.bf16.mxu0 0
        %5285 = vmatpush1.bf16.xpose.msra.mxu0 0
        %5286 = vmatprep.mubr.bf16.mxu0 0
        %5287 = vmatmul.mubr.bf16.gmra.mrb[0].mxu0 %v5249
        %v5288 = vpop.f32.mrb[0].mxu0
        %v5289 = vadd.f32 %v5189, %v5288
        %v5290 = vpop.f32.mrb[0].mxu0
        %v5291 = vpop.f32.mrb[0].mxu0
        %v5292 = vadd.f32 %v5190, %v5291
        %v5293 = vpop.f32.mrb[0].mxu0
        %5294 = vdwg.mxu0
        %5296 = vrot.lane.b32.xlu0 %v5151, 120
        %v5297 = vpop.permute.xlu0 %5296
        %v5299 = vsel %vm1890, %v5151, 0
        %v5302 = vsel %vm1890, %v5297, 0
        %5304 = vmatprep.subr.bf16.mxu0 0
        %5305 = vmatpush1.bf16.xpose.msra.mxu0 %v5302
        %5306 = vmatprep.subr.bf16.mxu0 0
        %5307 = vmatpush1.bf16.xpose.msra.mxu0 0
        %5308 = vmatprep.subr.bf16.mxu0 0
        %5309 = vmatpush1.bf16.xpose.msra.mxu0 0
        %5310 = vmatprep.subr.bf16.mxu0 0
        %5311 = vmatpush1.bf16.xpose.msra.mxu0 0
        %5312 = vmatprep.subr.bf16.mxu0 0
        %5313 = vmatpush1.bf16.xpose.msra.mxu0 0
        %5314 = vmatprep.subr.bf16.mxu0 0
        %5315 = vmatpush1.bf16.xpose.msra.mxu0 0
        %5316 = vmatprep.subr.bf16.mxu0 0
        %5317 = vmatpush1.bf16.xpose.msra.mxu0 0
        %5318 = vmatprep.subr.bf16.mxu0 0
        %5319 = vmatpush1.bf16.xpose.msra.mxu0 0
        %5320 = vmatprep.subr.bf16.mxu0 0
        %5321 = vmatpush1.bf16.xpose.msra.mxu0 0
        %5322 = vmatprep.subr.bf16.mxu0 0
        %5323 = vmatpush1.bf16.xpose.msra.mxu0 0
        %5324 = vmatprep.subr.bf16.mxu0 0
        %5325 = vmatpush1.bf16.xpose.msra.mxu0 0
        %5326 = vmatprep.subr.bf16.mxu0 0
        %5327 = vmatpush1.bf16.xpose.msra.mxu0 0
        %5328 = vmatprep.subr.bf16.mxu0 0
        %5329 = vmatpush1.bf16.xpose.msra.mxu0 0
        %5330 = vmatprep.subr.bf16.mxu0 0
        %5331 = vmatpush1.bf16.xpose.msra.mxu0 0
        %5332 = vmatprep.subr.bf16.mxu0 0
        %5333 = vmatpush1.bf16.xpose.msra.mxu0 0
        %5334 = vmatprep.subr.bf16.mxu0 0
        %5335 = vmatpush1.bf16.xpose.msra.mxu0 0
        %5336 = vmatprep.mubr.bf16.mxu0 0
        %5337 = vmatmul.mubr.bf16.gmra.mrb[0].mxu0 %v5299
        %v5338 = vpop.f32.mrb[0].mxu0
        %v5339 = vadd.f32 %v5191, %v5338
        %v5340 = vpop.f32.mrb[0].mxu0
        %v5341 = vpop.f32.mrb[0].mxu0
        %v5342 = vadd.f32 %v5192, %v5341
        %v5343 = vpop.f32.mrb[0].mxu0
        %5344 = vdwg.mxu0
        %5346 = vrot.lane.b32.xlu0 %v5152, 120
        %v5347 = vpop.permute.xlu0 %5346
        %v5349 = vsel %vm1890, %v5152, 0
        %v5352 = vsel %vm1890, %v5347, 0
        %5354 = vmatprep.subr.bf16.mxu0 0
        %5355 = vmatpush1.bf16.xpose.msra.mxu0 %v5352
        %5356 = vmatprep.subr.bf16.mxu0 0
        %5357 = vmatpush1.bf16.xpose.msra.mxu0 0
        %5358 = vmatprep.subr.bf16.mxu0 0
        %5359 = vmatpush1.bf16.xpose.msra.mxu0 0
        %5360 = vmatprep.subr.bf16.mxu0 0
        %5361 = vmatpush1.bf16.xpose.msra.mxu0 0
        %5362 = vmatprep.subr.bf16.mxu0 0
        %5363 = vmatpush1.bf16.xpose.msra.mxu0 0
        %5364 = vmatprep.subr.bf16.mxu0 0
        %5365 = vmatpush1.bf16.xpose.msra.mxu0 0
        %5366 = vmatprep.subr.bf16.mxu0 0
        %5367 = vmatpush1.bf16.xpose.msra.mxu0 0
        %5368 = vmatprep.subr.bf16.mxu0 0
        %5369 = vmatpush1.bf16.xpose.msra.mxu0 0
        %5370 = vmatprep.subr.bf16.mxu0 0
        %5371 = vmatpush1.bf16.xpose.msra.mxu0 0
        %5372 = vmatprep.subr.bf16.mxu0 0
        %5373 = vmatpush1.bf16.xpose.msra.mxu0 0
        %5374 = vmatprep.subr.bf16.mxu0 0
        %5375 = vmatpush1.bf16.xpose.msra.mxu0 0
        %5376 = vmatprep.subr.bf16.mxu0 0
        %5377 = vmatpush1.bf16.xpose.msra.mxu0 0
        %5378 = vmatprep.subr.bf16.mxu0 0
        %5379 = vmatpush1.bf16.xpose.msra.mxu0 0
        %5380 = vmatprep.subr.bf16.mxu0 0
        %5381 = vmatpush1.bf16.xpose.msra.mxu0 0
        %5382 = vmatprep.subr.bf16.mxu0 0
        %5383 = vmatpush1.bf16.xpose.msra.mxu0 0
        %5384 = vmatprep.subr.bf16.mxu0 0
        %5385 = vmatpush1.bf16.xpose.msra.mxu0 0
        %5386 = vmatprep.mubr.bf16.mxu0 0
        %5387 = vmatmul.mubr.bf16.gmra.mrb[0].mxu0 %v5349
        %v5388 = vpop.f32.mrb[0].mxu0
        %v5389 = vadd.f32 %v5193, %v5388
        %v5390 = vpop.f32.mrb[0].mxu0
        %v5391 = vpop.f32.mrb[0].mxu0
        %v5392 = vadd.f32 %v5194, %v5391
        %v5393 = vpop.f32.mrb[0].mxu0
        %5394 = vdwg.mxu0
        %v5395 = vld [vmem:[%s55] sm:$0xff]
        %v5396 = vld [vmem:[%s55 + $0x8] sm:$0xff]
        %5397 = vset.pattern.permute.xlu0 0
        %5398 = vperm.xlu0 %5397, %v5110
        %v5399 = vpop.permute.xlu0 %5398
        %5401 = vset.pattern.permute.xlu0 0
        %5402 = vperm.xlu0 %5401, %v5113
        %v5403 = vpop.permute.xlu0 %5402
        %5405 = vset.pattern.permute.xlu0 0
        %5406 = vperm.xlu0 %5405, %v5139
        %v5407 = vpop.permute.xlu0 %5406
        %5409 = vset.pattern.permute.xlu0 0
        %5410 = vperm.xlu0 %5409, %v5141
        %v5411 = vpop.permute.xlu0 %5410
        %5413 = vset.pattern.permute.xlu0 0
        %5414 = vperm.xlu0 %5413, %v5143
        %v5415 = vpop.permute.xlu0 %5414
        %5417 = vset.pattern.permute.xlu0 0
        %5418 = vperm.xlu0 %5417, %v5145
        %v5419 = vpop.permute.xlu0 %5418
        %5421 = vset.pattern.permute.xlu0 0
        %5422 = vperm.xlu0 %5421, %v5147
        %v5423 = vpop.permute.xlu0 %5422
        %5425 = vset.pattern.permute.xlu0 0
        %5426 = vperm.xlu0 %5425, %v5149
        %v5427 = vpop.permute.xlu0 %5426
        %v5429 = vmul.f32 %v5399, %v5395
        %v5430 = vmul.f32 %v5403, %v5396
        %v5431 = vmul.f32 %v5407, %v5395
        %v5432 = vmul.f32 %v5411, %v5396
        %v5433 = vmul.f32 %v5415, %v5395
        %v5434 = vmul.f32 %v5419, %v5396
        %v5435 = vmul.f32 %v5423, %v5395
        %v5436 = vmul.f32 %v5427, %v5396
        %v5437 = vadd.f32 %v5239, %v5429
        %v5438 = vadd.f32 %v5242, %v5430
        %v5439 = vadd.f32 %v5289, %v5431
        %v5440 = vadd.f32 %v5292, %v5432
        %v5441 = vadd.f32 %v5339, %v5433
        %v5442 = vadd.f32 %v5342, %v5434
        %v5443 = vadd.f32 %v5389, %v5435
        %v5444 = vadd.f32 %v5392, %v5436
        %s5445 = scalar_lea.vmem %s53, 16
        %v5446 = vld [vmem:[%s5445] sm:$0xff]
        %v5447 = vld [vmem:[%s5445 + $0x8] sm:$0xff]
        %5448 = vset.pattern.permute.xlu0 1
        %5449 = vperm.xlu0 %5448, %v5058
        %v5450 = vpop.permute.xlu0 %5449
        %5452 = vset.pattern.permute.xlu0 1
        %5453 = vperm.xlu0 %5452, %v5061
        %v5454 = vpop.permute.xlu0 %5453
        %5456 = vset.pattern.permute.xlu0 1
        %5457 = vperm.xlu0 %5456, %v5119
        %v5458 = vpop.permute.xlu0 %5457
        %5460 = vset.pattern.permute.xlu0 1
        %5461 = vperm.xlu0 %5460, %v5121
        %v5462 = vpop.permute.xlu0 %5461
        %5464 = vset.pattern.permute.xlu0 1
        %5465 = vperm.xlu0 %5464, %v5125
        %v5466 = vpop.permute.xlu0 %5465
        %5468 = vset.pattern.permute.xlu0 1
        %5469 = vperm.xlu0 %5468, %v5127
        %v5470 = vpop.permute.xlu0 %5469
        %5472 = vset.pattern.permute.xlu0 1
        %5473 = vperm.xlu0 %5472, %v5131
        %v5474 = vpop.permute.xlu0 %5473
        %5476 = vset.pattern.permute.xlu0 1
        %5477 = vperm.xlu0 %5476, %v5133
        %v5478 = vpop.permute.xlu0 %5477
        %v5480 = vmul.f32 %v5450, %v5446
        %v5481 = vmul.f32 %v5454, %v5447
        %v5482 = vmul.f32 %v5458, %v5446
        %v5483 = vmul.f32 %v5462, %v5447
        %v5484 = vmul.f32 %v5466, %v5446
        %v5485 = vmul.f32 %v5470, %v5447
        %v5486 = vmul.f32 %v5474, %v5446
        %v5487 = vmul.f32 %v5478, %v5447
        %v5488 = vadd.f32 %v5437, %v5480
        %v5489 = vadd.f32 %v5438, %v5481
        %v5490 = vadd.f32 %v5439, %v5482
        %v5491 = vadd.f32 %v5440, %v5483
        %v5492 = vadd.f32 %v5441, %v5484
        %v5493 = vadd.f32 %v5442, %v5485
        %v5494 = vadd.f32 %v5443, %v5486
        %v5495 = vadd.f32 %v5444, %v5487
        %s5496 = scalar_lea.vmem %s55, 16
        %v5497 = vld [vmem:[%s5496] sm:$0xff]
        %v5498 = vld [vmem:[%s5496 + $0x8] sm:$0xff]
        %5499 = vset.pattern.permute.xlu0 1
        %5500 = vperm.xlu0 %5499, %v5110
        %v5501 = vpop.permute.xlu0 %5500
        %5503 = vset.pattern.permute.xlu0 1
        %5504 = vperm.xlu0 %5503, %v5113
        %v5505 = vpop.permute.xlu0 %5504
        %5507 = vset.pattern.permute.xlu0 1
        %5508 = vperm.xlu0 %5507, %v5139
        %v5509 = vpop.permute.xlu0 %5508
        %5511 = vset.pattern.permute.xlu0 1
        %5512 = vperm.xlu0 %5511, %v5141
        %v5513 = vpop.permute.xlu0 %5512
        %5515 = vset.pattern.permute.xlu0 1
        %5516 = vperm.xlu0 %5515, %v5143
        %v5517 = vpop.permute.xlu0 %5516
        %5519 = vset.pattern.permute.xlu0 1
        %5520 = vperm.xlu0 %5519, %v5145
        %v5521 = vpop.permute.xlu0 %5520
        %5523 = vset.pattern.permute.xlu0 1
        %5524 = vperm.xlu0 %5523, %v5147
        %v5525 = vpop.permute.xlu0 %5524
        %5527 = vset.pattern.permute.xlu0 1
        %5528 = vperm.xlu0 %5527, %v5149
        %v5529 = vpop.permute.xlu0 %5528
        %v5531 = vmul.f32 %v5501, %v5497
        %v5532 = vmul.f32 %v5505, %v5498
        %v5533 = vmul.f32 %v5509, %v5497
        %v5534 = vmul.f32 %v5513, %v5498
        %v5535 = vmul.f32 %v5517, %v5497
        %v5536 = vmul.f32 %v5521, %v5498
        %v5537 = vmul.f32 %v5525, %v5497
        %v5538 = vmul.f32 %v5529, %v5498
        %v5539 = vadd.f32 %v5488, %v5531
        %v5540 = vadd.f32 %v5489, %v5532
        %v5541 = vadd.f32 %v5490, %v5533
        %v5542 = vadd.f32 %v5491, %v5534
        %v5543 = vadd.f32 %v5492, %v5535
        %v5544 = vadd.f32 %v5493, %v5536
        %v5545 = vadd.f32 %v5494, %v5537
        %v5546 = vadd.f32 %v5495, %v5538
        %v5547 = vsel %vm4090, %v5539, -inf
        %5548 = vmax.xlane.f32.xlu0 %v5547
        %v5549 = vpop.xlane.xlu0 %5548
        %v5550 = vsel %vm4090, %v5540, -inf
        %5551 = vmax.xlane.f32.xlu0 %v5550
        %v5552 = vpop.xlane.xlu0 %5551
        %v5553 = vsel %vm4090, %v5541, -inf
        %5554 = vmax.xlane.f32.xlu0 %v5553
        %v5555 = vpop.xlane.xlu0 %5554
        %v5556 = vsel %vm4090, %v5542, -inf
        %5557 = vmax.xlane.f32.xlu0 %v5556
        %v5558 = vpop.xlane.xlu0 %5557
        %v5559 = vsel %vm4090, %v5543, -inf
        %5560 = vmax.xlane.f32.xlu0 %v5559
        %v5561 = vpop.xlane.xlu0 %5560
        %v5562 = vsel %vm4090, %v5544, -inf
        %5563 = vmax.xlane.f32.xlu0 %v5562
        %v5564 = vpop.xlane.xlu0 %5563
        %v5565 = vsel %vm4090, %v5545, -inf
        %5566 = vmax.xlane.f32.xlu0 %v5565
        %v5567 = vpop.xlane.xlu0 %5566
        %v5568 = vsel %vm4090, %v5546, -inf
        %5569 = vmax.xlane.f32.xlu0 %v5568
        %v5570 = vpop.xlane.xlu0 %5569
        %v5571 = vsub.f32 %v5539, %v5549
        %v5572 = vsub.f32 %v5540, %v5552
        %v5573 = vsub.f32 %v5541, %v5555
        %v5574 = vsub.f32 %v5542, %v5558
        %v5575 = vsub.f32 %v5543, %v5561
        %v5576 = vsub.f32 %v5544, %v5564
        %v5577 = vsub.f32 %v5545, %v5567
        %v5578 = vsub.f32 %v5546, %v5570
        %v5579 = vmul.f32 %v5571, 1.442695
        %v5580 = vpow.pop %v5579
        %v5581 = vmul.f32 %v5572, 1.442695
        %v5582 = vpow.pop %v5581
        %v5583 = vmul.f32 %v5573, 1.442695
        %v5584 = vpow.pop %v5583
        %v5585 = vmul.f32 %v5574, 1.442695
        %v5586 = vpow.pop %v5585
        %v5587 = vmul.f32 %v5575, 1.442695
        %v5588 = vpow.pop %v5587
        %v5589 = vmul.f32 %v5576, 1.442695
        %v5590 = vpow.pop %v5589
        %v5591 = vmul.f32 %v5577, 1.442695
        %v5592 = vpow.pop %v5591
        %v5593 = vmul.f32 %v5578, 1.442695
        %v5594 = vpow.pop %v5593
        %v5595 = vsel %vm4090, %v5580, 0.0
        %5596 = vadd.xlane.f32.xlu0 %v5595
        %v5597 = vpop.xlane.xlu0 %5596
        %v5598 = vsel %vm4090, %v5582, 0.0
        %5599 = vadd.xlane.f32.xlu0 %v5598
        %v5600 = vpop.xlane.xlu0 %5599
        %v5601 = vsel %vm4090, %v5584, 0.0
        %5602 = vadd.xlane.f32.xlu0 %v5601
        %v5603 = vpop.xlane.xlu0 %5602
        %v5604 = vsel %vm4090, %v5586, 0.0
        %5605 = vadd.xlane.f32.xlu0 %v5604
        %v5606 = vpop.xlane.xlu0 %5605
        %v5607 = vsel %vm4090, %v5588, 0.0
        %5608 = vadd.xlane.f32.xlu0 %v5607
        %v5609 = vpop.xlane.xlu0 %5608
        %v5610 = vsel %vm4090, %v5590, 0.0
        %5611 = vadd.xlane.f32.xlu0 %v5610
        %v5612 = vpop.xlane.xlu0 %5611
        %v5613 = vsel %vm4090, %v5592, 0.0
        %5614 = vadd.xlane.f32.xlu0 %v5613
        %v5615 = vpop.xlane.xlu0 %5614
        %v5616 = vsel %vm4090, %v5594, 0.0
        %5617 = vadd.xlane.f32.xlu0 %v5616
        %v5618 = vpop.xlane.xlu0 %5617
        %v5619 = vrcp.pop %v5597
        %v5620 = vrcp.pop %v5600
        %v5621 = vrcp.pop %v5603
        %v5622 = vrcp.pop %v5606
        %v5623 = vrcp.pop %v5609
        %v5624 = vrcp.pop %v5612
        %v5625 = vrcp.pop %v5615
        %v5626 = vrcp.pop %v5618
        %v5627 = vmul.f32 %v5580, %v5619
        %v5628 = vmul.f32 %v5582, %v5620
        %v5629 = vmul.f32 %v5584, %v5621
        %v5630 = vmul.f32 %v5586, %v5622
        %v5631 = vmul.f32 %v5588, %v5623
        %v5632 = vmul.f32 %v5590, %v5624
        %v5633 = vmul.f32 %v5592, %v5625
        %v5634 = vmul.f32 %v5594, %v5626
        %v5635 = vpack.c.bf16 %v5628, %v5627
        %v5636 = vpack.c.bf16 %v5630, %v5629
        %v5637 = vpack.c.bf16 %v5632, %v5631
        %v5638 = vpack.c.bf16 %v5634, %v5633
        %5639 = vrot.lane.b32.xlu0 %v5066, 112
        %v5640 = vpop.permute.xlu0 %5639
        %v5643 = vsel %vm4090, %v5635, 0
        %5645 = vmatprep.subr.bf16.mxu0 0
        %5646 = vmatpush1.bf16.msra.mxu0 %v5640
        %5647 = vmatprep.subr.bf16.mxu0 0
        %5648 = vmatpush1.bf16.msra.mxu0 0
        %5649 = vmatprep.subr.bf16.mxu0 0
        %5650 = vmatpush1.bf16.msra.mxu0 0
        %5651 = vmatprep.subr.bf16.mxu0 0
        %5652 = vmatpush1.bf16.msra.mxu0 0
        %5653 = vmatprep.subr.bf16.mxu0 0
        %5654 = vmatpush1.bf16.msra.mxu0 0
        %5655 = vmatprep.subr.bf16.mxu0 0
        %5656 = vmatpush1.bf16.msra.mxu0 0
        %5657 = vmatprep.subr.bf16.mxu0 0
        %5658 = vmatpush1.bf16.msra.mxu0 0
        %5659 = vmatprep.subr.bf16.mxu0 0
        %5660 = vmatpush1.bf16.msra.mxu0 0
        %5661 = vmatprep.subr.bf16.mxu0 0
        %5662 = vmatpush1.bf16.msra.mxu0 0
        %5663 = vmatprep.subr.bf16.mxu0 0
        %5664 = vmatpush1.bf16.msra.mxu0 0
        %5665 = vmatprep.subr.bf16.mxu0 0
        %5666 = vmatpush1.bf16.msra.mxu0 0
        %5667 = vmatprep.subr.bf16.mxu0 0
        %5668 = vmatpush1.bf16.msra.mxu0 0
        %5669 = vmatprep.subr.bf16.mxu0 0
        %5670 = vmatpush1.bf16.msra.mxu0 0
        %5671 = vmatprep.subr.bf16.mxu0 0
        %5672 = vmatpush1.bf16.msra.mxu0 0
        %5673 = vmatprep.subr.bf16.mxu0 0
        %5674 = vmatpush1.bf16.msra.mxu0 0
        %5675 = vmatprep.subr.bf16.mxu0 0
        %5676 = vmatpush1.bf16.msra.mxu0 0
        %5677 = vmatprep.mubr.bf16.mxu0 0
        %5678 = vmatmul.mubr.bf16.gmra.mrb[0].mxu0 %v5643
        %v5679 = vpop.f32.mrb[0].mxu0
        %v5680 = vadd.f32 0.0, %v5679
        %v5681 = vpop.f32.mrb[0].mxu0
        %v5682 = vpop.f32.mrb[0].mxu0
        %v5683 = vadd.f32 0.0, %v5682
        %v5684 = vpop.f32.mrb[0].mxu0
        %5685 = vdwg.mxu0
        %5686 = vrot.lane.b32.xlu0 %v5150, 112
        %v5687 = vpop.permute.xlu0 %5686
        %v5690 = vsel %vm4090, %v5636, 0
        %5692 = vmatprep.subr.bf16.mxu0 0
        %5693 = vmatpush1.bf16.msra.mxu0 %v5687
        %5694 = vmatprep.subr.bf16.mxu0 0
        %5695 = vmatpush1.bf16.msra.mxu0 0
        %5696 = vmatprep.subr.bf16.mxu0 0
        %5697 = vmatpush1.bf16.msra.mxu0 0
        %5698 = vmatprep.subr.bf16.mxu0 0
        %5699 = vmatpush1.bf16.msra.mxu0 0
        %5700 = vmatprep.subr.bf16.mxu0 0
        %5701 = vmatpush1.bf16.msra.mxu0 0
        %5702 = vmatprep.subr.bf16.mxu0 0
        %5703 = vmatpush1.bf16.msra.mxu0 0
        %5704 = vmatprep.subr.bf16.mxu0 0
        %5705 = vmatpush1.bf16.msra.mxu0 0
        %5706 = vmatprep.subr.bf16.mxu0 0
        %5707 = vmatpush1.bf16.msra.mxu0 0
        %5708 = vmatprep.subr.bf16.mxu0 0
        %5709 = vmatpush1.bf16.msra.mxu0 0
        %5710 = vmatprep.subr.bf16.mxu0 0
        %5711 = vmatpush1.bf16.msra.mxu0 0
        %5712 = vmatprep.subr.bf16.mxu0 0
        %5713 = vmatpush1.bf16.msra.mxu0 0
        %5714 = vmatprep.subr.bf16.mxu0 0
        %5715 = vmatpush1.bf16.msra.mxu0 0
        %5716 = vmatprep.subr.bf16.mxu0 0
        %5717 = vmatpush1.bf16.msra.mxu0 0
        %5718 = vmatprep.subr.bf16.mxu0 0
        %5719 = vmatpush1.bf16.msra.mxu0 0
        %5720 = vmatprep.subr.bf16.mxu0 0
        %5721 = vmatpush1.bf16.msra.mxu0 0
        %5722 = vmatprep.subr.bf16.mxu0 0
        %5723 = vmatpush1.bf16.msra.mxu0 0
        %5724 = vmatprep.mubr.bf16.mxu0 0
        %5725 = vmatmul.mubr.bf16.gmra.mrb[0].mxu0 %v5690
        %v5726 = vpop.f32.mrb[0].mxu0
        %v5727 = vadd.f32 0.0, %v5726
        %v5728 = vpop.f32.mrb[0].mxu0
        %v5729 = vpop.f32.mrb[0].mxu0
        %v5730 = vadd.f32 0.0, %v5729
        %v5731 = vpop.f32.mrb[0].mxu0
        %5732 = vdwg.mxu0
        %5733 = vrot.lane.b32.xlu0 %v5151, 112
        %v5734 = vpop.permute.xlu0 %5733
        %v5737 = vsel %vm4090, %v5637, 0
        %5739 = vmatprep.subr.bf16.mxu0 0
        %5740 = vmatpush1.bf16.msra.mxu0 %v5734
        %5741 = vmatprep.subr.bf16.mxu0 0
        %5742 = vmatpush1.bf16.msra.mxu0 0
        %5743 = vmatprep.subr.bf16.mxu0 0
        %5744 = vmatpush1.bf16.msra.mxu0 0
        %5745 = vmatprep.subr.bf16.mxu0 0
        %5746 = vmatpush1.bf16.msra.mxu0 0
        %5747 = vmatprep.subr.bf16.mxu0 0
        %5748 = vmatpush1.bf16.msra.mxu0 0
        %5749 = vmatprep.subr.bf16.mxu0 0
        %5750 = vmatpush1.bf16.msra.mxu0 0
        %5751 = vmatprep.subr.bf16.mxu0 0
        %5752 = vmatpush1.bf16.msra.mxu0 0
        %5753 = vmatprep.subr.bf16.mxu0 0
        %5754 = vmatpush1.bf16.msra.mxu0 0
        %5755 = vmatprep.subr.bf16.mxu0 0
        %5756 = vmatpush1.bf16.msra.mxu0 0
        %5757 = vmatprep.subr.bf16.mxu0 0
        %5758 = vmatpush1.bf16.msra.mxu0 0
        %5759 = vmatprep.subr.bf16.mxu0 0
        %5760 = vmatpush1.bf16.msra.mxu0 0
        %5761 = vmatprep.subr.bf16.mxu0 0
        %5762 = vmatpush1.bf16.msra.mxu0 0
        %5763 = vmatprep.subr.bf16.mxu0 0
        %5764 = vmatpush1.bf16.msra.mxu0 0
        %5765 = vmatprep.subr.bf16.mxu0 0
        %5766 = vmatpush1.bf16.msra.mxu0 0
        %5767 = vmatprep.subr.bf16.mxu0 0
        %5768 = vmatpush1.bf16.msra.mxu0 0
        %5769 = vmatprep.subr.bf16.mxu0 0
        %5770 = vmatpush1.bf16.msra.mxu0 0
        %5771 = vmatprep.mubr.bf16.mxu0 0
        %5772 = vmatmul.mubr.bf16.gmra.mrb[0].mxu0 %v5737
        %v5773 = vpop.f32.mrb[0].mxu0
        %v5774 = vadd.f32 0.0, %v5773
        %v5775 = vpop.f32.mrb[0].mxu0
        %v5776 = vpop.f32.mrb[0].mxu0
        %v5777 = vadd.f32 0.0, %v5776
        %v5778 = vpop.f32.mrb[0].mxu0
        %5779 = vdwg.mxu0
        %5780 = vrot.lane.b32.xlu0 %v5152, 112
        %v5781 = vpop.permute.xlu0 %5780
        %v5784 = vsel %vm4090, %v5638, 0
        %5786 = vmatprep.subr.bf16.mxu0 0
        %5787 = vmatpush1.bf16.msra.mxu0 %v5781
        %5788 = vmatprep.subr.bf16.mxu0 0
        %5789 = vmatpush1.bf16.msra.mxu0 0
        %5790 = vmatprep.subr.bf16.mxu0 0
        %5791 = vmatpush1.bf16.msra.mxu0 0
        %5792 = vmatprep.subr.bf16.mxu0 0
        %5793 = vmatpush1.bf16.msra.mxu0 0
        %5794 = vmatprep.subr.bf16.mxu0 0
        %5795 = vmatpush1.bf16.msra.mxu0 0
        %5796 = vmatprep.subr.bf16.mxu0 0
        %5797 = vmatpush1.bf16.msra.mxu0 0
        %5798 = vmatprep.subr.bf16.mxu0 0
        %5799 = vmatpush1.bf16.msra.mxu0 0
        %5800 = vmatprep.subr.bf16.mxu0 0
        %5801 = vmatpush1.bf16.msra.mxu0 0
        %5802 = vmatprep.subr.bf16.mxu0 0
        %5803 = vmatpush1.bf16.msra.mxu0 0
        %5804 = vmatprep.subr.bf16.mxu0 0
        %5805 = vmatpush1.bf16.msra.mxu0 0
        %5806 = vmatprep.subr.bf16.mxu0 0
        %5807 = vmatpush1.bf16.msra.mxu0 0
        %5808 = vmatprep.subr.bf16.mxu0 0
        %5809 = vmatpush1.bf16.msra.mxu0 0
        %5810 = vmatprep.subr.bf16.mxu0 0
        %5811 = vmatpush1.bf16.msra.mxu0 0
        %5812 = vmatprep.subr.bf16.mxu0 0
        %5813 = vmatpush1.bf16.msra.mxu0 0
        %5814 = vmatprep.subr.bf16.mxu0 0
        %5815 = vmatpush1.bf16.msra.mxu0 0
        %5816 = vmatprep.subr.bf16.mxu0 0
        %5817 = vmatpush1.bf16.msra.mxu0 0
        %5818 = vmatprep.mubr.bf16.mxu0 0
        %5819 = vmatmul.mubr.bf16.gmra.mrb[0].mxu0 %v5784
        %v5820 = vpop.f32.mrb[0].mxu0
        %v5821 = vadd.f32 0.0, %v5820
        %v5822 = vpop.f32.mrb[0].mxu0
        %v5823 = vpop.f32.mrb[0].mxu0
        %v5824 = vadd.f32 0.0, %v5823
        %v5825 = vpop.f32.mrb[0].mxu0
        %5826 = vdwg.mxu0
        %5829 = vrot.lane.b32.xlu0 %v5727, 2
        %v5830 = vpop.permute.xlu0 %5829
        %5831 = vrot.lane.b32.xlu0 %v5730, 2
        %v5832 = vpop.permute.xlu0 %5831
        %5837 = vrot.lane.b32.xlu0 %v5774, 4
        %v5838 = vpop.permute.xlu0 %5837
        %5839 = vrot.lane.b32.xlu0 %v5777, 4
        %v5840 = vpop.permute.xlu0 %5839
        %5845 = vrot.lane.b32.xlu0 %v5821, 6
        %v5846 = vpop.permute.xlu0 %5845
        %5847 = vrot.lane.b32.xlu0 %v5824, 6
        %v5848 = vpop.permute.xlu0 %5847
        %v5851 = vsel %vm1890, %v5680, %v5830
        %v5852 = vsel %vm1890, %v5683, %v5832
        %v5853 = vsel %vm3713, %v5851, %v5838
        %v5854 = vsel %vm3713, %v5852, %v5840
        %v5855 = vsel %vm3722, %v5853, %v5846
        %v5856 = vsel %vm3722, %v5854, %v5848
        %v5857 = vld [vmem:[#allocation32] sm:$0x1]
        %v5859 = vlaneseq
        %v5860 = vshrl.u32 %v5859, 7
        %v5861 = vsub.s32 0, %v5860
        %v5862 = vrot.slane %v5857, %v5861
        %v5864 = vadd.f32 %v5855, %v5862
        %v5865 = vadd.f32 %v5856, %v5862
        %v5866 = vmax.f32 %v5864, 0.0
        %v5867 = vmax.f32 %v5865, 0.0
        %v5868 = vpack.c.bf16 %v5867, %v5866
        %v5869 = vld [vmem:[%s61] sm:$0xf]
        %v5870 = vld [vmem:[#allocation34] sm:$0x1]
        %v5872 = vlaneseq
        %v5873 = vshrl.u32 %v5872, 7
        %v5874 = vsub.s32 0, %v5873
        %v5875 = vrot.slane %v5870, %v5874
        %v5878 = vsel %vm1277, %v5868, 0
        %v5881 = vsel %vm1290, %v5869, 0
        %5883 = vmatprep.subr.bf16.mxu0 0
        %5884 = vmatpush1.bf16.msra.mxu0 %v5881
        %5885 = vmatprep.subr.bf16.mxu0 0
        %5886 = vmatpush1.bf16.msra.mxu0 0
        %5887 = vmatprep.subr.bf16.mxu0 0
        %5888 = vmatpush1.bf16.msra.mxu0 0
        %5889 = vmatprep.subr.bf16.mxu0 0
        %5890 = vmatpush1.bf16.msra.mxu0 0
        %5891 = vmatprep.subr.bf16.mxu0 0
        %5892 = vmatpush1.bf16.msra.mxu0 0
        %5893 = vmatprep.subr.bf16.mxu0 0
        %5894 = vmatpush1.bf16.msra.mxu0 0
        %5895 = vmatprep.subr.bf16.mxu0 0
        %5896 = vmatpush1.bf16.msra.mxu0 0
        %5897 = vmatprep.subr.bf16.mxu0 0
        %5898 = vmatpush1.bf16.msra.mxu0 0
        %5899 = vmatprep.subr.bf16.mxu0 0
        %5900 = vmatpush1.bf16.msra.mxu0 0
        %5901 = vmatprep.subr.bf16.mxu0 0
        %5902 = vmatpush1.bf16.msra.mxu0 0
        %5903 = vmatprep.subr.bf16.mxu0 0
        %5904 = vmatpush1.bf16.msra.mxu0 0
        %5905 = vmatprep.subr.bf16.mxu0 0
        %5906 = vmatpush1.bf16.msra.mxu0 0
        %5907 = vmatprep.subr.bf16.mxu0 0
        %5908 = vmatpush1.bf16.msra.mxu0 0
        %5909 = vmatprep.subr.bf16.mxu0 0
        %5910 = vmatpush1.bf16.msra.mxu0 0
        %5911 = vmatprep.subr.bf16.mxu0 0
        %5912 = vmatpush1.bf16.msra.mxu0 0
        %5913 = vmatprep.subr.bf16.mxu0 0
        %5914 = vmatpush1.bf16.msra.mxu0 0
        %5915 = vmatprep.mubr.bf16.mxu0 0
        %5916 = vmatmul.mubr.bf16.gmra.mrb[0].mxu0 %v5878
        %v5917 = vpop.f32.mrb[0].mxu0
        %v5918 = vadd.f32 %v5875, %v5917
        %v5919 = vpop.f32.mrb[0].mxu0
        %v5920 = vpop.f32.mrb[0].mxu0
        %v5921 = vadd.f32 %v5875, %v5920
        %v5922 = vpop.f32.mrb[0].mxu0
        %5923 = vdwg.mxu0
        %v5924 = vadd.f32 %v5918, %v4943
        %v5925 = vadd.f32 %v5921, %v4944
        %5926 = vst.msk [vmem:[%s1250] sm:$0xff] %vm3986, %v5924
        %5927 = vst.msk [vmem:[%s1250 + $0x8] sm:$0xff] %vm3986, %v5925
        %s5928 = sand.u32 %s775, 1
        %s5929 = scalar_lea.sflag [#allocation4], %s5928
        %s5930 = sand.u32 %s775, 1
        %s5931 = smul.addr %s5930, 16
        %s5932 = scalar_lea.vmem [#allocation35], %s5931
        // Predicated region
        $region233: #{_lambda_.1} parent=147 // pred_check
          %p5933 = pneg %p785
        $region234: #{_lambda_.1} parent=147 // pred_check_branch
          %5935 = sbr.rel (%p5933) target = $region236
        $region235: #{_lambda_.1} parent=147 // pred_region
          %s5937 = ssub.s32 256, 256
          %5938 = vsyncadd %s5929, %s5937
          %s5939 = smul.addr %s90, 2
          %s5940 = smul.addr %s5939, 128
          %s5941 = scalar_lea.hbm %s65, %s5940
          %s5942 = sshll.u32 %s5932, 4
          %s5943 = int_to_ptr.vmem [resolvable:$true] %s5942
          %5948 = dma.vmem_to_hbm [thread:$0]  %s5943, 256, %s5941, %s5929, 128, 128, 8
        $region236: #{_lambda_.1} parent=147 // pred_fallthru
          _
      $region148: #{_lambda_.1} parent=5 // pred_fallthru
        _
      %p5949 = scmp.le.s32.totalorder 2, %s85
      // Predicated region
      $region237: #{_lambda_.1} parent=5 // pred_check
        %p5950 = pneg %p5949
      $region238: #{_lambda_.1} parent=5 // pred_check_branch
        %5952 = sbr.rel (%p5950) target = $region240
      $region239: #{_lambda_.1} parent=5 // pred_region
        %s5953 = ssub.s32 %s85, 2
        // Predicated region
        $region241: #{_lambda_.1} parent=239 // pred_check
          %p5954 = pneg %p791
        $region242: #{_lambda_.1} parent=239 // pred_check_branch
          %5956 = sbr.rel (%p5954) target = $region244
        $region243: #{_lambda_.1} parent=239 // pred_region
          %s5957 = sand.u32 %s776, 1
          %s5958 = scalar_lea.sflag [#allocation4], %s5957
          %s5959 = sand.u32 %s776, 1
          %s5960 = smul.addr %s5959, 16
          %s5961 = scalar_lea.vmem [#allocation35], %s5960
          %5962 = dma.done %s5958, 256
        $region244: #{_lambda_.1} parent=239 // pred_fallthru
          _
      $region240: #{_lambda_.1} parent=5 // pred_fallthru
        _
    $region6: #{_lambda_.1} parent=1 // loop_footer
      %s89 = sadd.s32 1, %s85
    $region7: #{_lambda_.1} parent=1 // loop_footer_branch
      %84 = sbr.rel target = $region3
    $region8: #{_lambda_.1} parent=1 // loop_exit
      _
    %5963 = vsyncpa [#allocation3], 1
    %s5964 = scalar_lea.sflag [#allocation3], 1
    %5965 = vsyncpa %s5964, 1
    %5966 = vsyncpa [#allocation6], 1
    %5967 = vsyncpa [#allocation9], 1
    %5968 = vsyncpa [#allocation12], 1
    %5969 = vsyncpa [#allocation15], 1
    %5970 = vsyncpa [#allocation18], 1
    %5971 = vsyncpa [#allocation21], 1
    %5972 = vsyncpa [#allocation24], 1
    %5973 = vsyncpa [#allocation27], 1
    %5974 = vsyncpa [#allocation30], 1
    %5975 = vsyncpa [#allocation33], 1
    %5976 = vsyncpa [#allocation4], 1
    %s5977 = scalar_lea.sflag [#allocation4], 1
    %5978 = vsyncpa %s5977, 1

</llo_original>
